<compile_context>
chip_gen: v5e
topology: v5e:2x2
jax: 0.10.0
libtpu: 0.0.40
codegen_flags: <defaults>
</compile_context>

<pallas_src>
import functools

import jax
import jax.numpy as jnp
from jax import lax
from jax.experimental import pallas as pl
from jax.experimental.pallas import tpu as pltpu


def _residual_kernel(x_ref, w1_ref, s1_ref, b1_ref, w2_ref, s2_ref, b2_ref,
                     mask_ref, out_ref, xp_ref, hp_ref, *, H, W, C,
                     compute_dtype):
    """Fused: out = x + relu(ConvBN2(ConvBN1(x))) for one NHWC image."""
    Wp = W + 2
    M2 = H * Wp  # rows of the flat accumulator (each row has 2 junk columns)

    # Zero the flat padded scratches: the zero halo ring implements padding=1.
    xp_ref[...] = jnp.zeros_like(xp_ref)
    hp_ref[...] = jnp.zeros_like(hp_ref)

    # Scatter the unpadded input rows into the flat padded scratch:
    # image row h lands at flat rows [(h+1)*Wp + 1, (h+1)*Wp + 1 + W).
    for h in range(H):
        xp_ref[pl.ds((h + 1) * Wp + 1, W), :] = x_ref[0, h].astype(jnp.float32)

    def conv3x3_bn_relu(src_ref, w_ref, s_ref, b_ref):
        # 3x3 "same" conv as 9 shifted MXU matmuls on the flat padded layout:
        # output flat row p = h*Wp + w reads source flat row p + dh*Wp + dw.
        acc = jnp.zeros((M2, C), jnp.float32)
        for idx in range(9):
            dh, dw = idx // 3, idx % 3
            lhs = src_ref[pl.ds(dh * Wp + dw, M2), :].astype(compute_dtype)
            acc = acc + jnp.dot(lhs, w_ref[idx],
                                preferred_element_type=jnp.float32)
        y = acc * s_ref[...] + b_ref[...]   # folded BatchNorm (per-channel)
        return jnp.maximum(y, 0.0)          # ReLU

    # ---- stage 1 -----------------------------------------------------------
    y1 = conv3x3_bn_relu(xp_ref, w1_ref, s1_ref, b1_ref)

    # Hand h1 to stage 2 with ONE shifted store: flat row p = h*Wp + w maps to
    # padded coords (h+1, w+1) = flat row p + Wp + 1.  Junk columns (w >= W)
    # are zeroed by the 0/1 mask so they land on stage-2's zero halo ring.
    hp_ref[pl.ds(Wp + 1, M2), :] = y1 * mask_ref[...]

    # ---- stage 2 + residual ------------------------------------------------
    y2 = conv3x3_bn_relu(hp_ref, w2_ref, s2_ref, b2_ref)

    # Outer F.relu(relu(.)) is idempotent -> already applied inside the stage.
    y2_valid = y2.reshape(H, Wp, C)[:, :W, :]
    out_ref[0] = (x_ref[0].astype(jnp.float32) + y2_valid).astype(out_ref.dtype)


def residual_forward_nhwc(x_nhwc, params, *, compute_dtype=jnp.bfloat16):
    """Residual.forward on NHWC activations (preferred: no transposes)."""
    N, H, W, C = x_nhwc.shape
    Wp = W + 2
    M2 = H * Wp
    # Extra zero row so the largest tap offset (2*Wp + 2) stays in-bounds.
    pad_rows = (H + 3) * Wp

    w1 = params["w1"].reshape(9, C, C).astype(compute_dtype)
    w2 = params["w2"].reshape(9, C, C).astype(compute_dtype)
    s1 = params["scale1"].reshape(1, C).astype(jnp.float32)
    b1 = params["bias1"].reshape(1, C).astype(jnp.float32)
    s2 = params["scale2"].reshape(1, C).astype(jnp.float32)
    b2 = params["bias2"].reshape(1, C).astype(jnp.float32)

    # 0/1 mask of valid columns in the flat padded layout (computed outside
    # the kernel; avoids in-kernel vector integer remainder).
    mask = ((jnp.arange(M2, dtype=jnp.int32) % Wp) < W)
    mask = mask.astype(jnp.float32).reshape(M2, 1)

    kernel = functools.partial(_residual_kernel, H=H, W=W, C=C,
                               compute_dtype=compute_dtype)

    return pl.pallas_call(
        kernel,
        out_shape=jax.ShapeDtypeStruct((N, H, W, C), x_nhwc.dtype),
        grid_spec=pltpu.PrefetchScalarGridSpec(
            num_scalar_prefetch=0,
            grid=(N,),
            in_specs=[
                pl.BlockSpec((1, H, W, C), lambda n: (n, 0, 0, 0)),  # x
                pl.BlockSpec((9, C, C), lambda n: (0, 0, 0)),        # w1
                pl.BlockSpec((1, C), lambda n: (0, 0)),              # scale1
                pl.BlockSpec((1, C), lambda n: (0, 0)),              # bias1
                pl.BlockSpec((9, C, C), lambda n: (0, 0, 0)),        # w2
                pl.BlockSpec((1, C), lambda n: (0, 0)),              # scale2
                pl.BlockSpec((1, C), lambda n: (0, 0)),              # bias2
                pl.BlockSpec((M2, 1), lambda n: (0, 0)),             # mask
            ],
            out_specs=pl.BlockSpec((1, H, W, C), lambda n: (n, 0, 0, 0)),
            scratch_shapes=[
                pltpu.VMEM((pad_rows, C), jnp.float32),  # padded x  (stage 1)
                pltpu.VMEM((pad_rows, C), jnp.float32),  # padded h1 (stage 2)
            ],
        ),
        compiler_params=pltpu.CompilerParams(
            dimension_semantics=("parallel",),
            vmem_limit_bytes=64 * 1024 * 1024,
        ),
    )(x_nhwc, w1, s1, b1, w2, s2, b2, mask)


def residual_forward(x_nchw, params, *, compute_dtype=jnp.bfloat16):
    """PyTorch-convention entry point (NCHW in / NCHW out).

    The transposes live only here; in an NHWC pipeline call
    residual_forward_nhwc directly so they are hoisted to the model boundary.
    """
    x = jnp.transpose(x_nchw, (0, 2, 3, 1))          # NCHW -> NHWC
    out = residual_forward_nhwc(x, params, compute_dtype=compute_dtype)
    return jnp.transpose(out, (0, 3, 1, 2))          # NHWC -> NCHW


def _reference_forward(x_nchw, params, *, compute_dtype=jnp.bfloat16):
    """Pure-JAX reference with the same MXU input dtype (f32 accumulation)."""
    x = jnp.transpose(x_nchw, (0, 2, 3, 1)).astype(jnp.float32)
    dn = lax.conv_dimension_numbers(x.shape, params["w1"].shape,
                                    ("NHWC", "HWIO", "NHWC"))

    def stage(inp, w, s, b):
        y = lax.conv_general_dilated(
            inp.astype(compute_dtype), w.astype(compute_dtype), (1, 1), "SAME",
            dimension_numbers=dn, preferred_element_type=jnp.float32)
        return jax.nn.relu(y * s + b)

    h1 = stage(x, params["w1"], params["scale1"], params["bias1"])
    h2 = stage(h1, params["w2"], params["scale2"], params["bias2"])
    out = x + jax.nn.relu(h2)
    return jnp.transpose(out, (0, 3, 1, 2))


def init_params(key, c):
    k1, k2 = jax.random.split(key)
    fan_in = c * 3 * 3
    std = (2.0 / fan_in) ** 0.5
    eps = 1e-5
    gamma = jnp.ones((c,), jnp.float32)        # bn_weight_init=1.0
    beta = jnp.zeros((c,), jnp.float32)
    run_mean = jnp.zeros((c,), jnp.float32)
    run_var = jnp.ones((c,), jnp.float32)
    scale = gamma / jnp.sqrt(run_var + eps)
    bias = beta - run_mean * scale
    return {
        "w1": jax.random.normal(k1, (3, 3, c, c), jnp.float32) * std,
        "w2": jax.random.normal(k2, (3, 3, c, c), jnp.float32) * std,
        "scale1": scale, "bias1": bias,
        "scale2": scale, "bias2": bias,
    }


if __name__ == "__main__":
    key = jax.random.PRNGKey(0)
    kx, kp = jax.random.split(key)

    N, C, H, W = 2, 4, 16, 16
    x = jax.random.normal(kx, (N, C, H, W), jnp.float32)
    params = init_params(kp, C)

    # 1) Exact-semantics path (f32 MXU feeds) — tight check vs lax.conv.
    out_f32 = jax.block_until_ready(
        residual_forward(x, params, compute_dtype=jnp.float32))
    ref_f32 = jax.block_until_ready(
        _reference_forward(x, params, compute_dtype=jnp.float32))
    assert out_f32.shape == (N, C, H, W)
    assert jnp.allclose(out_f32, ref_f32, atol=1e-3, rtol=1e-3)

    # 2) Default fast path (bf16 MXU feeds, f32 accumulation).
    out_bf16 = jax.block_until_ready(residual_forward(x, params))
    ref_bf16 = jax.block_until_ready(
        _reference_forward(x, params, compute_dtype=jnp.bfloat16))
    assert out_bf16.shape == (N, C, H, W)
    assert jnp.allclose(out_bf16, ref_bf16, atol=2e-2, rtol=2e-2)

    print("KERNEL_OK")
</pallas_src>

<mosaic_0001>
module attributes {stable_mosaic.version = 11 : i64} {
  func.func @_residual_kernel(%arg0: i32, %arg1: memref<1x16x16x4xf32, #tpu.memory_space<vmem>>, %arg2: memref<9x4x4xf32, #tpu.memory_space<vmem>>, %arg3: memref<1x4xf32, #tpu.memory_space<vmem>>, %arg4: memref<1x4xf32, #tpu.memory_space<vmem>>, %arg5: memref<9x4x4xf32, #tpu.memory_space<vmem>>, %arg6: memref<1x4xf32, #tpu.memory_space<vmem>>, %arg7: memref<1x4xf32, #tpu.memory_space<vmem>>, %arg8: memref<288x1xf32, #tpu.memory_space<vmem>>, %arg9: memref<1x16x16x4xf32, #tpu.memory_space<vmem>>, %arg10: memref<342x4xf32, #tpu.memory_space<vmem>>, %arg11: memref<342x4xf32, #tpu.memory_space<vmem>>) attributes {dimension_semantics = [#tpu.dimension_semantics<parallel>], iteration_bounds = array<i64: 2>, scalar_prefetch = 0 : i64, scratch_operands = 2 : i64, tpu.core_type = #tpu.core_type<tc>, window_params = [{transform_indices = @transform_0, window_bounds = array<i64: 1, 16, 16, 4>}, {pipeline_mode = #tpu.pipeline_mode<synchronous>, transform_indices = @transform_1, window_bounds = array<i64: 9, 4, 4>}, {pipeline_mode = #tpu.pipeline_mode<synchronous>, transform_indices = @transform_2, window_bounds = array<i64: 1, 4>}, {pipeline_mode = #tpu.pipeline_mode<synchronous>, transform_indices = @transform_3, window_bounds = array<i64: 1, 4>}, {pipeline_mode = #tpu.pipeline_mode<synchronous>, transform_indices = @transform_4, window_bounds = array<i64: 9, 4, 4>}, {pipeline_mode = #tpu.pipeline_mode<synchronous>, transform_indices = @transform_5, window_bounds = array<i64: 1, 4>}, {pipeline_mode = #tpu.pipeline_mode<synchronous>, transform_indices = @transform_6, window_bounds = array<i64: 1, 4>}, {pipeline_mode = #tpu.pipeline_mode<synchronous>, transform_indices = @transform_7, window_bounds = array<i64: 288, 1>}, {transform_indices = @transform_8, window_bounds = array<i64: 1, 16, 16, 4>}]} {
    %cst = arith.constant 0.000000e+00 : f32
    %0 = vector.broadcast %cst : f32 to vector<342x4xf32>
    %c0 = arith.constant 0 : index
    %c0_0 = arith.constant 0 : index
    %1 = vector.load %arg10[%c0, %c0_0] : memref<342x4xf32, #tpu.memory_space<vmem>>, vector<342x4xf32>
    tpu.vector_store %arg10[%c0, %c0_0], %0 {strides = array<i32>} : memref<342x4xf32, #tpu.memory_space<vmem>>, vector<342x4xf32>,
    %cst_1 = arith.constant 0.000000e+00 : f32
    %2 = vector.broadcast %cst_1 : f32 to vector<342x4xf32>
    %c0_2 = arith.constant 0 : index
    %c0_3 = arith.constant 0 : index
    %3 = vector.load %arg11[%c0_2, %c0_3] : memref<342x4xf32, #tpu.memory_space<vmem>>, vector<342x4xf32>
    tpu.vector_store %arg11[%c0_2, %c0_3], %2 {strides = array<i32>} : memref<342x4xf32, #tpu.memory_space<vmem>>, vector<342x4xf32>,
    %c0_4 = arith.constant 0 : index
    %c0_5 = arith.constant 0 : index
    %c0_6 = arith.constant 0 : index
    %c0_7 = arith.constant 0 : index
    %4 = vector.load %arg1[%c0_4, %c0_5, %c0_6, %c0_7] : memref<1x16x16x4xf32, #tpu.memory_space<vmem>>, vector<1x1x16x4xf32>
    %5 = vector.shape_cast %4 : vector<1x1x16x4xf32> to vector<16x4xf32>
    %c19 = arith.constant 19 : index
    %c0_8 = arith.constant 0 : index
    %6 = vector.load %arg10[%c19, %c0_8] : memref<342x4xf32, #tpu.memory_space<vmem>>, vector<16x4xf32>
    tpu.vector_store %arg10[%c19, %c0_8], %5 {strides = array<i32>} : memref<342x4xf32, #tpu.memory_space<vmem>>, vector<16x4xf32>,
    %c0_9 = arith.constant 0 : index
    %c1 = arith.constant 1 : index
    %c0_10 = arith.constant 0 : index
    %c0_11 = arith.constant 0 : index
    %7 = vector.load %arg1[%c0_9, %c1, %c0_10, %c0_11] : memref<1x16x16x4xf32, #tpu.memory_space<vmem>>, vector<1x1x16x4xf32>
    %8 = vector.shape_cast %7 : vector<1x1x16x4xf32> to vector<16x4xf32>
    %c37 = arith.constant 37 : index
    %c0_12 = arith.constant 0 : index
    %9 = vector.load %arg10[%c37, %c0_12] : memref<342x4xf32, #tpu.memory_space<vmem>>, vector<16x4xf32>
    tpu.vector_store %arg10[%c37, %c0_12], %8 {strides = array<i32>} : memref<342x4xf32, #tpu.memory_space<vmem>>, vector<16x4xf32>,
    %c0_13 = arith.constant 0 : index
    %c2 = arith.constant 2 : index
    %c0_14 = arith.constant 0 : index
    %c0_15 = arith.constant 0 : index
    %10 = vector.load %arg1[%c0_13, %c2, %c0_14, %c0_15] : memref<1x16x16x4xf32, #tpu.memory_space<vmem>>, vector<1x1x16x4xf32>
    %11 = vector.shape_cast %10 : vector<1x1x16x4xf32> to vector<16x4xf32>
    %c55 = arith.constant 55 : index
    %c0_16 = arith.constant 0 : index
    %12 = vector.load %arg10[%c55, %c0_16] : memref<342x4xf32, #tpu.memory_space<vmem>>, vector<16x4xf32>
    tpu.vector_store %arg10[%c55, %c0_16], %11 {strides = array<i32>} : memref<342x4xf32, #tpu.memory_space<vmem>>, vector<16x4xf32>,
    %c0_17 = arith.constant 0 : index
    %c3 = arith.constant 3 : index
    %c0_18 = arith.constant 0 : index
    %c0_19 = arith.constant 0 : index
    %13 = vector.load %arg1[%c0_17, %c3, %c0_18, %c0_19] : memref<1x16x16x4xf32, #tpu.memory_space<vmem>>, vector<1x1x16x4xf32>
    %14 = vector.shape_cast %13 : vector<1x1x16x4xf32> to vector<16x4xf32>
    %c73 = arith.constant 73 : index
    %c0_20 = arith.constant 0 : index
    %15 = vector.load %arg10[%c73, %c0_20] : memref<342x4xf32, #tpu.memory_space<vmem>>, vector<16x4xf32>
    tpu.vector_store %arg10[%c73, %c0_20], %14 {strides = array<i32>} : memref<342x4xf32, #tpu.memory_space<vmem>>, vector<16x4xf32>,
    %c0_21 = arith.constant 0 : index
    %c4 = arith.constant 4 : index
    %c0_22 = arith.constant 0 : index
    %c0_23 = arith.constant 0 : index
    %16 = vector.load %arg1[%c0_21, %c4, %c0_22, %c0_23] : memref<1x16x16x4xf32, #tpu.memory_space<vmem>>, vector<1x1x16x4xf32>
    %17 = vector.shape_cast %16 : vector<1x1x16x4xf32> to vector<16x4xf32>
    %c91 = arith.constant 91 : index
    %c0_24 = arith.constant 0 : index
    %18 = vector.load %arg10[%c91, %c0_24] : memref<342x4xf32, #tpu.memory_space<vmem>>, vector<16x4xf32>
    tpu.vector_store %arg10[%c91, %c0_24], %17 {strides = array<i32>} : memref<342x4xf32, #tpu.memory_space<vmem>>, vector<16x4xf32>,
    %c0_25 = arith.constant 0 : index
    %c5 = arith.constant 5 : index
    %c0_26 = arith.constant 0 : index
    %c0_27 = arith.constant 0 : index
    %19 = vector.load %arg1[%c0_25, %c5, %c0_26, %c0_27] : memref<1x16x16x4xf32, #tpu.memory_space<vmem>>, vector<1x1x16x4xf32>
    %20 = vector.shape_cast %19 : vector<1x1x16x4xf32> to vector<16x4xf32>
    %c109 = arith.constant 109 : index
    %c0_28 = arith.constant 0 : index
    %21 = vector.load %arg10[%c109, %c0_28] : memref<342x4xf32, #tpu.memory_space<vmem>>, vector<16x4xf32>
    tpu.vector_store %arg10[%c109, %c0_28], %20 {strides = array<i32>} : memref<342x4xf32, #tpu.memory_space<vmem>>, vector<16x4xf32>,
    %c0_29 = arith.constant 0 : index
    %c6 = arith.constant 6 : index
    %c0_30 = arith.constant 0 : index
    %c0_31 = arith.constant 0 : index
    %22 = vector.load %arg1[%c0_29, %c6, %c0_30, %c0_31] : memref<1x16x16x4xf32, #tpu.memory_space<vmem>>, vector<1x1x16x4xf32>
    %23 = vector.shape_cast %22 : vector<1x1x16x4xf32> to vector<16x4xf32>
    %c127 = arith.constant 127 : index
    %c0_32 = arith.constant 0 : index
    %24 = vector.load %arg10[%c127, %c0_32] : memref<342x4xf32, #tpu.memory_space<vmem>>, vector<16x4xf32>
    tpu.vector_store %arg10[%c127, %c0_32], %23 {strides = array<i32>} : memref<342x4xf32, #tpu.memory_space<vmem>>, vector<16x4xf32>,
    %c0_33 = arith.constant 0 : index
    %c7 = arith.constant 7 : index
    %c0_34 = arith.constant 0 : index
    %c0_35 = arith.constant 0 : index
    %25 = vector.load %arg1[%c0_33, %c7, %c0_34, %c0_35] : memref<1x16x16x4xf32, #tpu.memory_space<vmem>>, vector<1x1x16x4xf32>
    %26 = vector.shape_cast %25 : vector<1x1x16x4xf32> to vector<16x4xf32>
    %c145 = arith.constant 145 : index
    %c0_36 = arith.constant 0 : index
    %27 = vector.load %arg10[%c145, %c0_36] : memref<342x4xf32, #tpu.memory_space<vmem>>, vector<16x4xf32>
    tpu.vector_store %arg10[%c145, %c0_36], %26 {strides = array<i32>} : memref<342x4xf32, #tpu.memory_space<vmem>>, vector<16x4xf32>,
    %c0_37 = arith.constant 0 : index
    %c8 = arith.constant 8 : index
    %c0_38 = arith.constant 0 : index
    %c0_39 = arith.constant 0 : index
    %28 = vector.load %arg1[%c0_37, %c8, %c0_38, %c0_39] : memref<1x16x16x4xf32, #tpu.memory_space<vmem>>, vector<1x1x16x4xf32>
    %29 = vector.shape_cast %28 : vector<1x1x16x4xf32> to vector<16x4xf32>
    %c163 = arith.constant 163 : index
    %c0_40 = arith.constant 0 : index
    %30 = vector.load %arg10[%c163, %c0_40] : memref<342x4xf32, #tpu.memory_space<vmem>>, vector<16x4xf32>
    tpu.vector_store %arg10[%c163, %c0_40], %29 {strides = array<i32>} : memref<342x4xf32, #tpu.memory_space<vmem>>, vector<16x4xf32>,
    %c0_41 = arith.constant 0 : index
    %c9 = arith.constant 9 : index
    %c0_42 = arith.constant 0 : index
    %c0_43 = arith.constant 0 : index
    %31 = vector.load %arg1[%c0_41, %c9, %c0_42, %c0_43] : memref<1x16x16x4xf32, #tpu.memory_space<vmem>>, vector<1x1x16x4xf32>
    %32 = vector.shape_cast %31 : vector<1x1x16x4xf32> to vector<16x4xf32>
    %c181 = arith.constant 181 : index
    %c0_44 = arith.constant 0 : index
    %33 = vector.load %arg10[%c181, %c0_44] : memref<342x4xf32, #tpu.memory_space<vmem>>, vector<16x4xf32>
    tpu.vector_store %arg10[%c181, %c0_44], %32 {strides = array<i32>} : memref<342x4xf32, #tpu.memory_space<vmem>>, vector<16x4xf32>,
    %c0_45 = arith.constant 0 : index
    %c10 = arith.constant 10 : index
    %c0_46 = arith.constant 0 : index
    %c0_47 = arith.constant 0 : index
    %34 = vector.load %arg1[%c0_45, %c10, %c0_46, %c0_47] : memref<1x16x16x4xf32, #tpu.memory_space<vmem>>, vector<1x1x16x4xf32>
    %35 = vector.shape_cast %34 : vector<1x1x16x4xf32> to vector<16x4xf32>
    %c199 = arith.constant 199 : index
    %c0_48 = arith.constant 0 : index
    %36 = vector.load %arg10[%c199, %c0_48] : memref<342x4xf32, #tpu.memory_space<vmem>>, vector<16x4xf32>
    tpu.vector_store %arg10[%c199, %c0_48], %35 {strides = array<i32>} : memref<342x4xf32, #tpu.memory_space<vmem>>, vector<16x4xf32>,
    %c0_49 = arith.constant 0 : index
    %c11 = arith.constant 11 : index
    %c0_50 = arith.constant 0 : index
    %c0_51 = arith.constant 0 : index
    %37 = vector.load %arg1[%c0_49, %c11, %c0_50, %c0_51] : memref<1x16x16x4xf32, #tpu.memory_space<vmem>>, vector<1x1x16x4xf32>
    %38 = vector.shape_cast %37 : vector<1x1x16x4xf32> to vector<16x4xf32>
    %c217 = arith.constant 217 : index
    %c0_52 = arith.constant 0 : index
    %39 = vector.load %arg10[%c217, %c0_52] : memref<342x4xf32, #tpu.memory_space<vmem>>, vector<16x4xf32>
    tpu.vector_store %arg10[%c217, %c0_52], %38 {strides = array<i32>} : memref<342x4xf32, #tpu.memory_space<vmem>>, vector<16x4xf32>,
    %c0_53 = arith.constant 0 : index
    %c12 = arith.constant 12 : index
    %c0_54 = arith.constant 0 : index
    %c0_55 = arith.constant 0 : index
    %40 = vector.load %arg1[%c0_53, %c12, %c0_54, %c0_55] : memref<1x16x16x4xf32, #tpu.memory_space<vmem>>, vector<1x1x16x4xf32>
    %41 = vector.shape_cast %40 : vector<1x1x16x4xf32> to vector<16x4xf32>
    %c235 = arith.constant 235 : index
    %c0_56 = arith.constant 0 : index
    %42 = vector.load %arg10[%c235, %c0_56] : memref<342x4xf32, #tpu.memory_space<vmem>>, vector<16x4xf32>
    tpu.vector_store %arg10[%c235, %c0_56], %41 {strides = array<i32>} : memref<342x4xf32, #tpu.memory_space<vmem>>, vector<16x4xf32>,
    %c0_57 = arith.constant 0 : index
    %c13 = arith.constant 13 : index
    %c0_58 = arith.constant 0 : index
    %c0_59 = arith.constant 0 : index
    %43 = vector.load %arg1[%c0_57, %c13, %c0_58, %c0_59] : memref<1x16x16x4xf32, #tpu.memory_space<vmem>>, vector<1x1x16x4xf32>
    %44 = vector.shape_cast %43 : vector<1x1x16x4xf32> to vector<16x4xf32>
    %c253 = arith.constant 253 : index
    %c0_60 = arith.constant 0 : index
    %45 = vector.load %arg10[%c253, %c0_60] : memref<342x4xf32, #tpu.memory_space<vmem>>, vector<16x4xf32>
    tpu.vector_store %arg10[%c253, %c0_60], %44 {strides = array<i32>} : memref<342x4xf32, #tpu.memory_space<vmem>>, vector<16x4xf32>,
    %c0_61 = arith.constant 0 : index
    %c14 = arith.constant 14 : index
    %c0_62 = arith.constant 0 : index
    %c0_63 = arith.constant 0 : index
    %46 = vector.load %arg1[%c0_61, %c14, %c0_62, %c0_63] : memref<1x16x16x4xf32, #tpu.memory_space<vmem>>, vector<1x1x16x4xf32>
    %47 = vector.shape_cast %46 : vector<1x1x16x4xf32> to vector<16x4xf32>
    %c271 = arith.constant 271 : index
    %c0_64 = arith.constant 0 : index
    %48 = vector.load %arg10[%c271, %c0_64] : memref<342x4xf32, #tpu.memory_space<vmem>>, vector<16x4xf32>
    tpu.vector_store %arg10[%c271, %c0_64], %47 {strides = array<i32>} : memref<342x4xf32, #tpu.memory_space<vmem>>, vector<16x4xf32>,
    %c0_65 = arith.constant 0 : index
    %c15 = arith.constant 15 : index
    %c0_66 = arith.constant 0 : index
    %c0_67 = arith.constant 0 : index
    %49 = vector.load %arg1[%c0_65, %c15, %c0_66, %c0_67] : memref<1x16x16x4xf32, #tpu.memory_space<vmem>>, vector<1x1x16x4xf32>
    %50 = vector.shape_cast %49 : vector<1x1x16x4xf32> to vector<16x4xf32>
    %c289 = arith.constant 289 : index
    %c0_68 = arith.constant 0 : index
    %51 = vector.load %arg10[%c289, %c0_68] : memref<342x4xf32, #tpu.memory_space<vmem>>, vector<16x4xf32>
    tpu.vector_store %arg10[%c289, %c0_68], %50 {strides = array<i32>} : memref<342x4xf32, #tpu.memory_space<vmem>>, vector<16x4xf32>,
    %cst_69 = arith.constant 0.000000e+00 : f32
    %52 = vector.broadcast %cst_69 : f32 to vector<288x4xf32>
    %c0_70 = arith.constant 0 : index
    %c0_71 = arith.constant 0 : index
    %53 = vector.load %arg10[%c0_70, %c0_71] : memref<342x4xf32, #tpu.memory_space<vmem>>, vector<288x4xf32>
    %c0_72 = arith.constant 0 : index
    %c0_73 = arith.constant 0 : index
    %c0_74 = arith.constant 0 : index
    %54 = vector.load %arg2[%c0_72, %c0_73, %c0_74] : memref<9x4x4xf32, #tpu.memory_space<vmem>>, vector<1x4x4xf32>
    %55 = vector.shape_cast %54 : vector<1x4x4xf32> to vector<4x4xf32>
    %cst_75 = arith.constant dense<0.000000e+00> : vector<288x4xf32>
    %56 = tpu.matmul %53, %55, %cst_75 {dimension_numbers = #tpu.dot_dimension_numbers<[1], [0], [0], [1], [0, 0, 1, 1], [], []>} : vector<288x4xf32>, vector<4x4xf32>, vector<288x4xf32> -> vector<288x4xf32>
    %57 = arith.addf %52, %56 : vector<288x4xf32>
    %c1_76 = arith.constant 1 : index
    %c0_77 = arith.constant 0 : index
    %58 = vector.load %arg10[%c1_76, %c0_77] : memref<342x4xf32, #tpu.memory_space<vmem>>, vector<288x4xf32>
    %c1_78 = arith.constant 1 : index
    %c0_79 = arith.constant 0 : index
    %c0_80 = arith.constant 0 : index
    %59 = vector.load %arg2[%c1_78, %c0_79, %c0_80] : memref<9x4x4xf32, #tpu.memory_space<vmem>>, vector<1x4x4xf32>
    %60 = vector.shape_cast %59 : vector<1x4x4xf32> to vector<4x4xf32>
    %cst_81 = arith.constant dense<0.000000e+00> : vector<288x4xf32>
    %61 = tpu.matmul %58, %60, %cst_81 {dimension_numbers = #tpu.dot_dimension_numbers<[1], [0], [0], [1], [0, 0, 1, 1], [], []>} : vector<288x4xf32>, vector<4x4xf32>, vector<288x4xf32> -> vector<288x4xf32>
    %62 = arith.addf %57, %61 : vector<288x4xf32>
    %c2_82 = arith.constant 2 : index
    %c0_83 = arith.constant 0 : index
    %63 = vector.load %arg10[%c2_82, %c0_83] : memref<342x4xf32, #tpu.memory_space<vmem>>, vector<288x4xf32>
    %c2_84 = arith.constant 2 : index
    %c0_85 = arith.constant 0 : index
    %c0_86 = arith.constant 0 : index
    %64 = vector.load %arg2[%c2_84, %c0_85, %c0_86] : memref<9x4x4xf32, #tpu.memory_space<vmem>>, vector<1x4x4xf32>
    %65 = vector.shape_cast %64 : vector<1x4x4xf32> to vector<4x4xf32>
    %cst_87 = arith.constant dense<0.000000e+00> : vector<288x4xf32>
    %66 = tpu.matmul %63, %65, %cst_87 {dimension_numbers = #tpu.dot_dimension_numbers<[1], [0], [0], [1], [0, 0, 1, 1], [], []>} : vector<288x4xf32>, vector<4x4xf32>, vector<288x4xf32> -> vector<288x4xf32>
    %67 = arith.addf %62, %66 : vector<288x4xf32>
    %c18 = arith.constant 18 : index
    %c0_88 = arith.constant 0 : index
    %68 = vector.load %arg10[%c18, %c0_88] : memref<342x4xf32, #tpu.memory_space<vmem>>, vector<288x4xf32>
    %c3_89 = arith.constant 3 : index
    %c0_90 = arith.constant 0 : index
    %c0_91 = arith.constant 0 : index
    %69 = vector.load %arg2[%c3_89, %c0_90, %c0_91] : memref<9x4x4xf32, #tpu.memory_space<vmem>>, vector<1x4x4xf32>
    %70 = vector.shape_cast %69 : vector<1x4x4xf32> to vector<4x4xf32>
    %cst_92 = arith.constant dense<0.000000e+00> : vector<288x4xf32>
    %71 = tpu.matmul %68, %70, %cst_92 {dimension_numbers = #tpu.dot_dimension_numbers<[1], [0], [0], [1], [0, 0, 1, 1], [], []>} : vector<288x4xf32>, vector<4x4xf32>, vector<288x4xf32> -> vector<288x4xf32>
    %72 = arith.addf %67, %71 : vector<288x4xf32>
    %c19_93 = arith.constant 19 : index
    %c0_94 = arith.constant 0 : index
    %73 = vector.load %arg10[%c19_93, %c0_94] : memref<342x4xf32, #tpu.memory_space<vmem>>, vector<288x4xf32>
    %c4_95 = arith.constant 4 : index
    %c0_96 = arith.constant 0 : index
    %c0_97 = arith.constant 0 : index
    %74 = vector.load %arg2[%c4_95, %c0_96, %c0_97] : memref<9x4x4xf32, #tpu.memory_space<vmem>>, vector<1x4x4xf32>
    %75 = vector.shape_cast %74 : vector<1x4x4xf32> to vector<4x4xf32>
    %cst_98 = arith.constant dense<0.000000e+00> : vector<288x4xf32>
    %76 = tpu.matmul %73, %75, %cst_98 {dimension_numbers = #tpu.dot_dimension_numbers<[1], [0], [0], [1], [0, 0, 1, 1], [], []>} : vector<288x4xf32>, vector<4x4xf32>, vector<288x4xf32> -> vector<288x4xf32>
    %77 = arith.addf %72, %76 : vector<288x4xf32>
    %c20 = arith.constant 20 : index
    %c0_99 = arith.constant 0 : index
    %78 = vector.load %arg10[%c20, %c0_99] : memref<342x4xf32, #tpu.memory_space<vmem>>, vector<288x4xf32>
    %c5_100 = arith.constant 5 : index
    %c0_101 = arith.constant 0 : index
    %c0_102 = arith.constant 0 : index
    %79 = vector.load %arg2[%c5_100, %c0_101, %c0_102] : memref<9x4x4xf32, #tpu.memory_space<vmem>>, vector<1x4x4xf32>
    %80 = vector.shape_cast %79 : vector<1x4x4xf32> to vector<4x4xf32>
    %cst_103 = arith.constant dense<0.000000e+00> : vector<288x4xf32>
    %81 = tpu.matmul %78, %80, %cst_103 {dimension_numbers = #tpu.dot_dimension_numbers<[1], [0], [0], [1], [0, 0, 1, 1], [], []>} : vector<288x4xf32>, vector<4x4xf32>, vector<288x4xf32> -> vector<288x4xf32>
    %82 = arith.addf %77, %81 : vector<288x4xf32>
    %c36 = arith.constant 36 : index
    %c0_104 = arith.constant 0 : index
    %83 = vector.load %arg10[%c36, %c0_104] : memref<342x4xf32, #tpu.memory_space<vmem>>, vector<288x4xf32>
    %c6_105 = arith.constant 6 : index
    %c0_106 = arith.constant 0 : index
    %c0_107 = arith.constant 0 : index
    %84 = vector.load %arg2[%c6_105, %c0_106, %c0_107] : memref<9x4x4xf32, #tpu.memory_space<vmem>>, vector<1x4x4xf32>
    %85 = vector.shape_cast %84 : vector<1x4x4xf32> to vector<4x4xf32>
    %cst_108 = arith.constant dense<0.000000e+00> : vector<288x4xf32>
    %86 = tpu.matmul %83, %85, %cst_108 {dimension_numbers = #tpu.dot_dimension_numbers<[1], [0], [0], [1], [0, 0, 1, 1], [], []>} : vector<288x4xf32>, vector<4x4xf32>, vector<288x4xf32> -> vector<288x4xf32>
    %87 = arith.addf %82, %86 : vector<288x4xf32>
    %c37_109 = arith.constant 37 : index
    %c0_110 = arith.constant 0 : index
    %88 = vector.load %arg10[%c37_109, %c0_110] : memref<342x4xf32, #tpu.memory_space<vmem>>, vector<288x4xf32>
    %c7_111 = arith.constant 7 : index
    %c0_112 = arith.constant 0 : index
    %c0_113 = arith.constant 0 : index
    %89 = vector.load %arg2[%c7_111, %c0_112, %c0_113] : memref<9x4x4xf32, #tpu.memory_space<vmem>>, vector<1x4x4xf32>
    %90 = vector.shape_cast %89 : vector<1x4x4xf32> to vector<4x4xf32>
    %cst_114 = arith.constant dense<0.000000e+00> : vector<288x4xf32>
    %91 = tpu.matmul %88, %90, %cst_114 {dimension_numbers = #tpu.dot_dimension_numbers<[1], [0], [0], [1], [0, 0, 1, 1], [], []>} : vector<288x4xf32>, vector<4x4xf32>, vector<288x4xf32> -> vector<288x4xf32>
    %92 = arith.addf %87, %91 : vector<288x4xf32>
    %c38 = arith.constant 38 : index
    %c0_115 = arith.constant 0 : index
    %93 = vector.load %arg10[%c38, %c0_115] : memref<342x4xf32, #tpu.memory_space<vmem>>, vector<288x4xf32>
    %c8_116 = arith.constant 8 : index
    %c0_117 = arith.constant 0 : index
    %c0_118 = arith.constant 0 : index
    %94 = vector.load %arg2[%c8_116, %c0_117, %c0_118] : memref<9x4x4xf32, #tpu.memory_space<vmem>>, vector<1x4x4xf32>
    %95 = vector.shape_cast %94 : vector<1x4x4xf32> to vector<4x4xf32>
    %cst_119 = arith.constant dense<0.000000e+00> : vector<288x4xf32>
    %96 = tpu.matmul %93, %95, %cst_119 {dimension_numbers = #tpu.dot_dimension_numbers<[1], [0], [0], [1], [0, 0, 1, 1], [], []>} : vector<288x4xf32>, vector<4x4xf32>, vector<288x4xf32> -> vector<288x4xf32>
    %97 = arith.addf %92, %96 : vector<288x4xf32>
    %c0_120 = arith.constant 0 : index
    %c0_121 = arith.constant 0 : index
    %98 = vector.load %arg3[%c0_120, %c0_121] : memref<1x4xf32, #tpu.memory_space<vmem>>, vector<1x4xf32>
    %99 = vector.broadcast %98 : vector<1x4xf32> to vector<288x4xf32>
    %100 = arith.mulf %97, %99 : vector<288x4xf32>
    %c0_122 = arith.constant 0 : index
    %c0_123 = arith.constant 0 : index
    %101 = vector.load %arg4[%c0_122, %c0_123] : memref<1x4xf32, #tpu.memory_space<vmem>>, vector<1x4xf32>
    %102 = vector.broadcast %101 : vector<1x4xf32> to vector<288x4xf32>
    %103 = arith.addf %100, %102 : vector<288x4xf32>
    %cst_124 = arith.constant 0.000000e+00 : f32
    %104 = vector.broadcast %cst_124 : f32 to vector<288x4xf32>
    %105 = arith.maximumf %103, %104 : vector<288x4xf32>
    %c0_125 = arith.constant 0 : index
    %c0_126 = arith.constant 0 : index
    %106 = vector.load %arg8[%c0_125, %c0_126] : memref<288x1xf32, #tpu.memory_space<vmem>>, vector<288x1xf32>
    %107 = vector.broadcast %106 : vector<288x1xf32> to vector<288x4xf32>
    %108 = arith.mulf %105, %107 : vector<288x4xf32>
    %c19_127 = arith.constant 19 : index
    %c0_128 = arith.constant 0 : index
    %109 = vector.load %arg11[%c19_127, %c0_128] : memref<342x4xf32, #tpu.memory_space<vmem>>, vector<288x4xf32>
    tpu.vector_store %arg11[%c19_127, %c0_128], %108 {strides = array<i32>} : memref<342x4xf32, #tpu.memory_space<vmem>>, vector<288x4xf32>,
    %cst_129 = arith.constant 0.000000e+00 : f32
    %110 = vector.broadcast %cst_129 : f32 to vector<288x4xf32>
    %c0_130 = arith.constant 0 : index
    %c0_131 = arith.constant 0 : index
    %111 = vector.load %arg11[%c0_130, %c0_131] : memref<342x4xf32, #tpu.memory_space<vmem>>, vector<288x4xf32>
    %c0_132 = arith.constant 0 : index
    %c0_133 = arith.constant 0 : index
    %c0_134 = arith.constant 0 : index
    %112 = vector.load %arg5[%c0_132, %c0_133, %c0_134] : memref<9x4x4xf32, #tpu.memory_space<vmem>>, vector<1x4x4xf32>
    %113 = vector.shape_cast %112 : vector<1x4x4xf32> to vector<4x4xf32>
    %cst_135 = arith.constant dense<0.000000e+00> : vector<288x4xf32>
    %114 = tpu.matmul %111, %113, %cst_135 {dimension_numbers = #tpu.dot_dimension_numbers<[1], [0], [0], [1], [0, 0, 1, 1], [], []>} : vector<288x4xf32>, vector<4x4xf32>, vector<288x4xf32> -> vector<288x4xf32>
    %115 = arith.addf %110, %114 : vector<288x4xf32>
    %c1_136 = arith.constant 1 : index
    %c0_137 = arith.constant 0 : index
    %116 = vector.load %arg11[%c1_136, %c0_137] : memref<342x4xf32, #tpu.memory_space<vmem>>, vector<288x4xf32>
    %c1_138 = arith.constant 1 : index
    %c0_139 = arith.constant 0 : index
    %c0_140 = arith.constant 0 : index
    %117 = vector.load %arg5[%c1_138, %c0_139, %c0_140] : memref<9x4x4xf32, #tpu.memory_space<vmem>>, vector<1x4x4xf32>
    %118 = vector.shape_cast %117 : vector<1x4x4xf32> to vector<4x4xf32>
    %cst_141 = arith.constant dense<0.000000e+00> : vector<288x4xf32>
    %119 = tpu.matmul %116, %118, %cst_141 {dimension_numbers = #tpu.dot_dimension_numbers<[1], [0], [0], [1], [0, 0, 1, 1], [], []>} : vector<288x4xf32>, vector<4x4xf32>, vector<288x4xf32> -> vector<288x4xf32>
    %120 = arith.addf %115, %119 : vector<288x4xf32>
    %c2_142 = arith.constant 2 : index
    %c0_143 = arith.constant 0 : index
    %121 = vector.load %arg11[%c2_142, %c0_143] : memref<342x4xf32, #tpu.memory_space<vmem>>, vector<288x4xf32>
    %c2_144 = arith.constant 2 : index
    %c0_145 = arith.constant 0 : index
    %c0_146 = arith.constant 0 : index
    %122 = vector.load %arg5[%c2_144, %c0_145, %c0_146] : memref<9x4x4xf32, #tpu.memory_space<vmem>>, vector<1x4x4xf32>
    %123 = vector.shape_cast %122 : vector<1x4x4xf32> to vector<4x4xf32>
    %cst_147 = arith.constant dense<0.000000e+00> : vector<288x4xf32>
    %124 = tpu.matmul %121, %123, %cst_147 {dimension_numbers = #tpu.dot_dimension_numbers<[1], [0], [0], [1], [0, 0, 1, 1], [], []>} : vector<288x4xf32>, vector<4x4xf32>, vector<288x4xf32> -> vector<288x4xf32>
    %125 = arith.addf %120, %124 : vector<288x4xf32>
    %c18_148 = arith.constant 18 : index
    %c0_149 = arith.constant 0 : index
    %126 = vector.load %arg11[%c18_148, %c0_149] : memref<342x4xf32, #tpu.memory_space<vmem>>, vector<288x4xf32>
    %c3_150 = arith.constant 3 : index
    %c0_151 = arith.constant 0 : index
    %c0_152 = arith.constant 0 : index
    %127 = vector.load %arg5[%c3_150, %c0_151, %c0_152] : memref<9x4x4xf32, #tpu.memory_space<vmem>>, vector<1x4x4xf32>
    %128 = vector.shape_cast %127 : vector<1x4x4xf32> to vector<4x4xf32>
    %cst_153 = arith.constant dense<0.000000e+00> : vector<288x4xf32>
    %129 = tpu.matmul %126, %128, %cst_153 {dimension_numbers = #tpu.dot_dimension_numbers<[1], [0], [0], [1], [0, 0, 1, 1], [], []>} : vector<288x4xf32>, vector<4x4xf32>, vector<288x4xf32> -> vector<288x4xf32>
    %130 = arith.addf %125, %129 : vector<288x4xf32>
    %c19_154 = arith.constant 19 : index
    %c0_155 = arith.constant 0 : index
    %131 = vector.load %arg11[%c19_154, %c0_155] : memref<342x4xf32, #tpu.memory_space<vmem>>, vector<288x4xf32>
    %c4_156 = arith.constant 4 : index
    %c0_157 = arith.constant 0 : index
    %c0_158 = arith.constant 0 : index
    %132 = vector.load %arg5[%c4_156, %c0_157, %c0_158] : memref<9x4x4xf32, #tpu.memory_space<vmem>>, vector<1x4x4xf32>
    %133 = vector.shape_cast %132 : vector<1x4x4xf32> to vector<4x4xf32>
    %cst_159 = arith.constant dense<0.000000e+00> : vector<288x4xf32>
    %134 = tpu.matmul %131, %133, %cst_159 {dimension_numbers = #tpu.dot_dimension_numbers<[1], [0], [0], [1], [0, 0, 1, 1], [], []>} : vector<288x4xf32>, vector<4x4xf32>, vector<288x4xf32> -> vector<288x4xf32>
    %135 = arith.addf %130, %134 : vector<288x4xf32>
    %c20_160 = arith.constant 20 : index
    %c0_161 = arith.constant 0 : index
    %136 = vector.load %arg11[%c20_160, %c0_161] : memref<342x4xf32, #tpu.memory_space<vmem>>, vector<288x4xf32>
    %c5_162 = arith.constant 5 : index
    %c0_163 = arith.constant 0 : index
    %c0_164 = arith.constant 0 : index
    %137 = vector.load %arg5[%c5_162, %c0_163, %c0_164] : memref<9x4x4xf32, #tpu.memory_space<vmem>>, vector<1x4x4xf32>
    %138 = vector.shape_cast %137 : vector<1x4x4xf32> to vector<4x4xf32>
    %cst_165 = arith.constant dense<0.000000e+00> : vector<288x4xf32>
    %139 = tpu.matmul %136, %138, %cst_165 {dimension_numbers = #tpu.dot_dimension_numbers<[1], [0], [0], [1], [0, 0, 1, 1], [], []>} : vector<288x4xf32>, vector<4x4xf32>, vector<288x4xf32> -> vector<288x4xf32>
    %140 = arith.addf %135, %139 : vector<288x4xf32>
    %c36_166 = arith.constant 36 : index
    %c0_167 = arith.constant 0 : index
    %141 = vector.load %arg11[%c36_166, %c0_167] : memref<342x4xf32, #tpu.memory_space<vmem>>, vector<288x4xf32>
    %c6_168 = arith.constant 6 : index
    %c0_169 = arith.constant 0 : index
    %c0_170 = arith.constant 0 : index
    %142 = vector.load %arg5[%c6_168, %c0_169, %c0_170] : memref<9x4x4xf32, #tpu.memory_space<vmem>>, vector<1x4x4xf32>
    %143 = vector.shape_cast %142 : vector<1x4x4xf32> to vector<4x4xf32>
    %cst_171 = arith.constant dense<0.000000e+00> : vector<288x4xf32>
    %144 = tpu.matmul %141, %143, %cst_171 {dimension_numbers = #tpu.dot_dimension_numbers<[1], [0], [0], [1], [0, 0, 1, 1], [], []>} : vector<288x4xf32>, vector<4x4xf32>, vector<288x4xf32> -> vector<288x4xf32>
    %145 = arith.addf %140, %144 : vector<288x4xf32>
    %c37_172 = arith.constant 37 : index
    %c0_173 = arith.constant 0 : index
    %146 = vector.load %arg11[%c37_172, %c0_173] : memref<342x4xf32, #tpu.memory_space<vmem>>, vector<288x4xf32>
    %c7_174 = arith.constant 7 : index
    %c0_175 = arith.constant 0 : index
    %c0_176 = arith.constant 0 : index
    %147 = vector.load %arg5[%c7_174, %c0_175, %c0_176] : memref<9x4x4xf32, #tpu.memory_space<vmem>>, vector<1x4x4xf32>
    %148 = vector.shape_cast %147 : vector<1x4x4xf32> to vector<4x4xf32>
    %cst_177 = arith.constant dense<0.000000e+00> : vector<288x4xf32>
    %149 = tpu.matmul %146, %148, %cst_177 {dimension_numbers = #tpu.dot_dimension_numbers<[1], [0], [0], [1], [0, 0, 1, 1], [], []>} : vector<288x4xf32>, vector<4x4xf32>, vector<288x4xf32> -> vector<288x4xf32>
    %150 = arith.addf %145, %149 : vector<288x4xf32>
    %c38_178 = arith.constant 38 : index
    %c0_179 = arith.constant 0 : index
    %151 = vector.load %arg11[%c38_178, %c0_179] : memref<342x4xf32, #tpu.memory_space<vmem>>, vector<288x4xf32>
    %c8_180 = arith.constant 8 : index
    %c0_181 = arith.constant 0 : index
    %c0_182 = arith.constant 0 : index
    %152 = vector.load %arg5[%c8_180, %c0_181, %c0_182] : memref<9x4x4xf32, #tpu.memory_space<vmem>>, vector<1x4x4xf32>
    %153 = vector.shape_cast %152 : vector<1x4x4xf32> to vector<4x4xf32>
    %cst_183 = arith.constant dense<0.000000e+00> : vector<288x4xf32>
    %154 = tpu.matmul %151, %153, %cst_183 {dimension_numbers = #tpu.dot_dimension_numbers<[1], [0], [0], [1], [0, 0, 1, 1], [], []>} : vector<288x4xf32>, vector<4x4xf32>, vector<288x4xf32> -> vector<288x4xf32>
    %155 = arith.addf %150, %154 : vector<288x4xf32>
    %c0_184 = arith.constant 0 : index
    %c0_185 = arith.constant 0 : index
    %156 = vector.load %arg6[%c0_184, %c0_185] : memref<1x4xf32, #tpu.memory_space<vmem>>, vector<1x4xf32>
    %157 = vector.broadcast %156 : vector<1x4xf32> to vector<288x4xf32>
    %158 = arith.mulf %155, %157 : vector<288x4xf32>
    %c0_186 = arith.constant 0 : index
    %c0_187 = arith.constant 0 : index
    %159 = vector.load %arg7[%c0_186, %c0_187] : memref<1x4xf32, #tpu.memory_space<vmem>>, vector<1x4xf32>
    %160 = vector.broadcast %159 : vector<1x4xf32> to vector<288x4xf32>
    %161 = arith.addf %158, %160 : vector<288x4xf32>
    %cst_188 = arith.constant 0.000000e+00 : f32
    %162 = vector.broadcast %cst_188 : f32 to vector<288x4xf32>
    %163 = arith.maximumf %161, %162 : vector<288x4xf32>
    %164 = vector.shape_cast %163 : vector<288x4xf32> to vector<16x18x4xf32>
    %165 = vector.extract_strided_slice %164 {offsets = [0, 0, 0], sizes = [16, 16, 4], strides = [1, 1, 1]} : vector<16x18x4xf32> to vector<16x16x4xf32>
    %c0_189 = arith.constant 0 : index
    %c0_190 = arith.constant 0 : index
    %c0_191 = arith.constant 0 : index
    %c0_192 = arith.constant 0 : index
    %166 = vector.load %arg1[%c0_189, %c0_190, %c0_191, %c0_192] : memref<1x16x16x4xf32, #tpu.memory_space<vmem>>, vector<1x16x16x4xf32>
    %167 = vector.shape_cast %166 : vector<1x16x16x4xf32> to vector<16x16x4xf32>
    %168 = arith.addf %167, %165 : vector<16x16x4xf32>
    %c0_193 = arith.constant 0 : index
    %c0_194 = arith.constant 0 : index
    %c0_195 = arith.constant 0 : index
    %c0_196 = arith.constant 0 : index
    %169 = vector.load %arg9[%c0_193, %c0_194, %c0_195, %c0_196] : memref<1x16x16x4xf32, #tpu.memory_space<vmem>>, vector<1x16x16x4xf32>
    %170 = vector.shape_cast %169 : vector<1x16x16x4xf32> to vector<16x16x4xf32>
    %171 = vector.shape_cast %168 : vector<16x16x4xf32> to vector<1x16x16x4xf32>
    tpu.vector_store %arg9[%c0_193, %c0_194, %c0_195, %c0_196], %171 {strides = array<i32>} : memref<1x16x16x4xf32, #tpu.memory_space<vmem>>, vector<1x16x16x4xf32>,
    return
  }
  func.func @transform_0(%arg0: i32) -> (i32, i32, i32, i32) {
    %c0_i32 = arith.constant 0 : i32
    %c0_i32_0 = arith.constant 0 : i32
    %c0_i32_1 = arith.constant 0 : i32
    %c0_i32_2 = arith.constant 0 : i32
    return %arg0, %c0_i32, %c0_i32_0, %c0_i32_1 : i32, i32, i32, i32
  }
  func.func @transform_1(%arg0: i32) -> (i32, i32, i32) {
    %c0_i32 = arith.constant 0 : i32
    %c0_i32_0 = arith.constant 0 : i32
    %c0_i32_1 = arith.constant 0 : i32
    %c0_i32_2 = arith.constant 0 : i32
    return %c0_i32, %c0_i32_0, %c0_i32_1 : i32, i32, i32
  }
  func.func @transform_2(%arg0: i32) -> (i32, i32) {
    %c0_i32 = arith.constant 0 : i32
    %c0_i32_0 = arith.constant 0 : i32
    %c0_i32_1 = arith.constant 0 : i32
    return %c0_i32, %c0_i32_0 : i32, i32
  }
  func.func @transform_3(%arg0: i32) -> (i32, i32) {
    %c0_i32 = arith.constant 0 : i32
    %c0_i32_0 = arith.constant 0 : i32
    %c0_i32_1 = arith.constant 0 : i32
    return %c0_i32, %c0_i32_0 : i32, i32
  }
  func.func @transform_4(%arg0: i32) -> (i32, i32, i32) {
    %c0_i32 = arith.constant 0 : i32
    %c0_i32_0 = arith.constant 0 : i32
    %c0_i32_1 = arith.constant 0 : i32
    %c0_i32_2 = arith.constant 0 : i32
    return %c0_i32, %c0_i32_0, %c0_i32_1 : i32, i32, i32
  }
  func.func @transform_5(%arg0: i32) -> (i32, i32) {
    %c0_i32 = arith.constant 0 : i32
    %c0_i32_0 = arith.constant 0 : i32
    %c0_i32_1 = arith.constant 0 : i32
    return %c0_i32, %c0_i32_0 : i32, i32
  }
  func.func @transform_6(%arg0: i32) -> (i32, i32) {
    %c0_i32 = arith.constant 0 : i32
    %c0_i32_0 = arith.constant 0 : i32
    %c0_i32_1 = arith.constant 0 : i32
    return %c0_i32, %c0_i32_0 : i32, i32
  }
  func.func @transform_7(%arg0: i32) -> (i32, i32) {
    %c0_i32 = arith.constant 0 : i32
    %c0_i32_0 = arith.constant 0 : i32
    %c0_i32_1 = arith.constant 0 : i32
    return %c0_i32, %c0_i32_0 : i32, i32
  }
  func.func @transform_8(%arg0: i32) -> (i32, i32, i32, i32) {
    %c0_i32 = arith.constant 0 : i32
    %c0_i32_0 = arith.constant 0 : i32
    %c0_i32_1 = arith.constant 0 : i32
    %c0_i32_2 = arith.constant 0 : i32
    return %arg0, %c0_i32, %c0_i32_0, %c0_i32_1 : i32, i32, i32, i32
  }
}

</mosaic_0001>

<llo_original>
// kernel: tpu_custom_call.1
$region0: #{tpu_custom_call.1}
  #allocation0 [shape = 'u32[]', space=smem, size = 0x4, offset = 0x4, fixed_abs, tag = 'smem constant byte address 0x4 - core index']
  #allocation1 [shape = 'u32[72,128]{1,0:T(1,128)}', space=vmem, size = 0x9000, scoped, tag = 'internal scratch']
  #allocation2 [shape = 'f32[342,4]{1,0:T(8,128)}', space=vmem, size = 0x2b000, scoped, tag = 'scratch operand']
  #allocation3 [shape = 'f32[342,4]{1,0:T(8,128)}', space=vmem, size = 0x2b000, scoped, tag = 'scratch operand']
  %s0 = inlined_call_operand.vmem [shape: f32[2,16,16,4], index: 0, kind: input, shape index: {}]
  %s1 = inlined_call_operand.vmem [shape: f32[9,4,4], index: 1, kind: input, shape index: {}]
  %s2 = inlined_call_operand.vmem [shape: f32[1,4], index: 2, kind: input, shape index: {}]
  %s3 = inlined_call_operand.vmem [shape: f32[1,4], index: 3, kind: input, shape index: {}]
  %s4 = inlined_call_operand.vmem [shape: f32[9,4,4], index: 4, kind: input, shape index: {}]
  %s5 = inlined_call_operand.vmem [shape: f32[1,4], index: 5, kind: input, shape index: {}]
  %s6 = inlined_call_operand.vmem [shape: f32[1,4], index: 6, kind: input, shape index: {}]
  %s7 = inlined_call_operand.vmem [shape: f32[288,1], index: 7, kind: input, shape index: {}]
  %s8 = inlined_call_operand.vmem [shape: f32[2,16,16,4], index: 8, kind: output, shape index: {}]
  %s9 = sld [smem:[#allocation0]]
  $region65: #{tpu_custom_call.1} parent=0
    _
  %s11 = ssub.s32 1, %s9
  %s12 = scalar_select 0, %s11, %s9
  loop: start=0, step=1, limit=4
  $region2: #{tpu_custom_call.1} parent=0 // loop_pre_header
    _
  $region3: #{tpu_custom_call.1} parent=0 // loop_header
    %s14 = sphi 0, %s18
    %p15 = scmp.ge.s32.totalorder %s14, 4
    %s24 = sphi 0, %s26
    %s27 = sphi 0, %s24
    %s28 = sphi 0, %s27
    %s44 = sphi 0, %s28
    %s48 = sphi 0, %s48
    %s50 = sphi 0, %s48
    %s51 = sphi 0, %s50
    %s65 = sphi 0, %s51
    %s69 = sphi 0, %s69
    %s71 = sphi 0, %s69
    %s72 = sphi 0, %s71
    %s86 = sphi 0, %s72
    %s90 = sphi 0, %s90
    %s92 = sphi 0, %s90
    %s93 = sphi 0, %s92
    %s107 = sphi 0, %s93
    %s111 = sphi 0, %s111
    %s113 = sphi 0, %s111
    %s114 = sphi 0, %s113
    %s128 = sphi 0, %s114
    %s132 = sphi 0, %s132
    %s134 = sphi 0, %s132
    %s135 = sphi 0, %s134
    %s149 = sphi 0, %s135
    %s153 = sphi 0, %s153
    %s155 = sphi 0, %s153
    %s156 = sphi 0, %s155
    %s170 = sphi 0, %s156
    %s174 = sphi 0, %s174
    %s176 = sphi 0, %s174
    %s177 = sphi 0, %s176
    %s191 = sphi 0, %s177
    %s197 = sphi 0, %s199
    %s200 = sphi 0, %s197
    %s201 = sphi 0, %s200
    %s217 = sphi 0, %s201
  $region4: #{tpu_custom_call.1} parent=0 // loop_header_branch
    %17 = sbr.rel (%p15) target = $region8
  $region5: #{tpu_custom_call.1} parent=0 // loop_body
    %s19 = ssub.s32 %s14, 1
    %s20 = ssub.s32 %s14, 2
    %s21 = sadd.s32 %s14, 1
    %s22 = ssub.s32 %s14, %s21
    %p23 = scmp.eq.s32.totalorder %s22, 0
    %s25 = sadd.s32 %s24, 1
    %s26 = scalar_select %p23, %s24, %s25
    %p29 = pneg %p23
    %p30 = scmp.eq.s32.totalorder %s14, 1
    %p31 = por %p29, %p30
    %p32 = scmp.ne.s32.totalorder %s24, %s27
    %p33 = scmp.eq.s32.totalorder %s14, 0
    %p34 = por %p32, %p33
    %p35 = scmp.ne.s32.totalorder %s24, %s27
    %p36 = scmp.eq.s32.totalorder %s19, 1
    %p37 = por %p35, %p36
    %p38 = scmp.ne.s32.totalorder %s27, %s28
    %p39 = scmp.eq.s32.totalorder %s19, 0
    %p40 = por %p38, %p39
    %p41 = scmp.ne.s32.totalorder %s27, %s28
    %p42 = scmp.eq.s32.totalorder %s20, 1
    %p43 = por %p41, %p42
    %p45 = scmp.ne.s32.totalorder %s28, %s44
    %p46 = scmp.eq.s32.totalorder %s20, 0
    %p47 = por %p45, %p46
    %s49 = sadd.s32 %s48, 1
    %p52 = scmp.eq.s32.totalorder %s14, 1
    %p53 = scmp.ne.s32.totalorder %s48, %s50
    %p54 = scmp.eq.s32.totalorder %s14, 0
    %p55 = por %p53, %p54
    %p56 = scmp.ne.s32.totalorder %s48, %s50
    %p57 = scmp.eq.s32.totalorder %s19, 1
    %p58 = por %p56, %p57
    %p59 = scmp.ne.s32.totalorder %s50, %s51
    %p60 = scmp.eq.s32.totalorder %s19, 0
    %p61 = por %p59, %p60
    %p62 = scmp.ne.s32.totalorder %s50, %s51
    %p63 = scmp.eq.s32.totalorder %s20, 1
    %p64 = por %p62, %p63
    %p66 = scmp.ne.s32.totalorder %s51, %s65
    %p67 = scmp.eq.s32.totalorder %s20, 0
    %p68 = por %p66, %p67
    %s70 = sadd.s32 %s69, 1
    %p73 = scmp.eq.s32.totalorder %s14, 1
    %p74 = scmp.ne.s32.totalorder %s69, %s71
    %p75 = scmp.eq.s32.totalorder %s14, 0
    %p76 = por %p74, %p75
    %p77 = scmp.ne.s32.totalorder %s69, %s71
    %p78 = scmp.eq.s32.totalorder %s19, 1
    %p79 = por %p77, %p78
    %p80 = scmp.ne.s32.totalorder %s71, %s72
    %p81 = scmp.eq.s32.totalorder %s19, 0
    %p82 = por %p80, %p81
    %p83 = scmp.ne.s32.totalorder %s71, %s72
    %p84 = scmp.eq.s32.totalorder %s20, 1
    %p85 = por %p83, %p84
    %p87 = scmp.ne.s32.totalorder %s72, %s86
    %p88 = scmp.eq.s32.totalorder %s20, 0
    %p89 = por %p87, %p88
    %s91 = sadd.s32 %s90, 1
    %p94 = scmp.eq.s32.totalorder %s14, 1
    %p95 = scmp.ne.s32.totalorder %s90, %s92
    %p96 = scmp.eq.s32.totalorder %s14, 0
    %p97 = por %p95, %p96
    %p98 = scmp.ne.s32.totalorder %s90, %s92
    %p99 = scmp.eq.s32.totalorder %s19, 1
    %p100 = por %p98, %p99
    %p101 = scmp.ne.s32.totalorder %s92, %s93
    %p102 = scmp.eq.s32.totalorder %s19, 0
    %p103 = por %p101, %p102
    %p104 = scmp.ne.s32.totalorder %s92, %s93
    %p105 = scmp.eq.s32.totalorder %s20, 1
    %p106 = por %p104, %p105
    %p108 = scmp.ne.s32.totalorder %s93, %s107
    %p109 = scmp.eq.s32.totalorder %s20, 0
    %p110 = por %p108, %p109
    %s112 = sadd.s32 %s111, 1
    %p115 = scmp.eq.s32.totalorder %s14, 1
    %p116 = scmp.ne.s32.totalorder %s111, %s113
    %p117 = scmp.eq.s32.totalorder %s14, 0
    %p118 = por %p116, %p117
    %p119 = scmp.ne.s32.totalorder %s111, %s113
    %p120 = scmp.eq.s32.totalorder %s19, 1
    %p121 = por %p119, %p120
    %p122 = scmp.ne.s32.totalorder %s113, %s114
    %p123 = scmp.eq.s32.totalorder %s19, 0
    %p124 = por %p122, %p123
    %p125 = scmp.ne.s32.totalorder %s113, %s114
    %p126 = scmp.eq.s32.totalorder %s20, 1
    %p127 = por %p125, %p126
    %p129 = scmp.ne.s32.totalorder %s114, %s128
    %p130 = scmp.eq.s32.totalorder %s20, 0
    %p131 = por %p129, %p130
    %s133 = sadd.s32 %s132, 1
    %p136 = scmp.eq.s32.totalorder %s14, 1
    %p137 = scmp.ne.s32.totalorder %s132, %s134
    %p138 = scmp.eq.s32.totalorder %s14, 0
    %p139 = por %p137, %p138
    %p140 = scmp.ne.s32.totalorder %s132, %s134
    %p141 = scmp.eq.s32.totalorder %s19, 1
    %p142 = por %p140, %p141
    %p143 = scmp.ne.s32.totalorder %s134, %s135
    %p144 = scmp.eq.s32.totalorder %s19, 0
    %p145 = por %p143, %p144
    %p146 = scmp.ne.s32.totalorder %s134, %s135
    %p147 = scmp.eq.s32.totalorder %s20, 1
    %p148 = por %p146, %p147
    %p150 = scmp.ne.s32.totalorder %s135, %s149
    %p151 = scmp.eq.s32.totalorder %s20, 0
    %p152 = por %p150, %p151
    %s154 = sadd.s32 %s153, 1
    %p157 = scmp.eq.s32.totalorder %s14, 1
    %p158 = scmp.ne.s32.totalorder %s153, %s155
    %p159 = scmp.eq.s32.totalorder %s14, 0
    %p160 = por %p158, %p159
    %p161 = scmp.ne.s32.totalorder %s153, %s155
    %p162 = scmp.eq.s32.totalorder %s19, 1
    %p163 = por %p161, %p162
    %p164 = scmp.ne.s32.totalorder %s155, %s156
    %p165 = scmp.eq.s32.totalorder %s19, 0
    %p166 = por %p164, %p165
    %p167 = scmp.ne.s32.totalorder %s155, %s156
    %p168 = scmp.eq.s32.totalorder %s20, 1
    %p169 = por %p167, %p168
    %p171 = scmp.ne.s32.totalorder %s156, %s170
    %p172 = scmp.eq.s32.totalorder %s20, 0
    %p173 = por %p171, %p172
    %s175 = sadd.s32 %s174, 1
    %p178 = scmp.eq.s32.totalorder %s14, 1
    %p179 = scmp.ne.s32.totalorder %s174, %s176
    %p180 = scmp.eq.s32.totalorder %s14, 0
    %p181 = por %p179, %p180
    %p182 = scmp.ne.s32.totalorder %s174, %s176
    %p183 = scmp.eq.s32.totalorder %s19, 1
    %p184 = por %p182, %p183
    %p185 = scmp.ne.s32.totalorder %s176, %s177
    %p186 = scmp.eq.s32.totalorder %s19, 0
    %p187 = por %p185, %p186
    %p188 = scmp.ne.s32.totalorder %s176, %s177
    %p189 = scmp.eq.s32.totalorder %s20, 1
    %p190 = por %p188, %p189
    %p192 = scmp.ne.s32.totalorder %s177, %s191
    %p193 = scmp.eq.s32.totalorder %s20, 0
    %p194 = por %p192, %p193
    %s195 = ssub.s32 %s14, %s21
    %p196 = scmp.eq.s32.totalorder %s195, 0
    %s198 = sadd.s32 %s197, 1
    %s199 = scalar_select %p196, %s197, %s198
    %p202 = pneg %p196
    %p203 = scmp.eq.s32.totalorder %s14, 1
    %p204 = por %p202, %p203
    %p205 = scmp.ne.s32.totalorder %s197, %s200
    %p206 = scmp.eq.s32.totalorder %s14, 0
    %p207 = por %p205, %p206
    %p208 = scmp.ne.s32.totalorder %s197, %s200
    %p209 = scmp.eq.s32.totalorder %s19, 1
    %p210 = por %p208, %p209
    %p211 = scmp.ne.s32.totalorder %s200, %s201
    %p212 = scmp.eq.s32.totalorder %s19, 0
    %p213 = por %p211, %p212
    %p214 = scmp.ne.s32.totalorder %s200, %s201
    %p215 = scmp.eq.s32.totalorder %s20, 1
    %p216 = por %p214, %p215
    %p218 = scmp.ne.s32.totalorder %s201, %s217
    %p219 = scmp.eq.s32.totalorder %s20, 0
    %p220 = por %p218, %p219
    %p221 = scmp.le.s32.totalorder 1, %s14
    %p222 = scmp.lt.s32.totalorder %s14, 3
    %p223 = pnand %p221, %p222
    %p224 = pneg %p223
    // Predicated region
    $region9: #{tpu_custom_call.1} parent=5 // pred_check
      _
    $region10: #{tpu_custom_call.1} parent=5 // pred_check_branch
      %226 = sbr.rel (%p223) target = $region12
    $region11: #{tpu_custom_call.1} parent=5 // pred_region
      %s227 = ssub.s32 %s14, 1
      // Predicated region
      $region13: #{tpu_custom_call.1} parent=11 // pred_check
        %p228 = pneg %p61
      $region14: #{tpu_custom_call.1} parent=11 // pred_check_branch
        %230 = sbr.rel (%p228) target = $region16
      $region15: #{tpu_custom_call.1} parent=11 // pred_region
        _
      $region16: #{tpu_custom_call.1} parent=11 // pred_fallthru
        _
      // Predicated region
      $region17: #{tpu_custom_call.1} parent=11 // pred_check
        %p231 = pneg %p82
      $region18: #{tpu_custom_call.1} parent=11 // pred_check_branch
        %233 = sbr.rel (%p231) target = $region20
      $region19: #{tpu_custom_call.1} parent=11 // pred_region
        _
      $region20: #{tpu_custom_call.1} parent=11 // pred_fallthru
        _
      // Predicated region
      $region21: #{tpu_custom_call.1} parent=11 // pred_check
        %p234 = pneg %p103
      $region22: #{tpu_custom_call.1} parent=11 // pred_check_branch
        %236 = sbr.rel (%p234) target = $region24
      $region23: #{tpu_custom_call.1} parent=11 // pred_region
        _
      $region24: #{tpu_custom_call.1} parent=11 // pred_fallthru
        _
      // Predicated region
      $region25: #{tpu_custom_call.1} parent=11 // pred_check
        %p237 = pneg %p124
      $region26: #{tpu_custom_call.1} parent=11 // pred_check_branch
        %239 = sbr.rel (%p237) target = $region28
      $region27: #{tpu_custom_call.1} parent=11 // pred_region
        _
      $region28: #{tpu_custom_call.1} parent=11 // pred_fallthru
        _
      // Predicated region
      $region29: #{tpu_custom_call.1} parent=11 // pred_check
        %p240 = pneg %p145
      $region30: #{tpu_custom_call.1} parent=11 // pred_check_branch
        %242 = sbr.rel (%p240) target = $region32
      $region31: #{tpu_custom_call.1} parent=11 // pred_region
        _
      $region32: #{tpu_custom_call.1} parent=11 // pred_fallthru
        _
      // Predicated region
      $region33: #{tpu_custom_call.1} parent=11 // pred_check
        %p243 = pneg %p166
      $region34: #{tpu_custom_call.1} parent=11 // pred_check_branch
        %245 = sbr.rel (%p243) target = $region36
      $region35: #{tpu_custom_call.1} parent=11 // pred_region
        _
      $region36: #{tpu_custom_call.1} parent=11 // pred_fallthru
        _
      // Predicated region
      $region37: #{tpu_custom_call.1} parent=11 // pred_check
        %p246 = pneg %p187
      $region38: #{tpu_custom_call.1} parent=11 // pred_check_branch
        %248 = sbr.rel (%p246) target = $region40
      $region39: #{tpu_custom_call.1} parent=11 // pred_region
        _
      $region40: #{tpu_custom_call.1} parent=11 // pred_fallthru
        _
    $region12: #{tpu_custom_call.1} parent=5 // pred_fallthru
      _
    %p249 = scmp.lt.s32.totalorder %s14, 2
    // Predicated region
    $region41: #{tpu_custom_call.1} parent=5 // pred_check
      %p250 = pneg %p249
    $region42: #{tpu_custom_call.1} parent=5 // pred_check_branch
      %252 = sbr.rel (%p250) target = $region44
    $region43: #{tpu_custom_call.1} parent=5 // pred_region
      // Predicated region
      $region45: #{tpu_custom_call.1} parent=43 // pred_check
        %p253 = pneg %p34
      $region46: #{tpu_custom_call.1} parent=43 // pred_check_branch
        %255 = sbr.rel (%p253) target = $region48
      $region47: #{tpu_custom_call.1} parent=43 // pred_region
        %p256 = scmp.lt.s32.totalorder %s14, 1
        %s257 = scalar_select %p256, %s14, 1
        %s258 = smul.addr %s257, 32
        %s259 = smul.addr %s258, 8
        %s260 = scalar_lea.vmem %s0, %s259
      $region48: #{tpu_custom_call.1} parent=43 // pred_fallthru
        _
    $region44: #{tpu_custom_call.1} parent=5 // pred_fallthru
      _
    %p261 = scmp.le.s32.totalorder 1, %s14
    %p262 = scmp.lt.s32.totalorder %s14, 3
    %p263 = pnand %p261, %p262
    %p264 = pneg %p263
    // Predicated region
    $region49: #{tpu_custom_call.1} parent=5 // pred_check
      _
    $region50: #{tpu_custom_call.1} parent=5 // pred_check_branch
      %266 = sbr.rel (%p263) target = $region52
    $region51: #{tpu_custom_call.1} parent=5 // pred_region
      %s267 = ssub.s32 %s14, 1
      %p268 = scmp.lt.s32.totalorder %s19, 1
      %s269 = scalar_select %p268, %s19, 1
      %s270 = smul.addr %s269, 32
      %s271 = smul.addr %s270, 8
      %s272 = scalar_lea.vmem %s0, %s271
      %p273 = pneg %p40
      %p274 = pneg %p37
      %p275 = pneg %p61
      %p276 = pneg %p58
      %p277 = pneg %p82
      %p278 = pneg %p79
      %p279 = pneg %p103
      %p280 = pneg %p100
      %p281 = pneg %p124
      %p282 = pneg %p121
      %p283 = pneg %p145
      %p284 = pneg %p142
      %p285 = pneg %p166
      %p286 = pneg %p163
      %p287 = pneg %p187
      %p288 = pneg %p184
      %p289 = pneg %p213
      %p290 = pneg %p210
      %p291 = scmp.lt.s32.totalorder %s19, 1
      %s292 = scalar_select %p291, %s19, 1
      %s293 = smul.addr %s292, 32
      %s294 = smul.addr %s293, 8
      %s295 = scalar_lea.vmem %s8, %s294
      %p296 = scmp.lt.s32.totalorder %s19, 1
      %s297 = scalar_select %p296, %s19, 1
      %s298 = smul.addr %s297, 32
      %s299 = smul.addr %s298, 8
      %s300 = scalar_lea.vmem %s0, %s299
      %p301 = scmp.lt.s32.totalorder %s19, 1
      %s302 = scalar_select %p301, %s19, 1
      %s303 = smul.addr %s302, 32
      %s304 = smul.addr %s303, 8
      %s305 = scalar_lea.vmem %s8, %s304
      %vm306 = vcmask 31744
      %307 = vst.msk [vmem:[#allocation2] sm:$0xff] %vm306, 0.0
      %308 = vst.msk [vmem:[#allocation2 + $0x8] sm:$0xff] %vm306, 0.0
      %309 = vst.msk [vmem:[#allocation2 + $0x10] sm:$0xff] %vm306, 0.0
      %310 = vst.msk [vmem:[#allocation2 + $0x18] sm:$0xff] %vm306, 0.0
      %311 = vst.msk [vmem:[#allocation2 + $0x20] sm:$0xff] %vm306, 0.0
      %312 = vst.msk [vmem:[#allocation2 + $0x28] sm:$0xff] %vm306, 0.0
      %313 = vst.msk [vmem:[#allocation2 + $0x30] sm:$0xff] %vm306, 0.0
      %314 = vst.msk [vmem:[#allocation2 + $0x38] sm:$0xff] %vm306, 0.0
      %315 = vst.msk [vmem:[#allocation2 + $0x40] sm:$0xff] %vm306, 0.0
      %316 = vst.msk [vmem:[#allocation2 + $0x48] sm:$0xff] %vm306, 0.0
      %317 = vst.msk [vmem:[#allocation2 + $0x50] sm:$0xff] %vm306, 0.0
      %318 = vst.msk [vmem:[#allocation2 + $0x58] sm:$0xff] %vm306, 0.0
      %319 = vst.msk [vmem:[#allocation2 + $0x60] sm:$0xff] %vm306, 0.0
      %320 = vst.msk [vmem:[#allocation2 + $0x68] sm:$0xff] %vm306, 0.0
      %321 = vst.msk [vmem:[#allocation2 + $0x70] sm:$0xff] %vm306, 0.0
      %322 = vst.msk [vmem:[#allocation2 + $0x78] sm:$0xff] %vm306, 0.0
      %323 = vst.msk [vmem:[#allocation2 + $0x80] sm:$0xff] %vm306, 0.0
      %324 = vst.msk [vmem:[#allocation2 + $0x88] sm:$0xff] %vm306, 0.0
      %325 = vst.msk [vmem:[#allocation2 + $0x90] sm:$0xff] %vm306, 0.0
      %326 = vst.msk [vmem:[#allocation2 + $0x98] sm:$0xff] %vm306, 0.0
      %327 = vst.msk [vmem:[#allocation2 + $0xa0] sm:$0xff] %vm306, 0.0
      %328 = vst.msk [vmem:[#allocation2 + $0xa8] sm:$0xff] %vm306, 0.0
      %329 = vst.msk [vmem:[#allocation2 + $0xb0] sm:$0xff] %vm306, 0.0
      %330 = vst.msk [vmem:[#allocation2 + $0xb8] sm:$0xff] %vm306, 0.0
      %331 = vst.msk [vmem:[#allocation2 + $0xc0] sm:$0xff] %vm306, 0.0
      %332 = vst.msk [vmem:[#allocation2 + $0xc8] sm:$0xff] %vm306, 0.0
      %333 = vst.msk [vmem:[#allocation2 + $0xd0] sm:$0xff] %vm306, 0.0
      %334 = vst.msk [vmem:[#allocation2 + $0xd8] sm:$0xff] %vm306, 0.0
      %335 = vst.msk [vmem:[#allocation2 + $0xe0] sm:$0xff] %vm306, 0.0
      %336 = vst.msk [vmem:[#allocation2 + $0xe8] sm:$0xff] %vm306, 0.0
      %337 = vst.msk [vmem:[#allocation2 + $0xf0] sm:$0xff] %vm306, 0.0
      %338 = vst.msk [vmem:[#allocation2 + $0xf8] sm:$0xff] %vm306, 0.0
      %339 = vst.msk [vmem:[#allocation2 + $0x100] sm:$0xff] %vm306, 0.0
      %340 = vst.msk [vmem:[#allocation2 + $0x108] sm:$0xff] %vm306, 0.0
      %341 = vst.msk [vmem:[#allocation2 + $0x110] sm:$0xff] %vm306, 0.0
      %342 = vst.msk [vmem:[#allocation2 + $0x118] sm:$0xff] %vm306, 0.0
      %343 = vst.msk [vmem:[#allocation2 + $0x120] sm:$0xff] %vm306, 0.0
      %344 = vst.msk [vmem:[#allocation2 + $0x128] sm:$0xff] %vm306, 0.0
      %345 = vst.msk [vmem:[#allocation2 + $0x130] sm:$0xff] %vm306, 0.0
      %346 = vst.msk [vmem:[#allocation2 + $0x138] sm:$0xff] %vm306, 0.0
      %347 = vst.msk [vmem:[#allocation2 + $0x140] sm:$0xff] %vm306, 0.0
      %348 = vst.msk [vmem:[#allocation2 + $0x148] sm:$0xff] %vm306, 0.0
      %vm349 = vcmask 29696
      %350 = vst.msk [vmem:[#allocation2 + $0x150] sm:$0x3f] %vm349, 0.0
      %351 = vst.msk [vmem:[#allocation3] sm:$0xff] %vm306, 0.0
      %352 = vst.msk [vmem:[#allocation3 + $0x8] sm:$0xff] %vm306, 0.0
      %353 = vst.msk [vmem:[#allocation3 + $0x10] sm:$0xff] %vm306, 0.0
      %354 = vst.msk [vmem:[#allocation3 + $0x18] sm:$0xff] %vm306, 0.0
      %355 = vst.msk [vmem:[#allocation3 + $0x20] sm:$0xff] %vm306, 0.0
      %356 = vst.msk [vmem:[#allocation3 + $0x28] sm:$0xff] %vm306, 0.0
      %357 = vst.msk [vmem:[#allocation3 + $0x30] sm:$0xff] %vm306, 0.0
      %358 = vst.msk [vmem:[#allocation3 + $0x38] sm:$0xff] %vm306, 0.0
      %359 = vst.msk [vmem:[#allocation3 + $0x40] sm:$0xff] %vm306, 0.0
      %360 = vst.msk [vmem:[#allocation3 + $0x48] sm:$0xff] %vm306, 0.0
      %361 = vst.msk [vmem:[#allocation3 + $0x50] sm:$0xff] %vm306, 0.0
      %362 = vst.msk [vmem:[#allocation3 + $0x58] sm:$0xff] %vm306, 0.0
      %363 = vst.msk [vmem:[#allocation3 + $0x60] sm:$0xff] %vm306, 0.0
      %364 = vst.msk [vmem:[#allocation3 + $0x68] sm:$0xff] %vm306, 0.0
      %365 = vst.msk [vmem:[#allocation3 + $0x70] sm:$0xff] %vm306, 0.0
      %366 = vst.msk [vmem:[#allocation3 + $0x78] sm:$0xff] %vm306, 0.0
      %367 = vst.msk [vmem:[#allocation3 + $0x80] sm:$0xff] %vm306, 0.0
      %368 = vst.msk [vmem:[#allocation3 + $0x88] sm:$0xff] %vm306, 0.0
      %369 = vst.msk [vmem:[#allocation3 + $0x90] sm:$0xff] %vm306, 0.0
      %370 = vst.msk [vmem:[#allocation3 + $0x98] sm:$0xff] %vm306, 0.0
      %371 = vst.msk [vmem:[#allocation3 + $0xa0] sm:$0xff] %vm306, 0.0
      %372 = vst.msk [vmem:[#allocation3 + $0xa8] sm:$0xff] %vm306, 0.0
      %373 = vst.msk [vmem:[#allocation3 + $0xb0] sm:$0xff] %vm306, 0.0
      %374 = vst.msk [vmem:[#allocation3 + $0xb8] sm:$0xff] %vm306, 0.0
      %375 = vst.msk [vmem:[#allocation3 + $0xc0] sm:$0xff] %vm306, 0.0
      %376 = vst.msk [vmem:[#allocation3 + $0xc8] sm:$0xff] %vm306, 0.0
      %377 = vst.msk [vmem:[#allocation3 + $0xd0] sm:$0xff] %vm306, 0.0
      %378 = vst.msk [vmem:[#allocation3 + $0xd8] sm:$0xff] %vm306, 0.0
      %379 = vst.msk [vmem:[#allocation3 + $0xe0] sm:$0xff] %vm306, 0.0
      %380 = vst.msk [vmem:[#allocation3 + $0xe8] sm:$0xff] %vm306, 0.0
      %381 = vst.msk [vmem:[#allocation3 + $0xf0] sm:$0xff] %vm306, 0.0
      %382 = vst.msk [vmem:[#allocation3 + $0xf8] sm:$0xff] %vm306, 0.0
      %383 = vst.msk [vmem:[#allocation3 + $0x100] sm:$0xff] %vm306, 0.0
      %384 = vst.msk [vmem:[#allocation3 + $0x108] sm:$0xff] %vm306, 0.0
      %385 = vst.msk [vmem:[#allocation3 + $0x110] sm:$0xff] %vm306, 0.0
      %386 = vst.msk [vmem:[#allocation3 + $0x118] sm:$0xff] %vm306, 0.0
      %387 = vst.msk [vmem:[#allocation3 + $0x120] sm:$0xff] %vm306, 0.0
      %388 = vst.msk [vmem:[#allocation3 + $0x128] sm:$0xff] %vm306, 0.0
      %389 = vst.msk [vmem:[#allocation3 + $0x130] sm:$0xff] %vm306, 0.0
      %390 = vst.msk [vmem:[#allocation3 + $0x138] sm:$0xff] %vm306, 0.0
      %391 = vst.msk [vmem:[#allocation3 + $0x140] sm:$0xff] %vm306, 0.0
      %392 = vst.msk [vmem:[#allocation3 + $0x148] sm:$0xff] %vm306, 0.0
      %393 = vst.msk [vmem:[#allocation3 + $0x150] sm:$0x3f] %vm349, 0.0
      %v394 = vld [vmem:[%s300] sm:$0xff]
      %v395 = vld [vmem:[%s300 + $0x8] sm:$0xff]
      %396 = vst.msk [vmem:[#allocation2 + $0x13] sm:$0xff] %vm306, %v394
      %397 = vst.msk [vmem:[#allocation2 + $0x1b] sm:$0xff] %vm306, %v395
      %s398 = scalar_lea.vmem %s300, 16
      %v399 = vld [vmem:[%s398] sm:$0xff]
      %v400 = vld [vmem:[%s398 + $0x8] sm:$0xff]
      %401 = vst.msk [vmem:[#allocation2 + $0x25] sm:$0xff] %vm306, %v399
      %402 = vst.msk [vmem:[#allocation2 + $0x2d] sm:$0xff] %vm306, %v400
      %s403 = scalar_lea.vmem %s300, 32
      %v404 = vld [vmem:[%s403] sm:$0xff]
      %v405 = vld [vmem:[%s403 + $0x8] sm:$0xff]
      %406 = vst.msk [vmem:[#allocation2 + $0x37] sm:$0xff] %vm306, %v404
      %407 = vst.msk [vmem:[#allocation2 + $0x3f] sm:$0xff] %vm306, %v405
      %s408 = scalar_lea.vmem %s300, 48
      %v409 = vld [vmem:[%s408] sm:$0xff]
      %v410 = vld [vmem:[%s408 + $0x8] sm:$0xff]
      %411 = vst.msk [vmem:[#allocation2 + $0x49] sm:$0xff] %vm306, %v409
      %412 = vst.msk [vmem:[#allocation2 + $0x51] sm:$0xff] %vm306, %v410
      %s413 = scalar_lea.vmem %s300, 64
      %v414 = vld [vmem:[%s413] sm:$0xff]
      %v415 = vld [vmem:[%s413 + $0x8] sm:$0xff]
      %416 = vst.msk [vmem:[#allocation2 + $0x5b] sm:$0xff] %vm306, %v414
      %417 = vst.msk [vmem:[#allocation2 + $0x63] sm:$0xff] %vm306, %v415
      %s418 = scalar_lea.vmem %s300, 80
      %v419 = vld [vmem:[%s418] sm:$0xff]
      %v420 = vld [vmem:[%s418 + $0x8] sm:$0xff]
      %421 = vst.msk [vmem:[#allocation2 + $0x6d] sm:$0xff] %vm306, %v419
      %422 = vst.msk [vmem:[#allocation2 + $0x75] sm:$0xff] %vm306, %v420
      %s423 = scalar_lea.vmem %s300, 96
      %v424 = vld [vmem:[%s423] sm:$0xff]
      %v425 = vld [vmem:[%s423 + $0x8] sm:$0xff]
      %426 = vst.msk [vmem:[#allocation2 + $0x7f] sm:$0xff] %vm306, %v424
      %427 = vst.msk [vmem:[#allocation2 + $0x87] sm:$0xff] %vm306, %v425
      %s428 = scalar_lea.vmem %s300, 112
      %v429 = vld [vmem:[%s428] sm:$0xff]
      %v430 = vld [vmem:[%s428 + $0x8] sm:$0xff]
      %431 = vst.msk [vmem:[#allocation2 + $0x91] sm:$0xff] %vm306, %v429
      %432 = vst.msk [vmem:[#allocation2 + $0x99] sm:$0xff] %vm306, %v430
      %s433 = scalar_lea.vmem %s300, 128
      %v434 = vld [vmem:[%s433] sm:$0xff]
      %v435 = vld [vmem:[%s433 + $0x8] sm:$0xff]
      %436 = vst.msk [vmem:[#allocation2 + $0xa3] sm:$0xff] %vm306, %v434
      %437 = vst.msk [vmem:[#allocation2 + $0xab] sm:$0xff] %vm306, %v435
      %s438 = scalar_lea.vmem %s300, 144
      %v439 = vld [vmem:[%s438] sm:$0xff]
      %v440 = vld [vmem:[%s438 + $0x8] sm:$0xff]
      %441 = vst.msk [vmem:[#allocation2 + $0xb5] sm:$0xff] %vm306, %v439
      %442 = vst.msk [vmem:[#allocation2 + $0xbd] sm:$0xff] %vm306, %v440
      %s443 = scalar_lea.vmem %s300, 160
      %v444 = vld [vmem:[%s443] sm:$0xff]
      %v445 = vld [vmem:[%s443 + $0x8] sm:$0xff]
      %446 = vst.msk [vmem:[#allocation2 + $0xc7] sm:$0xff] %vm306, %v444
      %447 = vst.msk [vmem:[#allocation2 + $0xcf] sm:$0xff] %vm306, %v445
      %s448 = scalar_lea.vmem %s300, 176
      %v449 = vld [vmem:[%s448] sm:$0xff]
      %v450 = vld [vmem:[%s448 + $0x8] sm:$0xff]
      %451 = vst.msk [vmem:[#allocation2 + $0xd9] sm:$0xff] %vm306, %v449
      %452 = vst.msk [vmem:[#allocation2 + $0xe1] sm:$0xff] %vm306, %v450
      %s453 = scalar_lea.vmem %s300, 192
      %v454 = vld [vmem:[%s453] sm:$0xff]
      %v455 = vld [vmem:[%s453 + $0x8] sm:$0xff]
      %456 = vst.msk [vmem:[#allocation2 + $0xeb] sm:$0xff] %vm306, %v454
      %457 = vst.msk [vmem:[#allocation2 + $0xf3] sm:$0xff] %vm306, %v455
      %s458 = scalar_lea.vmem %s300, 208
      %v459 = vld [vmem:[%s458] sm:$0xff]
      %v460 = vld [vmem:[%s458 + $0x8] sm:$0xff]
      %461 = vst.msk [vmem:[#allocation2 + $0xfd] sm:$0xff] %vm306, %v459
      %462 = vst.msk [vmem:[#allocation2 + $0x105] sm:$0xff] %vm306, %v460
      %s463 = scalar_lea.vmem %s300, 224
      %v464 = vld [vmem:[%s463] sm:$0xff]
      %v465 = vld [vmem:[%s463 + $0x8] sm:$0xff]
      %466 = vst.msk [vmem:[#allocation2 + $0x10f] sm:$0xff] %vm306, %v464
      %467 = vst.msk [vmem:[#allocation2 + $0x117] sm:$0xff] %vm306, %v465
      %s468 = scalar_lea.vmem %s300, 240
      %v469 = vld [vmem:[%s468] sm:$0xff]
      %v470 = vld [vmem:[%s468 + $0x8] sm:$0xff]
      %471 = vst.msk [vmem:[#allocation2 + $0x121] sm:$0xff] %vm306, %v469
      %472 = vst.msk [vmem:[#allocation2 + $0x129] sm:$0xff] %vm306, %v470
      %v473 = vld [vmem:[#allocation2] sm:$0xff]
      %v474 = vld [vmem:[#allocation2 + $0x8] sm:$0xff]
      %v475 = vld [vmem:[#allocation2 + $0x10] sm:$0xff]
      %v476 = vld [vmem:[#allocation2 + $0x18] sm:$0xff]
      %v477 = vld [vmem:[#allocation2 + $0x20] sm:$0xff]
      %v478 = vld [vmem:[#allocation2 + $0x28] sm:$0xff]
      %v479 = vld [vmem:[#allocation2 + $0x30] sm:$0xff]
      %v480 = vld [vmem:[#allocation2 + $0x38] sm:$0xff]
      %v481 = vld [vmem:[#allocation2 + $0x40] sm:$0xff]
      %v482 = vld [vmem:[#allocation2 + $0x48] sm:$0xff]
      %v483 = vld [vmem:[#allocation2 + $0x50] sm:$0xff]
      %v484 = vld [vmem:[#allocation2 + $0x58] sm:$0xff]
      %v485 = vld [vmem:[#allocation2 + $0x60] sm:$0xff]
      %v486 = vld [vmem:[#allocation2 + $0x68] sm:$0xff]
      %v487 = vld [vmem:[#allocation2 + $0x70] sm:$0xff]
      %v488 = vld [vmem:[#allocation2 + $0x78] sm:$0xff]
      %v489 = vld [vmem:[#allocation2 + $0x80] sm:$0xff]
      %v490 = vld [vmem:[#allocation2 + $0x88] sm:$0xff]
      %v491 = vld [vmem:[#allocation2 + $0x90] sm:$0xff]
      %v492 = vld [vmem:[#allocation2 + $0x98] sm:$0xff]
      %v493 = vld [vmem:[#allocation2 + $0xa0] sm:$0xff]
      %v494 = vld [vmem:[#allocation2 + $0xa8] sm:$0xff]
      %v495 = vld [vmem:[#allocation2 + $0xb0] sm:$0xff]
      %v496 = vld [vmem:[#allocation2 + $0xb8] sm:$0xff]
      %v497 = vld [vmem:[#allocation2 + $0xc0] sm:$0xff]
      %v498 = vld [vmem:[#allocation2 + $0xc8] sm:$0xff]
      %v499 = vld [vmem:[#allocation2 + $0xd0] sm:$0xff]
      %v500 = vld [vmem:[#allocation2 + $0xd8] sm:$0xff]
      %v501 = vld [vmem:[#allocation2 + $0xe0] sm:$0xff]
      %v502 = vld [vmem:[#allocation2 + $0xe8] sm:$0xff]
      %v503 = vld [vmem:[#allocation2 + $0xf0] sm:$0xff]
      %v504 = vld [vmem:[#allocation2 + $0xf8] sm:$0xff]
      %v505 = vld [vmem:[#allocation2 + $0x100] sm:$0xff]
      %v506 = vld [vmem:[#allocation2 + $0x108] sm:$0xff]
      %v507 = vld [vmem:[#allocation2 + $0x110] sm:$0xff]
      %v508 = vld [vmem:[#allocation2 + $0x118] sm:$0xff]
      %v509 = vld [vmem:[%s1] sm:$0xf]
      %v510 = vld [vmem:[#allocation2 + $0x1] sm:$0xff]
      %v511 = vld [vmem:[#allocation2 + $0x9] sm:$0xff]
      %v512 = vld [vmem:[#allocation2 + $0x11] sm:$0xff]
      %v513 = vld [vmem:[#allocation2 + $0x19] sm:$0xff]
      %v514 = vld [vmem:[#allocation2 + $0x21] sm:$0xff]
      %v515 = vld [vmem:[#allocation2 + $0x29] sm:$0xff]
      %v516 = vld [vmem:[#allocation2 + $0x31] sm:$0xff]
      %v517 = vld [vmem:[#allocation2 + $0x39] sm:$0xff]
      %v518 = vld [vmem:[#allocation2 + $0x41] sm:$0xff]
      %v519 = vld [vmem:[#allocation2 + $0x49] sm:$0xff]
      %v520 = vld [vmem:[#allocation2 + $0x51] sm:$0xff]
      %v521 = vld [vmem:[#allocation2 + $0x59] sm:$0xff]
      %v522 = vld [vmem:[#allocation2 + $0x61] sm:$0xff]
      %v523 = vld [vmem:[#allocation2 + $0x69] sm:$0xff]
      %v524 = vld [vmem:[#allocation2 + $0x71] sm:$0xff]
      %v525 = vld [vmem:[#allocation2 + $0x79] sm:$0xff]
      %v526 = vld [vmem:[#allocation2 + $0x81] sm:$0xff]
      %v527 = vld [vmem:[#allocation2 + $0x89] sm:$0xff]
      %v528 = vld [vmem:[#allocation2 + $0x91] sm:$0xff]
      %v529 = vld [vmem:[#allocation2 + $0x99] sm:$0xff]
      %v530 = vld [vmem:[#allocation2 + $0xa1] sm:$0xff]
      %v531 = vld [vmem:[#allocation2 + $0xa9] sm:$0xff]
      %v532 = vld [vmem:[#allocation2 + $0xb1] sm:$0xff]
      %v533 = vld [vmem:[#allocation2 + $0xb9] sm:$0xff]
      %v534 = vld [vmem:[#allocation2 + $0xc1] sm:$0xff]
      %v535 = vld [vmem:[#allocation2 + $0xc9] sm:$0xff]
      %v536 = vld [vmem:[#allocation2 + $0xd1] sm:$0xff]
      %v537 = vld [vmem:[#allocation2 + $0xd9] sm:$0xff]
      %v538 = vld [vmem:[#allocation2 + $0xe1] sm:$0xff]
      %v539 = vld [vmem:[#allocation2 + $0xe9] sm:$0xff]
      %v540 = vld [vmem:[#allocation2 + $0xf1] sm:$0xff]
      %v541 = vld [vmem:[#allocation2 + $0xf9] sm:$0xff]
      %v542 = vld [vmem:[#allocation2 + $0x101] sm:$0xff]
      %v543 = vld [vmem:[#allocation2 + $0x109] sm:$0xff]
      %v544 = vld [vmem:[#allocation2 + $0x111] sm:$0xff]
      %v545 = vld [vmem:[#allocation2 + $0x119] sm:$0xff]
      %s546 = scalar_lea.vmem %s1, 4
      %v547 = vld [vmem:[%s546] sm:$0xf]
      %v549 = vsel %vm306, %v510, 0
      %v552 = vsel %vm306, %v511, 0
      %v555 = vsel %vm306, %v512, 0
      %v558 = vsel %vm306, %v513, 0
      %v561 = vsel %vm306, %v514, 0
      %v564 = vsel %vm306, %v515, 0
      %v567 = vsel %vm306, %v516, 0
      %v570 = vsel %vm306, %v517, 0
      %v573 = vsel %vm306, %v518, 0
      %v576 = vsel %vm306, %v519, 0
      %v579 = vsel %vm306, %v520, 0
      %v582 = vsel %vm306, %v521, 0
      %v585 = vsel %vm306, %v522, 0
      %v588 = vsel %vm306, %v523, 0
      %v591 = vsel %vm306, %v524, 0
      %v594 = vsel %vm306, %v525, 0
      %v597 = vsel %vm306, %v526, 0
      %v600 = vsel %vm306, %v527, 0
      %v603 = vsel %vm306, %v528, 0
      %v606 = vsel %vm306, %v529, 0
      %v609 = vsel %vm306, %v530, 0
      %v612 = vsel %vm306, %v531, 0
      %v615 = vsel %vm306, %v532, 0
      %v618 = vsel %vm306, %v533, 0
      %v621 = vsel %vm306, %v534, 0
      %v624 = vsel %vm306, %v535, 0
      %v627 = vsel %vm306, %v536, 0
      %v630 = vsel %vm306, %v537, 0
      %v633 = vsel %vm306, %v538, 0
      %v636 = vsel %vm306, %v539, 0
      %v639 = vsel %vm306, %v540, 0
      %v642 = vsel %vm306, %v541, 0
      %v645 = vsel %vm306, %v542, 0
      %v648 = vsel %vm306, %v543, 0
      %v651 = vsel %vm306, %v544, 0
      %v654 = vsel %vm306, %v545, 0
      %vm656 = vcmask 1043456
      %v658 = vsel %vm656, %v547, 0
      %660 = vmatpush.msra.mxu0 0.0
      %661 = vmatpush.msra.mxu0 0.0
      %662 = vmatpush.msra.mxu0 0.0
      %663 = vmatpush.msra.mxu0 0.0
      %664 = vmatpush.msra.mxu0 0.0
      %665 = vmatpush.msra.mxu0 0.0
      %666 = vmatpush.msra.mxu0 0.0
      %667 = vmatpush.msra.mxu0 0.0
      %668 = vmatpush.msra.mxu0 0.0
      %669 = vmatpush.msra.mxu0 0.0
      %670 = vmatpush.msra.mxu0 0.0
      %671 = vmatpush.msra.mxu0 0.0
      %672 = vmatpush.msra.mxu0 0.0
      %673 = vmatpush.msra.mxu0 0.0
      %674 = vmatpush.msra.mxu0 0.0
      %675 = vmatpush.msra.mxu0 %v658
      %676 = vmatmul.f32.gmra.mxu0 %v549
      %v677 = vpop.f32.mrf.mxu0
      %v678 = vadd.f32 0.0, %v677
      %679 = vmatmul.f32.gmra.mxu0 %v552
      %v680 = vpop.f32.mrf.mxu0
      %v681 = vadd.f32 0.0, %v680
      %682 = vmatmul.f32.gmra.mxu0 %v555
      %v683 = vpop.f32.mrf.mxu0
      %v684 = vadd.f32 0.0, %v683
      %685 = vmatmul.f32.gmra.mxu0 %v558
      %v686 = vpop.f32.mrf.mxu0
      %v687 = vadd.f32 0.0, %v686
      %688 = vmatmul.f32.gmra.mxu0 %v561
      %v689 = vpop.f32.mrf.mxu0
      %v690 = vadd.f32 0.0, %v689
      %691 = vmatmul.f32.gmra.mxu0 %v564
      %v692 = vpop.f32.mrf.mxu0
      %v693 = vadd.f32 0.0, %v692
      %694 = vmatmul.f32.gmra.mxu0 %v567
      %v695 = vpop.f32.mrf.mxu0
      %v696 = vadd.f32 0.0, %v695
      %697 = vmatmul.f32.gmra.mxu0 %v570
      %v698 = vpop.f32.mrf.mxu0
      %v699 = vadd.f32 0.0, %v698
      %700 = vmatmul.f32.gmra.mxu0 %v573
      %v701 = vpop.f32.mrf.mxu0
      %v702 = vadd.f32 0.0, %v701
      %703 = vmatmul.f32.gmra.mxu0 %v576
      %v704 = vpop.f32.mrf.mxu0
      %v705 = vadd.f32 0.0, %v704
      %706 = vmatmul.f32.gmra.mxu0 %v579
      %v707 = vpop.f32.mrf.mxu0
      %v708 = vadd.f32 0.0, %v707
      %709 = vmatmul.f32.gmra.mxu0 %v582
      %v710 = vpop.f32.mrf.mxu0
      %v711 = vadd.f32 0.0, %v710
      %712 = vmatmul.f32.gmra.mxu0 %v585
      %v713 = vpop.f32.mrf.mxu0
      %v714 = vadd.f32 0.0, %v713
      %715 = vmatmul.f32.gmra.mxu0 %v588
      %v716 = vpop.f32.mrf.mxu0
      %v717 = vadd.f32 0.0, %v716
      %718 = vmatmul.f32.gmra.mxu0 %v591
      %v719 = vpop.f32.mrf.mxu0
      %v720 = vadd.f32 0.0, %v719
      %721 = vmatmul.f32.gmra.mxu0 %v594
      %v722 = vpop.f32.mrf.mxu0
      %v723 = vadd.f32 0.0, %v722
      %724 = vmatmul.f32.gmra.mxu0 %v597
      %v725 = vpop.f32.mrf.mxu0
      %v726 = vadd.f32 0.0, %v725
      %727 = vmatmul.f32.gmra.mxu0 %v600
      %v728 = vpop.f32.mrf.mxu0
      %v729 = vadd.f32 0.0, %v728
      %730 = vmatmul.f32.gmra.mxu0 %v603
      %v731 = vpop.f32.mrf.mxu0
      %v732 = vadd.f32 0.0, %v731
      %733 = vmatmul.f32.gmra.mxu0 %v606
      %v734 = vpop.f32.mrf.mxu0
      %v735 = vadd.f32 0.0, %v734
      %736 = vmatmul.f32.gmra.mxu0 %v609
      %v737 = vpop.f32.mrf.mxu0
      %v738 = vadd.f32 0.0, %v737
      %739 = vmatmul.f32.gmra.mxu0 %v612
      %v740 = vpop.f32.mrf.mxu0
      %v741 = vadd.f32 0.0, %v740
      %742 = vmatmul.f32.gmra.mxu0 %v615
      %v743 = vpop.f32.mrf.mxu0
      %v744 = vadd.f32 0.0, %v743
      %745 = vmatmul.f32.gmra.mxu0 %v618
      %v746 = vpop.f32.mrf.mxu0
      %v747 = vadd.f32 0.0, %v746
      %748 = vmatmul.f32.gmra.mxu0 %v621
      %v749 = vpop.f32.mrf.mxu0
      %v750 = vadd.f32 0.0, %v749
      %751 = vmatmul.f32.gmra.mxu0 %v624
      %v752 = vpop.f32.mrf.mxu0
      %v753 = vadd.f32 0.0, %v752
      %754 = vmatmul.f32.gmra.mxu0 %v627
      %v755 = vpop.f32.mrf.mxu0
      %v756 = vadd.f32 0.0, %v755
      %757 = vmatmul.f32.gmra.mxu0 %v630
      %v758 = vpop.f32.mrf.mxu0
      %v759 = vadd.f32 0.0, %v758
      %760 = vmatmul.f32.gmra.mxu0 %v633
      %v761 = vpop.f32.mrf.mxu0
      %v762 = vadd.f32 0.0, %v761
      %763 = vmatmul.f32.gmra.mxu0 %v636
      %v764 = vpop.f32.mrf.mxu0
      %v765 = vadd.f32 0.0, %v764
      %766 = vmatmul.f32.gmra.mxu0 %v639
      %v767 = vpop.f32.mrf.mxu0
      %v768 = vadd.f32 0.0, %v767
      %769 = vmatmul.f32.gmra.mxu0 %v642
      %v770 = vpop.f32.mrf.mxu0
      %v771 = vadd.f32 0.0, %v770
      %772 = vmatmul.f32.gmra.mxu0 %v645
      %v773 = vpop.f32.mrf.mxu0
      %v774 = vadd.f32 0.0, %v773
      %775 = vmatmul.f32.gmra.mxu0 %v648
      %v776 = vpop.f32.mrf.mxu0
      %v777 = vadd.f32 0.0, %v776
      %778 = vmatmul.f32.gmra.mxu0 %v651
      %v779 = vpop.f32.mrf.mxu0
      %v780 = vadd.f32 0.0, %v779
      %781 = vmatmul.f32.gmra.mxu0 %v654
      %v782 = vpop.f32.mrf.mxu0
      %v783 = vadd.f32 0.0, %v782
      %784 = vdwg.mxu0
      %v786 = vsel %vm306, %v473, 0
      %v789 = vsel %vm306, %v474, 0
      %v792 = vsel %vm306, %v475, 0
      %v795 = vsel %vm306, %v476, 0
      %v798 = vsel %vm306, %v477, 0
      %v801 = vsel %vm306, %v478, 0
      %v804 = vsel %vm306, %v479, 0
      %v807 = vsel %vm306, %v480, 0
      %v810 = vsel %vm306, %v481, 0
      %v813 = vsel %vm306, %v482, 0
      %v816 = vsel %vm306, %v483, 0
      %v819 = vsel %vm306, %v484, 0
      %v822 = vsel %vm306, %v485, 0
      %v825 = vsel %vm306, %v486, 0
      %v828 = vsel %vm306, %v487, 0
      %v831 = vsel %vm306, %v488, 0
      %v834 = vsel %vm306, %v489, 0
      %v837 = vsel %vm306, %v490, 0
      %v840 = vsel %vm306, %v491, 0
      %v843 = vsel %vm306, %v492, 0
      %v846 = vsel %vm306, %v493, 0
      %v849 = vsel %vm306, %v494, 0
      %v852 = vsel %vm306, %v495, 0
      %v855 = vsel %vm306, %v496, 0
      %v858 = vsel %vm306, %v497, 0
      %v861 = vsel %vm306, %v498, 0
      %v864 = vsel %vm306, %v499, 0
      %v867 = vsel %vm306, %v500, 0
      %v870 = vsel %vm306, %v501, 0
      %v873 = vsel %vm306, %v502, 0
      %v876 = vsel %vm306, %v503, 0
      %v879 = vsel %vm306, %v504, 0
      %v882 = vsel %vm306, %v505, 0
      %v885 = vsel %vm306, %v506, 0
      %v888 = vsel %vm306, %v507, 0
      %v891 = vsel %vm306, %v508, 0
      %v894 = vsel %vm656, %v509, 0
      %896 = vmatpush.msra.mxu0 0.0
      %897 = vmatpush.msra.mxu0 0.0
      %898 = vmatpush.msra.mxu0 0.0
      %899 = vmatpush.msra.mxu0 0.0
      %900 = vmatpush.msra.mxu0 0.0
      %901 = vmatpush.msra.mxu0 0.0
      %902 = vmatpush.msra.mxu0 0.0
      %903 = vmatpush.msra.mxu0 0.0
      %904 = vmatpush.msra.mxu0 0.0
      %905 = vmatpush.msra.mxu0 0.0
      %906 = vmatpush.msra.mxu0 0.0
      %907 = vmatpush.msra.mxu0 0.0
      %908 = vmatpush.msra.mxu0 0.0
      %909 = vmatpush.msra.mxu0 0.0
      %910 = vmatpush.msra.mxu0 0.0
      %911 = vmatpush.msra.mxu0 %v894
      %912 = vmatmul.f32.gmra.mxu0 %v786
      %v913 = vpop.f32.mrf.mxu0
      %v914 = vadd.f32 %v678, %v913
      %915 = vmatmul.f32.gmra.mxu0 %v789
      %v916 = vpop.f32.mrf.mxu0
      %v917 = vadd.f32 %v681, %v916
      %918 = vmatmul.f32.gmra.mxu0 %v792
      %v919 = vpop.f32.mrf.mxu0
      %v920 = vadd.f32 %v684, %v919
      %921 = vmatmul.f32.gmra.mxu0 %v795
      %v922 = vpop.f32.mrf.mxu0
      %v923 = vadd.f32 %v687, %v922
      %924 = vmatmul.f32.gmra.mxu0 %v798
      %v925 = vpop.f32.mrf.mxu0
      %v926 = vadd.f32 %v690, %v925
      %927 = vmatmul.f32.gmra.mxu0 %v801
      %v928 = vpop.f32.mrf.mxu0
      %v929 = vadd.f32 %v693, %v928
      %930 = vmatmul.f32.gmra.mxu0 %v804
      %v931 = vpop.f32.mrf.mxu0
      %v932 = vadd.f32 %v696, %v931
      %933 = vmatmul.f32.gmra.mxu0 %v807
      %v934 = vpop.f32.mrf.mxu0
      %v935 = vadd.f32 %v699, %v934
      %936 = vmatmul.f32.gmra.mxu0 %v810
      %v937 = vpop.f32.mrf.mxu0
      %v938 = vadd.f32 %v702, %v937
      %939 = vmatmul.f32.gmra.mxu0 %v813
      %v940 = vpop.f32.mrf.mxu0
      %v941 = vadd.f32 %v705, %v940
      %942 = vmatmul.f32.gmra.mxu0 %v816
      %v943 = vpop.f32.mrf.mxu0
      %v944 = vadd.f32 %v708, %v943
      %945 = vmatmul.f32.gmra.mxu0 %v819
      %v946 = vpop.f32.mrf.mxu0
      %v947 = vadd.f32 %v711, %v946
      %948 = vmatmul.f32.gmra.mxu0 %v822
      %v949 = vpop.f32.mrf.mxu0
      %v950 = vadd.f32 %v714, %v949
      %951 = vmatmul.f32.gmra.mxu0 %v825
      %v952 = vpop.f32.mrf.mxu0
      %v953 = vadd.f32 %v717, %v952
      %954 = vmatmul.f32.gmra.mxu0 %v828
      %v955 = vpop.f32.mrf.mxu0
      %v956 = vadd.f32 %v720, %v955
      %957 = vmatmul.f32.gmra.mxu0 %v831
      %v958 = vpop.f32.mrf.mxu0
      %v959 = vadd.f32 %v723, %v958
      %960 = vmatmul.f32.gmra.mxu0 %v834
      %v961 = vpop.f32.mrf.mxu0
      %v962 = vadd.f32 %v726, %v961
      %963 = vmatmul.f32.gmra.mxu0 %v837
      %v964 = vpop.f32.mrf.mxu0
      %v965 = vadd.f32 %v729, %v964
      %966 = vmatmul.f32.gmra.mxu0 %v840
      %v967 = vpop.f32.mrf.mxu0
      %v968 = vadd.f32 %v732, %v967
      %969 = vmatmul.f32.gmra.mxu0 %v843
      %v970 = vpop.f32.mrf.mxu0
      %v971 = vadd.f32 %v735, %v970
      %972 = vmatmul.f32.gmra.mxu0 %v846
      %v973 = vpop.f32.mrf.mxu0
      %v974 = vadd.f32 %v738, %v973
      %975 = vmatmul.f32.gmra.mxu0 %v849
      %v976 = vpop.f32.mrf.mxu0
      %v977 = vadd.f32 %v741, %v976
      %978 = vmatmul.f32.gmra.mxu0 %v852
      %v979 = vpop.f32.mrf.mxu0
      %v980 = vadd.f32 %v744, %v979
      %981 = vmatmul.f32.gmra.mxu0 %v855
      %v982 = vpop.f32.mrf.mxu0
      %v983 = vadd.f32 %v747, %v982
      %984 = vmatmul.f32.gmra.mxu0 %v858
      %v985 = vpop.f32.mrf.mxu0
      %v986 = vadd.f32 %v750, %v985
      %987 = vmatmul.f32.gmra.mxu0 %v861
      %v988 = vpop.f32.mrf.mxu0
      %v989 = vadd.f32 %v753, %v988
      %990 = vmatmul.f32.gmra.mxu0 %v864
      %v991 = vpop.f32.mrf.mxu0
      %v992 = vadd.f32 %v756, %v991
      %993 = vmatmul.f32.gmra.mxu0 %v867
      %v994 = vpop.f32.mrf.mxu0
      %v995 = vadd.f32 %v759, %v994
      %996 = vmatmul.f32.gmra.mxu0 %v870
      %v997 = vpop.f32.mrf.mxu0
      %v998 = vadd.f32 %v762, %v997
      %999 = vmatmul.f32.gmra.mxu0 %v873
      %v1000 = vpop.f32.mrf.mxu0
      %v1001 = vadd.f32 %v765, %v1000
      %1002 = vmatmul.f32.gmra.mxu0 %v876
      %v1003 = vpop.f32.mrf.mxu0
      %v1004 = vadd.f32 %v768, %v1003
      %1005 = vmatmul.f32.gmra.mxu0 %v879
      %v1006 = vpop.f32.mrf.mxu0
      %v1007 = vadd.f32 %v771, %v1006
      %1008 = vmatmul.f32.gmra.mxu0 %v882
      %v1009 = vpop.f32.mrf.mxu0
      %v1010 = vadd.f32 %v774, %v1009
      %1011 = vmatmul.f32.gmra.mxu0 %v885
      %v1012 = vpop.f32.mrf.mxu0
      %v1013 = vadd.f32 %v777, %v1012
      %1014 = vmatmul.f32.gmra.mxu0 %v888
      %v1015 = vpop.f32.mrf.mxu0
      %v1016 = vadd.f32 %v780, %v1015
      %1017 = vmatmul.f32.gmra.mxu0 %v891
      %v1018 = vpop.f32.mrf.mxu0
      %v1019 = vadd.f32 %v783, %v1018
      %1020 = vdwg.mxu0
      %v1021 = vld [vmem:[#allocation2 + $0x2] sm:$0xff]
      %v1022 = vld [vmem:[#allocation2 + $0xa] sm:$0xff]
      %v1023 = vld [vmem:[#allocation2 + $0x12] sm:$0xff]
      %v1024 = vld [vmem:[#allocation2 + $0x1a] sm:$0xff]
      %v1025 = vld [vmem:[#allocation2 + $0x22] sm:$0xff]
      %v1026 = vld [vmem:[#allocation2 + $0x2a] sm:$0xff]
      %v1027 = vld [vmem:[#allocation2 + $0x32] sm:$0xff]
      %v1028 = vld [vmem:[#allocation2 + $0x3a] sm:$0xff]
      %v1029 = vld [vmem:[#allocation2 + $0x42] sm:$0xff]
      %v1030 = vld [vmem:[#allocation2 + $0x4a] sm:$0xff]
      %v1031 = vld [vmem:[#allocation2 + $0x52] sm:$0xff]
      %v1032 = vld [vmem:[#allocation2 + $0x5a] sm:$0xff]
      %v1033 = vld [vmem:[#allocation2 + $0x62] sm:$0xff]
      %v1034 = vld [vmem:[#allocation2 + $0x6a] sm:$0xff]
      %v1035 = vld [vmem:[#allocation2 + $0x72] sm:$0xff]
      %v1036 = vld [vmem:[#allocation2 + $0x7a] sm:$0xff]
      %v1037 = vld [vmem:[#allocation2 + $0x82] sm:$0xff]
      %v1038 = vld [vmem:[#allocation2 + $0x8a] sm:$0xff]
      %v1039 = vld [vmem:[#allocation2 + $0x92] sm:$0xff]
      %v1040 = vld [vmem:[#allocation2 + $0x9a] sm:$0xff]
      %v1041 = vld [vmem:[#allocation2 + $0xa2] sm:$0xff]
      %v1042 = vld [vmem:[#allocation2 + $0xaa] sm:$0xff]
      %v1043 = vld [vmem:[#allocation2 + $0xb2] sm:$0xff]
      %v1044 = vld [vmem:[#allocation2 + $0xba] sm:$0xff]
      %v1045 = vld [vmem:[#allocation2 + $0xc2] sm:$0xff]
      %v1046 = vld [vmem:[#allocation2 + $0xca] sm:$0xff]
      %v1047 = vld [vmem:[#allocation2 + $0xd2] sm:$0xff]
      %v1048 = vld [vmem:[#allocation2 + $0xda] sm:$0xff]
      %v1049 = vld [vmem:[#allocation2 + $0xe2] sm:$0xff]
      %v1050 = vld [vmem:[#allocation2 + $0xea] sm:$0xff]
      %v1051 = vld [vmem:[#allocation2 + $0xf2] sm:$0xff]
      %v1052 = vld [vmem:[#allocation2 + $0xfa] sm:$0xff]
      %v1053 = vld [vmem:[#allocation2 + $0x102] sm:$0xff]
      %v1054 = vld [vmem:[#allocation2 + $0x10a] sm:$0xff]
      %v1055 = vld [vmem:[#allocation2 + $0x112] sm:$0xff]
      %v1056 = vld [vmem:[#allocation2 + $0x11a] sm:$0xff]
      %s1057 = scalar_lea.vmem %s1, 8
      %v1058 = vld [vmem:[%s1057] sm:$0xf]
      %v1060 = vsel %vm306, %v1021, 0
      %v1063 = vsel %vm306, %v1022, 0
      %v1066 = vsel %vm306, %v1023, 0
      %v1069 = vsel %vm306, %v1024, 0
      %v1072 = vsel %vm306, %v1025, 0
      %v1075 = vsel %vm306, %v1026, 0
      %v1078 = vsel %vm306, %v1027, 0
      %v1081 = vsel %vm306, %v1028, 0
      %v1084 = vsel %vm306, %v1029, 0
      %v1087 = vsel %vm306, %v1030, 0
      %v1090 = vsel %vm306, %v1031, 0
      %v1093 = vsel %vm306, %v1032, 0
      %v1096 = vsel %vm306, %v1033, 0
      %v1099 = vsel %vm306, %v1034, 0
      %v1102 = vsel %vm306, %v1035, 0
      %v1105 = vsel %vm306, %v1036, 0
      %v1108 = vsel %vm306, %v1037, 0
      %v1111 = vsel %vm306, %v1038, 0
      %v1114 = vsel %vm306, %v1039, 0
      %v1117 = vsel %vm306, %v1040, 0
      %v1120 = vsel %vm306, %v1041, 0
      %v1123 = vsel %vm306, %v1042, 0
      %v1126 = vsel %vm306, %v1043, 0
      %v1129 = vsel %vm306, %v1044, 0
      %v1132 = vsel %vm306, %v1045, 0
      %v1135 = vsel %vm306, %v1046, 0
      %v1138 = vsel %vm306, %v1047, 0
      %v1141 = vsel %vm306, %v1048, 0
      %v1144 = vsel %vm306, %v1049, 0
      %v1147 = vsel %vm306, %v1050, 0
      %v1150 = vsel %vm306, %v1051, 0
      %v1153 = vsel %vm306, %v1052, 0
      %v1156 = vsel %vm306, %v1053, 0
      %v1159 = vsel %vm306, %v1054, 0
      %v1162 = vsel %vm306, %v1055, 0
      %v1165 = vsel %vm306, %v1056, 0
      %v1168 = vsel %vm656, %v1058, 0
      %1170 = vmatpush.msra.mxu0 0.0
      %1171 = vmatpush.msra.mxu0 0.0
      %1172 = vmatpush.msra.mxu0 0.0
      %1173 = vmatpush.msra.mxu0 0.0
      %1174 = vmatpush.msra.mxu0 0.0
      %1175 = vmatpush.msra.mxu0 0.0
      %1176 = vmatpush.msra.mxu0 0.0
      %1177 = vmatpush.msra.mxu0 0.0
      %1178 = vmatpush.msra.mxu0 0.0
      %1179 = vmatpush.msra.mxu0 0.0
      %1180 = vmatpush.msra.mxu0 0.0
      %1181 = vmatpush.msra.mxu0 0.0
      %1182 = vmatpush.msra.mxu0 0.0
      %1183 = vmatpush.msra.mxu0 0.0
      %1184 = vmatpush.msra.mxu0 0.0
      %1185 = vmatpush.msra.mxu0 %v1168
      %1186 = vmatmul.f32.gmra.mxu0 %v1060
      %v1187 = vpop.f32.mrf.mxu0
      %v1188 = vadd.f32 0.0, %v1187
      %1189 = vmatmul.f32.gmra.mxu0 %v1063
      %v1190 = vpop.f32.mrf.mxu0
      %v1191 = vadd.f32 0.0, %v1190
      %1192 = vmatmul.f32.gmra.mxu0 %v1066
      %v1193 = vpop.f32.mrf.mxu0
      %v1194 = vadd.f32 0.0, %v1193
      %1195 = vmatmul.f32.gmra.mxu0 %v1069
      %v1196 = vpop.f32.mrf.mxu0
      %v1197 = vadd.f32 0.0, %v1196
      %1198 = vmatmul.f32.gmra.mxu0 %v1072
      %v1199 = vpop.f32.mrf.mxu0
      %v1200 = vadd.f32 0.0, %v1199
      %1201 = vmatmul.f32.gmra.mxu0 %v1075
      %v1202 = vpop.f32.mrf.mxu0
      %v1203 = vadd.f32 0.0, %v1202
      %1204 = vmatmul.f32.gmra.mxu0 %v1078
      %v1205 = vpop.f32.mrf.mxu0
      %v1206 = vadd.f32 0.0, %v1205
      %1207 = vmatmul.f32.gmra.mxu0 %v1081
      %v1208 = vpop.f32.mrf.mxu0
      %v1209 = vadd.f32 0.0, %v1208
      %1210 = vmatmul.f32.gmra.mxu0 %v1084
      %v1211 = vpop.f32.mrf.mxu0
      %v1212 = vadd.f32 0.0, %v1211
      %1213 = vmatmul.f32.gmra.mxu0 %v1087
      %v1214 = vpop.f32.mrf.mxu0
      %v1215 = vadd.f32 0.0, %v1214
      %1216 = vmatmul.f32.gmra.mxu0 %v1090
      %v1217 = vpop.f32.mrf.mxu0
      %v1218 = vadd.f32 0.0, %v1217
      %1219 = vmatmul.f32.gmra.mxu0 %v1093
      %v1220 = vpop.f32.mrf.mxu0
      %v1221 = vadd.f32 0.0, %v1220
      %1222 = vmatmul.f32.gmra.mxu0 %v1096
      %v1223 = vpop.f32.mrf.mxu0
      %v1224 = vadd.f32 0.0, %v1223
      %1225 = vmatmul.f32.gmra.mxu0 %v1099
      %v1226 = vpop.f32.mrf.mxu0
      %v1227 = vadd.f32 0.0, %v1226
      %1228 = vmatmul.f32.gmra.mxu0 %v1102
      %v1229 = vpop.f32.mrf.mxu0
      %v1230 = vadd.f32 0.0, %v1229
      %1231 = vmatmul.f32.gmra.mxu0 %v1105
      %v1232 = vpop.f32.mrf.mxu0
      %v1233 = vadd.f32 0.0, %v1232
      %1234 = vmatmul.f32.gmra.mxu0 %v1108
      %v1235 = vpop.f32.mrf.mxu0
      %v1236 = vadd.f32 0.0, %v1235
      %1237 = vmatmul.f32.gmra.mxu0 %v1111
      %v1238 = vpop.f32.mrf.mxu0
      %v1239 = vadd.f32 0.0, %v1238
      %1240 = vmatmul.f32.gmra.mxu0 %v1114
      %v1241 = vpop.f32.mrf.mxu0
      %v1242 = vadd.f32 0.0, %v1241
      %1243 = vmatmul.f32.gmra.mxu0 %v1117
      %v1244 = vpop.f32.mrf.mxu0
      %v1245 = vadd.f32 0.0, %v1244
      %1246 = vmatmul.f32.gmra.mxu0 %v1120
      %v1247 = vpop.f32.mrf.mxu0
      %v1248 = vadd.f32 0.0, %v1247
      %1249 = vmatmul.f32.gmra.mxu0 %v1123
      %v1250 = vpop.f32.mrf.mxu0
      %v1251 = vadd.f32 0.0, %v1250
      %1252 = vmatmul.f32.gmra.mxu0 %v1126
      %v1253 = vpop.f32.mrf.mxu0
      %v1254 = vadd.f32 0.0, %v1253
      %1255 = vmatmul.f32.gmra.mxu0 %v1129
      %v1256 = vpop.f32.mrf.mxu0
      %v1257 = vadd.f32 0.0, %v1256
      %1258 = vmatmul.f32.gmra.mxu0 %v1132
      %v1259 = vpop.f32.mrf.mxu0
      %v1260 = vadd.f32 0.0, %v1259
      %1261 = vmatmul.f32.gmra.mxu0 %v1135
      %v1262 = vpop.f32.mrf.mxu0
      %v1263 = vadd.f32 0.0, %v1262
      %1264 = vmatmul.f32.gmra.mxu0 %v1138
      %v1265 = vpop.f32.mrf.mxu0
      %v1266 = vadd.f32 0.0, %v1265
      %1267 = vmatmul.f32.gmra.mxu0 %v1141
      %v1268 = vpop.f32.mrf.mxu0
      %v1269 = vadd.f32 0.0, %v1268
      %1270 = vmatmul.f32.gmra.mxu0 %v1144
      %v1271 = vpop.f32.mrf.mxu0
      %v1272 = vadd.f32 0.0, %v1271
      %1273 = vmatmul.f32.gmra.mxu0 %v1147
      %v1274 = vpop.f32.mrf.mxu0
      %v1275 = vadd.f32 0.0, %v1274
      %1276 = vmatmul.f32.gmra.mxu0 %v1150
      %v1277 = vpop.f32.mrf.mxu0
      %v1278 = vadd.f32 0.0, %v1277
      %1279 = vmatmul.f32.gmra.mxu0 %v1153
      %v1280 = vpop.f32.mrf.mxu0
      %v1281 = vadd.f32 0.0, %v1280
      %1282 = vmatmul.f32.gmra.mxu0 %v1156
      %v1283 = vpop.f32.mrf.mxu0
      %v1284 = vadd.f32 0.0, %v1283
      %1285 = vmatmul.f32.gmra.mxu0 %v1159
      %v1286 = vpop.f32.mrf.mxu0
      %v1287 = vadd.f32 0.0, %v1286
      %1288 = vmatmul.f32.gmra.mxu0 %v1162
      %v1289 = vpop.f32.mrf.mxu0
      %v1290 = vadd.f32 0.0, %v1289
      %1291 = vmatmul.f32.gmra.mxu0 %v1165
      %v1292 = vpop.f32.mrf.mxu0
      %v1293 = vadd.f32 0.0, %v1292
      %1294 = vdwg.mxu0
      %v1295 = vadd.f32 %v914, %v1188
      %v1296 = vadd.f32 %v917, %v1191
      %v1297 = vadd.f32 %v920, %v1194
      %v1298 = vadd.f32 %v923, %v1197
      %v1299 = vadd.f32 %v926, %v1200
      %v1300 = vadd.f32 %v929, %v1203
      %v1301 = vadd.f32 %v932, %v1206
      %v1302 = vadd.f32 %v935, %v1209
      %v1303 = vadd.f32 %v938, %v1212
      %v1304 = vadd.f32 %v941, %v1215
      %v1305 = vadd.f32 %v944, %v1218
      %v1306 = vadd.f32 %v947, %v1221
      %v1307 = vadd.f32 %v950, %v1224
      %v1308 = vadd.f32 %v953, %v1227
      %v1309 = vadd.f32 %v956, %v1230
      %v1310 = vadd.f32 %v959, %v1233
      %v1311 = vadd.f32 %v962, %v1236
      %v1312 = vadd.f32 %v965, %v1239
      %v1313 = vadd.f32 %v968, %v1242
      %v1314 = vadd.f32 %v971, %v1245
      %v1315 = vadd.f32 %v974, %v1248
      %v1316 = vadd.f32 %v977, %v1251
      %v1317 = vadd.f32 %v980, %v1254
      %v1318 = vadd.f32 %v983, %v1257
      %v1319 = vadd.f32 %v986, %v1260
      %v1320 = vadd.f32 %v989, %v1263
      %v1321 = vadd.f32 %v992, %v1266
      %v1322 = vadd.f32 %v995, %v1269
      %v1323 = vadd.f32 %v998, %v1272
      %v1324 = vadd.f32 %v1001, %v1275
      %v1325 = vadd.f32 %v1004, %v1278
      %v1326 = vadd.f32 %v1007, %v1281
      %v1327 = vadd.f32 %v1010, %v1284
      %v1328 = vadd.f32 %v1013, %v1287
      %v1329 = vadd.f32 %v1016, %v1290
      %v1330 = vadd.f32 %v1019, %v1293
      %v1331 = vld [vmem:[#allocation2 + $0x12] sm:$0xff]
      %v1332 = vld [vmem:[#allocation2 + $0x1a] sm:$0xff]
      %v1333 = vld [vmem:[#allocation2 + $0x22] sm:$0xff]
      %v1334 = vld [vmem:[#allocation2 + $0x2a] sm:$0xff]
      %v1335 = vld [vmem:[#allocation2 + $0x32] sm:$0xff]
      %v1336 = vld [vmem:[#allocation2 + $0x3a] sm:$0xff]
      %v1337 = vld [vmem:[#allocation2 + $0x42] sm:$0xff]
      %v1338 = vld [vmem:[#allocation2 + $0x4a] sm:$0xff]
      %v1339 = vld [vmem:[#allocation2 + $0x52] sm:$0xff]
      %v1340 = vld [vmem:[#allocation2 + $0x5a] sm:$0xff]
      %v1341 = vld [vmem:[#allocation2 + $0x62] sm:$0xff]
      %v1342 = vld [vmem:[#allocation2 + $0x6a] sm:$0xff]
      %v1343 = vld [vmem:[#allocation2 + $0x72] sm:$0xff]
      %v1344 = vld [vmem:[#allocation2 + $0x7a] sm:$0xff]
      %v1345 = vld [vmem:[#allocation2 + $0x82] sm:$0xff]
      %v1346 = vld [vmem:[#allocation2 + $0x8a] sm:$0xff]
      %v1347 = vld [vmem:[#allocation2 + $0x92] sm:$0xff]
      %v1348 = vld [vmem:[#allocation2 + $0x9a] sm:$0xff]
      %v1349 = vld [vmem:[#allocation2 + $0xa2] sm:$0xff]
      %v1350 = vld [vmem:[#allocation2 + $0xaa] sm:$0xff]
      %v1351 = vld [vmem:[#allocation2 + $0xb2] sm:$0xff]
      %v1352 = vld [vmem:[#allocation2 + $0xba] sm:$0xff]
      %v1353 = vld [vmem:[#allocation2 + $0xc2] sm:$0xff]
      %v1354 = vld [vmem:[#allocation2 + $0xca] sm:$0xff]
      %v1355 = vld [vmem:[#allocation2 + $0xd2] sm:$0xff]
      %v1356 = vld [vmem:[#allocation2 + $0xda] sm:$0xff]
      %v1357 = vld [vmem:[#allocation2 + $0xe2] sm:$0xff]
      %v1358 = vld [vmem:[#allocation2 + $0xea] sm:$0xff]
      %v1359 = vld [vmem:[#allocation2 + $0xf2] sm:$0xff]
      %v1360 = vld [vmem:[#allocation2 + $0xfa] sm:$0xff]
      %v1361 = vld [vmem:[#allocation2 + $0x102] sm:$0xff]
      %v1362 = vld [vmem:[#allocation2 + $0x10a] sm:$0xff]
      %v1363 = vld [vmem:[#allocation2 + $0x112] sm:$0xff]
      %v1364 = vld [vmem:[#allocation2 + $0x11a] sm:$0xff]
      %v1365 = vld [vmem:[#allocation2 + $0x122] sm:$0xff]
      %v1366 = vld [vmem:[#allocation2 + $0x12a] sm:$0xff]
      %s1367 = scalar_lea.vmem %s1, 12
      %v1368 = vld [vmem:[%s1367] sm:$0xf]
      %v1370 = vsel %vm306, %v1331, 0
      %v1373 = vsel %vm306, %v1332, 0
      %v1376 = vsel %vm306, %v1333, 0
      %v1379 = vsel %vm306, %v1334, 0
      %v1382 = vsel %vm306, %v1335, 0
      %v1385 = vsel %vm306, %v1336, 0
      %v1388 = vsel %vm306, %v1337, 0
      %v1391 = vsel %vm306, %v1338, 0
      %v1394 = vsel %vm306, %v1339, 0
      %v1397 = vsel %vm306, %v1340, 0
      %v1400 = vsel %vm306, %v1341, 0
      %v1403 = vsel %vm306, %v1342, 0
      %v1406 = vsel %vm306, %v1343, 0
      %v1409 = vsel %vm306, %v1344, 0
      %v1412 = vsel %vm306, %v1345, 0
      %v1415 = vsel %vm306, %v1346, 0
      %v1418 = vsel %vm306, %v1347, 0
      %v1421 = vsel %vm306, %v1348, 0
      %v1424 = vsel %vm306, %v1349, 0
      %v1427 = vsel %vm306, %v1350, 0
      %v1430 = vsel %vm306, %v1351, 0
      %v1433 = vsel %vm306, %v1352, 0
      %v1436 = vsel %vm306, %v1353, 0
      %v1439 = vsel %vm306, %v1354, 0
      %v1442 = vsel %vm306, %v1355, 0
      %v1445 = vsel %vm306, %v1356, 0
      %v1448 = vsel %vm306, %v1357, 0
      %v1451 = vsel %vm306, %v1358, 0
      %v1454 = vsel %vm306, %v1359, 0
      %v1457 = vsel %vm306, %v1360, 0
      %v1460 = vsel %vm306, %v1361, 0
      %v1463 = vsel %vm306, %v1362, 0
      %v1466 = vsel %vm306, %v1363, 0
      %v1469 = vsel %vm306, %v1364, 0
      %v1472 = vsel %vm306, %v1365, 0
      %v1475 = vsel %vm306, %v1366, 0
      %v1478 = vsel %vm656, %v1368, 0
      %1480 = vmatpush.msra.mxu0 0.0
      %1481 = vmatpush.msra.mxu0 0.0
      %1482 = vmatpush.msra.mxu0 0.0
      %1483 = vmatpush.msra.mxu0 0.0
      %1484 = vmatpush.msra.mxu0 0.0
      %1485 = vmatpush.msra.mxu0 0.0
      %1486 = vmatpush.msra.mxu0 0.0
      %1487 = vmatpush.msra.mxu0 0.0
      %1488 = vmatpush.msra.mxu0 0.0
      %1489 = vmatpush.msra.mxu0 0.0
      %1490 = vmatpush.msra.mxu0 0.0
      %1491 = vmatpush.msra.mxu0 0.0
      %1492 = vmatpush.msra.mxu0 0.0
      %1493 = vmatpush.msra.mxu0 0.0
      %1494 = vmatpush.msra.mxu0 0.0
      %1495 = vmatpush.msra.mxu0 %v1478
      %1496 = vmatmul.f32.gmra.mxu0 %v1370
      %v1497 = vpop.f32.mrf.mxu0
      %v1498 = vadd.f32 0.0, %v1497
      %1499 = vmatmul.f32.gmra.mxu0 %v1373
      %v1500 = vpop.f32.mrf.mxu0
      %v1501 = vadd.f32 0.0, %v1500
      %1502 = vmatmul.f32.gmra.mxu0 %v1376
      %v1503 = vpop.f32.mrf.mxu0
      %v1504 = vadd.f32 0.0, %v1503
      %1505 = vmatmul.f32.gmra.mxu0 %v1379
      %v1506 = vpop.f32.mrf.mxu0
      %v1507 = vadd.f32 0.0, %v1506
      %1508 = vmatmul.f32.gmra.mxu0 %v1382
      %v1509 = vpop.f32.mrf.mxu0
      %v1510 = vadd.f32 0.0, %v1509
      %1511 = vmatmul.f32.gmra.mxu0 %v1385
      %v1512 = vpop.f32.mrf.mxu0
      %v1513 = vadd.f32 0.0, %v1512
      %1514 = vmatmul.f32.gmra.mxu0 %v1388
      %v1515 = vpop.f32.mrf.mxu0
      %v1516 = vadd.f32 0.0, %v1515
      %1517 = vmatmul.f32.gmra.mxu0 %v1391
      %v1518 = vpop.f32.mrf.mxu0
      %v1519 = vadd.f32 0.0, %v1518
      %1520 = vmatmul.f32.gmra.mxu0 %v1394
      %v1521 = vpop.f32.mrf.mxu0
      %v1522 = vadd.f32 0.0, %v1521
      %1523 = vmatmul.f32.gmra.mxu0 %v1397
      %v1524 = vpop.f32.mrf.mxu0
      %v1525 = vadd.f32 0.0, %v1524
      %1526 = vmatmul.f32.gmra.mxu0 %v1400
      %v1527 = vpop.f32.mrf.mxu0
      %v1528 = vadd.f32 0.0, %v1527
      %1529 = vmatmul.f32.gmra.mxu0 %v1403
      %v1530 = vpop.f32.mrf.mxu0
      %v1531 = vadd.f32 0.0, %v1530
      %1532 = vmatmul.f32.gmra.mxu0 %v1406
      %v1533 = vpop.f32.mrf.mxu0
      %v1534 = vadd.f32 0.0, %v1533
      %1535 = vmatmul.f32.gmra.mxu0 %v1409
      %v1536 = vpop.f32.mrf.mxu0
      %v1537 = vadd.f32 0.0, %v1536
      %1538 = vmatmul.f32.gmra.mxu0 %v1412
      %v1539 = vpop.f32.mrf.mxu0
      %v1540 = vadd.f32 0.0, %v1539
      %1541 = vmatmul.f32.gmra.mxu0 %v1415
      %v1542 = vpop.f32.mrf.mxu0
      %v1543 = vadd.f32 0.0, %v1542
      %1544 = vmatmul.f32.gmra.mxu0 %v1418
      %v1545 = vpop.f32.mrf.mxu0
      %v1546 = vadd.f32 0.0, %v1545
      %1547 = vmatmul.f32.gmra.mxu0 %v1421
      %v1548 = vpop.f32.mrf.mxu0
      %v1549 = vadd.f32 0.0, %v1548
      %1550 = vmatmul.f32.gmra.mxu0 %v1424
      %v1551 = vpop.f32.mrf.mxu0
      %v1552 = vadd.f32 0.0, %v1551
      %1553 = vmatmul.f32.gmra.mxu0 %v1427
      %v1554 = vpop.f32.mrf.mxu0
      %v1555 = vadd.f32 0.0, %v1554
      %1556 = vmatmul.f32.gmra.mxu0 %v1430
      %v1557 = vpop.f32.mrf.mxu0
      %v1558 = vadd.f32 0.0, %v1557
      %1559 = vmatmul.f32.gmra.mxu0 %v1433
      %v1560 = vpop.f32.mrf.mxu0
      %v1561 = vadd.f32 0.0, %v1560
      %1562 = vmatmul.f32.gmra.mxu0 %v1436
      %v1563 = vpop.f32.mrf.mxu0
      %v1564 = vadd.f32 0.0, %v1563
      %1565 = vmatmul.f32.gmra.mxu0 %v1439
      %v1566 = vpop.f32.mrf.mxu0
      %v1567 = vadd.f32 0.0, %v1566
      %1568 = vmatmul.f32.gmra.mxu0 %v1442
      %v1569 = vpop.f32.mrf.mxu0
      %v1570 = vadd.f32 0.0, %v1569
      %1571 = vmatmul.f32.gmra.mxu0 %v1445
      %v1572 = vpop.f32.mrf.mxu0
      %v1573 = vadd.f32 0.0, %v1572
      %1574 = vmatmul.f32.gmra.mxu0 %v1448
      %v1575 = vpop.f32.mrf.mxu0
      %v1576 = vadd.f32 0.0, %v1575
      %1577 = vmatmul.f32.gmra.mxu0 %v1451
      %v1578 = vpop.f32.mrf.mxu0
      %v1579 = vadd.f32 0.0, %v1578
      %1580 = vmatmul.f32.gmra.mxu0 %v1454
      %v1581 = vpop.f32.mrf.mxu0
      %v1582 = vadd.f32 0.0, %v1581
      %1583 = vmatmul.f32.gmra.mxu0 %v1457
      %v1584 = vpop.f32.mrf.mxu0
      %v1585 = vadd.f32 0.0, %v1584
      %1586 = vmatmul.f32.gmra.mxu0 %v1460
      %v1587 = vpop.f32.mrf.mxu0
      %v1588 = vadd.f32 0.0, %v1587
      %1589 = vmatmul.f32.gmra.mxu0 %v1463
      %v1590 = vpop.f32.mrf.mxu0
      %v1591 = vadd.f32 0.0, %v1590
      %1592 = vmatmul.f32.gmra.mxu0 %v1466
      %v1593 = vpop.f32.mrf.mxu0
      %v1594 = vadd.f32 0.0, %v1593
      %1595 = vmatmul.f32.gmra.mxu0 %v1469
      %v1596 = vpop.f32.mrf.mxu0
      %v1597 = vadd.f32 0.0, %v1596
      %1598 = vmatmul.f32.gmra.mxu0 %v1472
      %v1599 = vpop.f32.mrf.mxu0
      %v1600 = vadd.f32 0.0, %v1599
      %1601 = vmatmul.f32.gmra.mxu0 %v1475
      %v1602 = vpop.f32.mrf.mxu0
      %v1603 = vadd.f32 0.0, %v1602
      %1604 = vdwg.mxu0
      %v1605 = vadd.f32 %v1295, %v1498
      %v1606 = vadd.f32 %v1296, %v1501
      %v1607 = vadd.f32 %v1297, %v1504
      %v1608 = vadd.f32 %v1298, %v1507
      %v1609 = vadd.f32 %v1299, %v1510
      %v1610 = vadd.f32 %v1300, %v1513
      %v1611 = vadd.f32 %v1301, %v1516
      %v1612 = vadd.f32 %v1302, %v1519
      %v1613 = vadd.f32 %v1303, %v1522
      %v1614 = vadd.f32 %v1304, %v1525
      %v1615 = vadd.f32 %v1305, %v1528
      %v1616 = vadd.f32 %v1306, %v1531
      %v1617 = vadd.f32 %v1307, %v1534
      %v1618 = vadd.f32 %v1308, %v1537
      %v1619 = vadd.f32 %v1309, %v1540
      %v1620 = vadd.f32 %v1310, %v1543
      %v1621 = vadd.f32 %v1311, %v1546
      %v1622 = vadd.f32 %v1312, %v1549
      %v1623 = vadd.f32 %v1313, %v1552
      %v1624 = vadd.f32 %v1314, %v1555
      %v1625 = vadd.f32 %v1315, %v1558
      %v1626 = vadd.f32 %v1316, %v1561
      %v1627 = vadd.f32 %v1317, %v1564
      %v1628 = vadd.f32 %v1318, %v1567
      %v1629 = vadd.f32 %v1319, %v1570
      %v1630 = vadd.f32 %v1320, %v1573
      %v1631 = vadd.f32 %v1321, %v1576
      %v1632 = vadd.f32 %v1322, %v1579
      %v1633 = vadd.f32 %v1323, %v1582
      %v1634 = vadd.f32 %v1324, %v1585
      %v1635 = vadd.f32 %v1325, %v1588
      %v1636 = vadd.f32 %v1326, %v1591
      %v1637 = vadd.f32 %v1327, %v1594
      %v1638 = vadd.f32 %v1328, %v1597
      %v1639 = vadd.f32 %v1329, %v1600
      %v1640 = vadd.f32 %v1330, %v1603
      %v1641 = vld [vmem:[#allocation2 + $0x13] sm:$0xff]
      %v1642 = vld [vmem:[#allocation2 + $0x1b] sm:$0xff]
      %v1643 = vld [vmem:[#allocation2 + $0x23] sm:$0xff]
      %v1644 = vld [vmem:[#allocation2 + $0x2b] sm:$0xff]
      %v1645 = vld [vmem:[#allocation2 + $0x33] sm:$0xff]
      %v1646 = vld [vmem:[#allocation2 + $0x3b] sm:$0xff]
      %v1647 = vld [vmem:[#allocation2 + $0x43] sm:$0xff]
      %v1648 = vld [vmem:[#allocation2 + $0x4b] sm:$0xff]
      %v1649 = vld [vmem:[#allocation2 + $0x53] sm:$0xff]
      %v1650 = vld [vmem:[#allocation2 + $0x5b] sm:$0xff]
      %v1651 = vld [vmem:[#allocation2 + $0x63] sm:$0xff]
      %v1652 = vld [vmem:[#allocation2 + $0x6b] sm:$0xff]
      %v1653 = vld [vmem:[#allocation2 + $0x73] sm:$0xff]
      %v1654 = vld [vmem:[#allocation2 + $0x7b] sm:$0xff]
      %v1655 = vld [vmem:[#allocation2 + $0x83] sm:$0xff]
      %v1656 = vld [vmem:[#allocation2 + $0x8b] sm:$0xff]
      %v1657 = vld [vmem:[#allocation2 + $0x93] sm:$0xff]
      %v1658 = vld [vmem:[#allocation2 + $0x9b] sm:$0xff]
      %v1659 = vld [vmem:[#allocation2 + $0xa3] sm:$0xff]
      %v1660 = vld [vmem:[#allocation2 + $0xab] sm:$0xff]
      %v1661 = vld [vmem:[#allocation2 + $0xb3] sm:$0xff]
      %v1662 = vld [vmem:[#allocation2 + $0xbb] sm:$0xff]
      %v1663 = vld [vmem:[#allocation2 + $0xc3] sm:$0xff]
      %v1664 = vld [vmem:[#allocation2 + $0xcb] sm:$0xff]
      %v1665 = vld [vmem:[#allocation2 + $0xd3] sm:$0xff]
      %v1666 = vld [vmem:[#allocation2 + $0xdb] sm:$0xff]
      %v1667 = vld [vmem:[#allocation2 + $0xe3] sm:$0xff]
      %v1668 = vld [vmem:[#allocation2 + $0xeb] sm:$0xff]
      %v1669 = vld [vmem:[#allocation2 + $0xf3] sm:$0xff]
      %v1670 = vld [vmem:[#allocation2 + $0xfb] sm:$0xff]
      %v1671 = vld [vmem:[#allocation2 + $0x103] sm:$0xff]
      %v1672 = vld [vmem:[#allocation2 + $0x10b] sm:$0xff]
      %v1673 = vld [vmem:[#allocation2 + $0x113] sm:$0xff]
      %v1674 = vld [vmem:[#allocation2 + $0x11b] sm:$0xff]
      %v1675 = vld [vmem:[#allocation2 + $0x123] sm:$0xff]
      %v1676 = vld [vmem:[#allocation2 + $0x12b] sm:$0xff]
      %s1677 = scalar_lea.vmem %s1, 16
      %v1678 = vld [vmem:[%s1677] sm:$0xf]
      %v1680 = vsel %vm306, %v1641, 0
      %v1683 = vsel %vm306, %v1642, 0
      %v1686 = vsel %vm306, %v1643, 0
      %v1689 = vsel %vm306, %v1644, 0
      %v1692 = vsel %vm306, %v1645, 0
      %v1695 = vsel %vm306, %v1646, 0
      %v1698 = vsel %vm306, %v1647, 0
      %v1701 = vsel %vm306, %v1648, 0
      %v1704 = vsel %vm306, %v1649, 0
      %v1707 = vsel %vm306, %v1650, 0
      %v1710 = vsel %vm306, %v1651, 0
      %v1713 = vsel %vm306, %v1652, 0
      %v1716 = vsel %vm306, %v1653, 0
      %v1719 = vsel %vm306, %v1654, 0
      %v1722 = vsel %vm306, %v1655, 0
      %v1725 = vsel %vm306, %v1656, 0
      %v1728 = vsel %vm306, %v1657, 0
      %v1731 = vsel %vm306, %v1658, 0
      %v1734 = vsel %vm306, %v1659, 0
      %v1737 = vsel %vm306, %v1660, 0
      %v1740 = vsel %vm306, %v1661, 0
      %v1743 = vsel %vm306, %v1662, 0
      %v1746 = vsel %vm306, %v1663, 0
      %v1749 = vsel %vm306, %v1664, 0
      %v1752 = vsel %vm306, %v1665, 0
      %v1755 = vsel %vm306, %v1666, 0
      %v1758 = vsel %vm306, %v1667, 0
      %v1761 = vsel %vm306, %v1668, 0
      %v1764 = vsel %vm306, %v1669, 0
      %v1767 = vsel %vm306, %v1670, 0
      %v1770 = vsel %vm306, %v1671, 0
      %v1773 = vsel %vm306, %v1672, 0
      %v1776 = vsel %vm306, %v1673, 0
      %v1779 = vsel %vm306, %v1674, 0
      %v1782 = vsel %vm306, %v1675, 0
      %v1785 = vsel %vm306, %v1676, 0
      %v1788 = vsel %vm656, %v1678, 0
      %1790 = vmatpush.msra.mxu0 0.0
      %1791 = vmatpush.msra.mxu0 0.0
      %1792 = vmatpush.msra.mxu0 0.0
      %1793 = vmatpush.msra.mxu0 0.0
      %1794 = vmatpush.msra.mxu0 0.0
      %1795 = vmatpush.msra.mxu0 0.0
      %1796 = vmatpush.msra.mxu0 0.0
      %1797 = vmatpush.msra.mxu0 0.0
      %1798 = vmatpush.msra.mxu0 0.0
      %1799 = vmatpush.msra.mxu0 0.0
      %1800 = vmatpush.msra.mxu0 0.0
      %1801 = vmatpush.msra.mxu0 0.0
      %1802 = vmatpush.msra.mxu0 0.0
      %1803 = vmatpush.msra.mxu0 0.0
      %1804 = vmatpush.msra.mxu0 0.0
      %1805 = vmatpush.msra.mxu0 %v1788
      %1806 = vmatmul.f32.gmra.mxu0 %v1680
      %v1807 = vpop.f32.mrf.mxu0
      %v1808 = vadd.f32 0.0, %v1807
      %1809 = vmatmul.f32.gmra.mxu0 %v1683
      %v1810 = vpop.f32.mrf.mxu0
      %v1811 = vadd.f32 0.0, %v1810
      %1812 = vmatmul.f32.gmra.mxu0 %v1686
      %v1813 = vpop.f32.mrf.mxu0
      %v1814 = vadd.f32 0.0, %v1813
      %1815 = vmatmul.f32.gmra.mxu0 %v1689
      %v1816 = vpop.f32.mrf.mxu0
      %v1817 = vadd.f32 0.0, %v1816
      %1818 = vmatmul.f32.gmra.mxu0 %v1692
      %v1819 = vpop.f32.mrf.mxu0
      %v1820 = vadd.f32 0.0, %v1819
      %1821 = vmatmul.f32.gmra.mxu0 %v1695
      %v1822 = vpop.f32.mrf.mxu0
      %v1823 = vadd.f32 0.0, %v1822
      %1824 = vmatmul.f32.gmra.mxu0 %v1698
      %v1825 = vpop.f32.mrf.mxu0
      %v1826 = vadd.f32 0.0, %v1825
      %1827 = vmatmul.f32.gmra.mxu0 %v1701
      %v1828 = vpop.f32.mrf.mxu0
      %v1829 = vadd.f32 0.0, %v1828
      %1830 = vmatmul.f32.gmra.mxu0 %v1704
      %v1831 = vpop.f32.mrf.mxu0
      %v1832 = vadd.f32 0.0, %v1831
      %1833 = vmatmul.f32.gmra.mxu0 %v1707
      %v1834 = vpop.f32.mrf.mxu0
      %v1835 = vadd.f32 0.0, %v1834
      %1836 = vmatmul.f32.gmra.mxu0 %v1710
      %v1837 = vpop.f32.mrf.mxu0
      %v1838 = vadd.f32 0.0, %v1837
      %1839 = vmatmul.f32.gmra.mxu0 %v1713
      %v1840 = vpop.f32.mrf.mxu0
      %v1841 = vadd.f32 0.0, %v1840
      %1842 = vmatmul.f32.gmra.mxu0 %v1716
      %v1843 = vpop.f32.mrf.mxu0
      %v1844 = vadd.f32 0.0, %v1843
      %1845 = vmatmul.f32.gmra.mxu0 %v1719
      %v1846 = vpop.f32.mrf.mxu0
      %v1847 = vadd.f32 0.0, %v1846
      %1848 = vmatmul.f32.gmra.mxu0 %v1722
      %v1849 = vpop.f32.mrf.mxu0
      %v1850 = vadd.f32 0.0, %v1849
      %1851 = vmatmul.f32.gmra.mxu0 %v1725
      %v1852 = vpop.f32.mrf.mxu0
      %v1853 = vadd.f32 0.0, %v1852
      %1854 = vmatmul.f32.gmra.mxu0 %v1728
      %v1855 = vpop.f32.mrf.mxu0
      %v1856 = vadd.f32 0.0, %v1855
      %1857 = vmatmul.f32.gmra.mxu0 %v1731
      %v1858 = vpop.f32.mrf.mxu0
      %v1859 = vadd.f32 0.0, %v1858
      %1860 = vmatmul.f32.gmra.mxu0 %v1734
      %v1861 = vpop.f32.mrf.mxu0
      %v1862 = vadd.f32 0.0, %v1861
      %1863 = vmatmul.f32.gmra.mxu0 %v1737
      %v1864 = vpop.f32.mrf.mxu0
      %v1865 = vadd.f32 0.0, %v1864
      %1866 = vmatmul.f32.gmra.mxu0 %v1740
      %v1867 = vpop.f32.mrf.mxu0
      %v1868 = vadd.f32 0.0, %v1867
      %1869 = vmatmul.f32.gmra.mxu0 %v1743
      %v1870 = vpop.f32.mrf.mxu0
      %v1871 = vadd.f32 0.0, %v1870
      %1872 = vmatmul.f32.gmra.mxu0 %v1746
      %v1873 = vpop.f32.mrf.mxu0
      %v1874 = vadd.f32 0.0, %v1873
      %1875 = vmatmul.f32.gmra.mxu0 %v1749
      %v1876 = vpop.f32.mrf.mxu0
      %v1877 = vadd.f32 0.0, %v1876
      %1878 = vmatmul.f32.gmra.mxu0 %v1752
      %v1879 = vpop.f32.mrf.mxu0
      %v1880 = vadd.f32 0.0, %v1879
      %1881 = vmatmul.f32.gmra.mxu0 %v1755
      %v1882 = vpop.f32.mrf.mxu0
      %v1883 = vadd.f32 0.0, %v1882
      %1884 = vmatmul.f32.gmra.mxu0 %v1758
      %v1885 = vpop.f32.mrf.mxu0
      %v1886 = vadd.f32 0.0, %v1885
      %1887 = vmatmul.f32.gmra.mxu0 %v1761
      %v1888 = vpop.f32.mrf.mxu0
      %v1889 = vadd.f32 0.0, %v1888
      %1890 = vmatmul.f32.gmra.mxu0 %v1764
      %v1891 = vpop.f32.mrf.mxu0
      %v1892 = vadd.f32 0.0, %v1891
      %1893 = vmatmul.f32.gmra.mxu0 %v1767
      %v1894 = vpop.f32.mrf.mxu0
      %v1895 = vadd.f32 0.0, %v1894
      %1896 = vmatmul.f32.gmra.mxu0 %v1770
      %v1897 = vpop.f32.mrf.mxu0
      %v1898 = vadd.f32 0.0, %v1897
      %1899 = vmatmul.f32.gmra.mxu0 %v1773
      %v1900 = vpop.f32.mrf.mxu0
      %v1901 = vadd.f32 0.0, %v1900
      %1902 = vmatmul.f32.gmra.mxu0 %v1776
      %v1903 = vpop.f32.mrf.mxu0
      %v1904 = vadd.f32 0.0, %v1903
      %1905 = vmatmul.f32.gmra.mxu0 %v1779
      %v1906 = vpop.f32.mrf.mxu0
      %v1907 = vadd.f32 0.0, %v1906
      %1908 = vmatmul.f32.gmra.mxu0 %v1782
      %v1909 = vpop.f32.mrf.mxu0
      %v1910 = vadd.f32 0.0, %v1909
      %1911 = vmatmul.f32.gmra.mxu0 %v1785
      %v1912 = vpop.f32.mrf.mxu0
      %v1913 = vadd.f32 0.0, %v1912
      %1914 = vdwg.mxu0
      %v1915 = vadd.f32 %v1605, %v1808
      %v1916 = vadd.f32 %v1606, %v1811
      %v1917 = vadd.f32 %v1607, %v1814
      %v1918 = vadd.f32 %v1608, %v1817
      %v1919 = vadd.f32 %v1609, %v1820
      %v1920 = vadd.f32 %v1610, %v1823
      %v1921 = vadd.f32 %v1611, %v1826
      %v1922 = vadd.f32 %v1612, %v1829
      %v1923 = vadd.f32 %v1613, %v1832
      %v1924 = vadd.f32 %v1614, %v1835
      %v1925 = vadd.f32 %v1615, %v1838
      %v1926 = vadd.f32 %v1616, %v1841
      %v1927 = vadd.f32 %v1617, %v1844
      %v1928 = vadd.f32 %v1618, %v1847
      %v1929 = vadd.f32 %v1619, %v1850
      %v1930 = vadd.f32 %v1620, %v1853
      %v1931 = vadd.f32 %v1621, %v1856
      %v1932 = vadd.f32 %v1622, %v1859
      %v1933 = vadd.f32 %v1623, %v1862
      %v1934 = vadd.f32 %v1624, %v1865
      %v1935 = vadd.f32 %v1625, %v1868
      %v1936 = vadd.f32 %v1626, %v1871
      %v1937 = vadd.f32 %v1627, %v1874
      %v1938 = vadd.f32 %v1628, %v1877
      %v1939 = vadd.f32 %v1629, %v1880
      %v1940 = vadd.f32 %v1630, %v1883
      %v1941 = vadd.f32 %v1631, %v1886
      %v1942 = vadd.f32 %v1632, %v1889
      %v1943 = vadd.f32 %v1633, %v1892
      %v1944 = vadd.f32 %v1634, %v1895
      %v1945 = vadd.f32 %v1635, %v1898
      %v1946 = vadd.f32 %v1636, %v1901
      %v1947 = vadd.f32 %v1637, %v1904
      %v1948 = vadd.f32 %v1638, %v1907
      %v1949 = vadd.f32 %v1639, %v1910
      %v1950 = vadd.f32 %v1640, %v1913
      %v1951 = vld [vmem:[#allocation2 + $0x14] sm:$0xff]
      %v1952 = vld [vmem:[#allocation2 + $0x1c] sm:$0xff]
      %v1953 = vld [vmem:[#allocation2 + $0x24] sm:$0xff]
      %v1954 = vld [vmem:[#allocation2 + $0x2c] sm:$0xff]
      %v1955 = vld [vmem:[#allocation2 + $0x34] sm:$0xff]
      %v1956 = vld [vmem:[#allocation2 + $0x3c] sm:$0xff]
      %v1957 = vld [vmem:[#allocation2 + $0x44] sm:$0xff]
      %v1958 = vld [vmem:[#allocation2 + $0x4c] sm:$0xff]
      %v1959 = vld [vmem:[#allocation2 + $0x54] sm:$0xff]
      %v1960 = vld [vmem:[#allocation2 + $0x5c] sm:$0xff]
      %v1961 = vld [vmem:[#allocation2 + $0x64] sm:$0xff]
      %v1962 = vld [vmem:[#allocation2 + $0x6c] sm:$0xff]
      %v1963 = vld [vmem:[#allocation2 + $0x74] sm:$0xff]
      %v1964 = vld [vmem:[#allocation2 + $0x7c] sm:$0xff]
      %v1965 = vld [vmem:[#allocation2 + $0x84] sm:$0xff]
      %v1966 = vld [vmem:[#allocation2 + $0x8c] sm:$0xff]
      %v1967 = vld [vmem:[#allocation2 + $0x94] sm:$0xff]
      %v1968 = vld [vmem:[#allocation2 + $0x9c] sm:$0xff]
      %v1969 = vld [vmem:[#allocation2 + $0xa4] sm:$0xff]
      %v1970 = vld [vmem:[#allocation2 + $0xac] sm:$0xff]
      %v1971 = vld [vmem:[#allocation2 + $0xb4] sm:$0xff]
      %v1972 = vld [vmem:[#allocation2 + $0xbc] sm:$0xff]
      %v1973 = vld [vmem:[#allocation2 + $0xc4] sm:$0xff]
      %v1974 = vld [vmem:[#allocation2 + $0xcc] sm:$0xff]
      %v1975 = vld [vmem:[#allocation2 + $0xd4] sm:$0xff]
      %v1976 = vld [vmem:[#allocation2 + $0xdc] sm:$0xff]
      %v1977 = vld [vmem:[#allocation2 + $0xe4] sm:$0xff]
      %v1978 = vld [vmem:[#allocation2 + $0xec] sm:$0xff]
      %v1979 = vld [vmem:[#allocation2 + $0xf4] sm:$0xff]
      %v1980 = vld [vmem:[#allocation2 + $0xfc] sm:$0xff]
      %v1981 = vld [vmem:[#allocation2 + $0x104] sm:$0xff]
      %v1982 = vld [vmem:[#allocation2 + $0x10c] sm:$0xff]
      %v1983 = vld [vmem:[#allocation2 + $0x114] sm:$0xff]
      %v1984 = vld [vmem:[#allocation2 + $0x11c] sm:$0xff]
      %v1985 = vld [vmem:[#allocation2 + $0x124] sm:$0xff]
      %v1986 = vld [vmem:[#allocation2 + $0x12c] sm:$0xff]
      %s1987 = scalar_lea.vmem %s1, 20
      %v1988 = vld [vmem:[%s1987] sm:$0xf]
      %v1990 = vsel %vm306, %v1951, 0
      %v1993 = vsel %vm306, %v1952, 0
      %v1996 = vsel %vm306, %v1953, 0
      %v1999 = vsel %vm306, %v1954, 0
      %v2002 = vsel %vm306, %v1955, 0
      %v2005 = vsel %vm306, %v1956, 0
      %v2008 = vsel %vm306, %v1957, 0
      %v2011 = vsel %vm306, %v1958, 0
      %v2014 = vsel %vm306, %v1959, 0
      %v2017 = vsel %vm306, %v1960, 0
      %v2020 = vsel %vm306, %v1961, 0
      %v2023 = vsel %vm306, %v1962, 0
      %v2026 = vsel %vm306, %v1963, 0
      %v2029 = vsel %vm306, %v1964, 0
      %v2032 = vsel %vm306, %v1965, 0
      %v2035 = vsel %vm306, %v1966, 0
      %v2038 = vsel %vm306, %v1967, 0
      %v2041 = vsel %vm306, %v1968, 0
      %v2044 = vsel %vm306, %v1969, 0
      %v2047 = vsel %vm306, %v1970, 0
      %v2050 = vsel %vm306, %v1971, 0
      %v2053 = vsel %vm306, %v1972, 0
      %v2056 = vsel %vm306, %v1973, 0
      %v2059 = vsel %vm306, %v1974, 0
      %v2062 = vsel %vm306, %v1975, 0
      %v2065 = vsel %vm306, %v1976, 0
      %v2068 = vsel %vm306, %v1977, 0
      %v2071 = vsel %vm306, %v1978, 0
      %v2074 = vsel %vm306, %v1979, 0
      %v2077 = vsel %vm306, %v1980, 0
      %v2080 = vsel %vm306, %v1981, 0
      %v2083 = vsel %vm306, %v1982, 0
      %v2086 = vsel %vm306, %v1983, 0
      %v2089 = vsel %vm306, %v1984, 0
      %v2092 = vsel %vm306, %v1985, 0
      %v2095 = vsel %vm306, %v1986, 0
      %v2098 = vsel %vm656, %v1988, 0
      %2100 = vmatpush.msra.mxu0 0.0
      %2101 = vmatpush.msra.mxu0 0.0
      %2102 = vmatpush.msra.mxu0 0.0
      %2103 = vmatpush.msra.mxu0 0.0
      %2104 = vmatpush.msra.mxu0 0.0
      %2105 = vmatpush.msra.mxu0 0.0
      %2106 = vmatpush.msra.mxu0 0.0
      %2107 = vmatpush.msra.mxu0 0.0
      %2108 = vmatpush.msra.mxu0 0.0
      %2109 = vmatpush.msra.mxu0 0.0
      %2110 = vmatpush.msra.mxu0 0.0
      %2111 = vmatpush.msra.mxu0 0.0
      %2112 = vmatpush.msra.mxu0 0.0
      %2113 = vmatpush.msra.mxu0 0.0
      %2114 = vmatpush.msra.mxu0 0.0
      %2115 = vmatpush.msra.mxu0 %v2098
      %2116 = vmatmul.f32.gmra.mxu0 %v1990
      %v2117 = vpop.f32.mrf.mxu0
      %v2118 = vadd.f32 0.0, %v2117
      %2119 = vmatmul.f32.gmra.mxu0 %v1993
      %v2120 = vpop.f32.mrf.mxu0
      %v2121 = vadd.f32 0.0, %v2120
      %2122 = vmatmul.f32.gmra.mxu0 %v1996
      %v2123 = vpop.f32.mrf.mxu0
      %v2124 = vadd.f32 0.0, %v2123
      %2125 = vmatmul.f32.gmra.mxu0 %v1999
      %v2126 = vpop.f32.mrf.mxu0
      %v2127 = vadd.f32 0.0, %v2126
      %2128 = vmatmul.f32.gmra.mxu0 %v2002
      %v2129 = vpop.f32.mrf.mxu0
      %v2130 = vadd.f32 0.0, %v2129
      %2131 = vmatmul.f32.gmra.mxu0 %v2005
      %v2132 = vpop.f32.mrf.mxu0
      %v2133 = vadd.f32 0.0, %v2132
      %2134 = vmatmul.f32.gmra.mxu0 %v2008
      %v2135 = vpop.f32.mrf.mxu0
      %v2136 = vadd.f32 0.0, %v2135
      %2137 = vmatmul.f32.gmra.mxu0 %v2011
      %v2138 = vpop.f32.mrf.mxu0
      %v2139 = vadd.f32 0.0, %v2138
      %2140 = vmatmul.f32.gmra.mxu0 %v2014
      %v2141 = vpop.f32.mrf.mxu0
      %v2142 = vadd.f32 0.0, %v2141
      %2143 = vmatmul.f32.gmra.mxu0 %v2017
      %v2144 = vpop.f32.mrf.mxu0
      %v2145 = vadd.f32 0.0, %v2144
      %2146 = vmatmul.f32.gmra.mxu0 %v2020
      %v2147 = vpop.f32.mrf.mxu0
      %v2148 = vadd.f32 0.0, %v2147
      %2149 = vmatmul.f32.gmra.mxu0 %v2023
      %v2150 = vpop.f32.mrf.mxu0
      %v2151 = vadd.f32 0.0, %v2150
      %2152 = vmatmul.f32.gmra.mxu0 %v2026
      %v2153 = vpop.f32.mrf.mxu0
      %v2154 = vadd.f32 0.0, %v2153
      %2155 = vmatmul.f32.gmra.mxu0 %v2029
      %v2156 = vpop.f32.mrf.mxu0
      %v2157 = vadd.f32 0.0, %v2156
      %2158 = vmatmul.f32.gmra.mxu0 %v2032
      %v2159 = vpop.f32.mrf.mxu0
      %v2160 = vadd.f32 0.0, %v2159
      %2161 = vmatmul.f32.gmra.mxu0 %v2035
      %v2162 = vpop.f32.mrf.mxu0
      %v2163 = vadd.f32 0.0, %v2162
      %2164 = vmatmul.f32.gmra.mxu0 %v2038
      %v2165 = vpop.f32.mrf.mxu0
      %v2166 = vadd.f32 0.0, %v2165
      %2167 = vmatmul.f32.gmra.mxu0 %v2041
      %v2168 = vpop.f32.mrf.mxu0
      %v2169 = vadd.f32 0.0, %v2168
      %2170 = vmatmul.f32.gmra.mxu0 %v2044
      %v2171 = vpop.f32.mrf.mxu0
      %v2172 = vadd.f32 0.0, %v2171
      %2173 = vmatmul.f32.gmra.mxu0 %v2047
      %v2174 = vpop.f32.mrf.mxu0
      %v2175 = vadd.f32 0.0, %v2174
      %2176 = vmatmul.f32.gmra.mxu0 %v2050
      %v2177 = vpop.f32.mrf.mxu0
      %v2178 = vadd.f32 0.0, %v2177
      %2179 = vmatmul.f32.gmra.mxu0 %v2053
      %v2180 = vpop.f32.mrf.mxu0
      %v2181 = vadd.f32 0.0, %v2180
      %2182 = vmatmul.f32.gmra.mxu0 %v2056
      %v2183 = vpop.f32.mrf.mxu0
      %v2184 = vadd.f32 0.0, %v2183
      %2185 = vmatmul.f32.gmra.mxu0 %v2059
      %v2186 = vpop.f32.mrf.mxu0
      %v2187 = vadd.f32 0.0, %v2186
      %2188 = vmatmul.f32.gmra.mxu0 %v2062
      %v2189 = vpop.f32.mrf.mxu0
      %v2190 = vadd.f32 0.0, %v2189
      %2191 = vmatmul.f32.gmra.mxu0 %v2065
      %v2192 = vpop.f32.mrf.mxu0
      %v2193 = vadd.f32 0.0, %v2192
      %2194 = vmatmul.f32.gmra.mxu0 %v2068
      %v2195 = vpop.f32.mrf.mxu0
      %v2196 = vadd.f32 0.0, %v2195
      %2197 = vmatmul.f32.gmra.mxu0 %v2071
      %v2198 = vpop.f32.mrf.mxu0
      %v2199 = vadd.f32 0.0, %v2198
      %2200 = vmatmul.f32.gmra.mxu0 %v2074
      %v2201 = vpop.f32.mrf.mxu0
      %v2202 = vadd.f32 0.0, %v2201
      %2203 = vmatmul.f32.gmra.mxu0 %v2077
      %v2204 = vpop.f32.mrf.mxu0
      %v2205 = vadd.f32 0.0, %v2204
      %2206 = vmatmul.f32.gmra.mxu0 %v2080
      %v2207 = vpop.f32.mrf.mxu0
      %v2208 = vadd.f32 0.0, %v2207
      %2209 = vmatmul.f32.gmra.mxu0 %v2083
      %v2210 = vpop.f32.mrf.mxu0
      %v2211 = vadd.f32 0.0, %v2210
      %2212 = vmatmul.f32.gmra.mxu0 %v2086
      %v2213 = vpop.f32.mrf.mxu0
      %v2214 = vadd.f32 0.0, %v2213
      %2215 = vmatmul.f32.gmra.mxu0 %v2089
      %v2216 = vpop.f32.mrf.mxu0
      %v2217 = vadd.f32 0.0, %v2216
      %2218 = vmatmul.f32.gmra.mxu0 %v2092
      %v2219 = vpop.f32.mrf.mxu0
      %v2220 = vadd.f32 0.0, %v2219
      %2221 = vmatmul.f32.gmra.mxu0 %v2095
      %v2222 = vpop.f32.mrf.mxu0
      %v2223 = vadd.f32 0.0, %v2222
      %2224 = vdwg.mxu0
      %v2225 = vadd.f32 %v1915, %v2118
      %v2226 = vadd.f32 %v1916, %v2121
      %v2227 = vadd.f32 %v1917, %v2124
      %v2228 = vadd.f32 %v1918, %v2127
      %v2229 = vadd.f32 %v1919, %v2130
      %v2230 = vadd.f32 %v1920, %v2133
      %v2231 = vadd.f32 %v1921, %v2136
      %v2232 = vadd.f32 %v1922, %v2139
      %v2233 = vadd.f32 %v1923, %v2142
      %v2234 = vadd.f32 %v1924, %v2145
      %v2235 = vadd.f32 %v1925, %v2148
      %v2236 = vadd.f32 %v1926, %v2151
      %v2237 = vadd.f32 %v1927, %v2154
      %v2238 = vadd.f32 %v1928, %v2157
      %v2239 = vadd.f32 %v1929, %v2160
      %v2240 = vadd.f32 %v1930, %v2163
      %v2241 = vadd.f32 %v1931, %v2166
      %v2242 = vadd.f32 %v1932, %v2169
      %v2243 = vadd.f32 %v1933, %v2172
      %v2244 = vadd.f32 %v1934, %v2175
      %v2245 = vadd.f32 %v1935, %v2178
      %v2246 = vadd.f32 %v1936, %v2181
      %v2247 = vadd.f32 %v1937, %v2184
      %v2248 = vadd.f32 %v1938, %v2187
      %v2249 = vadd.f32 %v1939, %v2190
      %v2250 = vadd.f32 %v1940, %v2193
      %v2251 = vadd.f32 %v1941, %v2196
      %v2252 = vadd.f32 %v1942, %v2199
      %v2253 = vadd.f32 %v1943, %v2202
      %v2254 = vadd.f32 %v1944, %v2205
      %v2255 = vadd.f32 %v1945, %v2208
      %v2256 = vadd.f32 %v1946, %v2211
      %v2257 = vadd.f32 %v1947, %v2214
      %v2258 = vadd.f32 %v1948, %v2217
      %v2259 = vadd.f32 %v1949, %v2220
      %v2260 = vadd.f32 %v1950, %v2223
      %v2261 = vld [vmem:[#allocation2 + $0x24] sm:$0xff]
      %v2262 = vld [vmem:[#allocation2 + $0x2c] sm:$0xff]
      %v2263 = vld [vmem:[#allocation2 + $0x34] sm:$0xff]
      %v2264 = vld [vmem:[#allocation2 + $0x3c] sm:$0xff]
      %v2265 = vld [vmem:[#allocation2 + $0x44] sm:$0xff]
      %v2266 = vld [vmem:[#allocation2 + $0x4c] sm:$0xff]
      %v2267 = vld [vmem:[#allocation2 + $0x54] sm:$0xff]
      %v2268 = vld [vmem:[#allocation2 + $0x5c] sm:$0xff]
      %v2269 = vld [vmem:[#allocation2 + $0x64] sm:$0xff]
      %v2270 = vld [vmem:[#allocation2 + $0x6c] sm:$0xff]
      %v2271 = vld [vmem:[#allocation2 + $0x74] sm:$0xff]
      %v2272 = vld [vmem:[#allocation2 + $0x7c] sm:$0xff]
      %v2273 = vld [vmem:[#allocation2 + $0x84] sm:$0xff]
      %v2274 = vld [vmem:[#allocation2 + $0x8c] sm:$0xff]
      %v2275 = vld [vmem:[#allocation2 + $0x94] sm:$0xff]
      %v2276 = vld [vmem:[#allocation2 + $0x9c] sm:$0xff]
      %v2277 = vld [vmem:[#allocation2 + $0xa4] sm:$0xff]
      %v2278 = vld [vmem:[#allocation2 + $0xac] sm:$0xff]
      %v2279 = vld [vmem:[#allocation2 + $0xb4] sm:$0xff]
      %v2280 = vld [vmem:[#allocation2 + $0xbc] sm:$0xff]
      %v2281 = vld [vmem:[#allocation2 + $0xc4] sm:$0xff]
      %v2282 = vld [vmem:[#allocation2 + $0xcc] sm:$0xff]
      %v2283 = vld [vmem:[#allocation2 + $0xd4] sm:$0xff]
      %v2284 = vld [vmem:[#allocation2 + $0xdc] sm:$0xff]
      %v2285 = vld [vmem:[#allocation2 + $0xe4] sm:$0xff]
      %v2286 = vld [vmem:[#allocation2 + $0xec] sm:$0xff]
      %v2287 = vld [vmem:[#allocation2 + $0xf4] sm:$0xff]
      %v2288 = vld [vmem:[#allocation2 + $0xfc] sm:$0xff]
      %v2289 = vld [vmem:[#allocation2 + $0x104] sm:$0xff]
      %v2290 = vld [vmem:[#allocation2 + $0x10c] sm:$0xff]
      %v2291 = vld [vmem:[#allocation2 + $0x114] sm:$0xff]
      %v2292 = vld [vmem:[#allocation2 + $0x11c] sm:$0xff]
      %v2293 = vld [vmem:[#allocation2 + $0x124] sm:$0xff]
      %v2294 = vld [vmem:[#allocation2 + $0x12c] sm:$0xff]
      %v2295 = vld [vmem:[#allocation2 + $0x134] sm:$0xff]
      %v2296 = vld [vmem:[#allocation2 + $0x13c] sm:$0xff]
      %s2297 = scalar_lea.vmem %s1, 24
      %v2298 = vld [vmem:[%s2297] sm:$0xf]
      %v2300 = vsel %vm306, %v2261, 0
      %v2303 = vsel %vm306, %v2262, 0
      %v2306 = vsel %vm306, %v2263, 0
      %v2309 = vsel %vm306, %v2264, 0
      %v2312 = vsel %vm306, %v2265, 0
      %v2315 = vsel %vm306, %v2266, 0
      %v2318 = vsel %vm306, %v2267, 0
      %v2321 = vsel %vm306, %v2268, 0
      %v2324 = vsel %vm306, %v2269, 0
      %v2327 = vsel %vm306, %v2270, 0
      %v2330 = vsel %vm306, %v2271, 0
      %v2333 = vsel %vm306, %v2272, 0
      %v2336 = vsel %vm306, %v2273, 0
      %v2339 = vsel %vm306, %v2274, 0
      %v2342 = vsel %vm306, %v2275, 0
      %v2345 = vsel %vm306, %v2276, 0
      %v2348 = vsel %vm306, %v2277, 0
      %v2351 = vsel %vm306, %v2278, 0
      %v2354 = vsel %vm306, %v2279, 0
      %v2357 = vsel %vm306, %v2280, 0
      %v2360 = vsel %vm306, %v2281, 0
      %v2363 = vsel %vm306, %v2282, 0
      %v2366 = vsel %vm306, %v2283, 0
      %v2369 = vsel %vm306, %v2284, 0
      %v2372 = vsel %vm306, %v2285, 0
      %v2375 = vsel %vm306, %v2286, 0
      %v2378 = vsel %vm306, %v2287, 0
      %v2381 = vsel %vm306, %v2288, 0
      %v2384 = vsel %vm306, %v2289, 0
      %v2387 = vsel %vm306, %v2290, 0
      %v2390 = vsel %vm306, %v2291, 0
      %v2393 = vsel %vm306, %v2292, 0
      %v2396 = vsel %vm306, %v2293, 0
      %v2399 = vsel %vm306, %v2294, 0
      %v2402 = vsel %vm306, %v2295, 0
      %v2405 = vsel %vm306, %v2296, 0
      %v2408 = vsel %vm656, %v2298, 0
      %2410 = vmatpush.msra.mxu0 0.0
      %2411 = vmatpush.msra.mxu0 0.0
      %2412 = vmatpush.msra.mxu0 0.0
      %2413 = vmatpush.msra.mxu0 0.0
      %2414 = vmatpush.msra.mxu0 0.0
      %2415 = vmatpush.msra.mxu0 0.0
      %2416 = vmatpush.msra.mxu0 0.0
      %2417 = vmatpush.msra.mxu0 0.0
      %2418 = vmatpush.msra.mxu0 0.0
      %2419 = vmatpush.msra.mxu0 0.0
      %2420 = vmatpush.msra.mxu0 0.0
      %2421 = vmatpush.msra.mxu0 0.0
      %2422 = vmatpush.msra.mxu0 0.0
      %2423 = vmatpush.msra.mxu0 0.0
      %2424 = vmatpush.msra.mxu0 0.0
      %2425 = vmatpush.msra.mxu0 %v2408
      %2426 = vmatmul.f32.gmra.mxu0 %v2300
      %v2427 = vpop.f32.mrf.mxu0
      %v2428 = vadd.f32 0.0, %v2427
      %2429 = vmatmul.f32.gmra.mxu0 %v2303
      %v2430 = vpop.f32.mrf.mxu0
      %v2431 = vadd.f32 0.0, %v2430
      %2432 = vmatmul.f32.gmra.mxu0 %v2306
      %v2433 = vpop.f32.mrf.mxu0
      %v2434 = vadd.f32 0.0, %v2433
      %2435 = vmatmul.f32.gmra.mxu0 %v2309
      %v2436 = vpop.f32.mrf.mxu0
      %v2437 = vadd.f32 0.0, %v2436
      %2438 = vmatmul.f32.gmra.mxu0 %v2312
      %v2439 = vpop.f32.mrf.mxu0
      %v2440 = vadd.f32 0.0, %v2439
      %2441 = vmatmul.f32.gmra.mxu0 %v2315
      %v2442 = vpop.f32.mrf.mxu0
      %v2443 = vadd.f32 0.0, %v2442
      %2444 = vmatmul.f32.gmra.mxu0 %v2318
      %v2445 = vpop.f32.mrf.mxu0
      %v2446 = vadd.f32 0.0, %v2445
      %2447 = vmatmul.f32.gmra.mxu0 %v2321
      %v2448 = vpop.f32.mrf.mxu0
      %v2449 = vadd.f32 0.0, %v2448
      %2450 = vmatmul.f32.gmra.mxu0 %v2324
      %v2451 = vpop.f32.mrf.mxu0
      %v2452 = vadd.f32 0.0, %v2451
      %2453 = vmatmul.f32.gmra.mxu0 %v2327
      %v2454 = vpop.f32.mrf.mxu0
      %v2455 = vadd.f32 0.0, %v2454
      %2456 = vmatmul.f32.gmra.mxu0 %v2330
      %v2457 = vpop.f32.mrf.mxu0
      %v2458 = vadd.f32 0.0, %v2457
      %2459 = vmatmul.f32.gmra.mxu0 %v2333
      %v2460 = vpop.f32.mrf.mxu0
      %v2461 = vadd.f32 0.0, %v2460
      %2462 = vmatmul.f32.gmra.mxu0 %v2336
      %v2463 = vpop.f32.mrf.mxu0
      %v2464 = vadd.f32 0.0, %v2463
      %2465 = vmatmul.f32.gmra.mxu0 %v2339
      %v2466 = vpop.f32.mrf.mxu0
      %v2467 = vadd.f32 0.0, %v2466
      %2468 = vmatmul.f32.gmra.mxu0 %v2342
      %v2469 = vpop.f32.mrf.mxu0
      %v2470 = vadd.f32 0.0, %v2469
      %2471 = vmatmul.f32.gmra.mxu0 %v2345
      %v2472 = vpop.f32.mrf.mxu0
      %v2473 = vadd.f32 0.0, %v2472
      %2474 = vmatmul.f32.gmra.mxu0 %v2348
      %v2475 = vpop.f32.mrf.mxu0
      %v2476 = vadd.f32 0.0, %v2475
      %2477 = vmatmul.f32.gmra.mxu0 %v2351
      %v2478 = vpop.f32.mrf.mxu0
      %v2479 = vadd.f32 0.0, %v2478
      %2480 = vmatmul.f32.gmra.mxu0 %v2354
      %v2481 = vpop.f32.mrf.mxu0
      %v2482 = vadd.f32 0.0, %v2481
      %2483 = vmatmul.f32.gmra.mxu0 %v2357
      %v2484 = vpop.f32.mrf.mxu0
      %v2485 = vadd.f32 0.0, %v2484
      %2486 = vmatmul.f32.gmra.mxu0 %v2360
      %v2487 = vpop.f32.mrf.mxu0
      %v2488 = vadd.f32 0.0, %v2487
      %2489 = vmatmul.f32.gmra.mxu0 %v2363
      %v2490 = vpop.f32.mrf.mxu0
      %v2491 = vadd.f32 0.0, %v2490
      %2492 = vmatmul.f32.gmra.mxu0 %v2366
      %v2493 = vpop.f32.mrf.mxu0
      %v2494 = vadd.f32 0.0, %v2493
      %2495 = vmatmul.f32.gmra.mxu0 %v2369
      %v2496 = vpop.f32.mrf.mxu0
      %v2497 = vadd.f32 0.0, %v2496
      %2498 = vmatmul.f32.gmra.mxu0 %v2372
      %v2499 = vpop.f32.mrf.mxu0
      %v2500 = vadd.f32 0.0, %v2499
      %2501 = vmatmul.f32.gmra.mxu0 %v2375
      %v2502 = vpop.f32.mrf.mxu0
      %v2503 = vadd.f32 0.0, %v2502
      %2504 = vmatmul.f32.gmra.mxu0 %v2378
      %v2505 = vpop.f32.mrf.mxu0
      %v2506 = vadd.f32 0.0, %v2505
      %2507 = vmatmul.f32.gmra.mxu0 %v2381
      %v2508 = vpop.f32.mrf.mxu0
      %v2509 = vadd.f32 0.0, %v2508
      %2510 = vmatmul.f32.gmra.mxu0 %v2384
      %v2511 = vpop.f32.mrf.mxu0
      %v2512 = vadd.f32 0.0, %v2511
      %2513 = vmatmul.f32.gmra.mxu0 %v2387
      %v2514 = vpop.f32.mrf.mxu0
      %v2515 = vadd.f32 0.0, %v2514
      %2516 = vmatmul.f32.gmra.mxu0 %v2390
      %v2517 = vpop.f32.mrf.mxu0
      %v2518 = vadd.f32 0.0, %v2517
      %2519 = vmatmul.f32.gmra.mxu0 %v2393
      %v2520 = vpop.f32.mrf.mxu0
      %v2521 = vadd.f32 0.0, %v2520
      %2522 = vmatmul.f32.gmra.mxu0 %v2396
      %v2523 = vpop.f32.mrf.mxu0
      %v2524 = vadd.f32 0.0, %v2523
      %2525 = vmatmul.f32.gmra.mxu0 %v2399
      %v2526 = vpop.f32.mrf.mxu0
      %v2527 = vadd.f32 0.0, %v2526
      %2528 = vmatmul.f32.gmra.mxu0 %v2402
      %v2529 = vpop.f32.mrf.mxu0
      %v2530 = vadd.f32 0.0, %v2529
      %2531 = vmatmul.f32.gmra.mxu0 %v2405
      %v2532 = vpop.f32.mrf.mxu0
      %v2533 = vadd.f32 0.0, %v2532
      %2534 = vdwg.mxu0
      %v2535 = vadd.f32 %v2225, %v2428
      %v2536 = vadd.f32 %v2226, %v2431
      %v2537 = vadd.f32 %v2227, %v2434
      %v2538 = vadd.f32 %v2228, %v2437
      %v2539 = vadd.f32 %v2229, %v2440
      %v2540 = vadd.f32 %v2230, %v2443
      %v2541 = vadd.f32 %v2231, %v2446
      %v2542 = vadd.f32 %v2232, %v2449
      %v2543 = vadd.f32 %v2233, %v2452
      %v2544 = vadd.f32 %v2234, %v2455
      %v2545 = vadd.f32 %v2235, %v2458
      %v2546 = vadd.f32 %v2236, %v2461
      %v2547 = vadd.f32 %v2237, %v2464
      %v2548 = vadd.f32 %v2238, %v2467
      %v2549 = vadd.f32 %v2239, %v2470
      %v2550 = vadd.f32 %v2240, %v2473
      %v2551 = vadd.f32 %v2241, %v2476
      %v2552 = vadd.f32 %v2242, %v2479
      %v2553 = vadd.f32 %v2243, %v2482
      %v2554 = vadd.f32 %v2244, %v2485
      %v2555 = vadd.f32 %v2245, %v2488
      %v2556 = vadd.f32 %v2246, %v2491
      %v2557 = vadd.f32 %v2247, %v2494
      %v2558 = vadd.f32 %v2248, %v2497
      %v2559 = vadd.f32 %v2249, %v2500
      %v2560 = vadd.f32 %v2250, %v2503
      %v2561 = vadd.f32 %v2251, %v2506
      %v2562 = vadd.f32 %v2252, %v2509
      %v2563 = vadd.f32 %v2253, %v2512
      %v2564 = vadd.f32 %v2254, %v2515
      %v2565 = vadd.f32 %v2255, %v2518
      %v2566 = vadd.f32 %v2256, %v2521
      %v2567 = vadd.f32 %v2257, %v2524
      %v2568 = vadd.f32 %v2258, %v2527
      %v2569 = vadd.f32 %v2259, %v2530
      %v2570 = vadd.f32 %v2260, %v2533
      %v2571 = vld [vmem:[#allocation2 + $0x25] sm:$0xff]
      %v2572 = vld [vmem:[#allocation2 + $0x2d] sm:$0xff]
      %v2573 = vld [vmem:[#allocation2 + $0x35] sm:$0xff]
      %v2574 = vld [vmem:[#allocation2 + $0x3d] sm:$0xff]
      %v2575 = vld [vmem:[#allocation2 + $0x45] sm:$0xff]
      %v2576 = vld [vmem:[#allocation2 + $0x4d] sm:$0xff]
      %v2577 = vld [vmem:[#allocation2 + $0x55] sm:$0xff]
      %v2578 = vld [vmem:[#allocation2 + $0x5d] sm:$0xff]
      %v2579 = vld [vmem:[#allocation2 + $0x65] sm:$0xff]
      %v2580 = vld [vmem:[#allocation2 + $0x6d] sm:$0xff]
      %v2581 = vld [vmem:[#allocation2 + $0x75] sm:$0xff]
      %v2582 = vld [vmem:[#allocation2 + $0x7d] sm:$0xff]
      %v2583 = vld [vmem:[#allocation2 + $0x85] sm:$0xff]
      %v2584 = vld [vmem:[#allocation2 + $0x8d] sm:$0xff]
      %v2585 = vld [vmem:[#allocation2 + $0x95] sm:$0xff]
      %v2586 = vld [vmem:[#allocation2 + $0x9d] sm:$0xff]
      %v2587 = vld [vmem:[#allocation2 + $0xa5] sm:$0xff]
      %v2588 = vld [vmem:[#allocation2 + $0xad] sm:$0xff]
      %v2589 = vld [vmem:[#allocation2 + $0xb5] sm:$0xff]
      %v2590 = vld [vmem:[#allocation2 + $0xbd] sm:$0xff]
      %v2591 = vld [vmem:[#allocation2 + $0xc5] sm:$0xff]
      %v2592 = vld [vmem:[#allocation2 + $0xcd] sm:$0xff]
      %v2593 = vld [vmem:[#allocation2 + $0xd5] sm:$0xff]
      %v2594 = vld [vmem:[#allocation2 + $0xdd] sm:$0xff]
      %v2595 = vld [vmem:[#allocation2 + $0xe5] sm:$0xff]
      %v2596 = vld [vmem:[#allocation2 + $0xed] sm:$0xff]
      %v2597 = vld [vmem:[#allocation2 + $0xf5] sm:$0xff]
      %v2598 = vld [vmem:[#allocation2 + $0xfd] sm:$0xff]
      %v2599 = vld [vmem:[#allocation2 + $0x105] sm:$0xff]
      %v2600 = vld [vmem:[#allocation2 + $0x10d] sm:$0xff]
      %v2601 = vld [vmem:[#allocation2 + $0x115] sm:$0xff]
      %v2602 = vld [vmem:[#allocation2 + $0x11d] sm:$0xff]
      %v2603 = vld [vmem:[#allocation2 + $0x125] sm:$0xff]
      %v2604 = vld [vmem:[#allocation2 + $0x12d] sm:$0xff]
      %v2605 = vld [vmem:[#allocation2 + $0x135] sm:$0xff]
      %v2606 = vld [vmem:[#allocation2 + $0x13d] sm:$0xff]
      %s2607 = scalar_lea.vmem %s1, 28
      %v2608 = vld [vmem:[%s2607] sm:$0xf]
      %v2610 = vsel %vm306, %v2571, 0
      %v2613 = vsel %vm306, %v2572, 0
      %v2616 = vsel %vm306, %v2573, 0
      %v2619 = vsel %vm306, %v2574, 0
      %v2622 = vsel %vm306, %v2575, 0
      %v2625 = vsel %vm306, %v2576, 0
      %v2628 = vsel %vm306, %v2577, 0
      %v2631 = vsel %vm306, %v2578, 0
      %v2634 = vsel %vm306, %v2579, 0
      %v2637 = vsel %vm306, %v2580, 0
      %v2640 = vsel %vm306, %v2581, 0
      %v2643 = vsel %vm306, %v2582, 0
      %v2646 = vsel %vm306, %v2583, 0
      %v2649 = vsel %vm306, %v2584, 0
      %v2652 = vsel %vm306, %v2585, 0
      %v2655 = vsel %vm306, %v2586, 0
      %v2658 = vsel %vm306, %v2587, 0
      %v2661 = vsel %vm306, %v2588, 0
      %v2664 = vsel %vm306, %v2589, 0
      %v2667 = vsel %vm306, %v2590, 0
      %v2670 = vsel %vm306, %v2591, 0
      %v2673 = vsel %vm306, %v2592, 0
      %v2676 = vsel %vm306, %v2593, 0
      %v2679 = vsel %vm306, %v2594, 0
      %v2682 = vsel %vm306, %v2595, 0
      %v2685 = vsel %vm306, %v2596, 0
      %v2688 = vsel %vm306, %v2597, 0
      %v2691 = vsel %vm306, %v2598, 0
      %v2694 = vsel %vm306, %v2599, 0
      %v2697 = vsel %vm306, %v2600, 0
      %v2700 = vsel %vm306, %v2601, 0
      %v2703 = vsel %vm306, %v2602, 0
      %v2706 = vsel %vm306, %v2603, 0
      %v2709 = vsel %vm306, %v2604, 0
      %v2712 = vsel %vm306, %v2605, 0
      %v2715 = vsel %vm306, %v2606, 0
      %v2718 = vsel %vm656, %v2608, 0
      %2720 = vmatpush.msra.mxu0 0.0
      %2721 = vmatpush.msra.mxu0 0.0
      %2722 = vmatpush.msra.mxu0 0.0
      %2723 = vmatpush.msra.mxu0 0.0
      %2724 = vmatpush.msra.mxu0 0.0
      %2725 = vmatpush.msra.mxu0 0.0
      %2726 = vmatpush.msra.mxu0 0.0
      %2727 = vmatpush.msra.mxu0 0.0
      %2728 = vmatpush.msra.mxu0 0.0
      %2729 = vmatpush.msra.mxu0 0.0
      %2730 = vmatpush.msra.mxu0 0.0
      %2731 = vmatpush.msra.mxu0 0.0
      %2732 = vmatpush.msra.mxu0 0.0
      %2733 = vmatpush.msra.mxu0 0.0
      %2734 = vmatpush.msra.mxu0 0.0
      %2735 = vmatpush.msra.mxu0 %v2718
      %2736 = vmatmul.f32.gmra.mxu0 %v2610
      %v2737 = vpop.f32.mrf.mxu0
      %v2738 = vadd.f32 0.0, %v2737
      %2739 = vmatmul.f32.gmra.mxu0 %v2613
      %v2740 = vpop.f32.mrf.mxu0
      %v2741 = vadd.f32 0.0, %v2740
      %2742 = vmatmul.f32.gmra.mxu0 %v2616
      %v2743 = vpop.f32.mrf.mxu0
      %v2744 = vadd.f32 0.0, %v2743
      %2745 = vmatmul.f32.gmra.mxu0 %v2619
      %v2746 = vpop.f32.mrf.mxu0
      %v2747 = vadd.f32 0.0, %v2746
      %2748 = vmatmul.f32.gmra.mxu0 %v2622
      %v2749 = vpop.f32.mrf.mxu0
      %v2750 = vadd.f32 0.0, %v2749
      %2751 = vmatmul.f32.gmra.mxu0 %v2625
      %v2752 = vpop.f32.mrf.mxu0
      %v2753 = vadd.f32 0.0, %v2752
      %2754 = vmatmul.f32.gmra.mxu0 %v2628
      %v2755 = vpop.f32.mrf.mxu0
      %v2756 = vadd.f32 0.0, %v2755
      %2757 = vmatmul.f32.gmra.mxu0 %v2631
      %v2758 = vpop.f32.mrf.mxu0
      %v2759 = vadd.f32 0.0, %v2758
      %2760 = vmatmul.f32.gmra.mxu0 %v2634
      %v2761 = vpop.f32.mrf.mxu0
      %v2762 = vadd.f32 0.0, %v2761
      %2763 = vmatmul.f32.gmra.mxu0 %v2637
      %v2764 = vpop.f32.mrf.mxu0
      %v2765 = vadd.f32 0.0, %v2764
      %2766 = vmatmul.f32.gmra.mxu0 %v2640
      %v2767 = vpop.f32.mrf.mxu0
      %v2768 = vadd.f32 0.0, %v2767
      %2769 = vmatmul.f32.gmra.mxu0 %v2643
      %v2770 = vpop.f32.mrf.mxu0
      %v2771 = vadd.f32 0.0, %v2770
      %2772 = vmatmul.f32.gmra.mxu0 %v2646
      %v2773 = vpop.f32.mrf.mxu0
      %v2774 = vadd.f32 0.0, %v2773
      %2775 = vmatmul.f32.gmra.mxu0 %v2649
      %v2776 = vpop.f32.mrf.mxu0
      %v2777 = vadd.f32 0.0, %v2776
      %2778 = vmatmul.f32.gmra.mxu0 %v2652
      %v2779 = vpop.f32.mrf.mxu0
      %v2780 = vadd.f32 0.0, %v2779
      %2781 = vmatmul.f32.gmra.mxu0 %v2655
      %v2782 = vpop.f32.mrf.mxu0
      %v2783 = vadd.f32 0.0, %v2782
      %2784 = vmatmul.f32.gmra.mxu0 %v2658
      %v2785 = vpop.f32.mrf.mxu0
      %v2786 = vadd.f32 0.0, %v2785
      %2787 = vmatmul.f32.gmra.mxu0 %v2661
      %v2788 = vpop.f32.mrf.mxu0
      %v2789 = vadd.f32 0.0, %v2788
      %2790 = vmatmul.f32.gmra.mxu0 %v2664
      %v2791 = vpop.f32.mrf.mxu0
      %v2792 = vadd.f32 0.0, %v2791
      %2793 = vmatmul.f32.gmra.mxu0 %v2667
      %v2794 = vpop.f32.mrf.mxu0
      %v2795 = vadd.f32 0.0, %v2794
      %2796 = vmatmul.f32.gmra.mxu0 %v2670
      %v2797 = vpop.f32.mrf.mxu0
      %v2798 = vadd.f32 0.0, %v2797
      %2799 = vmatmul.f32.gmra.mxu0 %v2673
      %v2800 = vpop.f32.mrf.mxu0
      %v2801 = vadd.f32 0.0, %v2800
      %2802 = vmatmul.f32.gmra.mxu0 %v2676
      %v2803 = vpop.f32.mrf.mxu0
      %v2804 = vadd.f32 0.0, %v2803
      %2805 = vmatmul.f32.gmra.mxu0 %v2679
      %v2806 = vpop.f32.mrf.mxu0
      %v2807 = vadd.f32 0.0, %v2806
      %2808 = vmatmul.f32.gmra.mxu0 %v2682
      %v2809 = vpop.f32.mrf.mxu0
      %v2810 = vadd.f32 0.0, %v2809
      %2811 = vmatmul.f32.gmra.mxu0 %v2685
      %v2812 = vpop.f32.mrf.mxu0
      %v2813 = vadd.f32 0.0, %v2812
      %2814 = vmatmul.f32.gmra.mxu0 %v2688
      %v2815 = vpop.f32.mrf.mxu0
      %v2816 = vadd.f32 0.0, %v2815
      %2817 = vmatmul.f32.gmra.mxu0 %v2691
      %v2818 = vpop.f32.mrf.mxu0
      %v2819 = vadd.f32 0.0, %v2818
      %2820 = vmatmul.f32.gmra.mxu0 %v2694
      %v2821 = vpop.f32.mrf.mxu0
      %v2822 = vadd.f32 0.0, %v2821
      %2823 = vmatmul.f32.gmra.mxu0 %v2697
      %v2824 = vpop.f32.mrf.mxu0
      %v2825 = vadd.f32 0.0, %v2824
      %2826 = vmatmul.f32.gmra.mxu0 %v2700
      %v2827 = vpop.f32.mrf.mxu0
      %v2828 = vadd.f32 0.0, %v2827
      %2829 = vmatmul.f32.gmra.mxu0 %v2703
      %v2830 = vpop.f32.mrf.mxu0
      %v2831 = vadd.f32 0.0, %v2830
      %2832 = vmatmul.f32.gmra.mxu0 %v2706
      %v2833 = vpop.f32.mrf.mxu0
      %v2834 = vadd.f32 0.0, %v2833
      %2835 = vmatmul.f32.gmra.mxu0 %v2709
      %v2836 = vpop.f32.mrf.mxu0
      %v2837 = vadd.f32 0.0, %v2836
      %2838 = vmatmul.f32.gmra.mxu0 %v2712
      %v2839 = vpop.f32.mrf.mxu0
      %v2840 = vadd.f32 0.0, %v2839
      %2841 = vmatmul.f32.gmra.mxu0 %v2715
      %v2842 = vpop.f32.mrf.mxu0
      %v2843 = vadd.f32 0.0, %v2842
      %2844 = vdwg.mxu0
      %v2845 = vadd.f32 %v2535, %v2738
      %v2846 = vadd.f32 %v2536, %v2741
      %v2847 = vadd.f32 %v2537, %v2744
      %v2848 = vadd.f32 %v2538, %v2747
      %v2849 = vadd.f32 %v2539, %v2750
      %v2850 = vadd.f32 %v2540, %v2753
      %v2851 = vadd.f32 %v2541, %v2756
      %v2852 = vadd.f32 %v2542, %v2759
      %v2853 = vadd.f32 %v2543, %v2762
      %v2854 = vadd.f32 %v2544, %v2765
      %v2855 = vadd.f32 %v2545, %v2768
      %v2856 = vadd.f32 %v2546, %v2771
      %v2857 = vadd.f32 %v2547, %v2774
      %v2858 = vadd.f32 %v2548, %v2777
      %v2859 = vadd.f32 %v2549, %v2780
      %v2860 = vadd.f32 %v2550, %v2783
      %v2861 = vadd.f32 %v2551, %v2786
      %v2862 = vadd.f32 %v2552, %v2789
      %v2863 = vadd.f32 %v2553, %v2792
      %v2864 = vadd.f32 %v2554, %v2795
      %v2865 = vadd.f32 %v2555, %v2798
      %v2866 = vadd.f32 %v2556, %v2801
      %v2867 = vadd.f32 %v2557, %v2804
      %v2868 = vadd.f32 %v2558, %v2807
      %v2869 = vadd.f32 %v2559, %v2810
      %v2870 = vadd.f32 %v2560, %v2813
      %v2871 = vadd.f32 %v2561, %v2816
      %v2872 = vadd.f32 %v2562, %v2819
      %v2873 = vadd.f32 %v2563, %v2822
      %v2874 = vadd.f32 %v2564, %v2825
      %v2875 = vadd.f32 %v2565, %v2828
      %v2876 = vadd.f32 %v2566, %v2831
      %v2877 = vadd.f32 %v2567, %v2834
      %v2878 = vadd.f32 %v2568, %v2837
      %v2879 = vadd.f32 %v2569, %v2840
      %v2880 = vadd.f32 %v2570, %v2843
      %v2881 = vld [vmem:[#allocation2 + $0x26] sm:$0xff]
      %v2882 = vld [vmem:[#allocation2 + $0x2e] sm:$0xff]
      %v2883 = vld [vmem:[#allocation2 + $0x36] sm:$0xff]
      %v2884 = vld [vmem:[#allocation2 + $0x3e] sm:$0xff]
      %v2885 = vld [vmem:[#allocation2 + $0x46] sm:$0xff]
      %v2886 = vld [vmem:[#allocation2 + $0x4e] sm:$0xff]
      %v2887 = vld [vmem:[#allocation2 + $0x56] sm:$0xff]
      %v2888 = vld [vmem:[#allocation2 + $0x5e] sm:$0xff]
      %v2889 = vld [vmem:[#allocation2 + $0x66] sm:$0xff]
      %v2890 = vld [vmem:[#allocation2 + $0x6e] sm:$0xff]
      %v2891 = vld [vmem:[#allocation2 + $0x76] sm:$0xff]
      %v2892 = vld [vmem:[#allocation2 + $0x7e] sm:$0xff]
      %v2893 = vld [vmem:[#allocation2 + $0x86] sm:$0xff]
      %v2894 = vld [vmem:[#allocation2 + $0x8e] sm:$0xff]
      %v2895 = vld [vmem:[#allocation2 + $0x96] sm:$0xff]
      %v2896 = vld [vmem:[#allocation2 + $0x9e] sm:$0xff]
      %v2897 = vld [vmem:[#allocation2 + $0xa6] sm:$0xff]
      %v2898 = vld [vmem:[#allocation2 + $0xae] sm:$0xff]
      %v2899 = vld [vmem:[#allocation2 + $0xb6] sm:$0xff]
      %v2900 = vld [vmem:[#allocation2 + $0xbe] sm:$0xff]
      %v2901 = vld [vmem:[#allocation2 + $0xc6] sm:$0xff]
      %v2902 = vld [vmem:[#allocation2 + $0xce] sm:$0xff]
      %v2903 = vld [vmem:[#allocation2 + $0xd6] sm:$0xff]
      %v2904 = vld [vmem:[#allocation2 + $0xde] sm:$0xff]
      %v2905 = vld [vmem:[#allocation2 + $0xe6] sm:$0xff]
      %v2906 = vld [vmem:[#allocation2 + $0xee] sm:$0xff]
      %v2907 = vld [vmem:[#allocation2 + $0xf6] sm:$0xff]
      %v2908 = vld [vmem:[#allocation2 + $0xfe] sm:$0xff]
      %v2909 = vld [vmem:[#allocation2 + $0x106] sm:$0xff]
      %v2910 = vld [vmem:[#allocation2 + $0x10e] sm:$0xff]
      %v2911 = vld [vmem:[#allocation2 + $0x116] sm:$0xff]
      %v2912 = vld [vmem:[#allocation2 + $0x11e] sm:$0xff]
      %v2913 = vld [vmem:[#allocation2 + $0x126] sm:$0xff]
      %v2914 = vld [vmem:[#allocation2 + $0x12e] sm:$0xff]
      %v2915 = vld [vmem:[#allocation2 + $0x136] sm:$0xff]
      %v2916 = vld [vmem:[#allocation2 + $0x13e] sm:$0xff]
      %s2917 = scalar_lea.vmem %s1, 32
      %v2918 = vld [vmem:[%s2917] sm:$0xf]
      %v2920 = vsel %vm306, %v2881, 0
      %v2923 = vsel %vm306, %v2882, 0
      %v2926 = vsel %vm306, %v2883, 0
      %v2929 = vsel %vm306, %v2884, 0
      %v2932 = vsel %vm306, %v2885, 0
      %v2935 = vsel %vm306, %v2886, 0
      %v2938 = vsel %vm306, %v2887, 0
      %v2941 = vsel %vm306, %v2888, 0
      %v2944 = vsel %vm306, %v2889, 0
      %v2947 = vsel %vm306, %v2890, 0
      %v2950 = vsel %vm306, %v2891, 0
      %v2953 = vsel %vm306, %v2892, 0
      %v2956 = vsel %vm306, %v2893, 0
      %v2959 = vsel %vm306, %v2894, 0
      %v2962 = vsel %vm306, %v2895, 0
      %v2965 = vsel %vm306, %v2896, 0
      %v2968 = vsel %vm306, %v2897, 0
      %v2971 = vsel %vm306, %v2898, 0
      %v2974 = vsel %vm306, %v2899, 0
      %v2977 = vsel %vm306, %v2900, 0
      %v2980 = vsel %vm306, %v2901, 0
      %v2983 = vsel %vm306, %v2902, 0
      %v2986 = vsel %vm306, %v2903, 0
      %v2989 = vsel %vm306, %v2904, 0
      %v2992 = vsel %vm306, %v2905, 0
      %v2995 = vsel %vm306, %v2906, 0
      %v2998 = vsel %vm306, %v2907, 0
      %v3001 = vsel %vm306, %v2908, 0
      %v3004 = vsel %vm306, %v2909, 0
      %v3007 = vsel %vm306, %v2910, 0
      %v3010 = vsel %vm306, %v2911, 0
      %v3013 = vsel %vm306, %v2912, 0
      %v3016 = vsel %vm306, %v2913, 0
      %v3019 = vsel %vm306, %v2914, 0
      %v3022 = vsel %vm306, %v2915, 0
      %v3025 = vsel %vm306, %v2916, 0
      %v3028 = vsel %vm656, %v2918, 0
      %3030 = vmatpush.msra.mxu0 0.0
      %3031 = vmatpush.msra.mxu0 0.0
      %3032 = vmatpush.msra.mxu0 0.0
      %3033 = vmatpush.msra.mxu0 0.0
      %3034 = vmatpush.msra.mxu0 0.0
      %3035 = vmatpush.msra.mxu0 0.0
      %3036 = vmatpush.msra.mxu0 0.0
      %3037 = vmatpush.msra.mxu0 0.0
      %3038 = vmatpush.msra.mxu0 0.0
      %3039 = vmatpush.msra.mxu0 0.0
      %3040 = vmatpush.msra.mxu0 0.0
      %3041 = vmatpush.msra.mxu0 0.0
      %3042 = vmatpush.msra.mxu0 0.0
      %3043 = vmatpush.msra.mxu0 0.0
      %3044 = vmatpush.msra.mxu0 0.0
      %3045 = vmatpush.msra.mxu0 %v3028
      %3046 = vmatmul.f32.gmra.mxu0 %v2920
      %v3047 = vpop.f32.mrf.mxu0
      %v3048 = vadd.f32 0.0, %v3047
      %3049 = vmatmul.f32.gmra.mxu0 %v2923
      %v3050 = vpop.f32.mrf.mxu0
      %v3051 = vadd.f32 0.0, %v3050
      %3052 = vmatmul.f32.gmra.mxu0 %v2926
      %v3053 = vpop.f32.mrf.mxu0
      %v3054 = vadd.f32 0.0, %v3053
      %3055 = vmatmul.f32.gmra.mxu0 %v2929
      %v3056 = vpop.f32.mrf.mxu0
      %v3057 = vadd.f32 0.0, %v3056
      %3058 = vmatmul.f32.gmra.mxu0 %v2932
      %v3059 = vpop.f32.mrf.mxu0
      %v3060 = vadd.f32 0.0, %v3059
      %3061 = vmatmul.f32.gmra.mxu0 %v2935
      %v3062 = vpop.f32.mrf.mxu0
      %v3063 = vadd.f32 0.0, %v3062
      %3064 = vmatmul.f32.gmra.mxu0 %v2938
      %v3065 = vpop.f32.mrf.mxu0
      %v3066 = vadd.f32 0.0, %v3065
      %3067 = vmatmul.f32.gmra.mxu0 %v2941
      %v3068 = vpop.f32.mrf.mxu0
      %v3069 = vadd.f32 0.0, %v3068
      %3070 = vmatmul.f32.gmra.mxu0 %v2944
      %v3071 = vpop.f32.mrf.mxu0
      %v3072 = vadd.f32 0.0, %v3071
      %3073 = vmatmul.f32.gmra.mxu0 %v2947
      %v3074 = vpop.f32.mrf.mxu0
      %v3075 = vadd.f32 0.0, %v3074
      %3076 = vmatmul.f32.gmra.mxu0 %v2950
      %v3077 = vpop.f32.mrf.mxu0
      %v3078 = vadd.f32 0.0, %v3077
      %3079 = vmatmul.f32.gmra.mxu0 %v2953
      %v3080 = vpop.f32.mrf.mxu0
      %v3081 = vadd.f32 0.0, %v3080
      %3082 = vmatmul.f32.gmra.mxu0 %v2956
      %v3083 = vpop.f32.mrf.mxu0
      %v3084 = vadd.f32 0.0, %v3083
      %3085 = vmatmul.f32.gmra.mxu0 %v2959
      %v3086 = vpop.f32.mrf.mxu0
      %v3087 = vadd.f32 0.0, %v3086
      %3088 = vmatmul.f32.gmra.mxu0 %v2962
      %v3089 = vpop.f32.mrf.mxu0
      %v3090 = vadd.f32 0.0, %v3089
      %3091 = vmatmul.f32.gmra.mxu0 %v2965
      %v3092 = vpop.f32.mrf.mxu0
      %v3093 = vadd.f32 0.0, %v3092
      %3094 = vmatmul.f32.gmra.mxu0 %v2968
      %v3095 = vpop.f32.mrf.mxu0
      %v3096 = vadd.f32 0.0, %v3095
      %3097 = vmatmul.f32.gmra.mxu0 %v2971
      %v3098 = vpop.f32.mrf.mxu0
      %v3099 = vadd.f32 0.0, %v3098
      %3100 = vmatmul.f32.gmra.mxu0 %v2974
      %v3101 = vpop.f32.mrf.mxu0
      %v3102 = vadd.f32 0.0, %v3101
      %3103 = vmatmul.f32.gmra.mxu0 %v2977
      %v3104 = vpop.f32.mrf.mxu0
      %v3105 = vadd.f32 0.0, %v3104
      %3106 = vmatmul.f32.gmra.mxu0 %v2980
      %v3107 = vpop.f32.mrf.mxu0
      %v3108 = vadd.f32 0.0, %v3107
      %3109 = vmatmul.f32.gmra.mxu0 %v2983
      %v3110 = vpop.f32.mrf.mxu0
      %v3111 = vadd.f32 0.0, %v3110
      %3112 = vmatmul.f32.gmra.mxu0 %v2986
      %v3113 = vpop.f32.mrf.mxu0
      %v3114 = vadd.f32 0.0, %v3113
      %3115 = vmatmul.f32.gmra.mxu0 %v2989
      %v3116 = vpop.f32.mrf.mxu0
      %v3117 = vadd.f32 0.0, %v3116
      %3118 = vmatmul.f32.gmra.mxu0 %v2992
      %v3119 = vpop.f32.mrf.mxu0
      %v3120 = vadd.f32 0.0, %v3119
      %3121 = vmatmul.f32.gmra.mxu0 %v2995
      %v3122 = vpop.f32.mrf.mxu0
      %v3123 = vadd.f32 0.0, %v3122
      %3124 = vmatmul.f32.gmra.mxu0 %v2998
      %v3125 = vpop.f32.mrf.mxu0
      %v3126 = vadd.f32 0.0, %v3125
      %3127 = vmatmul.f32.gmra.mxu0 %v3001
      %v3128 = vpop.f32.mrf.mxu0
      %v3129 = vadd.f32 0.0, %v3128
      %3130 = vmatmul.f32.gmra.mxu0 %v3004
      %v3131 = vpop.f32.mrf.mxu0
      %v3132 = vadd.f32 0.0, %v3131
      %3133 = vmatmul.f32.gmra.mxu0 %v3007
      %v3134 = vpop.f32.mrf.mxu0
      %v3135 = vadd.f32 0.0, %v3134
      %3136 = vmatmul.f32.gmra.mxu0 %v3010
      %v3137 = vpop.f32.mrf.mxu0
      %v3138 = vadd.f32 0.0, %v3137
      %3139 = vmatmul.f32.gmra.mxu0 %v3013
      %v3140 = vpop.f32.mrf.mxu0
      %v3141 = vadd.f32 0.0, %v3140
      %3142 = vmatmul.f32.gmra.mxu0 %v3016
      %v3143 = vpop.f32.mrf.mxu0
      %v3144 = vadd.f32 0.0, %v3143
      %3145 = vmatmul.f32.gmra.mxu0 %v3019
      %v3146 = vpop.f32.mrf.mxu0
      %v3147 = vadd.f32 0.0, %v3146
      %3148 = vmatmul.f32.gmra.mxu0 %v3022
      %v3149 = vpop.f32.mrf.mxu0
      %v3150 = vadd.f32 0.0, %v3149
      %3151 = vmatmul.f32.gmra.mxu0 %v3025
      %v3152 = vpop.f32.mrf.mxu0
      %v3153 = vadd.f32 0.0, %v3152
      %3154 = vdwg.mxu0
      %v3155 = vadd.f32 %v2845, %v3048
      %v3156 = vadd.f32 %v2846, %v3051
      %v3157 = vadd.f32 %v2847, %v3054
      %v3158 = vadd.f32 %v2848, %v3057
      %v3159 = vadd.f32 %v2849, %v3060
      %v3160 = vadd.f32 %v2850, %v3063
      %v3161 = vadd.f32 %v2851, %v3066
      %v3162 = vadd.f32 %v2852, %v3069
      %v3163 = vadd.f32 %v2853, %v3072
      %v3164 = vadd.f32 %v2854, %v3075
      %v3165 = vadd.f32 %v2855, %v3078
      %v3166 = vadd.f32 %v2856, %v3081
      %v3167 = vadd.f32 %v2857, %v3084
      %v3168 = vadd.f32 %v2858, %v3087
      %v3169 = vadd.f32 %v2859, %v3090
      %v3170 = vadd.f32 %v2860, %v3093
      %v3171 = vadd.f32 %v2861, %v3096
      %v3172 = vadd.f32 %v2862, %v3099
      %v3173 = vadd.f32 %v2863, %v3102
      %v3174 = vadd.f32 %v2864, %v3105
      %v3175 = vadd.f32 %v2865, %v3108
      %v3176 = vadd.f32 %v2866, %v3111
      %v3177 = vadd.f32 %v2867, %v3114
      %v3178 = vadd.f32 %v2868, %v3117
      %v3179 = vadd.f32 %v2869, %v3120
      %v3180 = vadd.f32 %v2870, %v3123
      %v3181 = vadd.f32 %v2871, %v3126
      %v3182 = vadd.f32 %v2872, %v3129
      %v3183 = vadd.f32 %v2873, %v3132
      %v3184 = vadd.f32 %v2874, %v3135
      %v3185 = vadd.f32 %v2875, %v3138
      %v3186 = vadd.f32 %v2876, %v3141
      %v3187 = vadd.f32 %v2877, %v3144
      %v3188 = vadd.f32 %v2878, %v3147
      %v3189 = vadd.f32 %v2879, %v3150
      %v3190 = vadd.f32 %v2880, %v3153
      %v3191 = vld [vmem:[%s2] sm:$0x1]
      %v3193 = vperm.slane %v3191, 0
      %v3195 = vmul.f32 %v3155, %v3193
      %v3196 = vmul.f32 %v3156, %v3193
      %v3197 = vmul.f32 %v3157, %v3193
      %v3198 = vmul.f32 %v3158, %v3193
      %v3199 = vmul.f32 %v3159, %v3193
      %v3200 = vmul.f32 %v3160, %v3193
      %v3201 = vmul.f32 %v3161, %v3193
      %v3202 = vmul.f32 %v3162, %v3193
      %v3203 = vmul.f32 %v3163, %v3193
      %v3204 = vmul.f32 %v3164, %v3193
      %v3205 = vmul.f32 %v3165, %v3193
      %v3206 = vmul.f32 %v3166, %v3193
      %v3207 = vmul.f32 %v3167, %v3193
      %v3208 = vmul.f32 %v3168, %v3193
      %v3209 = vmul.f32 %v3169, %v3193
      %v3210 = vmul.f32 %v3170, %v3193
      %v3211 = vmul.f32 %v3171, %v3193
      %v3212 = vmul.f32 %v3172, %v3193
      %v3213 = vmul.f32 %v3173, %v3193
      %v3214 = vmul.f32 %v3174, %v3193
      %v3215 = vmul.f32 %v3175, %v3193
      %v3216 = vmul.f32 %v3176, %v3193
      %v3217 = vmul.f32 %v3177, %v3193
      %v3218 = vmul.f32 %v3178, %v3193
      %v3219 = vmul.f32 %v3179, %v3193
      %v3220 = vmul.f32 %v3180, %v3193
      %v3221 = vmul.f32 %v3181, %v3193
      %v3222 = vmul.f32 %v3182, %v3193
      %v3223 = vmul.f32 %v3183, %v3193
      %v3224 = vmul.f32 %v3184, %v3193
      %v3225 = vmul.f32 %v3185, %v3193
      %v3226 = vmul.f32 %v3186, %v3193
      %v3227 = vmul.f32 %v3187, %v3193
      %v3228 = vmul.f32 %v3188, %v3193
      %v3229 = vmul.f32 %v3189, %v3193
      %v3230 = vmul.f32 %v3190, %v3193
      %v3231 = vld [vmem:[%s3] sm:$0x1]
      %v3233 = vperm.slane %v3231, 0
      %v3235 = vadd.f32 %v3195, %v3233
      %v3236 = vadd.f32 %v3196, %v3233
      %v3237 = vadd.f32 %v3197, %v3233
      %v3238 = vadd.f32 %v3198, %v3233
      %v3239 = vadd.f32 %v3199, %v3233
      %v3240 = vadd.f32 %v3200, %v3233
      %v3241 = vadd.f32 %v3201, %v3233
      %v3242 = vadd.f32 %v3202, %v3233
      %v3243 = vadd.f32 %v3203, %v3233
      %v3244 = vadd.f32 %v3204, %v3233
      %v3245 = vadd.f32 %v3205, %v3233
      %v3246 = vadd.f32 %v3206, %v3233
      %v3247 = vadd.f32 %v3207, %v3233
      %v3248 = vadd.f32 %v3208, %v3233
      %v3249 = vadd.f32 %v3209, %v3233
      %v3250 = vadd.f32 %v3210, %v3233
      %v3251 = vadd.f32 %v3211, %v3233
      %v3252 = vadd.f32 %v3212, %v3233
      %v3253 = vadd.f32 %v3213, %v3233
      %v3254 = vadd.f32 %v3214, %v3233
      %v3255 = vadd.f32 %v3215, %v3233
      %v3256 = vadd.f32 %v3216, %v3233
      %v3257 = vadd.f32 %v3217, %v3233
      %v3258 = vadd.f32 %v3218, %v3233
      %v3259 = vadd.f32 %v3219, %v3233
      %v3260 = vadd.f32 %v3220, %v3233
      %v3261 = vadd.f32 %v3221, %v3233
      %v3262 = vadd.f32 %v3222, %v3233
      %v3263 = vadd.f32 %v3223, %v3233
      %v3264 = vadd.f32 %v3224, %v3233
      %v3265 = vadd.f32 %v3225, %v3233
      %v3266 = vadd.f32 %v3226, %v3233
      %v3267 = vadd.f32 %v3227, %v3233
      %v3268 = vadd.f32 %v3228, %v3233
      %v3269 = vadd.f32 %v3229, %v3233
      %v3270 = vadd.f32 %v3230, %v3233
      %v3271 = vmax.f32 %v3235, 0.0
      %v3272 = vmax.f32 %v3236, 0.0
      %v3273 = vmax.f32 %v3237, 0.0
      %v3274 = vmax.f32 %v3238, 0.0
      %v3275 = vmax.f32 %v3239, 0.0
      %v3276 = vmax.f32 %v3240, 0.0
      %v3277 = vmax.f32 %v3241, 0.0
      %v3278 = vmax.f32 %v3242, 0.0
      %v3279 = vmax.f32 %v3243, 0.0
      %v3280 = vmax.f32 %v3244, 0.0
      %v3281 = vmax.f32 %v3245, 0.0
      %v3282 = vmax.f32 %v3246, 0.0
      %v3283 = vmax.f32 %v3247, 0.0
      %v3284 = vmax.f32 %v3248, 0.0
      %v3285 = vmax.f32 %v3249, 0.0
      %v3286 = vmax.f32 %v3250, 0.0
      %v3287 = vmax.f32 %v3251, 0.0
      %v3288 = vmax.f32 %v3252, 0.0
      %v3289 = vmax.f32 %v3253, 0.0
      %v3290 = vmax.f32 %v3254, 0.0
      %v3291 = vmax.f32 %v3255, 0.0
      %v3292 = vmax.f32 %v3256, 0.0
      %v3293 = vmax.f32 %v3257, 0.0
      %v3294 = vmax.f32 %v3258, 0.0
      %v3295 = vmax.f32 %v3259, 0.0
      %v3296 = vmax.f32 %v3260, 0.0
      %v3297 = vmax.f32 %v3261, 0.0
      %v3298 = vmax.f32 %v3262, 0.0
      %v3299 = vmax.f32 %v3263, 0.0
      %v3300 = vmax.f32 %v3264, 0.0
      %v3301 = vmax.f32 %v3265, 0.0
      %v3302 = vmax.f32 %v3266, 0.0
      %v3303 = vmax.f32 %v3267, 0.0
      %v3304 = vmax.f32 %v3268, 0.0
      %v3305 = vmax.f32 %v3269, 0.0
      %v3306 = vmax.f32 %v3270, 0.0
      %v3307 = vld [vmem:[%s7] sm:$0xff]
      %v3308 = vld [vmem:[%s7 + $0x8] sm:$0xff]
      %v3309 = vld [vmem:[%s7 + $0x10] sm:$0xff]
      %v3310 = vld [vmem:[%s7 + $0x18] sm:$0xff]
      %v3311 = vld [vmem:[%s7 + $0x20] sm:$0xff]
      %v3312 = vld [vmem:[%s7 + $0x28] sm:$0xff]
      %v3313 = vld [vmem:[%s7 + $0x30] sm:$0xff]
      %v3314 = vld [vmem:[%s7 + $0x38] sm:$0xff]
      %v3315 = vld [vmem:[%s7 + $0x40] sm:$0xff]
      %v3316 = vld [vmem:[%s7 + $0x48] sm:$0xff]
      %v3317 = vld [vmem:[%s7 + $0x50] sm:$0xff]
      %v3318 = vld [vmem:[%s7 + $0x58] sm:$0xff]
      %v3319 = vld [vmem:[%s7 + $0x60] sm:$0xff]
      %v3320 = vld [vmem:[%s7 + $0x68] sm:$0xff]
      %v3321 = vld [vmem:[%s7 + $0x70] sm:$0xff]
      %v3322 = vld [vmem:[%s7 + $0x78] sm:$0xff]
      %v3323 = vld [vmem:[%s7 + $0x80] sm:$0xff]
      %v3324 = vld [vmem:[%s7 + $0x88] sm:$0xff]
      %v3325 = vld [vmem:[%s7 + $0x90] sm:$0xff]
      %v3326 = vld [vmem:[%s7 + $0x98] sm:$0xff]
      %v3327 = vld [vmem:[%s7 + $0xa0] sm:$0xff]
      %v3328 = vld [vmem:[%s7 + $0xa8] sm:$0xff]
      %v3329 = vld [vmem:[%s7 + $0xb0] sm:$0xff]
      %v3330 = vld [vmem:[%s7 + $0xb8] sm:$0xff]
      %v3331 = vld [vmem:[%s7 + $0xc0] sm:$0xff]
      %v3332 = vld [vmem:[%s7 + $0xc8] sm:$0xff]
      %v3333 = vld [vmem:[%s7 + $0xd0] sm:$0xff]
      %v3334 = vld [vmem:[%s7 + $0xd8] sm:$0xff]
      %v3335 = vld [vmem:[%s7 + $0xe0] sm:$0xff]
      %v3336 = vld [vmem:[%s7 + $0xe8] sm:$0xff]
      %v3337 = vld [vmem:[%s7 + $0xf0] sm:$0xff]
      %v3338 = vld [vmem:[%s7 + $0xf8] sm:$0xff]
      %v3339 = vld [vmem:[%s7 + $0x100] sm:$0xff]
      %v3340 = vld [vmem:[%s7 + $0x108] sm:$0xff]
      %v3341 = vld [vmem:[%s7 + $0x110] sm:$0xff]
      %v3342 = vld [vmem:[%s7 + $0x118] sm:$0xff]
      %3344 = vset.pattern.permute.xlu0 0
      %3345 = vperm.xlu0 %3344, %v3307
      %v3346 = vpop.permute.xlu0 %3345
      %3349 = vset.pattern.permute.xlu0 0
      %3350 = vperm.xlu0 %3349, %v3308
      %v3351 = vpop.permute.xlu0 %3350
      %3354 = vset.pattern.permute.xlu0 0
      %3355 = vperm.xlu0 %3354, %v3309
      %v3356 = vpop.permute.xlu0 %3355
      %3359 = vset.pattern.permute.xlu0 0
      %3360 = vperm.xlu0 %3359, %v3310
      %v3361 = vpop.permute.xlu0 %3360
      %3364 = vset.pattern.permute.xlu0 0
      %3365 = vperm.xlu0 %3364, %v3311
      %v3366 = vpop.permute.xlu0 %3365
      %3369 = vset.pattern.permute.xlu0 0
      %3370 = vperm.xlu0 %3369, %v3312
      %v3371 = vpop.permute.xlu0 %3370
      %3374 = vset.pattern.permute.xlu0 0
      %3375 = vperm.xlu0 %3374, %v3313
      %v3376 = vpop.permute.xlu0 %3375
      %3379 = vset.pattern.permute.xlu0 0
      %3380 = vperm.xlu0 %3379, %v3314
      %v3381 = vpop.permute.xlu0 %3380
      %3384 = vset.pattern.permute.xlu0 0
      %3385 = vperm.xlu0 %3384, %v3315
      %v3386 = vpop.permute.xlu0 %3385
      %3389 = vset.pattern.permute.xlu0 0
      %3390 = vperm.xlu0 %3389, %v3316
      %v3391 = vpop.permute.xlu0 %3390
      %3394 = vset.pattern.permute.xlu0 0
      %3395 = vperm.xlu0 %3394, %v3317
      %v3396 = vpop.permute.xlu0 %3395
      %3399 = vset.pattern.permute.xlu0 0
      %3400 = vperm.xlu0 %3399, %v3318
      %v3401 = vpop.permute.xlu0 %3400
      %3404 = vset.pattern.permute.xlu0 0
      %3405 = vperm.xlu0 %3404, %v3319
      %v3406 = vpop.permute.xlu0 %3405
      %3409 = vset.pattern.permute.xlu0 0
      %3410 = vperm.xlu0 %3409, %v3320
      %v3411 = vpop.permute.xlu0 %3410
      %3414 = vset.pattern.permute.xlu0 0
      %3415 = vperm.xlu0 %3414, %v3321
      %v3416 = vpop.permute.xlu0 %3415
      %3419 = vset.pattern.permute.xlu0 0
      %3420 = vperm.xlu0 %3419, %v3322
      %v3421 = vpop.permute.xlu0 %3420
      %3424 = vset.pattern.permute.xlu0 0
      %3425 = vperm.xlu0 %3424, %v3323
      %v3426 = vpop.permute.xlu0 %3425
      %3429 = vset.pattern.permute.xlu0 0
      %3430 = vperm.xlu0 %3429, %v3324
      %v3431 = vpop.permute.xlu0 %3430
      %3434 = vset.pattern.permute.xlu0 0
      %3435 = vperm.xlu0 %3434, %v3325
      %v3436 = vpop.permute.xlu0 %3435
      %3439 = vset.pattern.permute.xlu0 0
      %3440 = vperm.xlu0 %3439, %v3326
      %v3441 = vpop.permute.xlu0 %3440
      %3444 = vset.pattern.permute.xlu0 0
      %3445 = vperm.xlu0 %3444, %v3327
      %v3446 = vpop.permute.xlu0 %3445
      %3449 = vset.pattern.permute.xlu0 0
      %3450 = vperm.xlu0 %3449, %v3328
      %v3451 = vpop.permute.xlu0 %3450
      %3454 = vset.pattern.permute.xlu0 0
      %3455 = vperm.xlu0 %3454, %v3329
      %v3456 = vpop.permute.xlu0 %3455
      %3459 = vset.pattern.permute.xlu0 0
      %3460 = vperm.xlu0 %3459, %v3330
      %v3461 = vpop.permute.xlu0 %3460
      %3464 = vset.pattern.permute.xlu0 0
      %3465 = vperm.xlu0 %3464, %v3331
      %v3466 = vpop.permute.xlu0 %3465
      %3469 = vset.pattern.permute.xlu0 0
      %3470 = vperm.xlu0 %3469, %v3332
      %v3471 = vpop.permute.xlu0 %3470
      %3474 = vset.pattern.permute.xlu0 0
      %3475 = vperm.xlu0 %3474, %v3333
      %v3476 = vpop.permute.xlu0 %3475
      %3479 = vset.pattern.permute.xlu0 0
      %3480 = vperm.xlu0 %3479, %v3334
      %v3481 = vpop.permute.xlu0 %3480
      %3484 = vset.pattern.permute.xlu0 0
      %3485 = vperm.xlu0 %3484, %v3335
      %v3486 = vpop.permute.xlu0 %3485
      %3489 = vset.pattern.permute.xlu0 0
      %3490 = vperm.xlu0 %3489, %v3336
      %v3491 = vpop.permute.xlu0 %3490
      %3494 = vset.pattern.permute.xlu0 0
      %3495 = vperm.xlu0 %3494, %v3337
      %v3496 = vpop.permute.xlu0 %3495
      %3499 = vset.pattern.permute.xlu0 0
      %3500 = vperm.xlu0 %3499, %v3338
      %v3501 = vpop.permute.xlu0 %3500
      %3504 = vset.pattern.permute.xlu0 0
      %3505 = vperm.xlu0 %3504, %v3339
      %v3506 = vpop.permute.xlu0 %3505
      %3509 = vset.pattern.permute.xlu0 0
      %3510 = vperm.xlu0 %3509, %v3340
      %v3511 = vpop.permute.xlu0 %3510
      %3514 = vset.pattern.permute.xlu0 0
      %3515 = vperm.xlu0 %3514, %v3341
      %v3516 = vpop.permute.xlu0 %3515
      %3519 = vset.pattern.permute.xlu0 0
      %3520 = vperm.xlu0 %3519, %v3342
      %v3521 = vpop.permute.xlu0 %3520
      %v3523 = vmul.f32 %v3271, %v3346
      %v3524 = vmul.f32 %v3272, %v3351
      %v3525 = vmul.f32 %v3273, %v3356
      %v3526 = vmul.f32 %v3274, %v3361
      %v3527 = vmul.f32 %v3275, %v3366
      %v3528 = vmul.f32 %v3276, %v3371
      %v3529 = vmul.f32 %v3277, %v3376
      %v3530 = vmul.f32 %v3278, %v3381
      %v3531 = vmul.f32 %v3279, %v3386
      %v3532 = vmul.f32 %v3280, %v3391
      %v3533 = vmul.f32 %v3281, %v3396
      %v3534 = vmul.f32 %v3282, %v3401
      %v3535 = vmul.f32 %v3283, %v3406
      %v3536 = vmul.f32 %v3284, %v3411
      %v3537 = vmul.f32 %v3285, %v3416
      %v3538 = vmul.f32 %v3286, %v3421
      %v3539 = vmul.f32 %v3287, %v3426
      %v3540 = vmul.f32 %v3288, %v3431
      %v3541 = vmul.f32 %v3289, %v3436
      %v3542 = vmul.f32 %v3290, %v3441
      %v3543 = vmul.f32 %v3291, %v3446
      %v3544 = vmul.f32 %v3292, %v3451
      %v3545 = vmul.f32 %v3293, %v3456
      %v3546 = vmul.f32 %v3294, %v3461
      %v3547 = vmul.f32 %v3295, %v3466
      %v3548 = vmul.f32 %v3296, %v3471
      %v3549 = vmul.f32 %v3297, %v3476
      %v3550 = vmul.f32 %v3298, %v3481
      %v3551 = vmul.f32 %v3299, %v3486
      %v3552 = vmul.f32 %v3300, %v3491
      %v3553 = vmul.f32 %v3301, %v3496
      %v3554 = vmul.f32 %v3302, %v3501
      %v3555 = vmul.f32 %v3303, %v3506
      %v3556 = vmul.f32 %v3304, %v3511
      %v3557 = vmul.f32 %v3305, %v3516
      %v3558 = vmul.f32 %v3306, %v3521
      %3559 = vst.msk [vmem:[#allocation3 + $0x13] sm:$0xff] %vm306, %v3523
      %3560 = vst.msk [vmem:[#allocation3 + $0x1b] sm:$0xff] %vm306, %v3524
      %3561 = vst.msk [vmem:[#allocation3 + $0x23] sm:$0xff] %vm306, %v3525
      %3562 = vst.msk [vmem:[#allocation3 + $0x2b] sm:$0xff] %vm306, %v3526
      %3563 = vst.msk [vmem:[#allocation3 + $0x33] sm:$0xff] %vm306, %v3527
      %3564 = vst.msk [vmem:[#allocation3 + $0x3b] sm:$0xff] %vm306, %v3528
      %3565 = vst.msk [vmem:[#allocation3 + $0x43] sm:$0xff] %vm306, %v3529
      %3566 = vst.msk [vmem:[#allocation3 + $0x4b] sm:$0xff] %vm306, %v3530
      %3567 = vst.msk [vmem:[#allocation3 + $0x53] sm:$0xff] %vm306, %v3531
      %3568 = vst.msk [vmem:[#allocation3 + $0x5b] sm:$0xff] %vm306, %v3532
      %3569 = vst.msk [vmem:[#allocation3 + $0x63] sm:$0xff] %vm306, %v3533
      %3570 = vst.msk [vmem:[#allocation3 + $0x6b] sm:$0xff] %vm306, %v3534
      %3571 = vst.msk [vmem:[#allocation3 + $0x73] sm:$0xff] %vm306, %v3535
      %3572 = vst.msk [vmem:[#allocation3 + $0x7b] sm:$0xff] %vm306, %v3536
      %3573 = vst.msk [vmem:[#allocation3 + $0x83] sm:$0xff] %vm306, %v3537
      %3574 = vst.msk [vmem:[#allocation3 + $0x8b] sm:$0xff] %vm306, %v3538
      %3575 = vst.msk [vmem:[#allocation3 + $0x93] sm:$0xff] %vm306, %v3539
      %3576 = vst.msk [vmem:[#allocation3 + $0x9b] sm:$0xff] %vm306, %v3540
      %3577 = vst.msk [vmem:[#allocation3 + $0xa3] sm:$0xff] %vm306, %v3541
      %3578 = vst.msk [vmem:[#allocation3 + $0xab] sm:$0xff] %vm306, %v3542
      %3579 = vst.msk [vmem:[#allocation3 + $0xb3] sm:$0xff] %vm306, %v3543
      %3580 = vst.msk [vmem:[#allocation3 + $0xbb] sm:$0xff] %vm306, %v3544
      %3581 = vst.msk [vmem:[#allocation3 + $0xc3] sm:$0xff] %vm306, %v3545
      %3582 = vst.msk [vmem:[#allocation3 + $0xcb] sm:$0xff] %vm306, %v3546
      %3583 = vst.msk [vmem:[#allocation3 + $0xd3] sm:$0xff] %vm306, %v3547
      %3584 = vst.msk [vmem:[#allocation3 + $0xdb] sm:$0xff] %vm306, %v3548
      %3585 = vst.msk [vmem:[#allocation3 + $0xe3] sm:$0xff] %vm306, %v3549
      %3586 = vst.msk [vmem:[#allocation3 + $0xeb] sm:$0xff] %vm306, %v3550
      %3587 = vst.msk [vmem:[#allocation3 + $0xf3] sm:$0xff] %vm306, %v3551
      %3588 = vst.msk [vmem:[#allocation3 + $0xfb] sm:$0xff] %vm306, %v3552
      %3589 = vst.msk [vmem:[#allocation3 + $0x103] sm:$0xff] %vm306, %v3553
      %3590 = vst.msk [vmem:[#allocation3 + $0x10b] sm:$0xff] %vm306, %v3554
      %3591 = vst.msk [vmem:[#allocation3 + $0x113] sm:$0xff] %vm306, %v3555
      %3592 = vst.msk [vmem:[#allocation3 + $0x11b] sm:$0xff] %vm306, %v3556
      %3593 = vst.msk [vmem:[#allocation3 + $0x123] sm:$0xff] %vm306, %v3557
      %3594 = vst.msk [vmem:[#allocation3 + $0x12b] sm:$0xff] %vm306, %v3558
      %v3595 = vld [vmem:[#allocation3] sm:$0xff]
      %v3596 = vld [vmem:[#allocation3 + $0x8] sm:$0xff]
      %v3597 = vld [vmem:[#allocation3 + $0x10] sm:$0xff]
      %v3598 = vld [vmem:[#allocation3 + $0x18] sm:$0xff]
      %v3599 = vld [vmem:[#allocation3 + $0x20] sm:$0xff]
      %v3600 = vld [vmem:[#allocation3 + $0x28] sm:$0xff]
      %v3601 = vld [vmem:[#allocation3 + $0x30] sm:$0xff]
      %v3602 = vld [vmem:[#allocation3 + $0x38] sm:$0xff]
      %v3603 = vld [vmem:[#allocation3 + $0x40] sm:$0xff]
      %v3604 = vld [vmem:[#allocation3 + $0x48] sm:$0xff]
      %v3605 = vld [vmem:[#allocation3 + $0x50] sm:$0xff]
      %v3606 = vld [vmem:[#allocation3 + $0x58] sm:$0xff]
      %v3607 = vld [vmem:[#allocation3 + $0x60] sm:$0xff]
      %v3608 = vld [vmem:[#allocation3 + $0x68] sm:$0xff]
      %v3609 = vld [vmem:[#allocation3 + $0x70] sm:$0xff]
      %v3610 = vld [vmem:[#allocation3 + $0x78] sm:$0xff]
      %v3611 = vld [vmem:[#allocation3 + $0x80] sm:$0xff]
      %v3612 = vld [vmem:[#allocation3 + $0x88] sm:$0xff]
      %v3613 = vld [vmem:[#allocation3 + $0x90] sm:$0xff]
      %v3614 = vld [vmem:[#allocation3 + $0x98] sm:$0xff]
      %v3615 = vld [vmem:[#allocation3 + $0xa0] sm:$0xff]
      %v3616 = vld [vmem:[#allocation3 + $0xa8] sm:$0xff]
      %v3617 = vld [vmem:[#allocation3 + $0xb0] sm:$0xff]
      %v3618 = vld [vmem:[#allocation3 + $0xb8] sm:$0xff]
      %v3619 = vld [vmem:[#allocation3 + $0xc0] sm:$0xff]
      %v3620 = vld [vmem:[#allocation3 + $0xc8] sm:$0xff]
      %v3621 = vld [vmem:[#allocation3 + $0xd0] sm:$0xff]
      %v3622 = vld [vmem:[#allocation3 + $0xd8] sm:$0xff]
      %v3623 = vld [vmem:[#allocation3 + $0xe0] sm:$0xff]
      %v3624 = vld [vmem:[#allocation3 + $0xe8] sm:$0xff]
      %v3625 = vld [vmem:[#allocation3 + $0xf0] sm:$0xff]
      %v3626 = vld [vmem:[#allocation3 + $0xf8] sm:$0xff]
      %v3627 = vld [vmem:[#allocation3 + $0x100] sm:$0xff]
      %v3628 = vld [vmem:[#allocation3 + $0x108] sm:$0xff]
      %v3629 = vld [vmem:[#allocation3 + $0x110] sm:$0xff]
      %v3630 = vld [vmem:[#allocation3 + $0x118] sm:$0xff]
      %v3631 = vld [vmem:[%s4] sm:$0xf]
      %v3632 = vld [vmem:[#allocation3 + $0x1] sm:$0xff]
      %v3633 = vld [vmem:[#allocation3 + $0x9] sm:$0xff]
      %v3634 = vld [vmem:[#allocation3 + $0x11] sm:$0xff]
      %v3635 = vld [vmem:[#allocation3 + $0x19] sm:$0xff]
      %v3636 = vld [vmem:[#allocation3 + $0x21] sm:$0xff]
      %v3637 = vld [vmem:[#allocation3 + $0x29] sm:$0xff]
      %v3638 = vld [vmem:[#allocation3 + $0x31] sm:$0xff]
      %v3639 = vld [vmem:[#allocation3 + $0x39] sm:$0xff]
      %v3640 = vld [vmem:[#allocation3 + $0x41] sm:$0xff]
      %v3641 = vld [vmem:[#allocation3 + $0x49] sm:$0xff]
      %v3642 = vld [vmem:[#allocation3 + $0x51] sm:$0xff]
      %v3643 = vld [vmem:[#allocation3 + $0x59] sm:$0xff]
      %v3644 = vld [vmem:[#allocation3 + $0x61] sm:$0xff]
      %v3645 = vld [vmem:[#allocation3 + $0x69] sm:$0xff]
      %v3646 = vld [vmem:[#allocation3 + $0x71] sm:$0xff]
      %v3647 = vld [vmem:[#allocation3 + $0x79] sm:$0xff]
      %v3648 = vld [vmem:[#allocation3 + $0x81] sm:$0xff]
      %v3649 = vld [vmem:[#allocation3 + $0x89] sm:$0xff]
      %v3650 = vld [vmem:[#allocation3 + $0x91] sm:$0xff]
      %v3651 = vld [vmem:[#allocation3 + $0x99] sm:$0xff]
      %v3652 = vld [vmem:[#allocation3 + $0xa1] sm:$0xff]
      %v3653 = vld [vmem:[#allocation3 + $0xa9] sm:$0xff]
      %v3654 = vld [vmem:[#allocation3 + $0xb1] sm:$0xff]
      %v3655 = vld [vmem:[#allocation3 + $0xb9] sm:$0xff]
      %v3656 = vld [vmem:[#allocation3 + $0xc1] sm:$0xff]
      %v3657 = vld [vmem:[#allocation3 + $0xc9] sm:$0xff]
      %v3658 = vld [vmem:[#allocation3 + $0xd1] sm:$0xff]
      %v3659 = vld [vmem:[#allocation3 + $0xd9] sm:$0xff]
      %v3660 = vld [vmem:[#allocation3 + $0xe1] sm:$0xff]
      %v3661 = vld [vmem:[#allocation3 + $0xe9] sm:$0xff]
      %v3662 = vld [vmem:[#allocation3 + $0xf1] sm:$0xff]
      %v3663 = vld [vmem:[#allocation3 + $0xf9] sm:$0xff]
      %v3664 = vld [vmem:[#allocation3 + $0x101] sm:$0xff]
      %v3665 = vld [vmem:[#allocation3 + $0x109] sm:$0xff]
      %v3666 = vld [vmem:[#allocation3 + $0x111] sm:$0xff]
      %v3667 = vld [vmem:[#allocation3 + $0x119] sm:$0xff]
      %s3668 = scalar_lea.vmem %s4, 4
      %v3669 = vld [vmem:[%s3668] sm:$0xf]
      %v3671 = vsel %vm306, %v3632, 0
      %v3674 = vsel %vm306, %v3633, 0
      %v3677 = vsel %vm306, %v3634, 0
      %v3680 = vsel %vm306, %v3635, 0
      %v3683 = vsel %vm306, %v3636, 0
      %v3686 = vsel %vm306, %v3637, 0
      %v3689 = vsel %vm306, %v3638, 0
      %v3692 = vsel %vm306, %v3639, 0
      %v3695 = vsel %vm306, %v3640, 0
      %v3698 = vsel %vm306, %v3641, 0
      %v3701 = vsel %vm306, %v3642, 0
      %v3704 = vsel %vm306, %v3643, 0
      %v3707 = vsel %vm306, %v3644, 0
      %v3710 = vsel %vm306, %v3645, 0
      %v3713 = vsel %vm306, %v3646, 0
      %v3716 = vsel %vm306, %v3647, 0
      %v3719 = vsel %vm306, %v3648, 0
      %v3722 = vsel %vm306, %v3649, 0
      %v3725 = vsel %vm306, %v3650, 0
      %v3728 = vsel %vm306, %v3651, 0
      %v3731 = vsel %vm306, %v3652, 0
      %v3734 = vsel %vm306, %v3653, 0
      %v3737 = vsel %vm306, %v3654, 0
      %v3740 = vsel %vm306, %v3655, 0
      %v3743 = vsel %vm306, %v3656, 0
      %v3746 = vsel %vm306, %v3657, 0
      %v3749 = vsel %vm306, %v3658, 0
      %v3752 = vsel %vm306, %v3659, 0
      %v3755 = vsel %vm306, %v3660, 0
      %v3758 = vsel %vm306, %v3661, 0
      %v3761 = vsel %vm306, %v3662, 0
      %v3764 = vsel %vm306, %v3663, 0
      %v3767 = vsel %vm306, %v3664, 0
      %v3770 = vsel %vm306, %v3665, 0
      %v3773 = vsel %vm306, %v3666, 0
      %v3776 = vsel %vm306, %v3667, 0
      %v3779 = vsel %vm656, %v3669, 0
      %3781 = vmatpush.msra.mxu0 0.0
      %3782 = vmatpush.msra.mxu0 0.0
      %3783 = vmatpush.msra.mxu0 0.0
      %3784 = vmatpush.msra.mxu0 0.0
      %3785 = vmatpush.msra.mxu0 0.0
      %3786 = vmatpush.msra.mxu0 0.0
      %3787 = vmatpush.msra.mxu0 0.0
      %3788 = vmatpush.msra.mxu0 0.0
      %3789 = vmatpush.msra.mxu0 0.0
      %3790 = vmatpush.msra.mxu0 0.0
      %3791 = vmatpush.msra.mxu0 0.0
      %3792 = vmatpush.msra.mxu0 0.0
      %3793 = vmatpush.msra.mxu0 0.0
      %3794 = vmatpush.msra.mxu0 0.0
      %3795 = vmatpush.msra.mxu0 0.0
      %3796 = vmatpush.msra.mxu0 %v3779
      %3797 = vmatmul.f32.gmra.mxu0 %v3671
      %v3798 = vpop.f32.mrf.mxu0
      %v3799 = vadd.f32 0.0, %v3798
      %3800 = vmatmul.f32.gmra.mxu0 %v3674
      %v3801 = vpop.f32.mrf.mxu0
      %v3802 = vadd.f32 0.0, %v3801
      %3803 = vmatmul.f32.gmra.mxu0 %v3677
      %v3804 = vpop.f32.mrf.mxu0
      %v3805 = vadd.f32 0.0, %v3804
      %3806 = vmatmul.f32.gmra.mxu0 %v3680
      %v3807 = vpop.f32.mrf.mxu0
      %v3808 = vadd.f32 0.0, %v3807
      %3809 = vmatmul.f32.gmra.mxu0 %v3683
      %v3810 = vpop.f32.mrf.mxu0
      %v3811 = vadd.f32 0.0, %v3810
      %3812 = vmatmul.f32.gmra.mxu0 %v3686
      %v3813 = vpop.f32.mrf.mxu0
      %v3814 = vadd.f32 0.0, %v3813
      %3815 = vmatmul.f32.gmra.mxu0 %v3689
      %v3816 = vpop.f32.mrf.mxu0
      %v3817 = vadd.f32 0.0, %v3816
      %3818 = vmatmul.f32.gmra.mxu0 %v3692
      %v3819 = vpop.f32.mrf.mxu0
      %v3820 = vadd.f32 0.0, %v3819
      %3821 = vmatmul.f32.gmra.mxu0 %v3695
      %v3822 = vpop.f32.mrf.mxu0
      %v3823 = vadd.f32 0.0, %v3822
      %3824 = vmatmul.f32.gmra.mxu0 %v3698
      %v3825 = vpop.f32.mrf.mxu0
      %v3826 = vadd.f32 0.0, %v3825
      %3827 = vmatmul.f32.gmra.mxu0 %v3701
      %v3828 = vpop.f32.mrf.mxu0
      %v3829 = vadd.f32 0.0, %v3828
      %3830 = vmatmul.f32.gmra.mxu0 %v3704
      %v3831 = vpop.f32.mrf.mxu0
      %v3832 = vadd.f32 0.0, %v3831
      %3833 = vmatmul.f32.gmra.mxu0 %v3707
      %v3834 = vpop.f32.mrf.mxu0
      %v3835 = vadd.f32 0.0, %v3834
      %3836 = vmatmul.f32.gmra.mxu0 %v3710
      %v3837 = vpop.f32.mrf.mxu0
      %v3838 = vadd.f32 0.0, %v3837
      %3839 = vmatmul.f32.gmra.mxu0 %v3713
      %v3840 = vpop.f32.mrf.mxu0
      %v3841 = vadd.f32 0.0, %v3840
      %3842 = vmatmul.f32.gmra.mxu0 %v3716
      %v3843 = vpop.f32.mrf.mxu0
      %v3844 = vadd.f32 0.0, %v3843
      %3845 = vmatmul.f32.gmra.mxu0 %v3719
      %v3846 = vpop.f32.mrf.mxu0
      %v3847 = vadd.f32 0.0, %v3846
      %3848 = vmatmul.f32.gmra.mxu0 %v3722
      %v3849 = vpop.f32.mrf.mxu0
      %v3850 = vadd.f32 0.0, %v3849
      %3851 = vmatmul.f32.gmra.mxu0 %v3725
      %v3852 = vpop.f32.mrf.mxu0
      %v3853 = vadd.f32 0.0, %v3852
      %3854 = vmatmul.f32.gmra.mxu0 %v3728
      %v3855 = vpop.f32.mrf.mxu0
      %v3856 = vadd.f32 0.0, %v3855
      %3857 = vmatmul.f32.gmra.mxu0 %v3731
      %v3858 = vpop.f32.mrf.mxu0
      %v3859 = vadd.f32 0.0, %v3858
      %3860 = vmatmul.f32.gmra.mxu0 %v3734
      %v3861 = vpop.f32.mrf.mxu0
      %v3862 = vadd.f32 0.0, %v3861
      %3863 = vmatmul.f32.gmra.mxu0 %v3737
      %v3864 = vpop.f32.mrf.mxu0
      %v3865 = vadd.f32 0.0, %v3864
      %3866 = vmatmul.f32.gmra.mxu0 %v3740
      %v3867 = vpop.f32.mrf.mxu0
      %v3868 = vadd.f32 0.0, %v3867
      %3869 = vmatmul.f32.gmra.mxu0 %v3743
      %v3870 = vpop.f32.mrf.mxu0
      %v3871 = vadd.f32 0.0, %v3870
      %3872 = vmatmul.f32.gmra.mxu0 %v3746
      %v3873 = vpop.f32.mrf.mxu0
      %v3874 = vadd.f32 0.0, %v3873
      %3875 = vmatmul.f32.gmra.mxu0 %v3749
      %v3876 = vpop.f32.mrf.mxu0
      %v3877 = vadd.f32 0.0, %v3876
      %3878 = vmatmul.f32.gmra.mxu0 %v3752
      %v3879 = vpop.f32.mrf.mxu0
      %v3880 = vadd.f32 0.0, %v3879
      %3881 = vmatmul.f32.gmra.mxu0 %v3755
      %v3882 = vpop.f32.mrf.mxu0
      %v3883 = vadd.f32 0.0, %v3882
      %3884 = vmatmul.f32.gmra.mxu0 %v3758
      %v3885 = vpop.f32.mrf.mxu0
      %v3886 = vadd.f32 0.0, %v3885
      %3887 = vmatmul.f32.gmra.mxu0 %v3761
      %v3888 = vpop.f32.mrf.mxu0
      %v3889 = vadd.f32 0.0, %v3888
      %3890 = vmatmul.f32.gmra.mxu0 %v3764
      %v3891 = vpop.f32.mrf.mxu0
      %v3892 = vadd.f32 0.0, %v3891
      %3893 = vmatmul.f32.gmra.mxu0 %v3767
      %v3894 = vpop.f32.mrf.mxu0
      %v3895 = vadd.f32 0.0, %v3894
      %3896 = vmatmul.f32.gmra.mxu0 %v3770
      %v3897 = vpop.f32.mrf.mxu0
      %v3898 = vadd.f32 0.0, %v3897
      %3899 = vmatmul.f32.gmra.mxu0 %v3773
      %v3900 = vpop.f32.mrf.mxu0
      %v3901 = vadd.f32 0.0, %v3900
      %3902 = vmatmul.f32.gmra.mxu0 %v3776
      %v3903 = vpop.f32.mrf.mxu0
      %v3904 = vadd.f32 0.0, %v3903
      %3905 = vdwg.mxu0
      %v3907 = vsel %vm306, %v3595, 0
      %v3910 = vsel %vm306, %v3596, 0
      %v3913 = vsel %vm306, %v3597, 0
      %v3916 = vsel %vm306, %v3598, 0
      %v3919 = vsel %vm306, %v3599, 0
      %v3922 = vsel %vm306, %v3600, 0
      %v3925 = vsel %vm306, %v3601, 0
      %v3928 = vsel %vm306, %v3602, 0
      %v3931 = vsel %vm306, %v3603, 0
      %v3934 = vsel %vm306, %v3604, 0
      %v3937 = vsel %vm306, %v3605, 0
      %v3940 = vsel %vm306, %v3606, 0
      %v3943 = vsel %vm306, %v3607, 0
      %v3946 = vsel %vm306, %v3608, 0
      %v3949 = vsel %vm306, %v3609, 0
      %v3952 = vsel %vm306, %v3610, 0
      %v3955 = vsel %vm306, %v3611, 0
      %v3958 = vsel %vm306, %v3612, 0
      %v3961 = vsel %vm306, %v3613, 0
      %v3964 = vsel %vm306, %v3614, 0
      %v3967 = vsel %vm306, %v3615, 0
      %v3970 = vsel %vm306, %v3616, 0
      %v3973 = vsel %vm306, %v3617, 0
      %v3976 = vsel %vm306, %v3618, 0
      %v3979 = vsel %vm306, %v3619, 0
      %v3982 = vsel %vm306, %v3620, 0
      %v3985 = vsel %vm306, %v3621, 0
      %v3988 = vsel %vm306, %v3622, 0
      %v3991 = vsel %vm306, %v3623, 0
      %v3994 = vsel %vm306, %v3624, 0
      %v3997 = vsel %vm306, %v3625, 0
      %v4000 = vsel %vm306, %v3626, 0
      %v4003 = vsel %vm306, %v3627, 0
      %v4006 = vsel %vm306, %v3628, 0
      %v4009 = vsel %vm306, %v3629, 0
      %v4012 = vsel %vm306, %v3630, 0
      %v4015 = vsel %vm656, %v3631, 0
      %4017 = vmatpush.msra.mxu0 0.0
      %4018 = vmatpush.msra.mxu0 0.0
      %4019 = vmatpush.msra.mxu0 0.0
      %4020 = vmatpush.msra.mxu0 0.0
      %4021 = vmatpush.msra.mxu0 0.0
      %4022 = vmatpush.msra.mxu0 0.0
      %4023 = vmatpush.msra.mxu0 0.0
      %4024 = vmatpush.msra.mxu0 0.0
      %4025 = vmatpush.msra.mxu0 0.0
      %4026 = vmatpush.msra.mxu0 0.0
      %4027 = vmatpush.msra.mxu0 0.0
      %4028 = vmatpush.msra.mxu0 0.0
      %4029 = vmatpush.msra.mxu0 0.0
      %4030 = vmatpush.msra.mxu0 0.0
      %4031 = vmatpush.msra.mxu0 0.0
      %4032 = vmatpush.msra.mxu0 %v4015
      %4033 = vmatmul.f32.gmra.mxu0 %v3907
      %v4034 = vpop.f32.mrf.mxu0
      %v4035 = vadd.f32 %v3799, %v4034
      %4036 = vmatmul.f32.gmra.mxu0 %v3910
      %v4037 = vpop.f32.mrf.mxu0
      %v4038 = vadd.f32 %v3802, %v4037
      %4039 = vmatmul.f32.gmra.mxu0 %v3913
      %v4040 = vpop.f32.mrf.mxu0
      %v4041 = vadd.f32 %v3805, %v4040
      %4042 = vmatmul.f32.gmra.mxu0 %v3916
      %v4043 = vpop.f32.mrf.mxu0
      %v4044 = vadd.f32 %v3808, %v4043
      %4045 = vmatmul.f32.gmra.mxu0 %v3919
      %v4046 = vpop.f32.mrf.mxu0
      %v4047 = vadd.f32 %v3811, %v4046
      %4048 = vmatmul.f32.gmra.mxu0 %v3922
      %v4049 = vpop.f32.mrf.mxu0
      %v4050 = vadd.f32 %v3814, %v4049
      %4051 = vmatmul.f32.gmra.mxu0 %v3925
      %v4052 = vpop.f32.mrf.mxu0
      %v4053 = vadd.f32 %v3817, %v4052
      %4054 = vmatmul.f32.gmra.mxu0 %v3928
      %v4055 = vpop.f32.mrf.mxu0
      %v4056 = vadd.f32 %v3820, %v4055
      %4057 = vmatmul.f32.gmra.mxu0 %v3931
      %v4058 = vpop.f32.mrf.mxu0
      %v4059 = vadd.f32 %v3823, %v4058
      %4060 = vmatmul.f32.gmra.mxu0 %v3934
      %v4061 = vpop.f32.mrf.mxu0
      %v4062 = vadd.f32 %v3826, %v4061
      %4063 = vmatmul.f32.gmra.mxu0 %v3937
      %v4064 = vpop.f32.mrf.mxu0
      %v4065 = vadd.f32 %v3829, %v4064
      %4066 = vmatmul.f32.gmra.mxu0 %v3940
      %v4067 = vpop.f32.mrf.mxu0
      %v4068 = vadd.f32 %v3832, %v4067
      %4069 = vmatmul.f32.gmra.mxu0 %v3943
      %v4070 = vpop.f32.mrf.mxu0
      %v4071 = vadd.f32 %v3835, %v4070
      %4072 = vmatmul.f32.gmra.mxu0 %v3946
      %v4073 = vpop.f32.mrf.mxu0
      %v4074 = vadd.f32 %v3838, %v4073
      %4075 = vmatmul.f32.gmra.mxu0 %v3949
      %v4076 = vpop.f32.mrf.mxu0
      %v4077 = vadd.f32 %v3841, %v4076
      %4078 = vmatmul.f32.gmra.mxu0 %v3952
      %v4079 = vpop.f32.mrf.mxu0
      %v4080 = vadd.f32 %v3844, %v4079
      %4081 = vmatmul.f32.gmra.mxu0 %v3955
      %v4082 = vpop.f32.mrf.mxu0
      %v4083 = vadd.f32 %v3847, %v4082
      %4084 = vmatmul.f32.gmra.mxu0 %v3958
      %v4085 = vpop.f32.mrf.mxu0
      %v4086 = vadd.f32 %v3850, %v4085
      %4087 = vmatmul.f32.gmra.mxu0 %v3961
      %v4088 = vpop.f32.mrf.mxu0
      %v4089 = vadd.f32 %v3853, %v4088
      %4090 = vmatmul.f32.gmra.mxu0 %v3964
      %v4091 = vpop.f32.mrf.mxu0
      %v4092 = vadd.f32 %v3856, %v4091
      %4093 = vmatmul.f32.gmra.mxu0 %v3967
      %v4094 = vpop.f32.mrf.mxu0
      %v4095 = vadd.f32 %v3859, %v4094
      %4096 = vmatmul.f32.gmra.mxu0 %v3970
      %v4097 = vpop.f32.mrf.mxu0
      %v4098 = vadd.f32 %v3862, %v4097
      %4099 = vmatmul.f32.gmra.mxu0 %v3973
      %v4100 = vpop.f32.mrf.mxu0
      %v4101 = vadd.f32 %v3865, %v4100
      %4102 = vmatmul.f32.gmra.mxu0 %v3976
      %v4103 = vpop.f32.mrf.mxu0
      %v4104 = vadd.f32 %v3868, %v4103
      %4105 = vmatmul.f32.gmra.mxu0 %v3979
      %v4106 = vpop.f32.mrf.mxu0
      %v4107 = vadd.f32 %v3871, %v4106
      %4108 = vmatmul.f32.gmra.mxu0 %v3982
      %v4109 = vpop.f32.mrf.mxu0
      %v4110 = vadd.f32 %v3874, %v4109
      %4111 = vmatmul.f32.gmra.mxu0 %v3985
      %v4112 = vpop.f32.mrf.mxu0
      %v4113 = vadd.f32 %v3877, %v4112
      %4114 = vmatmul.f32.gmra.mxu0 %v3988
      %v4115 = vpop.f32.mrf.mxu0
      %v4116 = vadd.f32 %v3880, %v4115
      %4117 = vmatmul.f32.gmra.mxu0 %v3991
      %v4118 = vpop.f32.mrf.mxu0
      %v4119 = vadd.f32 %v3883, %v4118
      %4120 = vmatmul.f32.gmra.mxu0 %v3994
      %v4121 = vpop.f32.mrf.mxu0
      %v4122 = vadd.f32 %v3886, %v4121
      %4123 = vmatmul.f32.gmra.mxu0 %v3997
      %v4124 = vpop.f32.mrf.mxu0
      %v4125 = vadd.f32 %v3889, %v4124
      %4126 = vmatmul.f32.gmra.mxu0 %v4000
      %v4127 = vpop.f32.mrf.mxu0
      %v4128 = vadd.f32 %v3892, %v4127
      %4129 = vmatmul.f32.gmra.mxu0 %v4003
      %v4130 = vpop.f32.mrf.mxu0
      %v4131 = vadd.f32 %v3895, %v4130
      %4132 = vmatmul.f32.gmra.mxu0 %v4006
      %v4133 = vpop.f32.mrf.mxu0
      %v4134 = vadd.f32 %v3898, %v4133
      %4135 = vmatmul.f32.gmra.mxu0 %v4009
      %v4136 = vpop.f32.mrf.mxu0
      %v4137 = vadd.f32 %v3901, %v4136
      %4138 = vmatmul.f32.gmra.mxu0 %v4012
      %v4139 = vpop.f32.mrf.mxu0
      %v4140 = vadd.f32 %v3904, %v4139
      %4141 = vdwg.mxu0
      %v4142 = vld [vmem:[#allocation3 + $0x2] sm:$0xff]
      %v4143 = vld [vmem:[#allocation3 + $0xa] sm:$0xff]
      %v4144 = vld [vmem:[#allocation3 + $0x12] sm:$0xff]
      %v4145 = vld [vmem:[#allocation3 + $0x1a] sm:$0xff]
      %v4146 = vld [vmem:[#allocation3 + $0x22] sm:$0xff]
      %v4147 = vld [vmem:[#allocation3 + $0x2a] sm:$0xff]
      %v4148 = vld [vmem:[#allocation3 + $0x32] sm:$0xff]
      %v4149 = vld [vmem:[#allocation3 + $0x3a] sm:$0xff]
      %v4150 = vld [vmem:[#allocation3 + $0x42] sm:$0xff]
      %v4151 = vld [vmem:[#allocation3 + $0x4a] sm:$0xff]
      %v4152 = vld [vmem:[#allocation3 + $0x52] sm:$0xff]
      %v4153 = vld [vmem:[#allocation3 + $0x5a] sm:$0xff]
      %v4154 = vld [vmem:[#allocation3 + $0x62] sm:$0xff]
      %v4155 = vld [vmem:[#allocation3 + $0x6a] sm:$0xff]
      %v4156 = vld [vmem:[#allocation3 + $0x72] sm:$0xff]
      %v4157 = vld [vmem:[#allocation3 + $0x7a] sm:$0xff]
      %v4158 = vld [vmem:[#allocation3 + $0x82] sm:$0xff]
      %v4159 = vld [vmem:[#allocation3 + $0x8a] sm:$0xff]
      %v4160 = vld [vmem:[#allocation3 + $0x92] sm:$0xff]
      %v4161 = vld [vmem:[#allocation3 + $0x9a] sm:$0xff]
      %v4162 = vld [vmem:[#allocation3 + $0xa2] sm:$0xff]
      %v4163 = vld [vmem:[#allocation3 + $0xaa] sm:$0xff]
      %v4164 = vld [vmem:[#allocation3 + $0xb2] sm:$0xff]
      %v4165 = vld [vmem:[#allocation3 + $0xba] sm:$0xff]
      %v4166 = vld [vmem:[#allocation3 + $0xc2] sm:$0xff]
      %v4167 = vld [vmem:[#allocation3 + $0xca] sm:$0xff]
      %v4168 = vld [vmem:[#allocation3 + $0xd2] sm:$0xff]
      %v4169 = vld [vmem:[#allocation3 + $0xda] sm:$0xff]
      %v4170 = vld [vmem:[#allocation3 + $0xe2] sm:$0xff]
      %v4171 = vld [vmem:[#allocation3 + $0xea] sm:$0xff]
      %v4172 = vld [vmem:[#allocation3 + $0xf2] sm:$0xff]
      %v4173 = vld [vmem:[#allocation3 + $0xfa] sm:$0xff]
      %v4174 = vld [vmem:[#allocation3 + $0x102] sm:$0xff]
      %v4175 = vld [vmem:[#allocation3 + $0x10a] sm:$0xff]
      %v4176 = vld [vmem:[#allocation3 + $0x112] sm:$0xff]
      %v4177 = vld [vmem:[#allocation3 + $0x11a] sm:$0xff]
      %s4178 = scalar_lea.vmem %s4, 8
      %v4179 = vld [vmem:[%s4178] sm:$0xf]
      %v4181 = vsel %vm306, %v4142, 0
      %v4184 = vsel %vm306, %v4143, 0
      %v4187 = vsel %vm306, %v4144, 0
      %v4190 = vsel %vm306, %v4145, 0
      %v4193 = vsel %vm306, %v4146, 0
      %v4196 = vsel %vm306, %v4147, 0
      %v4199 = vsel %vm306, %v4148, 0
      %v4202 = vsel %vm306, %v4149, 0
      %v4205 = vsel %vm306, %v4150, 0
      %v4208 = vsel %vm306, %v4151, 0
      %v4211 = vsel %vm306, %v4152, 0
      %v4214 = vsel %vm306, %v4153, 0
      %v4217 = vsel %vm306, %v4154, 0
      %v4220 = vsel %vm306, %v4155, 0
      %v4223 = vsel %vm306, %v4156, 0
      %v4226 = vsel %vm306, %v4157, 0
      %v4229 = vsel %vm306, %v4158, 0
      %v4232 = vsel %vm306, %v4159, 0
      %v4235 = vsel %vm306, %v4160, 0
      %v4238 = vsel %vm306, %v4161, 0
      %v4241 = vsel %vm306, %v4162, 0
      %v4244 = vsel %vm306, %v4163, 0
      %v4247 = vsel %vm306, %v4164, 0
      %v4250 = vsel %vm306, %v4165, 0
      %v4253 = vsel %vm306, %v4166, 0
      %v4256 = vsel %vm306, %v4167, 0
      %v4259 = vsel %vm306, %v4168, 0
      %v4262 = vsel %vm306, %v4169, 0
      %v4265 = vsel %vm306, %v4170, 0
      %v4268 = vsel %vm306, %v4171, 0
      %v4271 = vsel %vm306, %v4172, 0
      %v4274 = vsel %vm306, %v4173, 0
      %v4277 = vsel %vm306, %v4174, 0
      %v4280 = vsel %vm306, %v4175, 0
      %v4283 = vsel %vm306, %v4176, 0
      %v4286 = vsel %vm306, %v4177, 0
      %v4289 = vsel %vm656, %v4179, 0
      %4291 = vmatpush.msra.mxu0 0.0
      %4292 = vmatpush.msra.mxu0 0.0
      %4293 = vmatpush.msra.mxu0 0.0
      %4294 = vmatpush.msra.mxu0 0.0
      %4295 = vmatpush.msra.mxu0 0.0
      %4296 = vmatpush.msra.mxu0 0.0
      %4297 = vmatpush.msra.mxu0 0.0
      %4298 = vmatpush.msra.mxu0 0.0
      %4299 = vmatpush.msra.mxu0 0.0
      %4300 = vmatpush.msra.mxu0 0.0
      %4301 = vmatpush.msra.mxu0 0.0
      %4302 = vmatpush.msra.mxu0 0.0
      %4303 = vmatpush.msra.mxu0 0.0
      %4304 = vmatpush.msra.mxu0 0.0
      %4305 = vmatpush.msra.mxu0 0.0
      %4306 = vmatpush.msra.mxu0 %v4289
      %4307 = vmatmul.f32.gmra.mxu0 %v4181
      %v4308 = vpop.f32.mrf.mxu0
      %v4309 = vadd.f32 0.0, %v4308
      %4310 = vmatmul.f32.gmra.mxu0 %v4184
      %v4311 = vpop.f32.mrf.mxu0
      %v4312 = vadd.f32 0.0, %v4311
      %4313 = vmatmul.f32.gmra.mxu0 %v4187
      %v4314 = vpop.f32.mrf.mxu0
      %v4315 = vadd.f32 0.0, %v4314
      %4316 = vmatmul.f32.gmra.mxu0 %v4190
      %v4317 = vpop.f32.mrf.mxu0
      %v4318 = vadd.f32 0.0, %v4317
      %4319 = vmatmul.f32.gmra.mxu0 %v4193
      %v4320 = vpop.f32.mrf.mxu0
      %v4321 = vadd.f32 0.0, %v4320
      %4322 = vmatmul.f32.gmra.mxu0 %v4196
      %v4323 = vpop.f32.mrf.mxu0
      %v4324 = vadd.f32 0.0, %v4323
      %4325 = vmatmul.f32.gmra.mxu0 %v4199
      %v4326 = vpop.f32.mrf.mxu0
      %v4327 = vadd.f32 0.0, %v4326
      %4328 = vmatmul.f32.gmra.mxu0 %v4202
      %v4329 = vpop.f32.mrf.mxu0
      %v4330 = vadd.f32 0.0, %v4329
      %4331 = vmatmul.f32.gmra.mxu0 %v4205
      %v4332 = vpop.f32.mrf.mxu0
      %v4333 = vadd.f32 0.0, %v4332
      %4334 = vmatmul.f32.gmra.mxu0 %v4208
      %v4335 = vpop.f32.mrf.mxu0
      %v4336 = vadd.f32 0.0, %v4335
      %4337 = vmatmul.f32.gmra.mxu0 %v4211
      %v4338 = vpop.f32.mrf.mxu0
      %v4339 = vadd.f32 0.0, %v4338
      %4340 = vmatmul.f32.gmra.mxu0 %v4214
      %v4341 = vpop.f32.mrf.mxu0
      %v4342 = vadd.f32 0.0, %v4341
      %4343 = vmatmul.f32.gmra.mxu0 %v4217
      %v4344 = vpop.f32.mrf.mxu0
      %v4345 = vadd.f32 0.0, %v4344
      %4346 = vmatmul.f32.gmra.mxu0 %v4220
      %v4347 = vpop.f32.mrf.mxu0
      %v4348 = vadd.f32 0.0, %v4347
      %4349 = vmatmul.f32.gmra.mxu0 %v4223
      %v4350 = vpop.f32.mrf.mxu0
      %v4351 = vadd.f32 0.0, %v4350
      %4352 = vmatmul.f32.gmra.mxu0 %v4226
      %v4353 = vpop.f32.mrf.mxu0
      %v4354 = vadd.f32 0.0, %v4353
      %4355 = vmatmul.f32.gmra.mxu0 %v4229
      %v4356 = vpop.f32.mrf.mxu0
      %v4357 = vadd.f32 0.0, %v4356
      %4358 = vmatmul.f32.gmra.mxu0 %v4232
      %v4359 = vpop.f32.mrf.mxu0
      %v4360 = vadd.f32 0.0, %v4359
      %4361 = vmatmul.f32.gmra.mxu0 %v4235
      %v4362 = vpop.f32.mrf.mxu0
      %v4363 = vadd.f32 0.0, %v4362
      %4364 = vmatmul.f32.gmra.mxu0 %v4238
      %v4365 = vpop.f32.mrf.mxu0
      %v4366 = vadd.f32 0.0, %v4365
      %4367 = vmatmul.f32.gmra.mxu0 %v4241
      %v4368 = vpop.f32.mrf.mxu0
      %v4369 = vadd.f32 0.0, %v4368
      %4370 = vmatmul.f32.gmra.mxu0 %v4244
      %v4371 = vpop.f32.mrf.mxu0
      %v4372 = vadd.f32 0.0, %v4371
      %4373 = vmatmul.f32.gmra.mxu0 %v4247
      %v4374 = vpop.f32.mrf.mxu0
      %v4375 = vadd.f32 0.0, %v4374
      %4376 = vmatmul.f32.gmra.mxu0 %v4250
      %v4377 = vpop.f32.mrf.mxu0
      %v4378 = vadd.f32 0.0, %v4377
      %4379 = vmatmul.f32.gmra.mxu0 %v4253
      %v4380 = vpop.f32.mrf.mxu0
      %v4381 = vadd.f32 0.0, %v4380
      %4382 = vmatmul.f32.gmra.mxu0 %v4256
      %v4383 = vpop.f32.mrf.mxu0
      %v4384 = vadd.f32 0.0, %v4383
      %4385 = vmatmul.f32.gmra.mxu0 %v4259
      %v4386 = vpop.f32.mrf.mxu0
      %v4387 = vadd.f32 0.0, %v4386
      %4388 = vmatmul.f32.gmra.mxu0 %v4262
      %v4389 = vpop.f32.mrf.mxu0
      %v4390 = vadd.f32 0.0, %v4389
      %4391 = vmatmul.f32.gmra.mxu0 %v4265
      %v4392 = vpop.f32.mrf.mxu0
      %v4393 = vadd.f32 0.0, %v4392
      %4394 = vmatmul.f32.gmra.mxu0 %v4268
      %v4395 = vpop.f32.mrf.mxu0
      %v4396 = vadd.f32 0.0, %v4395
      %4397 = vmatmul.f32.gmra.mxu0 %v4271
      %v4398 = vpop.f32.mrf.mxu0
      %v4399 = vadd.f32 0.0, %v4398
      %4400 = vmatmul.f32.gmra.mxu0 %v4274
      %v4401 = vpop.f32.mrf.mxu0
      %v4402 = vadd.f32 0.0, %v4401
      %4403 = vmatmul.f32.gmra.mxu0 %v4277
      %v4404 = vpop.f32.mrf.mxu0
      %v4405 = vadd.f32 0.0, %v4404
      %4406 = vmatmul.f32.gmra.mxu0 %v4280
      %v4407 = vpop.f32.mrf.mxu0
      %v4408 = vadd.f32 0.0, %v4407
      %4409 = vmatmul.f32.gmra.mxu0 %v4283
      %v4410 = vpop.f32.mrf.mxu0
      %v4411 = vadd.f32 0.0, %v4410
      %4412 = vmatmul.f32.gmra.mxu0 %v4286
      %v4413 = vpop.f32.mrf.mxu0
      %v4414 = vadd.f32 0.0, %v4413
      %4415 = vdwg.mxu0
      %v4416 = vadd.f32 %v4035, %v4309
      %v4417 = vadd.f32 %v4038, %v4312
      %v4418 = vadd.f32 %v4041, %v4315
      %v4419 = vadd.f32 %v4044, %v4318
      %v4420 = vadd.f32 %v4047, %v4321
      %v4421 = vadd.f32 %v4050, %v4324
      %v4422 = vadd.f32 %v4053, %v4327
      %v4423 = vadd.f32 %v4056, %v4330
      %v4424 = vadd.f32 %v4059, %v4333
      %v4425 = vadd.f32 %v4062, %v4336
      %v4426 = vadd.f32 %v4065, %v4339
      %v4427 = vadd.f32 %v4068, %v4342
      %v4428 = vadd.f32 %v4071, %v4345
      %v4429 = vadd.f32 %v4074, %v4348
      %v4430 = vadd.f32 %v4077, %v4351
      %v4431 = vadd.f32 %v4080, %v4354
      %v4432 = vadd.f32 %v4083, %v4357
      %v4433 = vadd.f32 %v4086, %v4360
      %v4434 = vadd.f32 %v4089, %v4363
      %v4435 = vadd.f32 %v4092, %v4366
      %v4436 = vadd.f32 %v4095, %v4369
      %v4437 = vadd.f32 %v4098, %v4372
      %v4438 = vadd.f32 %v4101, %v4375
      %v4439 = vadd.f32 %v4104, %v4378
      %v4440 = vadd.f32 %v4107, %v4381
      %v4441 = vadd.f32 %v4110, %v4384
      %v4442 = vadd.f32 %v4113, %v4387
      %v4443 = vadd.f32 %v4116, %v4390
      %v4444 = vadd.f32 %v4119, %v4393
      %v4445 = vadd.f32 %v4122, %v4396
      %v4446 = vadd.f32 %v4125, %v4399
      %v4447 = vadd.f32 %v4128, %v4402
      %v4448 = vadd.f32 %v4131, %v4405
      %v4449 = vadd.f32 %v4134, %v4408
      %v4450 = vadd.f32 %v4137, %v4411
      %v4451 = vadd.f32 %v4140, %v4414
      %v4452 = vld [vmem:[#allocation3 + $0x12] sm:$0xff]
      %v4453 = vld [vmem:[#allocation3 + $0x1a] sm:$0xff]
      %v4454 = vld [vmem:[#allocation3 + $0x22] sm:$0xff]
      %v4455 = vld [vmem:[#allocation3 + $0x2a] sm:$0xff]
      %v4456 = vld [vmem:[#allocation3 + $0x32] sm:$0xff]
      %v4457 = vld [vmem:[#allocation3 + $0x3a] sm:$0xff]
      %v4458 = vld [vmem:[#allocation3 + $0x42] sm:$0xff]
      %v4459 = vld [vmem:[#allocation3 + $0x4a] sm:$0xff]
      %v4460 = vld [vmem:[#allocation3 + $0x52] sm:$0xff]
      %v4461 = vld [vmem:[#allocation3 + $0x5a] sm:$0xff]
      %v4462 = vld [vmem:[#allocation3 + $0x62] sm:$0xff]
      %v4463 = vld [vmem:[#allocation3 + $0x6a] sm:$0xff]
      %v4464 = vld [vmem:[#allocation3 + $0x72] sm:$0xff]
      %v4465 = vld [vmem:[#allocation3 + $0x7a] sm:$0xff]
      %v4466 = vld [vmem:[#allocation3 + $0x82] sm:$0xff]
      %v4467 = vld [vmem:[#allocation3 + $0x8a] sm:$0xff]
      %v4468 = vld [vmem:[#allocation3 + $0x92] sm:$0xff]
      %v4469 = vld [vmem:[#allocation3 + $0x9a] sm:$0xff]
      %v4470 = vld [vmem:[#allocation3 + $0xa2] sm:$0xff]
      %v4471 = vld [vmem:[#allocation3 + $0xaa] sm:$0xff]
      %v4472 = vld [vmem:[#allocation3 + $0xb2] sm:$0xff]
      %v4473 = vld [vmem:[#allocation3 + $0xba] sm:$0xff]
      %v4474 = vld [vmem:[#allocation3 + $0xc2] sm:$0xff]
      %v4475 = vld [vmem:[#allocation3 + $0xca] sm:$0xff]
      %v4476 = vld [vmem:[#allocation3 + $0xd2] sm:$0xff]
      %v4477 = vld [vmem:[#allocation3 + $0xda] sm:$0xff]
      %v4478 = vld [vmem:[#allocation3 + $0xe2] sm:$0xff]
      %v4479 = vld [vmem:[#allocation3 + $0xea] sm:$0xff]
      %v4480 = vld [vmem:[#allocation3 + $0xf2] sm:$0xff]
      %v4481 = vld [vmem:[#allocation3 + $0xfa] sm:$0xff]
      %v4482 = vld [vmem:[#allocation3 + $0x102] sm:$0xff]
      %v4483 = vld [vmem:[#allocation3 + $0x10a] sm:$0xff]
      %v4484 = vld [vmem:[#allocation3 + $0x112] sm:$0xff]
      %v4485 = vld [vmem:[#allocation3 + $0x11a] sm:$0xff]
      %v4486 = vld [vmem:[#allocation3 + $0x122] sm:$0xff]
      %v4487 = vld [vmem:[#allocation3 + $0x12a] sm:$0xff]
      %s4488 = scalar_lea.vmem %s4, 12
      %v4489 = vld [vmem:[%s4488] sm:$0xf]
      %v4491 = vsel %vm306, %v4452, 0
      %v4494 = vsel %vm306, %v4453, 0
      %v4497 = vsel %vm306, %v4454, 0
      %v4500 = vsel %vm306, %v4455, 0
      %v4503 = vsel %vm306, %v4456, 0
      %v4506 = vsel %vm306, %v4457, 0
      %v4509 = vsel %vm306, %v4458, 0
      %v4512 = vsel %vm306, %v4459, 0
      %v4515 = vsel %vm306, %v4460, 0
      %v4518 = vsel %vm306, %v4461, 0
      %v4521 = vsel %vm306, %v4462, 0
      %v4524 = vsel %vm306, %v4463, 0
      %v4527 = vsel %vm306, %v4464, 0
      %v4530 = vsel %vm306, %v4465, 0
      %v4533 = vsel %vm306, %v4466, 0
      %v4536 = vsel %vm306, %v4467, 0
      %v4539 = vsel %vm306, %v4468, 0
      %v4542 = vsel %vm306, %v4469, 0
      %v4545 = vsel %vm306, %v4470, 0
      %v4548 = vsel %vm306, %v4471, 0
      %v4551 = vsel %vm306, %v4472, 0
      %v4554 = vsel %vm306, %v4473, 0
      %v4557 = vsel %vm306, %v4474, 0
      %v4560 = vsel %vm306, %v4475, 0
      %v4563 = vsel %vm306, %v4476, 0
      %v4566 = vsel %vm306, %v4477, 0
      %v4569 = vsel %vm306, %v4478, 0
      %v4572 = vsel %vm306, %v4479, 0
      %v4575 = vsel %vm306, %v4480, 0
      %v4578 = vsel %vm306, %v4481, 0
      %v4581 = vsel %vm306, %v4482, 0
      %v4584 = vsel %vm306, %v4483, 0
      %v4587 = vsel %vm306, %v4484, 0
      %v4590 = vsel %vm306, %v4485, 0
      %v4593 = vsel %vm306, %v4486, 0
      %v4596 = vsel %vm306, %v4487, 0
      %v4599 = vsel %vm656, %v4489, 0
      %4601 = vmatpush.msra.mxu0 0.0
      %4602 = vmatpush.msra.mxu0 0.0
      %4603 = vmatpush.msra.mxu0 0.0
      %4604 = vmatpush.msra.mxu0 0.0
      %4605 = vmatpush.msra.mxu0 0.0
      %4606 = vmatpush.msra.mxu0 0.0
      %4607 = vmatpush.msra.mxu0 0.0
      %4608 = vmatpush.msra.mxu0 0.0
      %4609 = vmatpush.msra.mxu0 0.0
      %4610 = vmatpush.msra.mxu0 0.0
      %4611 = vmatpush.msra.mxu0 0.0
      %4612 = vmatpush.msra.mxu0 0.0
      %4613 = vmatpush.msra.mxu0 0.0
      %4614 = vmatpush.msra.mxu0 0.0
      %4615 = vmatpush.msra.mxu0 0.0
      %4616 = vmatpush.msra.mxu0 %v4599
      %4617 = vmatmul.f32.gmra.mxu0 %v4491
      %v4618 = vpop.f32.mrf.mxu0
      %v4619 = vadd.f32 0.0, %v4618
      %4620 = vmatmul.f32.gmra.mxu0 %v4494
      %v4621 = vpop.f32.mrf.mxu0
      %v4622 = vadd.f32 0.0, %v4621
      %4623 = vmatmul.f32.gmra.mxu0 %v4497
      %v4624 = vpop.f32.mrf.mxu0
      %v4625 = vadd.f32 0.0, %v4624
      %4626 = vmatmul.f32.gmra.mxu0 %v4500
      %v4627 = vpop.f32.mrf.mxu0
      %v4628 = vadd.f32 0.0, %v4627
      %4629 = vmatmul.f32.gmra.mxu0 %v4503
      %v4630 = vpop.f32.mrf.mxu0
      %v4631 = vadd.f32 0.0, %v4630
      %4632 = vmatmul.f32.gmra.mxu0 %v4506
      %v4633 = vpop.f32.mrf.mxu0
      %v4634 = vadd.f32 0.0, %v4633
      %4635 = vmatmul.f32.gmra.mxu0 %v4509
      %v4636 = vpop.f32.mrf.mxu0
      %v4637 = vadd.f32 0.0, %v4636
      %4638 = vmatmul.f32.gmra.mxu0 %v4512
      %v4639 = vpop.f32.mrf.mxu0
      %v4640 = vadd.f32 0.0, %v4639
      %4641 = vmatmul.f32.gmra.mxu0 %v4515
      %v4642 = vpop.f32.mrf.mxu0
      %v4643 = vadd.f32 0.0, %v4642
      %4644 = vmatmul.f32.gmra.mxu0 %v4518
      %v4645 = vpop.f32.mrf.mxu0
      %v4646 = vadd.f32 0.0, %v4645
      %4647 = vmatmul.f32.gmra.mxu0 %v4521
      %v4648 = vpop.f32.mrf.mxu0
      %v4649 = vadd.f32 0.0, %v4648
      %4650 = vmatmul.f32.gmra.mxu0 %v4524
      %v4651 = vpop.f32.mrf.mxu0
      %v4652 = vadd.f32 0.0, %v4651
      %4653 = vmatmul.f32.gmra.mxu0 %v4527
      %v4654 = vpop.f32.mrf.mxu0
      %v4655 = vadd.f32 0.0, %v4654
      %4656 = vmatmul.f32.gmra.mxu0 %v4530
      %v4657 = vpop.f32.mrf.mxu0
      %v4658 = vadd.f32 0.0, %v4657
      %4659 = vmatmul.f32.gmra.mxu0 %v4533
      %v4660 = vpop.f32.mrf.mxu0
      %v4661 = vadd.f32 0.0, %v4660
      %4662 = vmatmul.f32.gmra.mxu0 %v4536
      %v4663 = vpop.f32.mrf.mxu0
      %v4664 = vadd.f32 0.0, %v4663
      %4665 = vmatmul.f32.gmra.mxu0 %v4539
      %v4666 = vpop.f32.mrf.mxu0
      %v4667 = vadd.f32 0.0, %v4666
      %4668 = vmatmul.f32.gmra.mxu0 %v4542
      %v4669 = vpop.f32.mrf.mxu0
      %v4670 = vadd.f32 0.0, %v4669
      %4671 = vmatmul.f32.gmra.mxu0 %v4545
      %v4672 = vpop.f32.mrf.mxu0
      %v4673 = vadd.f32 0.0, %v4672
      %4674 = vmatmul.f32.gmra.mxu0 %v4548
      %v4675 = vpop.f32.mrf.mxu0
      %v4676 = vadd.f32 0.0, %v4675
      %4677 = vmatmul.f32.gmra.mxu0 %v4551
      %v4678 = vpop.f32.mrf.mxu0
      %v4679 = vadd.f32 0.0, %v4678
      %4680 = vmatmul.f32.gmra.mxu0 %v4554
      %v4681 = vpop.f32.mrf.mxu0
      %v4682 = vadd.f32 0.0, %v4681
      %4683 = vmatmul.f32.gmra.mxu0 %v4557
      %v4684 = vpop.f32.mrf.mxu0
      %v4685 = vadd.f32 0.0, %v4684
      %4686 = vmatmul.f32.gmra.mxu0 %v4560
      %v4687 = vpop.f32.mrf.mxu0
      %v4688 = vadd.f32 0.0, %v4687
      %4689 = vmatmul.f32.gmra.mxu0 %v4563
      %v4690 = vpop.f32.mrf.mxu0
      %v4691 = vadd.f32 0.0, %v4690
      %4692 = vmatmul.f32.gmra.mxu0 %v4566
      %v4693 = vpop.f32.mrf.mxu0
      %v4694 = vadd.f32 0.0, %v4693
      %4695 = vmatmul.f32.gmra.mxu0 %v4569
      %v4696 = vpop.f32.mrf.mxu0
      %v4697 = vadd.f32 0.0, %v4696
      %4698 = vmatmul.f32.gmra.mxu0 %v4572
      %v4699 = vpop.f32.mrf.mxu0
      %v4700 = vadd.f32 0.0, %v4699
      %4701 = vmatmul.f32.gmra.mxu0 %v4575
      %v4702 = vpop.f32.mrf.mxu0
      %v4703 = vadd.f32 0.0, %v4702
      %4704 = vmatmul.f32.gmra.mxu0 %v4578
      %v4705 = vpop.f32.mrf.mxu0
      %v4706 = vadd.f32 0.0, %v4705
      %4707 = vmatmul.f32.gmra.mxu0 %v4581
      %v4708 = vpop.f32.mrf.mxu0
      %v4709 = vadd.f32 0.0, %v4708
      %4710 = vmatmul.f32.gmra.mxu0 %v4584
      %v4711 = vpop.f32.mrf.mxu0
      %v4712 = vadd.f32 0.0, %v4711
      %4713 = vmatmul.f32.gmra.mxu0 %v4587
      %v4714 = vpop.f32.mrf.mxu0
      %v4715 = vadd.f32 0.0, %v4714
      %4716 = vmatmul.f32.gmra.mxu0 %v4590
      %v4717 = vpop.f32.mrf.mxu0
      %v4718 = vadd.f32 0.0, %v4717
      %4719 = vmatmul.f32.gmra.mxu0 %v4593
      %v4720 = vpop.f32.mrf.mxu0
      %v4721 = vadd.f32 0.0, %v4720
      %4722 = vmatmul.f32.gmra.mxu0 %v4596
      %v4723 = vpop.f32.mrf.mxu0
      %v4724 = vadd.f32 0.0, %v4723
      %4725 = vdwg.mxu0
      %v4726 = vadd.f32 %v4416, %v4619
      %v4727 = vadd.f32 %v4417, %v4622
      %v4728 = vadd.f32 %v4418, %v4625
      %v4729 = vadd.f32 %v4419, %v4628
      %v4730 = vadd.f32 %v4420, %v4631
      %v4731 = vadd.f32 %v4421, %v4634
      %v4732 = vadd.f32 %v4422, %v4637
      %v4733 = vadd.f32 %v4423, %v4640
      %v4734 = vadd.f32 %v4424, %v4643
      %v4735 = vadd.f32 %v4425, %v4646
      %v4736 = vadd.f32 %v4426, %v4649
      %v4737 = vadd.f32 %v4427, %v4652
      %v4738 = vadd.f32 %v4428, %v4655
      %v4739 = vadd.f32 %v4429, %v4658
      %v4740 = vadd.f32 %v4430, %v4661
      %v4741 = vadd.f32 %v4431, %v4664
      %v4742 = vadd.f32 %v4432, %v4667
      %v4743 = vadd.f32 %v4433, %v4670
      %v4744 = vadd.f32 %v4434, %v4673
      %v4745 = vadd.f32 %v4435, %v4676
      %v4746 = vadd.f32 %v4436, %v4679
      %v4747 = vadd.f32 %v4437, %v4682
      %v4748 = vadd.f32 %v4438, %v4685
      %v4749 = vadd.f32 %v4439, %v4688
      %v4750 = vadd.f32 %v4440, %v4691
      %v4751 = vadd.f32 %v4441, %v4694
      %v4752 = vadd.f32 %v4442, %v4697
      %v4753 = vadd.f32 %v4443, %v4700
      %v4754 = vadd.f32 %v4444, %v4703
      %v4755 = vadd.f32 %v4445, %v4706
      %v4756 = vadd.f32 %v4446, %v4709
      %v4757 = vadd.f32 %v4447, %v4712
      %v4758 = vadd.f32 %v4448, %v4715
      %v4759 = vadd.f32 %v4449, %v4718
      %v4760 = vadd.f32 %v4450, %v4721
      %v4761 = vadd.f32 %v4451, %v4724
      %v4762 = vld [vmem:[#allocation3 + $0x13] sm:$0xff]
      %v4763 = vld [vmem:[#allocation3 + $0x1b] sm:$0xff]
      %v4764 = vld [vmem:[#allocation3 + $0x23] sm:$0xff]
      %v4765 = vld [vmem:[#allocation3 + $0x2b] sm:$0xff]
      %v4766 = vld [vmem:[#allocation3 + $0x33] sm:$0xff]
      %v4767 = vld [vmem:[#allocation3 + $0x3b] sm:$0xff]
      %v4768 = vld [vmem:[#allocation3 + $0x43] sm:$0xff]
      %v4769 = vld [vmem:[#allocation3 + $0x4b] sm:$0xff]
      %v4770 = vld [vmem:[#allocation3 + $0x53] sm:$0xff]
      %v4771 = vld [vmem:[#allocation3 + $0x5b] sm:$0xff]
      %v4772 = vld [vmem:[#allocation3 + $0x63] sm:$0xff]
      %v4773 = vld [vmem:[#allocation3 + $0x6b] sm:$0xff]
      %v4774 = vld [vmem:[#allocation3 + $0x73] sm:$0xff]
      %v4775 = vld [vmem:[#allocation3 + $0x7b] sm:$0xff]
      %v4776 = vld [vmem:[#allocation3 + $0x83] sm:$0xff]
      %v4777 = vld [vmem:[#allocation3 + $0x8b] sm:$0xff]
      %v4778 = vld [vmem:[#allocation3 + $0x93] sm:$0xff]
      %v4779 = vld [vmem:[#allocation3 + $0x9b] sm:$0xff]
      %v4780 = vld [vmem:[#allocation3 + $0xa3] sm:$0xff]
      %v4781 = vld [vmem:[#allocation3 + $0xab] sm:$0xff]
      %v4782 = vld [vmem:[#allocation3 + $0xb3] sm:$0xff]
      %v4783 = vld [vmem:[#allocation3 + $0xbb] sm:$0xff]
      %v4784 = vld [vmem:[#allocation3 + $0xc3] sm:$0xff]
      %v4785 = vld [vmem:[#allocation3 + $0xcb] sm:$0xff]
      %v4786 = vld [vmem:[#allocation3 + $0xd3] sm:$0xff]
      %v4787 = vld [vmem:[#allocation3 + $0xdb] sm:$0xff]
      %v4788 = vld [vmem:[#allocation3 + $0xe3] sm:$0xff]
      %v4789 = vld [vmem:[#allocation3 + $0xeb] sm:$0xff]
      %v4790 = vld [vmem:[#allocation3 + $0xf3] sm:$0xff]
      %v4791 = vld [vmem:[#allocation3 + $0xfb] sm:$0xff]
      %v4792 = vld [vmem:[#allocation3 + $0x103] sm:$0xff]
      %v4793 = vld [vmem:[#allocation3 + $0x10b] sm:$0xff]
      %v4794 = vld [vmem:[#allocation3 + $0x113] sm:$0xff]
      %v4795 = vld [vmem:[#allocation3 + $0x11b] sm:$0xff]
      %v4796 = vld [vmem:[#allocation3 + $0x123] sm:$0xff]
      %v4797 = vld [vmem:[#allocation3 + $0x12b] sm:$0xff]
      %s4798 = scalar_lea.vmem %s4, 16
      %v4799 = vld [vmem:[%s4798] sm:$0xf]
      %v4801 = vsel %vm306, %v4762, 0
      %v4804 = vsel %vm306, %v4763, 0
      %v4807 = vsel %vm306, %v4764, 0
      %v4810 = vsel %vm306, %v4765, 0
      %v4813 = vsel %vm306, %v4766, 0
      %v4816 = vsel %vm306, %v4767, 0
      %v4819 = vsel %vm306, %v4768, 0
      %v4822 = vsel %vm306, %v4769, 0
      %v4825 = vsel %vm306, %v4770, 0
      %v4828 = vsel %vm306, %v4771, 0
      %v4831 = vsel %vm306, %v4772, 0
      %v4834 = vsel %vm306, %v4773, 0
      %v4837 = vsel %vm306, %v4774, 0
      %v4840 = vsel %vm306, %v4775, 0
      %v4843 = vsel %vm306, %v4776, 0
      %v4846 = vsel %vm306, %v4777, 0
      %v4849 = vsel %vm306, %v4778, 0
      %v4852 = vsel %vm306, %v4779, 0
      %v4855 = vsel %vm306, %v4780, 0
      %v4858 = vsel %vm306, %v4781, 0
      %v4861 = vsel %vm306, %v4782, 0
      %v4864 = vsel %vm306, %v4783, 0
      %v4867 = vsel %vm306, %v4784, 0
      %v4870 = vsel %vm306, %v4785, 0
      %v4873 = vsel %vm306, %v4786, 0
      %v4876 = vsel %vm306, %v4787, 0
      %v4879 = vsel %vm306, %v4788, 0
      %v4882 = vsel %vm306, %v4789, 0
      %v4885 = vsel %vm306, %v4790, 0
      %v4888 = vsel %vm306, %v4791, 0
      %v4891 = vsel %vm306, %v4792, 0
      %v4894 = vsel %vm306, %v4793, 0
      %v4897 = vsel %vm306, %v4794, 0
      %v4900 = vsel %vm306, %v4795, 0
      %v4903 = vsel %vm306, %v4796, 0
      %v4906 = vsel %vm306, %v4797, 0
      %v4909 = vsel %vm656, %v4799, 0
      %4911 = vmatpush.msra.mxu0 0.0
      %4912 = vmatpush.msra.mxu0 0.0
      %4913 = vmatpush.msra.mxu0 0.0
      %4914 = vmatpush.msra.mxu0 0.0
      %4915 = vmatpush.msra.mxu0 0.0
      %4916 = vmatpush.msra.mxu0 0.0
      %4917 = vmatpush.msra.mxu0 0.0
      %4918 = vmatpush.msra.mxu0 0.0
      %4919 = vmatpush.msra.mxu0 0.0
      %4920 = vmatpush.msra.mxu0 0.0
      %4921 = vmatpush.msra.mxu0 0.0
      %4922 = vmatpush.msra.mxu0 0.0
      %4923 = vmatpush.msra.mxu0 0.0
      %4924 = vmatpush.msra.mxu0 0.0
      %4925 = vmatpush.msra.mxu0 0.0
      %4926 = vmatpush.msra.mxu0 %v4909
      %4927 = vmatmul.f32.gmra.mxu0 %v4801
      %v4928 = vpop.f32.mrf.mxu0
      %v4929 = vadd.f32 0.0, %v4928
      %4930 = vmatmul.f32.gmra.mxu0 %v4804
      %v4931 = vpop.f32.mrf.mxu0
      %v4932 = vadd.f32 0.0, %v4931
      %4933 = vmatmul.f32.gmra.mxu0 %v4807
      %v4934 = vpop.f32.mrf.mxu0
      %v4935 = vadd.f32 0.0, %v4934
      %4936 = vmatmul.f32.gmra.mxu0 %v4810
      %v4937 = vpop.f32.mrf.mxu0
      %v4938 = vadd.f32 0.0, %v4937
      %4939 = vmatmul.f32.gmra.mxu0 %v4813
      %v4940 = vpop.f32.mrf.mxu0
      %v4941 = vadd.f32 0.0, %v4940
      %4942 = vmatmul.f32.gmra.mxu0 %v4816
      %v4943 = vpop.f32.mrf.mxu0
      %v4944 = vadd.f32 0.0, %v4943
      %4945 = vmatmul.f32.gmra.mxu0 %v4819
      %v4946 = vpop.f32.mrf.mxu0
      %v4947 = vadd.f32 0.0, %v4946
      %4948 = vmatmul.f32.gmra.mxu0 %v4822
      %v4949 = vpop.f32.mrf.mxu0
      %v4950 = vadd.f32 0.0, %v4949
      %4951 = vmatmul.f32.gmra.mxu0 %v4825
      %v4952 = vpop.f32.mrf.mxu0
      %v4953 = vadd.f32 0.0, %v4952
      %4954 = vmatmul.f32.gmra.mxu0 %v4828
      %v4955 = vpop.f32.mrf.mxu0
      %v4956 = vadd.f32 0.0, %v4955
      %4957 = vmatmul.f32.gmra.mxu0 %v4831
      %v4958 = vpop.f32.mrf.mxu0
      %v4959 = vadd.f32 0.0, %v4958
      %4960 = vmatmul.f32.gmra.mxu0 %v4834
      %v4961 = vpop.f32.mrf.mxu0
      %v4962 = vadd.f32 0.0, %v4961
      %4963 = vmatmul.f32.gmra.mxu0 %v4837
      %v4964 = vpop.f32.mrf.mxu0
      %v4965 = vadd.f32 0.0, %v4964
      %4966 = vmatmul.f32.gmra.mxu0 %v4840
      %v4967 = vpop.f32.mrf.mxu0
      %v4968 = vadd.f32 0.0, %v4967
      %4969 = vmatmul.f32.gmra.mxu0 %v4843
      %v4970 = vpop.f32.mrf.mxu0
      %v4971 = vadd.f32 0.0, %v4970
      %4972 = vmatmul.f32.gmra.mxu0 %v4846
      %v4973 = vpop.f32.mrf.mxu0
      %v4974 = vadd.f32 0.0, %v4973
      %4975 = vmatmul.f32.gmra.mxu0 %v4849
      %v4976 = vpop.f32.mrf.mxu0
      %v4977 = vadd.f32 0.0, %v4976
      %4978 = vmatmul.f32.gmra.mxu0 %v4852
      %v4979 = vpop.f32.mrf.mxu0
      %v4980 = vadd.f32 0.0, %v4979
      %4981 = vmatmul.f32.gmra.mxu0 %v4855
      %v4982 = vpop.f32.mrf.mxu0
      %v4983 = vadd.f32 0.0, %v4982
      %4984 = vmatmul.f32.gmra.mxu0 %v4858
      %v4985 = vpop.f32.mrf.mxu0
      %v4986 = vadd.f32 0.0, %v4985
      %4987 = vmatmul.f32.gmra.mxu0 %v4861
      %v4988 = vpop.f32.mrf.mxu0
      %v4989 = vadd.f32 0.0, %v4988
      %4990 = vmatmul.f32.gmra.mxu0 %v4864
      %v4991 = vpop.f32.mrf.mxu0
      %v4992 = vadd.f32 0.0, %v4991
      %4993 = vmatmul.f32.gmra.mxu0 %v4867
      %v4994 = vpop.f32.mrf.mxu0
      %v4995 = vadd.f32 0.0, %v4994
      %4996 = vmatmul.f32.gmra.mxu0 %v4870
      %v4997 = vpop.f32.mrf.mxu0
      %v4998 = vadd.f32 0.0, %v4997
      %4999 = vmatmul.f32.gmra.mxu0 %v4873
      %v5000 = vpop.f32.mrf.mxu0
      %v5001 = vadd.f32 0.0, %v5000
      %5002 = vmatmul.f32.gmra.mxu0 %v4876
      %v5003 = vpop.f32.mrf.mxu0
      %v5004 = vadd.f32 0.0, %v5003
      %5005 = vmatmul.f32.gmra.mxu0 %v4879
      %v5006 = vpop.f32.mrf.mxu0
      %v5007 = vadd.f32 0.0, %v5006
      %5008 = vmatmul.f32.gmra.mxu0 %v4882
      %v5009 = vpop.f32.mrf.mxu0
      %v5010 = vadd.f32 0.0, %v5009
      %5011 = vmatmul.f32.gmra.mxu0 %v4885
      %v5012 = vpop.f32.mrf.mxu0
      %v5013 = vadd.f32 0.0, %v5012
      %5014 = vmatmul.f32.gmra.mxu0 %v4888
      %v5015 = vpop.f32.mrf.mxu0
      %v5016 = vadd.f32 0.0, %v5015
      %5017 = vmatmul.f32.gmra.mxu0 %v4891
      %v5018 = vpop.f32.mrf.mxu0
      %v5019 = vadd.f32 0.0, %v5018
      %5020 = vmatmul.f32.gmra.mxu0 %v4894
      %v5021 = vpop.f32.mrf.mxu0
      %v5022 = vadd.f32 0.0, %v5021
      %5023 = vmatmul.f32.gmra.mxu0 %v4897
      %v5024 = vpop.f32.mrf.mxu0
      %v5025 = vadd.f32 0.0, %v5024
      %5026 = vmatmul.f32.gmra.mxu0 %v4900
      %v5027 = vpop.f32.mrf.mxu0
      %v5028 = vadd.f32 0.0, %v5027
      %5029 = vmatmul.f32.gmra.mxu0 %v4903
      %v5030 = vpop.f32.mrf.mxu0
      %v5031 = vadd.f32 0.0, %v5030
      %5032 = vmatmul.f32.gmra.mxu0 %v4906
      %v5033 = vpop.f32.mrf.mxu0
      %v5034 = vadd.f32 0.0, %v5033
      %5035 = vdwg.mxu0
      %v5036 = vadd.f32 %v4726, %v4929
      %v5037 = vadd.f32 %v4727, %v4932
      %v5038 = vadd.f32 %v4728, %v4935
      %v5039 = vadd.f32 %v4729, %v4938
      %v5040 = vadd.f32 %v4730, %v4941
      %v5041 = vadd.f32 %v4731, %v4944
      %v5042 = vadd.f32 %v4732, %v4947
      %v5043 = vadd.f32 %v4733, %v4950
      %v5044 = vadd.f32 %v4734, %v4953
      %v5045 = vadd.f32 %v4735, %v4956
      %v5046 = vadd.f32 %v4736, %v4959
      %v5047 = vadd.f32 %v4737, %v4962
      %v5048 = vadd.f32 %v4738, %v4965
      %v5049 = vadd.f32 %v4739, %v4968
      %v5050 = vadd.f32 %v4740, %v4971
      %v5051 = vadd.f32 %v4741, %v4974
      %v5052 = vadd.f32 %v4742, %v4977
      %v5053 = vadd.f32 %v4743, %v4980
      %v5054 = vadd.f32 %v4744, %v4983
      %v5055 = vadd.f32 %v4745, %v4986
      %v5056 = vadd.f32 %v4746, %v4989
      %v5057 = vadd.f32 %v4747, %v4992
      %v5058 = vadd.f32 %v4748, %v4995
      %v5059 = vadd.f32 %v4749, %v4998
      %v5060 = vadd.f32 %v4750, %v5001
      %v5061 = vadd.f32 %v4751, %v5004
      %v5062 = vadd.f32 %v4752, %v5007
      %v5063 = vadd.f32 %v4753, %v5010
      %v5064 = vadd.f32 %v4754, %v5013
      %v5065 = vadd.f32 %v4755, %v5016
      %v5066 = vadd.f32 %v4756, %v5019
      %v5067 = vadd.f32 %v4757, %v5022
      %v5068 = vadd.f32 %v4758, %v5025
      %v5069 = vadd.f32 %v4759, %v5028
      %v5070 = vadd.f32 %v4760, %v5031
      %v5071 = vadd.f32 %v4761, %v5034
      %v5072 = vld [vmem:[#allocation3 + $0x14] sm:$0xff]
      %v5073 = vld [vmem:[#allocation3 + $0x1c] sm:$0xff]
      %v5074 = vld [vmem:[#allocation3 + $0x24] sm:$0xff]
      %v5075 = vld [vmem:[#allocation3 + $0x2c] sm:$0xff]
      %v5076 = vld [vmem:[#allocation3 + $0x34] sm:$0xff]
      %v5077 = vld [vmem:[#allocation3 + $0x3c] sm:$0xff]
      %v5078 = vld [vmem:[#allocation3 + $0x44] sm:$0xff]
      %v5079 = vld [vmem:[#allocation3 + $0x4c] sm:$0xff]
      %v5080 = vld [vmem:[#allocation3 + $0x54] sm:$0xff]
      %v5081 = vld [vmem:[#allocation3 + $0x5c] sm:$0xff]
      %v5082 = vld [vmem:[#allocation3 + $0x64] sm:$0xff]
      %v5083 = vld [vmem:[#allocation3 + $0x6c] sm:$0xff]
      %v5084 = vld [vmem:[#allocation3 + $0x74] sm:$0xff]
      %v5085 = vld [vmem:[#allocation3 + $0x7c] sm:$0xff]
      %v5086 = vld [vmem:[#allocation3 + $0x84] sm:$0xff]
      %v5087 = vld [vmem:[#allocation3 + $0x8c] sm:$0xff]
      %v5088 = vld [vmem:[#allocation3 + $0x94] sm:$0xff]
      %v5089 = vld [vmem:[#allocation3 + $0x9c] sm:$0xff]
      %v5090 = vld [vmem:[#allocation3 + $0xa4] sm:$0xff]
      %v5091 = vld [vmem:[#allocation3 + $0xac] sm:$0xff]
      %v5092 = vld [vmem:[#allocation3 + $0xb4] sm:$0xff]
      %v5093 = vld [vmem:[#allocation3 + $0xbc] sm:$0xff]
      %v5094 = vld [vmem:[#allocation3 + $0xc4] sm:$0xff]
      %v5095 = vld [vmem:[#allocation3 + $0xcc] sm:$0xff]
      %v5096 = vld [vmem:[#allocation3 + $0xd4] sm:$0xff]
      %v5097 = vld [vmem:[#allocation3 + $0xdc] sm:$0xff]
      %v5098 = vld [vmem:[#allocation3 + $0xe4] sm:$0xff]
      %v5099 = vld [vmem:[#allocation3 + $0xec] sm:$0xff]
      %v5100 = vld [vmem:[#allocation3 + $0xf4] sm:$0xff]
      %v5101 = vld [vmem:[#allocation3 + $0xfc] sm:$0xff]
      %v5102 = vld [vmem:[#allocation3 + $0x104] sm:$0xff]
      %v5103 = vld [vmem:[#allocation3 + $0x10c] sm:$0xff]
      %v5104 = vld [vmem:[#allocation3 + $0x114] sm:$0xff]
      %v5105 = vld [vmem:[#allocation3 + $0x11c] sm:$0xff]
      %v5106 = vld [vmem:[#allocation3 + $0x124] sm:$0xff]
      %v5107 = vld [vmem:[#allocation3 + $0x12c] sm:$0xff]
      %s5108 = scalar_lea.vmem %s4, 20
      %v5109 = vld [vmem:[%s5108] sm:$0xf]
      %v5111 = vsel %vm306, %v5072, 0
      %v5114 = vsel %vm306, %v5073, 0
      %v5117 = vsel %vm306, %v5074, 0
      %v5120 = vsel %vm306, %v5075, 0
      %v5123 = vsel %vm306, %v5076, 0
      %v5126 = vsel %vm306, %v5077, 0
      %v5129 = vsel %vm306, %v5078, 0
      %v5132 = vsel %vm306, %v5079, 0
      %v5135 = vsel %vm306, %v5080, 0
      %v5138 = vsel %vm306, %v5081, 0
      %v5141 = vsel %vm306, %v5082, 0
      %v5144 = vsel %vm306, %v5083, 0
      %v5147 = vsel %vm306, %v5084, 0
      %v5150 = vsel %vm306, %v5085, 0
      %v5153 = vsel %vm306, %v5086, 0
      %v5156 = vsel %vm306, %v5087, 0
      %v5159 = vsel %vm306, %v5088, 0
      %v5162 = vsel %vm306, %v5089, 0
      %v5165 = vsel %vm306, %v5090, 0
      %v5168 = vsel %vm306, %v5091, 0
      %v5171 = vsel %vm306, %v5092, 0
      %v5174 = vsel %vm306, %v5093, 0
      %v5177 = vsel %vm306, %v5094, 0
      %v5180 = vsel %vm306, %v5095, 0
      %v5183 = vsel %vm306, %v5096, 0
      %v5186 = vsel %vm306, %v5097, 0
      %v5189 = vsel %vm306, %v5098, 0
      %v5192 = vsel %vm306, %v5099, 0
      %v5195 = vsel %vm306, %v5100, 0
      %v5198 = vsel %vm306, %v5101, 0
      %v5201 = vsel %vm306, %v5102, 0
      %v5204 = vsel %vm306, %v5103, 0
      %v5207 = vsel %vm306, %v5104, 0
      %v5210 = vsel %vm306, %v5105, 0
      %v5213 = vsel %vm306, %v5106, 0
      %v5216 = vsel %vm306, %v5107, 0
      %v5219 = vsel %vm656, %v5109, 0
      %5221 = vmatpush.msra.mxu0 0.0
      %5222 = vmatpush.msra.mxu0 0.0
      %5223 = vmatpush.msra.mxu0 0.0
      %5224 = vmatpush.msra.mxu0 0.0
      %5225 = vmatpush.msra.mxu0 0.0
      %5226 = vmatpush.msra.mxu0 0.0
      %5227 = vmatpush.msra.mxu0 0.0
      %5228 = vmatpush.msra.mxu0 0.0
      %5229 = vmatpush.msra.mxu0 0.0
      %5230 = vmatpush.msra.mxu0 0.0
      %5231 = vmatpush.msra.mxu0 0.0
      %5232 = vmatpush.msra.mxu0 0.0
      %5233 = vmatpush.msra.mxu0 0.0
      %5234 = vmatpush.msra.mxu0 0.0
      %5235 = vmatpush.msra.mxu0 0.0
      %5236 = vmatpush.msra.mxu0 %v5219
      %5237 = vmatmul.f32.gmra.mxu0 %v5111
      %v5238 = vpop.f32.mrf.mxu0
      %v5239 = vadd.f32 0.0, %v5238
      %5240 = vmatmul.f32.gmra.mxu0 %v5114
      %v5241 = vpop.f32.mrf.mxu0
      %v5242 = vadd.f32 0.0, %v5241
      %5243 = vmatmul.f32.gmra.mxu0 %v5117
      %v5244 = vpop.f32.mrf.mxu0
      %v5245 = vadd.f32 0.0, %v5244
      %5246 = vmatmul.f32.gmra.mxu0 %v5120
      %v5247 = vpop.f32.mrf.mxu0
      %v5248 = vadd.f32 0.0, %v5247
      %5249 = vmatmul.f32.gmra.mxu0 %v5123
      %v5250 = vpop.f32.mrf.mxu0
      %v5251 = vadd.f32 0.0, %v5250
      %5252 = vmatmul.f32.gmra.mxu0 %v5126
      %v5253 = vpop.f32.mrf.mxu0
      %v5254 = vadd.f32 0.0, %v5253
      %5255 = vmatmul.f32.gmra.mxu0 %v5129
      %v5256 = vpop.f32.mrf.mxu0
      %v5257 = vadd.f32 0.0, %v5256
      %5258 = vmatmul.f32.gmra.mxu0 %v5132
      %v5259 = vpop.f32.mrf.mxu0
      %v5260 = vadd.f32 0.0, %v5259
      %5261 = vmatmul.f32.gmra.mxu0 %v5135
      %v5262 = vpop.f32.mrf.mxu0
      %v5263 = vadd.f32 0.0, %v5262
      %5264 = vmatmul.f32.gmra.mxu0 %v5138
      %v5265 = vpop.f32.mrf.mxu0
      %v5266 = vadd.f32 0.0, %v5265
      %5267 = vmatmul.f32.gmra.mxu0 %v5141
      %v5268 = vpop.f32.mrf.mxu0
      %v5269 = vadd.f32 0.0, %v5268
      %5270 = vmatmul.f32.gmra.mxu0 %v5144
      %v5271 = vpop.f32.mrf.mxu0
      %v5272 = vadd.f32 0.0, %v5271
      %5273 = vmatmul.f32.gmra.mxu0 %v5147
      %v5274 = vpop.f32.mrf.mxu0
      %v5275 = vadd.f32 0.0, %v5274
      %5276 = vmatmul.f32.gmra.mxu0 %v5150
      %v5277 = vpop.f32.mrf.mxu0
      %v5278 = vadd.f32 0.0, %v5277
      %5279 = vmatmul.f32.gmra.mxu0 %v5153
      %v5280 = vpop.f32.mrf.mxu0
      %v5281 = vadd.f32 0.0, %v5280
      %5282 = vmatmul.f32.gmra.mxu0 %v5156
      %v5283 = vpop.f32.mrf.mxu0
      %v5284 = vadd.f32 0.0, %v5283
      %5285 = vmatmul.f32.gmra.mxu0 %v5159
      %v5286 = vpop.f32.mrf.mxu0
      %v5287 = vadd.f32 0.0, %v5286
      %5288 = vmatmul.f32.gmra.mxu0 %v5162
      %v5289 = vpop.f32.mrf.mxu0
      %v5290 = vadd.f32 0.0, %v5289
      %5291 = vmatmul.f32.gmra.mxu0 %v5165
      %v5292 = vpop.f32.mrf.mxu0
      %v5293 = vadd.f32 0.0, %v5292
      %5294 = vmatmul.f32.gmra.mxu0 %v5168
      %v5295 = vpop.f32.mrf.mxu0
      %v5296 = vadd.f32 0.0, %v5295
      %5297 = vmatmul.f32.gmra.mxu0 %v5171
      %v5298 = vpop.f32.mrf.mxu0
      %v5299 = vadd.f32 0.0, %v5298
      %5300 = vmatmul.f32.gmra.mxu0 %v5174
      %v5301 = vpop.f32.mrf.mxu0
      %v5302 = vadd.f32 0.0, %v5301
      %5303 = vmatmul.f32.gmra.mxu0 %v5177
      %v5304 = vpop.f32.mrf.mxu0
      %v5305 = vadd.f32 0.0, %v5304
      %5306 = vmatmul.f32.gmra.mxu0 %v5180
      %v5307 = vpop.f32.mrf.mxu0
      %v5308 = vadd.f32 0.0, %v5307
      %5309 = vmatmul.f32.gmra.mxu0 %v5183
      %v5310 = vpop.f32.mrf.mxu0
      %v5311 = vadd.f32 0.0, %v5310
      %5312 = vmatmul.f32.gmra.mxu0 %v5186
      %v5313 = vpop.f32.mrf.mxu0
      %v5314 = vadd.f32 0.0, %v5313
      %5315 = vmatmul.f32.gmra.mxu0 %v5189
      %v5316 = vpop.f32.mrf.mxu0
      %v5317 = vadd.f32 0.0, %v5316
      %5318 = vmatmul.f32.gmra.mxu0 %v5192
      %v5319 = vpop.f32.mrf.mxu0
      %v5320 = vadd.f32 0.0, %v5319
      %5321 = vmatmul.f32.gmra.mxu0 %v5195
      %v5322 = vpop.f32.mrf.mxu0
      %v5323 = vadd.f32 0.0, %v5322
      %5324 = vmatmul.f32.gmra.mxu0 %v5198
      %v5325 = vpop.f32.mrf.mxu0
      %v5326 = vadd.f32 0.0, %v5325
      %5327 = vmatmul.f32.gmra.mxu0 %v5201
      %v5328 = vpop.f32.mrf.mxu0
      %v5329 = vadd.f32 0.0, %v5328
      %5330 = vmatmul.f32.gmra.mxu0 %v5204
      %v5331 = vpop.f32.mrf.mxu0
      %v5332 = vadd.f32 0.0, %v5331
      %5333 = vmatmul.f32.gmra.mxu0 %v5207
      %v5334 = vpop.f32.mrf.mxu0
      %v5335 = vadd.f32 0.0, %v5334
      %5336 = vmatmul.f32.gmra.mxu0 %v5210
      %v5337 = vpop.f32.mrf.mxu0
      %v5338 = vadd.f32 0.0, %v5337
      %5339 = vmatmul.f32.gmra.mxu0 %v5213
      %v5340 = vpop.f32.mrf.mxu0
      %v5341 = vadd.f32 0.0, %v5340
      %5342 = vmatmul.f32.gmra.mxu0 %v5216
      %v5343 = vpop.f32.mrf.mxu0
      %v5344 = vadd.f32 0.0, %v5343
      %5345 = vdwg.mxu0
      %v5346 = vadd.f32 %v5036, %v5239
      %v5347 = vadd.f32 %v5037, %v5242
      %v5348 = vadd.f32 %v5038, %v5245
      %v5349 = vadd.f32 %v5039, %v5248
      %v5350 = vadd.f32 %v5040, %v5251
      %v5351 = vadd.f32 %v5041, %v5254
      %v5352 = vadd.f32 %v5042, %v5257
      %v5353 = vadd.f32 %v5043, %v5260
      %v5354 = vadd.f32 %v5044, %v5263
      %v5355 = vadd.f32 %v5045, %v5266
      %v5356 = vadd.f32 %v5046, %v5269
      %v5357 = vadd.f32 %v5047, %v5272
      %v5358 = vadd.f32 %v5048, %v5275
      %v5359 = vadd.f32 %v5049, %v5278
      %v5360 = vadd.f32 %v5050, %v5281
      %v5361 = vadd.f32 %v5051, %v5284
      %v5362 = vadd.f32 %v5052, %v5287
      %v5363 = vadd.f32 %v5053, %v5290
      %v5364 = vadd.f32 %v5054, %v5293
      %v5365 = vadd.f32 %v5055, %v5296
      %v5366 = vadd.f32 %v5056, %v5299
      %v5367 = vadd.f32 %v5057, %v5302
      %v5368 = vadd.f32 %v5058, %v5305
      %v5369 = vadd.f32 %v5059, %v5308
      %v5370 = vadd.f32 %v5060, %v5311
      %v5371 = vadd.f32 %v5061, %v5314
      %v5372 = vadd.f32 %v5062, %v5317
      %v5373 = vadd.f32 %v5063, %v5320
      %v5374 = vadd.f32 %v5064, %v5323
      %v5375 = vadd.f32 %v5065, %v5326
      %v5376 = vadd.f32 %v5066, %v5329
      %v5377 = vadd.f32 %v5067, %v5332
      %v5378 = vadd.f32 %v5068, %v5335
      %v5379 = vadd.f32 %v5069, %v5338
      %v5380 = vadd.f32 %v5070, %v5341
      %v5381 = vadd.f32 %v5071, %v5344
      %v5382 = vld [vmem:[#allocation3 + $0x24] sm:$0xff]
      %v5383 = vld [vmem:[#allocation3 + $0x2c] sm:$0xff]
      %v5384 = vld [vmem:[#allocation3 + $0x34] sm:$0xff]
      %v5385 = vld [vmem:[#allocation3 + $0x3c] sm:$0xff]
      %v5386 = vld [vmem:[#allocation3 + $0x44] sm:$0xff]
      %v5387 = vld [vmem:[#allocation3 + $0x4c] sm:$0xff]
      %v5388 = vld [vmem:[#allocation3 + $0x54] sm:$0xff]
      %v5389 = vld [vmem:[#allocation3 + $0x5c] sm:$0xff]
      %v5390 = vld [vmem:[#allocation3 + $0x64] sm:$0xff]
      %v5391 = vld [vmem:[#allocation3 + $0x6c] sm:$0xff]
      %v5392 = vld [vmem:[#allocation3 + $0x74] sm:$0xff]
      %v5393 = vld [vmem:[#allocation3 + $0x7c] sm:$0xff]
      %v5394 = vld [vmem:[#allocation3 + $0x84] sm:$0xff]
      %v5395 = vld [vmem:[#allocation3 + $0x8c] sm:$0xff]
      %v5396 = vld [vmem:[#allocation3 + $0x94] sm:$0xff]
      %v5397 = vld [vmem:[#allocation3 + $0x9c] sm:$0xff]
      %v5398 = vld [vmem:[#allocation3 + $0xa4] sm:$0xff]
      %v5399 = vld [vmem:[#allocation3 + $0xac] sm:$0xff]
      %v5400 = vld [vmem:[#allocation3 + $0xb4] sm:$0xff]
      %v5401 = vld [vmem:[#allocation3 + $0xbc] sm:$0xff]
      %v5402 = vld [vmem:[#allocation3 + $0xc4] sm:$0xff]
      %v5403 = vld [vmem:[#allocation3 + $0xcc] sm:$0xff]
      %v5404 = vld [vmem:[#allocation3 + $0xd4] sm:$0xff]
      %v5405 = vld [vmem:[#allocation3 + $0xdc] sm:$0xff]
      %v5406 = vld [vmem:[#allocation3 + $0xe4] sm:$0xff]
      %v5407 = vld [vmem:[#allocation3 + $0xec] sm:$0xff]
      %v5408 = vld [vmem:[#allocation3 + $0xf4] sm:$0xff]
      %v5409 = vld [vmem:[#allocation3 + $0xfc] sm:$0xff]
      %v5410 = vld [vmem:[#allocation3 + $0x104] sm:$0xff]
      %v5411 = vld [vmem:[#allocation3 + $0x10c] sm:$0xff]
      %v5412 = vld [vmem:[#allocation3 + $0x114] sm:$0xff]
      %v5413 = vld [vmem:[#allocation3 + $0x11c] sm:$0xff]
      %v5414 = vld [vmem:[#allocation3 + $0x124] sm:$0xff]
      %v5415 = vld [vmem:[#allocation3 + $0x12c] sm:$0xff]
      %v5416 = vld [vmem:[#allocation3 + $0x134] sm:$0xff]
      %v5417 = vld [vmem:[#allocation3 + $0x13c] sm:$0xff]
      %s5418 = scalar_lea.vmem %s4, 24
      %v5419 = vld [vmem:[%s5418] sm:$0xf]
      %v5421 = vsel %vm306, %v5382, 0
      %v5424 = vsel %vm306, %v5383, 0
      %v5427 = vsel %vm306, %v5384, 0
      %v5430 = vsel %vm306, %v5385, 0
      %v5433 = vsel %vm306, %v5386, 0
      %v5436 = vsel %vm306, %v5387, 0
      %v5439 = vsel %vm306, %v5388, 0
      %v5442 = vsel %vm306, %v5389, 0
      %v5445 = vsel %vm306, %v5390, 0
      %v5448 = vsel %vm306, %v5391, 0
      %v5451 = vsel %vm306, %v5392, 0
      %v5454 = vsel %vm306, %v5393, 0
      %v5457 = vsel %vm306, %v5394, 0
      %v5460 = vsel %vm306, %v5395, 0
      %v5463 = vsel %vm306, %v5396, 0
      %v5466 = vsel %vm306, %v5397, 0
      %v5469 = vsel %vm306, %v5398, 0
      %v5472 = vsel %vm306, %v5399, 0
      %v5475 = vsel %vm306, %v5400, 0
      %v5478 = vsel %vm306, %v5401, 0
      %v5481 = vsel %vm306, %v5402, 0
      %v5484 = vsel %vm306, %v5403, 0
      %v5487 = vsel %vm306, %v5404, 0
      %v5490 = vsel %vm306, %v5405, 0
      %v5493 = vsel %vm306, %v5406, 0
      %v5496 = vsel %vm306, %v5407, 0
      %v5499 = vsel %vm306, %v5408, 0
      %v5502 = vsel %vm306, %v5409, 0
      %v5505 = vsel %vm306, %v5410, 0
      %v5508 = vsel %vm306, %v5411, 0
      %v5511 = vsel %vm306, %v5412, 0
      %v5514 = vsel %vm306, %v5413, 0
      %v5517 = vsel %vm306, %v5414, 0
      %v5520 = vsel %vm306, %v5415, 0
      %v5523 = vsel %vm306, %v5416, 0
      %v5526 = vsel %vm306, %v5417, 0
      %v5529 = vsel %vm656, %v5419, 0
      %5531 = vmatpush.msra.mxu0 0.0
      %5532 = vmatpush.msra.mxu0 0.0
      %5533 = vmatpush.msra.mxu0 0.0
      %5534 = vmatpush.msra.mxu0 0.0
      %5535 = vmatpush.msra.mxu0 0.0
      %5536 = vmatpush.msra.mxu0 0.0
      %5537 = vmatpush.msra.mxu0 0.0
      %5538 = vmatpush.msra.mxu0 0.0
      %5539 = vmatpush.msra.mxu0 0.0
      %5540 = vmatpush.msra.mxu0 0.0
      %5541 = vmatpush.msra.mxu0 0.0
      %5542 = vmatpush.msra.mxu0 0.0
      %5543 = vmatpush.msra.mxu0 0.0
      %5544 = vmatpush.msra.mxu0 0.0
      %5545 = vmatpush.msra.mxu0 0.0
      %5546 = vmatpush.msra.mxu0 %v5529
      %5547 = vmatmul.f32.gmra.mxu0 %v5421
      %v5548 = vpop.f32.mrf.mxu0
      %v5549 = vadd.f32 0.0, %v5548
      %5550 = vmatmul.f32.gmra.mxu0 %v5424
      %v5551 = vpop.f32.mrf.mxu0
      %v5552 = vadd.f32 0.0, %v5551
      %5553 = vmatmul.f32.gmra.mxu0 %v5427
      %v5554 = vpop.f32.mrf.mxu0
      %v5555 = vadd.f32 0.0, %v5554
      %5556 = vmatmul.f32.gmra.mxu0 %v5430
      %v5557 = vpop.f32.mrf.mxu0
      %v5558 = vadd.f32 0.0, %v5557
      %5559 = vmatmul.f32.gmra.mxu0 %v5433
      %v5560 = vpop.f32.mrf.mxu0
      %v5561 = vadd.f32 0.0, %v5560
      %5562 = vmatmul.f32.gmra.mxu0 %v5436
      %v5563 = vpop.f32.mrf.mxu0
      %v5564 = vadd.f32 0.0, %v5563
      %5565 = vmatmul.f32.gmra.mxu0 %v5439
      %v5566 = vpop.f32.mrf.mxu0
      %v5567 = vadd.f32 0.0, %v5566
      %5568 = vmatmul.f32.gmra.mxu0 %v5442
      %v5569 = vpop.f32.mrf.mxu0
      %v5570 = vadd.f32 0.0, %v5569
      %5571 = vmatmul.f32.gmra.mxu0 %v5445
      %v5572 = vpop.f32.mrf.mxu0
      %v5573 = vadd.f32 0.0, %v5572
      %5574 = vmatmul.f32.gmra.mxu0 %v5448
      %v5575 = vpop.f32.mrf.mxu0
      %v5576 = vadd.f32 0.0, %v5575
      %5577 = vmatmul.f32.gmra.mxu0 %v5451
      %v5578 = vpop.f32.mrf.mxu0
      %v5579 = vadd.f32 0.0, %v5578
      %5580 = vmatmul.f32.gmra.mxu0 %v5454
      %v5581 = vpop.f32.mrf.mxu0
      %v5582 = vadd.f32 0.0, %v5581
      %5583 = vmatmul.f32.gmra.mxu0 %v5457
      %v5584 = vpop.f32.mrf.mxu0
      %v5585 = vadd.f32 0.0, %v5584
      %5586 = vmatmul.f32.gmra.mxu0 %v5460
      %v5587 = vpop.f32.mrf.mxu0
      %v5588 = vadd.f32 0.0, %v5587
      %5589 = vmatmul.f32.gmra.mxu0 %v5463
      %v5590 = vpop.f32.mrf.mxu0
      %v5591 = vadd.f32 0.0, %v5590
      %5592 = vmatmul.f32.gmra.mxu0 %v5466
      %v5593 = vpop.f32.mrf.mxu0
      %v5594 = vadd.f32 0.0, %v5593
      %5595 = vmatmul.f32.gmra.mxu0 %v5469
      %v5596 = vpop.f32.mrf.mxu0
      %v5597 = vadd.f32 0.0, %v5596
      %5598 = vmatmul.f32.gmra.mxu0 %v5472
      %v5599 = vpop.f32.mrf.mxu0
      %v5600 = vadd.f32 0.0, %v5599
      %5601 = vmatmul.f32.gmra.mxu0 %v5475
      %v5602 = vpop.f32.mrf.mxu0
      %v5603 = vadd.f32 0.0, %v5602
      %5604 = vmatmul.f32.gmra.mxu0 %v5478
      %v5605 = vpop.f32.mrf.mxu0
      %v5606 = vadd.f32 0.0, %v5605
      %5607 = vmatmul.f32.gmra.mxu0 %v5481
      %v5608 = vpop.f32.mrf.mxu0
      %v5609 = vadd.f32 0.0, %v5608
      %5610 = vmatmul.f32.gmra.mxu0 %v5484
      %v5611 = vpop.f32.mrf.mxu0
      %v5612 = vadd.f32 0.0, %v5611
      %5613 = vmatmul.f32.gmra.mxu0 %v5487
      %v5614 = vpop.f32.mrf.mxu0
      %v5615 = vadd.f32 0.0, %v5614
      %5616 = vmatmul.f32.gmra.mxu0 %v5490
      %v5617 = vpop.f32.mrf.mxu0
      %v5618 = vadd.f32 0.0, %v5617
      %5619 = vmatmul.f32.gmra.mxu0 %v5493
      %v5620 = vpop.f32.mrf.mxu0
      %v5621 = vadd.f32 0.0, %v5620
      %5622 = vmatmul.f32.gmra.mxu0 %v5496
      %v5623 = vpop.f32.mrf.mxu0
      %v5624 = vadd.f32 0.0, %v5623
      %5625 = vmatmul.f32.gmra.mxu0 %v5499
      %v5626 = vpop.f32.mrf.mxu0
      %v5627 = vadd.f32 0.0, %v5626
      %5628 = vmatmul.f32.gmra.mxu0 %v5502
      %v5629 = vpop.f32.mrf.mxu0
      %v5630 = vadd.f32 0.0, %v5629
      %5631 = vmatmul.f32.gmra.mxu0 %v5505
      %v5632 = vpop.f32.mrf.mxu0
      %v5633 = vadd.f32 0.0, %v5632
      %5634 = vmatmul.f32.gmra.mxu0 %v5508
      %v5635 = vpop.f32.mrf.mxu0
      %v5636 = vadd.f32 0.0, %v5635
      %5637 = vmatmul.f32.gmra.mxu0 %v5511
      %v5638 = vpop.f32.mrf.mxu0
      %v5639 = vadd.f32 0.0, %v5638
      %5640 = vmatmul.f32.gmra.mxu0 %v5514
      %v5641 = vpop.f32.mrf.mxu0
      %v5642 = vadd.f32 0.0, %v5641
      %5643 = vmatmul.f32.gmra.mxu0 %v5517
      %v5644 = vpop.f32.mrf.mxu0
      %v5645 = vadd.f32 0.0, %v5644
      %5646 = vmatmul.f32.gmra.mxu0 %v5520
      %v5647 = vpop.f32.mrf.mxu0
      %v5648 = vadd.f32 0.0, %v5647
      %5649 = vmatmul.f32.gmra.mxu0 %v5523
      %v5650 = vpop.f32.mrf.mxu0
      %v5651 = vadd.f32 0.0, %v5650
      %5652 = vmatmul.f32.gmra.mxu0 %v5526
      %v5653 = vpop.f32.mrf.mxu0
      %v5654 = vadd.f32 0.0, %v5653
      %5655 = vdwg.mxu0
      %v5656 = vadd.f32 %v5346, %v5549
      %v5657 = vadd.f32 %v5347, %v5552
      %v5658 = vadd.f32 %v5348, %v5555
      %v5659 = vadd.f32 %v5349, %v5558
      %v5660 = vadd.f32 %v5350, %v5561
      %v5661 = vadd.f32 %v5351, %v5564
      %v5662 = vadd.f32 %v5352, %v5567
      %v5663 = vadd.f32 %v5353, %v5570
      %v5664 = vadd.f32 %v5354, %v5573
      %v5665 = vadd.f32 %v5355, %v5576
      %v5666 = vadd.f32 %v5356, %v5579
      %v5667 = vadd.f32 %v5357, %v5582
      %v5668 = vadd.f32 %v5358, %v5585
      %v5669 = vadd.f32 %v5359, %v5588
      %v5670 = vadd.f32 %v5360, %v5591
      %v5671 = vadd.f32 %v5361, %v5594
      %v5672 = vadd.f32 %v5362, %v5597
      %v5673 = vadd.f32 %v5363, %v5600
      %v5674 = vadd.f32 %v5364, %v5603
      %v5675 = vadd.f32 %v5365, %v5606
      %v5676 = vadd.f32 %v5366, %v5609
      %v5677 = vadd.f32 %v5367, %v5612
      %v5678 = vadd.f32 %v5368, %v5615
      %v5679 = vadd.f32 %v5369, %v5618
      %v5680 = vadd.f32 %v5370, %v5621
      %v5681 = vadd.f32 %v5371, %v5624
      %v5682 = vadd.f32 %v5372, %v5627
      %v5683 = vadd.f32 %v5373, %v5630
      %v5684 = vadd.f32 %v5374, %v5633
      %v5685 = vadd.f32 %v5375, %v5636
      %v5686 = vadd.f32 %v5376, %v5639
      %v5687 = vadd.f32 %v5377, %v5642
      %v5688 = vadd.f32 %v5378, %v5645
      %v5689 = vadd.f32 %v5379, %v5648
      %v5690 = vadd.f32 %v5380, %v5651
      %v5691 = vadd.f32 %v5381, %v5654
      %v5692 = vld [vmem:[#allocation3 + $0x25] sm:$0xff]
      %v5693 = vld [vmem:[#allocation3 + $0x2d] sm:$0xff]
      %v5694 = vld [vmem:[#allocation3 + $0x35] sm:$0xff]
      %v5695 = vld [vmem:[#allocation3 + $0x3d] sm:$0xff]
      %v5696 = vld [vmem:[#allocation3 + $0x45] sm:$0xff]
      %v5697 = vld [vmem:[#allocation3 + $0x4d] sm:$0xff]
      %v5698 = vld [vmem:[#allocation3 + $0x55] sm:$0xff]
      %v5699 = vld [vmem:[#allocation3 + $0x5d] sm:$0xff]
      %v5700 = vld [vmem:[#allocation3 + $0x65] sm:$0xff]
      %v5701 = vld [vmem:[#allocation3 + $0x6d] sm:$0xff]
      %v5702 = vld [vmem:[#allocation3 + $0x75] sm:$0xff]
      %v5703 = vld [vmem:[#allocation3 + $0x7d] sm:$0xff]
      %v5704 = vld [vmem:[#allocation3 + $0x85] sm:$0xff]
      %v5705 = vld [vmem:[#allocation3 + $0x8d] sm:$0xff]
      %v5706 = vld [vmem:[#allocation3 + $0x95] sm:$0xff]
      %v5707 = vld [vmem:[#allocation3 + $0x9d] sm:$0xff]
      %v5708 = vld [vmem:[#allocation3 + $0xa5] sm:$0xff]
      %v5709 = vld [vmem:[#allocation3 + $0xad] sm:$0xff]
      %v5710 = vld [vmem:[#allocation3 + $0xb5] sm:$0xff]
      %v5711 = vld [vmem:[#allocation3 + $0xbd] sm:$0xff]
      %v5712 = vld [vmem:[#allocation3 + $0xc5] sm:$0xff]
      %v5713 = vld [vmem:[#allocation3 + $0xcd] sm:$0xff]
      %v5714 = vld [vmem:[#allocation3 + $0xd5] sm:$0xff]
      %v5715 = vld [vmem:[#allocation3 + $0xdd] sm:$0xff]
      %v5716 = vld [vmem:[#allocation3 + $0xe5] sm:$0xff]
      %v5717 = vld [vmem:[#allocation3 + $0xed] sm:$0xff]
      %v5718 = vld [vmem:[#allocation3 + $0xf5] sm:$0xff]
      %v5719 = vld [vmem:[#allocation3 + $0xfd] sm:$0xff]
      %v5720 = vld [vmem:[#allocation3 + $0x105] sm:$0xff]
      %v5721 = vld [vmem:[#allocation3 + $0x10d] sm:$0xff]
      %v5722 = vld [vmem:[#allocation3 + $0x115] sm:$0xff]
      %v5723 = vld [vmem:[#allocation3 + $0x11d] sm:$0xff]
      %v5724 = vld [vmem:[#allocation3 + $0x125] sm:$0xff]
      %v5725 = vld [vmem:[#allocation3 + $0x12d] sm:$0xff]
      %v5726 = vld [vmem:[#allocation3 + $0x135] sm:$0xff]
      %v5727 = vld [vmem:[#allocation3 + $0x13d] sm:$0xff]
      %s5728 = scalar_lea.vmem %s4, 28
      %v5729 = vld [vmem:[%s5728] sm:$0xf]
      %v5731 = vsel %vm306, %v5692, 0
      %v5734 = vsel %vm306, %v5693, 0
      %v5737 = vsel %vm306, %v5694, 0
      %v5740 = vsel %vm306, %v5695, 0
      %v5743 = vsel %vm306, %v5696, 0
      %v5746 = vsel %vm306, %v5697, 0
      %v5749 = vsel %vm306, %v5698, 0
      %v5752 = vsel %vm306, %v5699, 0
      %v5755 = vsel %vm306, %v5700, 0
      %v5758 = vsel %vm306, %v5701, 0
      %v5761 = vsel %vm306, %v5702, 0
      %v5764 = vsel %vm306, %v5703, 0
      %v5767 = vsel %vm306, %v5704, 0
      %v5770 = vsel %vm306, %v5705, 0
      %v5773 = vsel %vm306, %v5706, 0
      %v5776 = vsel %vm306, %v5707, 0
      %v5779 = vsel %vm306, %v5708, 0
      %v5782 = vsel %vm306, %v5709, 0
      %v5785 = vsel %vm306, %v5710, 0
      %v5788 = vsel %vm306, %v5711, 0
      %v5791 = vsel %vm306, %v5712, 0
      %v5794 = vsel %vm306, %v5713, 0
      %v5797 = vsel %vm306, %v5714, 0
      %v5800 = vsel %vm306, %v5715, 0
      %v5803 = vsel %vm306, %v5716, 0
      %v5806 = vsel %vm306, %v5717, 0
      %v5809 = vsel %vm306, %v5718, 0
      %v5812 = vsel %vm306, %v5719, 0
      %v5815 = vsel %vm306, %v5720, 0
      %v5818 = vsel %vm306, %v5721, 0
      %v5821 = vsel %vm306, %v5722, 0
      %v5824 = vsel %vm306, %v5723, 0
      %v5827 = vsel %vm306, %v5724, 0
      %v5830 = vsel %vm306, %v5725, 0
      %v5833 = vsel %vm306, %v5726, 0
      %v5836 = vsel %vm306, %v5727, 0
      %v5839 = vsel %vm656, %v5729, 0
      %5841 = vmatpush.msra.mxu0 0.0
      %5842 = vmatpush.msra.mxu0 0.0
      %5843 = vmatpush.msra.mxu0 0.0
      %5844 = vmatpush.msra.mxu0 0.0
      %5845 = vmatpush.msra.mxu0 0.0
      %5846 = vmatpush.msra.mxu0 0.0
      %5847 = vmatpush.msra.mxu0 0.0
      %5848 = vmatpush.msra.mxu0 0.0
      %5849 = vmatpush.msra.mxu0 0.0
      %5850 = vmatpush.msra.mxu0 0.0
      %5851 = vmatpush.msra.mxu0 0.0
      %5852 = vmatpush.msra.mxu0 0.0
      %5853 = vmatpush.msra.mxu0 0.0
      %5854 = vmatpush.msra.mxu0 0.0
      %5855 = vmatpush.msra.mxu0 0.0
      %5856 = vmatpush.msra.mxu0 %v5839
      %5857 = vmatmul.f32.gmra.mxu0 %v5731
      %v5858 = vpop.f32.mrf.mxu0
      %v5859 = vadd.f32 0.0, %v5858
      %5860 = vmatmul.f32.gmra.mxu0 %v5734
      %v5861 = vpop.f32.mrf.mxu0
      %v5862 = vadd.f32 0.0, %v5861
      %5863 = vmatmul.f32.gmra.mxu0 %v5737
      %v5864 = vpop.f32.mrf.mxu0
      %v5865 = vadd.f32 0.0, %v5864
      %5866 = vmatmul.f32.gmra.mxu0 %v5740
      %v5867 = vpop.f32.mrf.mxu0
      %v5868 = vadd.f32 0.0, %v5867
      %5869 = vmatmul.f32.gmra.mxu0 %v5743
      %v5870 = vpop.f32.mrf.mxu0
      %v5871 = vadd.f32 0.0, %v5870
      %5872 = vmatmul.f32.gmra.mxu0 %v5746
      %v5873 = vpop.f32.mrf.mxu0
      %v5874 = vadd.f32 0.0, %v5873
      %5875 = vmatmul.f32.gmra.mxu0 %v5749
      %v5876 = vpop.f32.mrf.mxu0
      %v5877 = vadd.f32 0.0, %v5876
      %5878 = vmatmul.f32.gmra.mxu0 %v5752
      %v5879 = vpop.f32.mrf.mxu0
      %v5880 = vadd.f32 0.0, %v5879
      %5881 = vmatmul.f32.gmra.mxu0 %v5755
      %v5882 = vpop.f32.mrf.mxu0
      %v5883 = vadd.f32 0.0, %v5882
      %5884 = vmatmul.f32.gmra.mxu0 %v5758
      %v5885 = vpop.f32.mrf.mxu0
      %v5886 = vadd.f32 0.0, %v5885
      %5887 = vmatmul.f32.gmra.mxu0 %v5761
      %v5888 = vpop.f32.mrf.mxu0
      %v5889 = vadd.f32 0.0, %v5888
      %5890 = vmatmul.f32.gmra.mxu0 %v5764
      %v5891 = vpop.f32.mrf.mxu0
      %v5892 = vadd.f32 0.0, %v5891
      %5893 = vmatmul.f32.gmra.mxu0 %v5767
      %v5894 = vpop.f32.mrf.mxu0
      %v5895 = vadd.f32 0.0, %v5894
      %5896 = vmatmul.f32.gmra.mxu0 %v5770
      %v5897 = vpop.f32.mrf.mxu0
      %v5898 = vadd.f32 0.0, %v5897
      %5899 = vmatmul.f32.gmra.mxu0 %v5773
      %v5900 = vpop.f32.mrf.mxu0
      %v5901 = vadd.f32 0.0, %v5900
      %5902 = vmatmul.f32.gmra.mxu0 %v5776
      %v5903 = vpop.f32.mrf.mxu0
      %v5904 = vadd.f32 0.0, %v5903
      %5905 = vmatmul.f32.gmra.mxu0 %v5779
      %v5906 = vpop.f32.mrf.mxu0
      %v5907 = vadd.f32 0.0, %v5906
      %5908 = vmatmul.f32.gmra.mxu0 %v5782
      %v5909 = vpop.f32.mrf.mxu0
      %v5910 = vadd.f32 0.0, %v5909
      %5911 = vmatmul.f32.gmra.mxu0 %v5785
      %v5912 = vpop.f32.mrf.mxu0
      %v5913 = vadd.f32 0.0, %v5912
      %5914 = vmatmul.f32.gmra.mxu0 %v5788
      %v5915 = vpop.f32.mrf.mxu0
      %v5916 = vadd.f32 0.0, %v5915
      %5917 = vmatmul.f32.gmra.mxu0 %v5791
      %v5918 = vpop.f32.mrf.mxu0
      %v5919 = vadd.f32 0.0, %v5918
      %5920 = vmatmul.f32.gmra.mxu0 %v5794
      %v5921 = vpop.f32.mrf.mxu0
      %v5922 = vadd.f32 0.0, %v5921
      %5923 = vmatmul.f32.gmra.mxu0 %v5797
      %v5924 = vpop.f32.mrf.mxu0
      %v5925 = vadd.f32 0.0, %v5924
      %5926 = vmatmul.f32.gmra.mxu0 %v5800
      %v5927 = vpop.f32.mrf.mxu0
      %v5928 = vadd.f32 0.0, %v5927
      %5929 = vmatmul.f32.gmra.mxu0 %v5803
      %v5930 = vpop.f32.mrf.mxu0
      %v5931 = vadd.f32 0.0, %v5930
      %5932 = vmatmul.f32.gmra.mxu0 %v5806
      %v5933 = vpop.f32.mrf.mxu0
      %v5934 = vadd.f32 0.0, %v5933
      %5935 = vmatmul.f32.gmra.mxu0 %v5809
      %v5936 = vpop.f32.mrf.mxu0
      %v5937 = vadd.f32 0.0, %v5936
      %5938 = vmatmul.f32.gmra.mxu0 %v5812
      %v5939 = vpop.f32.mrf.mxu0
      %v5940 = vadd.f32 0.0, %v5939
      %5941 = vmatmul.f32.gmra.mxu0 %v5815
      %v5942 = vpop.f32.mrf.mxu0
      %v5943 = vadd.f32 0.0, %v5942
      %5944 = vmatmul.f32.gmra.mxu0 %v5818
      %v5945 = vpop.f32.mrf.mxu0
      %v5946 = vadd.f32 0.0, %v5945
      %5947 = vmatmul.f32.gmra.mxu0 %v5821
      %v5948 = vpop.f32.mrf.mxu0
      %v5949 = vadd.f32 0.0, %v5948
      %5950 = vmatmul.f32.gmra.mxu0 %v5824
      %v5951 = vpop.f32.mrf.mxu0
      %v5952 = vadd.f32 0.0, %v5951
      %5953 = vmatmul.f32.gmra.mxu0 %v5827
      %v5954 = vpop.f32.mrf.mxu0
      %v5955 = vadd.f32 0.0, %v5954
      %5956 = vmatmul.f32.gmra.mxu0 %v5830
      %v5957 = vpop.f32.mrf.mxu0
      %v5958 = vadd.f32 0.0, %v5957
      %5959 = vmatmul.f32.gmra.mxu0 %v5833
      %v5960 = vpop.f32.mrf.mxu0
      %v5961 = vadd.f32 0.0, %v5960
      %5962 = vmatmul.f32.gmra.mxu0 %v5836
      %v5963 = vpop.f32.mrf.mxu0
      %v5964 = vadd.f32 0.0, %v5963
      %5965 = vdwg.mxu0
      %v5966 = vadd.f32 %v5656, %v5859
      %v5967 = vadd.f32 %v5657, %v5862
      %v5968 = vadd.f32 %v5658, %v5865
      %v5969 = vadd.f32 %v5659, %v5868
      %v5970 = vadd.f32 %v5660, %v5871
      %v5971 = vadd.f32 %v5661, %v5874
      %v5972 = vadd.f32 %v5662, %v5877
      %v5973 = vadd.f32 %v5663, %v5880
      %v5974 = vadd.f32 %v5664, %v5883
      %v5975 = vadd.f32 %v5665, %v5886
      %v5976 = vadd.f32 %v5666, %v5889
      %v5977 = vadd.f32 %v5667, %v5892
      %v5978 = vadd.f32 %v5668, %v5895
      %v5979 = vadd.f32 %v5669, %v5898
      %v5980 = vadd.f32 %v5670, %v5901
      %v5981 = vadd.f32 %v5671, %v5904
      %v5982 = vadd.f32 %v5672, %v5907
      %v5983 = vadd.f32 %v5673, %v5910
      %v5984 = vadd.f32 %v5674, %v5913
      %v5985 = vadd.f32 %v5675, %v5916
      %v5986 = vadd.f32 %v5676, %v5919
      %v5987 = vadd.f32 %v5677, %v5922
      %v5988 = vadd.f32 %v5678, %v5925
      %v5989 = vadd.f32 %v5679, %v5928
      %v5990 = vadd.f32 %v5680, %v5931
      %v5991 = vadd.f32 %v5681, %v5934
      %v5992 = vadd.f32 %v5682, %v5937
      %v5993 = vadd.f32 %v5683, %v5940
      %v5994 = vadd.f32 %v5684, %v5943
      %v5995 = vadd.f32 %v5685, %v5946
      %v5996 = vadd.f32 %v5686, %v5949
      %v5997 = vadd.f32 %v5687, %v5952
      %v5998 = vadd.f32 %v5688, %v5955
      %v5999 = vadd.f32 %v5689, %v5958
      %v6000 = vadd.f32 %v5690, %v5961
      %v6001 = vadd.f32 %v5691, %v5964
      %v6002 = vld [vmem:[#allocation3 + $0x26] sm:$0xff]
      %v6003 = vld [vmem:[#allocation3 + $0x2e] sm:$0xff]
      %v6004 = vld [vmem:[#allocation3 + $0x36] sm:$0xff]
      %v6005 = vld [vmem:[#allocation3 + $0x3e] sm:$0xff]
      %v6006 = vld [vmem:[#allocation3 + $0x46] sm:$0xff]
      %v6007 = vld [vmem:[#allocation3 + $0x4e] sm:$0xff]
      %v6008 = vld [vmem:[#allocation3 + $0x56] sm:$0xff]
      %v6009 = vld [vmem:[#allocation3 + $0x5e] sm:$0xff]
      %v6010 = vld [vmem:[#allocation3 + $0x66] sm:$0xff]
      %v6011 = vld [vmem:[#allocation3 + $0x6e] sm:$0xff]
      %v6012 = vld [vmem:[#allocation3 + $0x76] sm:$0xff]
      %v6013 = vld [vmem:[#allocation3 + $0x7e] sm:$0xff]
      %v6014 = vld [vmem:[#allocation3 + $0x86] sm:$0xff]
      %v6015 = vld [vmem:[#allocation3 + $0x8e] sm:$0xff]
      %v6016 = vld [vmem:[#allocation3 + $0x96] sm:$0xff]
      %v6017 = vld [vmem:[#allocation3 + $0x9e] sm:$0xff]
      %v6018 = vld [vmem:[#allocation3 + $0xa6] sm:$0xff]
      %v6019 = vld [vmem:[#allocation3 + $0xae] sm:$0xff]
      %v6020 = vld [vmem:[#allocation3 + $0xb6] sm:$0xff]
      %v6021 = vld [vmem:[#allocation3 + $0xbe] sm:$0xff]
      %v6022 = vld [vmem:[#allocation3 + $0xc6] sm:$0xff]
      %v6023 = vld [vmem:[#allocation3 + $0xce] sm:$0xff]
      %v6024 = vld [vmem:[#allocation3 + $0xd6] sm:$0xff]
      %v6025 = vld [vmem:[#allocation3 + $0xde] sm:$0xff]
      %v6026 = vld [vmem:[#allocation3 + $0xe6] sm:$0xff]
      %v6027 = vld [vmem:[#allocation3 + $0xee] sm:$0xff]
      %v6028 = vld [vmem:[#allocation3 + $0xf6] sm:$0xff]
      %v6029 = vld [vmem:[#allocation3 + $0xfe] sm:$0xff]
      %v6030 = vld [vmem:[#allocation3 + $0x106] sm:$0xff]
      %v6031 = vld [vmem:[#allocation3 + $0x10e] sm:$0xff]
      %v6032 = vld [vmem:[#allocation3 + $0x116] sm:$0xff]
      %v6033 = vld [vmem:[#allocation3 + $0x11e] sm:$0xff]
      %v6034 = vld [vmem:[#allocation3 + $0x126] sm:$0xff]
      %v6035 = vld [vmem:[#allocation3 + $0x12e] sm:$0xff]
      %v6036 = vld [vmem:[#allocation3 + $0x136] sm:$0xff]
      %v6037 = vld [vmem:[#allocation3 + $0x13e] sm:$0xff]
      %s6038 = scalar_lea.vmem %s4, 32
      %v6039 = vld [vmem:[%s6038] sm:$0xf]
      %v6041 = vsel %vm306, %v6002, 0
      %v6044 = vsel %vm306, %v6003, 0
      %v6047 = vsel %vm306, %v6004, 0
      %v6050 = vsel %vm306, %v6005, 0
      %v6053 = vsel %vm306, %v6006, 0
      %v6056 = vsel %vm306, %v6007, 0
      %v6059 = vsel %vm306, %v6008, 0
      %v6062 = vsel %vm306, %v6009, 0
      %v6065 = vsel %vm306, %v6010, 0
      %v6068 = vsel %vm306, %v6011, 0
      %v6071 = vsel %vm306, %v6012, 0
      %v6074 = vsel %vm306, %v6013, 0
      %v6077 = vsel %vm306, %v6014, 0
      %v6080 = vsel %vm306, %v6015, 0
      %v6083 = vsel %vm306, %v6016, 0
      %v6086 = vsel %vm306, %v6017, 0
      %v6089 = vsel %vm306, %v6018, 0
      %v6092 = vsel %vm306, %v6019, 0
      %v6095 = vsel %vm306, %v6020, 0
      %v6098 = vsel %vm306, %v6021, 0
      %v6101 = vsel %vm306, %v6022, 0
      %v6104 = vsel %vm306, %v6023, 0
      %v6107 = vsel %vm306, %v6024, 0
      %v6110 = vsel %vm306, %v6025, 0
      %v6113 = vsel %vm306, %v6026, 0
      %v6116 = vsel %vm306, %v6027, 0
      %v6119 = vsel %vm306, %v6028, 0
      %v6122 = vsel %vm306, %v6029, 0
      %v6125 = vsel %vm306, %v6030, 0
      %v6128 = vsel %vm306, %v6031, 0
      %v6131 = vsel %vm306, %v6032, 0
      %v6134 = vsel %vm306, %v6033, 0
      %v6137 = vsel %vm306, %v6034, 0
      %v6140 = vsel %vm306, %v6035, 0
      %v6143 = vsel %vm306, %v6036, 0
      %v6146 = vsel %vm306, %v6037, 0
      %v6149 = vsel %vm656, %v6039, 0
      %6151 = vmatpush.msra.mxu0 0.0
      %6152 = vmatpush.msra.mxu0 0.0
      %6153 = vmatpush.msra.mxu0 0.0
      %6154 = vmatpush.msra.mxu0 0.0
      %6155 = vmatpush.msra.mxu0 0.0
      %6156 = vmatpush.msra.mxu0 0.0
      %6157 = vmatpush.msra.mxu0 0.0
      %6158 = vmatpush.msra.mxu0 0.0
      %6159 = vmatpush.msra.mxu0 0.0
      %6160 = vmatpush.msra.mxu0 0.0
      %6161 = vmatpush.msra.mxu0 0.0
      %6162 = vmatpush.msra.mxu0 0.0
      %6163 = vmatpush.msra.mxu0 0.0
      %6164 = vmatpush.msra.mxu0 0.0
      %6165 = vmatpush.msra.mxu0 0.0
      %6166 = vmatpush.msra.mxu0 %v6149
      %6167 = vmatmul.f32.gmra.mxu0 %v6041
      %v6168 = vpop.f32.mrf.mxu0
      %v6169 = vadd.f32 0.0, %v6168
      %6170 = vmatmul.f32.gmra.mxu0 %v6044
      %v6171 = vpop.f32.mrf.mxu0
      %v6172 = vadd.f32 0.0, %v6171
      %6173 = vmatmul.f32.gmra.mxu0 %v6047
      %v6174 = vpop.f32.mrf.mxu0
      %v6175 = vadd.f32 0.0, %v6174
      %6176 = vmatmul.f32.gmra.mxu0 %v6050
      %v6177 = vpop.f32.mrf.mxu0
      %v6178 = vadd.f32 0.0, %v6177
      %6179 = vmatmul.f32.gmra.mxu0 %v6053
      %v6180 = vpop.f32.mrf.mxu0
      %v6181 = vadd.f32 0.0, %v6180
      %6182 = vmatmul.f32.gmra.mxu0 %v6056
      %v6183 = vpop.f32.mrf.mxu0
      %v6184 = vadd.f32 0.0, %v6183
      %6185 = vmatmul.f32.gmra.mxu0 %v6059
      %v6186 = vpop.f32.mrf.mxu0
      %v6187 = vadd.f32 0.0, %v6186
      %6188 = vmatmul.f32.gmra.mxu0 %v6062
      %v6189 = vpop.f32.mrf.mxu0
      %v6190 = vadd.f32 0.0, %v6189
      %6191 = vmatmul.f32.gmra.mxu0 %v6065
      %v6192 = vpop.f32.mrf.mxu0
      %v6193 = vadd.f32 0.0, %v6192
      %6194 = vmatmul.f32.gmra.mxu0 %v6068
      %v6195 = vpop.f32.mrf.mxu0
      %v6196 = vadd.f32 0.0, %v6195
      %6197 = vmatmul.f32.gmra.mxu0 %v6071
      %v6198 = vpop.f32.mrf.mxu0
      %v6199 = vadd.f32 0.0, %v6198
      %6200 = vmatmul.f32.gmra.mxu0 %v6074
      %v6201 = vpop.f32.mrf.mxu0
      %v6202 = vadd.f32 0.0, %v6201
      %6203 = vmatmul.f32.gmra.mxu0 %v6077
      %v6204 = vpop.f32.mrf.mxu0
      %v6205 = vadd.f32 0.0, %v6204
      %6206 = vmatmul.f32.gmra.mxu0 %v6080
      %v6207 = vpop.f32.mrf.mxu0
      %v6208 = vadd.f32 0.0, %v6207
      %6209 = vmatmul.f32.gmra.mxu0 %v6083
      %v6210 = vpop.f32.mrf.mxu0
      %v6211 = vadd.f32 0.0, %v6210
      %6212 = vmatmul.f32.gmra.mxu0 %v6086
      %v6213 = vpop.f32.mrf.mxu0
      %v6214 = vadd.f32 0.0, %v6213
      %6215 = vmatmul.f32.gmra.mxu0 %v6089
      %v6216 = vpop.f32.mrf.mxu0
      %v6217 = vadd.f32 0.0, %v6216
      %6218 = vmatmul.f32.gmra.mxu0 %v6092
      %v6219 = vpop.f32.mrf.mxu0
      %v6220 = vadd.f32 0.0, %v6219
      %6221 = vmatmul.f32.gmra.mxu0 %v6095
      %v6222 = vpop.f32.mrf.mxu0
      %v6223 = vadd.f32 0.0, %v6222
      %6224 = vmatmul.f32.gmra.mxu0 %v6098
      %v6225 = vpop.f32.mrf.mxu0
      %v6226 = vadd.f32 0.0, %v6225
      %6227 = vmatmul.f32.gmra.mxu0 %v6101
      %v6228 = vpop.f32.mrf.mxu0
      %v6229 = vadd.f32 0.0, %v6228
      %6230 = vmatmul.f32.gmra.mxu0 %v6104
      %v6231 = vpop.f32.mrf.mxu0
      %v6232 = vadd.f32 0.0, %v6231
      %6233 = vmatmul.f32.gmra.mxu0 %v6107
      %v6234 = vpop.f32.mrf.mxu0
      %v6235 = vadd.f32 0.0, %v6234
      %6236 = vmatmul.f32.gmra.mxu0 %v6110
      %v6237 = vpop.f32.mrf.mxu0
      %v6238 = vadd.f32 0.0, %v6237
      %6239 = vmatmul.f32.gmra.mxu0 %v6113
      %v6240 = vpop.f32.mrf.mxu0
      %v6241 = vadd.f32 0.0, %v6240
      %6242 = vmatmul.f32.gmra.mxu0 %v6116
      %v6243 = vpop.f32.mrf.mxu0
      %v6244 = vadd.f32 0.0, %v6243
      %6245 = vmatmul.f32.gmra.mxu0 %v6119
      %v6246 = vpop.f32.mrf.mxu0
      %v6247 = vadd.f32 0.0, %v6246
      %6248 = vmatmul.f32.gmra.mxu0 %v6122
      %v6249 = vpop.f32.mrf.mxu0
      %v6250 = vadd.f32 0.0, %v6249
      %6251 = vmatmul.f32.gmra.mxu0 %v6125
      %v6252 = vpop.f32.mrf.mxu0
      %v6253 = vadd.f32 0.0, %v6252
      %6254 = vmatmul.f32.gmra.mxu0 %v6128
      %v6255 = vpop.f32.mrf.mxu0
      %v6256 = vadd.f32 0.0, %v6255
      %6257 = vmatmul.f32.gmra.mxu0 %v6131
      %v6258 = vpop.f32.mrf.mxu0
      %v6259 = vadd.f32 0.0, %v6258
      %6260 = vmatmul.f32.gmra.mxu0 %v6134
      %v6261 = vpop.f32.mrf.mxu0
      %v6262 = vadd.f32 0.0, %v6261
      %6263 = vmatmul.f32.gmra.mxu0 %v6137
      %v6264 = vpop.f32.mrf.mxu0
      %v6265 = vadd.f32 0.0, %v6264
      %6266 = vmatmul.f32.gmra.mxu0 %v6140
      %v6267 = vpop.f32.mrf.mxu0
      %v6268 = vadd.f32 0.0, %v6267
      %6269 = vmatmul.f32.gmra.mxu0 %v6143
      %v6270 = vpop.f32.mrf.mxu0
      %v6271 = vadd.f32 0.0, %v6270
      %6272 = vmatmul.f32.gmra.mxu0 %v6146
      %v6273 = vpop.f32.mrf.mxu0
      %v6274 = vadd.f32 0.0, %v6273
      %6275 = vdwg.mxu0
      %v6276 = vadd.f32 %v5966, %v6169
      %v6277 = vadd.f32 %v5967, %v6172
      %v6278 = vadd.f32 %v5968, %v6175
      %v6279 = vadd.f32 %v5969, %v6178
      %v6280 = vadd.f32 %v5970, %v6181
      %v6281 = vadd.f32 %v5971, %v6184
      %v6282 = vadd.f32 %v5972, %v6187
      %v6283 = vadd.f32 %v5973, %v6190
      %v6284 = vadd.f32 %v5974, %v6193
      %v6285 = vadd.f32 %v5975, %v6196
      %v6286 = vadd.f32 %v5976, %v6199
      %v6287 = vadd.f32 %v5977, %v6202
      %v6288 = vadd.f32 %v5978, %v6205
      %v6289 = vadd.f32 %v5979, %v6208
      %v6290 = vadd.f32 %v5980, %v6211
      %v6291 = vadd.f32 %v5981, %v6214
      %v6292 = vadd.f32 %v5982, %v6217
      %v6293 = vadd.f32 %v5983, %v6220
      %v6294 = vadd.f32 %v5984, %v6223
      %v6295 = vadd.f32 %v5985, %v6226
      %v6296 = vadd.f32 %v5986, %v6229
      %v6297 = vadd.f32 %v5987, %v6232
      %v6298 = vadd.f32 %v5988, %v6235
      %v6299 = vadd.f32 %v5989, %v6238
      %v6300 = vadd.f32 %v5990, %v6241
      %v6301 = vadd.f32 %v5991, %v6244
      %v6302 = vadd.f32 %v5992, %v6247
      %v6303 = vadd.f32 %v5993, %v6250
      %v6304 = vadd.f32 %v5994, %v6253
      %v6305 = vadd.f32 %v5995, %v6256
      %v6306 = vadd.f32 %v5996, %v6259
      %v6307 = vadd.f32 %v5997, %v6262
      %v6308 = vadd.f32 %v5998, %v6265
      %v6309 = vadd.f32 %v5999, %v6268
      %v6310 = vadd.f32 %v6000, %v6271
      %v6311 = vadd.f32 %v6001, %v6274
      %v6312 = vld [vmem:[%s5] sm:$0x1]
      %v6314 = vperm.slane %v6312, 0
      %v6316 = vmul.f32 %v6276, %v6314
      %v6317 = vmul.f32 %v6277, %v6314
      %v6318 = vmul.f32 %v6278, %v6314
      %v6319 = vmul.f32 %v6279, %v6314
      %v6320 = vmul.f32 %v6280, %v6314
      %v6321 = vmul.f32 %v6281, %v6314
      %v6322 = vmul.f32 %v6282, %v6314
      %v6323 = vmul.f32 %v6283, %v6314
      %v6324 = vmul.f32 %v6284, %v6314
      %v6325 = vmul.f32 %v6285, %v6314
      %v6326 = vmul.f32 %v6286, %v6314
      %v6327 = vmul.f32 %v6287, %v6314
      %v6328 = vmul.f32 %v6288, %v6314
      %v6329 = vmul.f32 %v6289, %v6314
      %v6330 = vmul.f32 %v6290, %v6314
      %v6331 = vmul.f32 %v6291, %v6314
      %v6332 = vmul.f32 %v6292, %v6314
      %v6333 = vmul.f32 %v6293, %v6314
      %v6334 = vmul.f32 %v6294, %v6314
      %v6335 = vmul.f32 %v6295, %v6314
      %v6336 = vmul.f32 %v6296, %v6314
      %v6337 = vmul.f32 %v6297, %v6314
      %v6338 = vmul.f32 %v6298, %v6314
      %v6339 = vmul.f32 %v6299, %v6314
      %v6340 = vmul.f32 %v6300, %v6314
      %v6341 = vmul.f32 %v6301, %v6314
      %v6342 = vmul.f32 %v6302, %v6314
      %v6343 = vmul.f32 %v6303, %v6314
      %v6344 = vmul.f32 %v6304, %v6314
      %v6345 = vmul.f32 %v6305, %v6314
      %v6346 = vmul.f32 %v6306, %v6314
      %v6347 = vmul.f32 %v6307, %v6314
      %v6348 = vmul.f32 %v6308, %v6314
      %v6349 = vmul.f32 %v6309, %v6314
      %v6350 = vmul.f32 %v6310, %v6314
      %v6351 = vmul.f32 %v6311, %v6314
      %v6352 = vld [vmem:[%s6] sm:$0x1]
      %v6354 = vperm.slane %v6352, 0
      %v6356 = vadd.f32 %v6316, %v6354
      %v6357 = vadd.f32 %v6317, %v6354
      %v6358 = vadd.f32 %v6318, %v6354
      %v6359 = vadd.f32 %v6319, %v6354
      %v6360 = vadd.f32 %v6320, %v6354
      %v6361 = vadd.f32 %v6321, %v6354
      %v6362 = vadd.f32 %v6322, %v6354
      %v6363 = vadd.f32 %v6323, %v6354
      %v6364 = vadd.f32 %v6324, %v6354
      %v6365 = vadd.f32 %v6325, %v6354
      %v6366 = vadd.f32 %v6326, %v6354
      %v6367 = vadd.f32 %v6327, %v6354
      %v6368 = vadd.f32 %v6328, %v6354
      %v6369 = vadd.f32 %v6329, %v6354
      %v6370 = vadd.f32 %v6330, %v6354
      %v6371 = vadd.f32 %v6331, %v6354
      %v6372 = vadd.f32 %v6332, %v6354
      %v6373 = vadd.f32 %v6333, %v6354
      %v6374 = vadd.f32 %v6334, %v6354
      %v6375 = vadd.f32 %v6335, %v6354
      %v6376 = vadd.f32 %v6336, %v6354
      %v6377 = vadd.f32 %v6337, %v6354
      %v6378 = vadd.f32 %v6338, %v6354
      %v6379 = vadd.f32 %v6339, %v6354
      %v6380 = vadd.f32 %v6340, %v6354
      %v6381 = vadd.f32 %v6341, %v6354
      %v6382 = vadd.f32 %v6342, %v6354
      %v6383 = vadd.f32 %v6343, %v6354
      %v6384 = vadd.f32 %v6344, %v6354
      %v6385 = vadd.f32 %v6345, %v6354
      %v6386 = vadd.f32 %v6346, %v6354
      %v6387 = vadd.f32 %v6347, %v6354
      %v6388 = vadd.f32 %v6348, %v6354
      %v6389 = vadd.f32 %v6349, %v6354
      %v6390 = vadd.f32 %v6350, %v6354
      %v6391 = vadd.f32 %v6351, %v6354
      %v6392 = vmax.f32 %v6356, 0.0
      %v6393 = vmax.f32 %v6357, 0.0
      %v6394 = vmax.f32 %v6358, 0.0
      %v6395 = vmax.f32 %v6359, 0.0
      %v6396 = vmax.f32 %v6360, 0.0
      %v6397 = vmax.f32 %v6361, 0.0
      %v6398 = vmax.f32 %v6362, 0.0
      %v6399 = vmax.f32 %v6363, 0.0
      %v6400 = vmax.f32 %v6364, 0.0
      %v6401 = vmax.f32 %v6365, 0.0
      %v6402 = vmax.f32 %v6366, 0.0
      %v6403 = vmax.f32 %v6367, 0.0
      %v6404 = vmax.f32 %v6368, 0.0
      %v6405 = vmax.f32 %v6369, 0.0
      %v6406 = vmax.f32 %v6370, 0.0
      %v6407 = vmax.f32 %v6371, 0.0
      %v6408 = vmax.f32 %v6372, 0.0
      %v6409 = vmax.f32 %v6373, 0.0
      %v6410 = vmax.f32 %v6374, 0.0
      %v6411 = vmax.f32 %v6375, 0.0
      %v6412 = vmax.f32 %v6376, 0.0
      %v6413 = vmax.f32 %v6377, 0.0
      %v6414 = vmax.f32 %v6378, 0.0
      %v6415 = vmax.f32 %v6379, 0.0
      %v6416 = vmax.f32 %v6380, 0.0
      %v6417 = vmax.f32 %v6381, 0.0
      %v6418 = vmax.f32 %v6382, 0.0
      %v6419 = vmax.f32 %v6383, 0.0
      %v6420 = vmax.f32 %v6384, 0.0
      %v6421 = vmax.f32 %v6385, 0.0
      %v6422 = vmax.f32 %v6386, 0.0
      %v6423 = vmax.f32 %v6387, 0.0
      %v6424 = vmax.f32 %v6388, 0.0
      %v6425 = vmax.f32 %v6389, 0.0
      %v6426 = vmax.f32 %v6390, 0.0
      %v6427 = vmax.f32 %v6391, 0.0
      %v6464 = vrot.slane %v6392, 2
      %v6465 = vrot.slane %v6392, 4
      %v6466 = vrot.slane %v6392, 6
      %v6467 = vrot.slane %v6393, 2
      %v6468 = vrot.slane %v6393, 4
      %v6469 = vrot.slane %v6393, 6
      %v6470 = vrot.slane %v6394, 2
      %v6471 = vrot.slane %v6394, 4
      %v6472 = vrot.slane %v6394, 6
      %v6473 = vrot.slane %v6395, 2
      %v6474 = vrot.slane %v6395, 4
      %v6475 = vrot.slane %v6395, 6
      %v6476 = vrot.slane %v6396, 4
      %v6477 = vrot.slane %v6396, 6
      %v6478 = vrot.slane %v6397, 2
      %v6479 = vrot.slane %v6397, 4
      %v6480 = vrot.slane %v6397, 6
      %v6481 = vrot.slane %v6398, 2
      %v6482 = vrot.slane %v6398, 6
      %v6483 = vrot.slane %v6399, 2
      %v6484 = vrot.slane %v6399, 4
      %v6485 = vrot.slane %v6399, 6
      %v6486 = vrot.slane %v6400, 2
      %v6487 = vrot.slane %v6400, 4
      %v6488 = vrot.slane %v6401, 2
      %v6489 = vrot.slane %v6401, 4
      %v6490 = vrot.slane %v6401, 6
      %v6491 = vrot.slane %v6402, 2
      %v6492 = vrot.slane %v6402, 4
      %v6493 = vrot.slane %v6402, 6
      %v6494 = vrot.slane %v6403, 2
      %v6495 = vrot.slane %v6403, 4
      %v6496 = vrot.slane %v6403, 6
      %v6497 = vrot.slane %v6404, 2
      %v6498 = vrot.slane %v6404, 4
      %v6499 = vrot.slane %v6404, 6
      %v6500 = vrot.slane %v6405, 4
      %v6501 = vrot.slane %v6405, 6
      %v6502 = vrot.slane %v6406, 2
      %v6503 = vrot.slane %v6406, 4
      %v6504 = vrot.slane %v6406, 6
      %v6505 = vrot.slane %v6407, 2
      %v6506 = vrot.slane %v6407, 6
      %v6507 = vrot.slane %v6408, 2
      %v6508 = vrot.slane %v6408, 4
      %v6509 = vrot.slane %v6408, 6
      %v6510 = vrot.slane %v6409, 2
      %v6511 = vrot.slane %v6409, 4
      %v6512 = vrot.slane %v6410, 2
      %v6513 = vrot.slane %v6410, 4
      %v6514 = vrot.slane %v6410, 6
      %v6515 = vrot.slane %v6411, 2
      %v6516 = vrot.slane %v6411, 4
      %v6517 = vrot.slane %v6411, 6
      %v6518 = vrot.slane %v6412, 2
      %v6519 = vrot.slane %v6412, 4
      %v6520 = vrot.slane %v6412, 6
      %v6521 = vrot.slane %v6413, 2
      %v6522 = vrot.slane %v6413, 4
      %v6523 = vrot.slane %v6413, 6
      %v6524 = vrot.slane %v6414, 4
      %v6525 = vrot.slane %v6414, 6
      %v6526 = vrot.slane %v6415, 2
      %v6527 = vrot.slane %v6415, 4
      %v6528 = vrot.slane %v6415, 6
      %v6529 = vrot.slane %v6416, 2
      %v6530 = vrot.slane %v6416, 6
      %v6531 = vrot.slane %v6417, 2
      %v6532 = vrot.slane %v6417, 4
      %v6533 = vrot.slane %v6417, 6
      %v6534 = vrot.slane %v6418, 2
      %v6535 = vrot.slane %v6418, 4
      %v6536 = vrot.slane %v6419, 2
      %v6537 = vrot.slane %v6419, 4
      %v6538 = vrot.slane %v6419, 6
      %v6539 = vrot.slane %v6420, 2
      %v6540 = vrot.slane %v6420, 4
      %v6541 = vrot.slane %v6420, 6
      %v6542 = vrot.slane %v6421, 2
      %v6543 = vrot.slane %v6421, 4
      %v6544 = vrot.slane %v6421, 6
      %v6545 = vrot.slane %v6422, 2
      %v6546 = vrot.slane %v6422, 4
      %v6547 = vrot.slane %v6422, 6
      %v6548 = vrot.slane %v6423, 4
      %v6549 = vrot.slane %v6423, 6
      %v6550 = vrot.slane %v6424, 2
      %v6551 = vrot.slane %v6424, 4
      %v6552 = vrot.slane %v6424, 6
      %v6553 = vrot.slane %v6425, 2
      %v6554 = vrot.slane %v6425, 6
      %v6555 = vrot.slane %v6426, 2
      %v6556 = vrot.slane %v6426, 4
      %v6557 = vrot.slane %v6426, 6
      %v6558 = vrot.slane %v6427, 2
      %v6559 = vrot.slane %v6427, 4
      %v6560 = vld [vmem:[%s300] sm:$0xff]
      %v6561 = vld [vmem:[%s300 + $0x8] sm:$0xff]
      %v6562 = vld [vmem:[%s300 + $0x10] sm:$0xff]
      %v6563 = vld [vmem:[%s300 + $0x18] sm:$0xff]
      %v6564 = vld [vmem:[%s300 + $0x20] sm:$0xff]
      %v6565 = vld [vmem:[%s300 + $0x28] sm:$0xff]
      %v6566 = vld [vmem:[%s300 + $0x30] sm:$0xff]
      %v6567 = vld [vmem:[%s300 + $0x38] sm:$0xff]
      %v6568 = vld [vmem:[%s300 + $0x40] sm:$0xff]
      %v6569 = vld [vmem:[%s300 + $0x48] sm:$0xff]
      %v6570 = vld [vmem:[%s300 + $0x50] sm:$0xff]
      %v6571 = vld [vmem:[%s300 + $0x58] sm:$0xff]
      %v6572 = vld [vmem:[%s300 + $0x60] sm:$0xff]
      %v6573 = vld [vmem:[%s300 + $0x68] sm:$0xff]
      %v6574 = vld [vmem:[%s300 + $0x70] sm:$0xff]
      %v6575 = vld [vmem:[%s300 + $0x78] sm:$0xff]
      %v6576 = vld [vmem:[%s300 + $0x80] sm:$0xff]
      %v6577 = vld [vmem:[%s300 + $0x88] sm:$0xff]
      %v6578 = vld [vmem:[%s300 + $0x90] sm:$0xff]
      %v6579 = vld [vmem:[%s300 + $0x98] sm:$0xff]
      %v6580 = vld [vmem:[%s300 + $0xa0] sm:$0xff]
      %v6581 = vld [vmem:[%s300 + $0xa8] sm:$0xff]
      %v6582 = vld [vmem:[%s300 + $0xb0] sm:$0xff]
      %v6583 = vld [vmem:[%s300 + $0xb8] sm:$0xff]
      %v6584 = vld [vmem:[%s300 + $0xc0] sm:$0xff]
      %v6585 = vld [vmem:[%s300 + $0xc8] sm:$0xff]
      %v6586 = vld [vmem:[%s300 + $0xd0] sm:$0xff]
      %v6587 = vld [vmem:[%s300 + $0xd8] sm:$0xff]
      %v6588 = vld [vmem:[%s300 + $0xe0] sm:$0xff]
      %v6589 = vld [vmem:[%s300 + $0xe8] sm:$0xff]
      %v6590 = vld [vmem:[%s300 + $0xf0] sm:$0xff]
      %v6591 = vld [vmem:[%s300 + $0xf8] sm:$0xff]
      %6592 = vst [vmem:[#allocation1] ss:$4 sm:$0xff] %v6392
      %s6593 = scalar_lea.vmem [#allocation1], 1
      %6594 = vst [vmem:[%s6593] ss:$4 sm:$0xff] %v6464
      %s6595 = scalar_lea.vmem [#allocation1], 2
      %6596 = vst [vmem:[%s6595] ss:$4 sm:$0xff] %v6465
      %s6597 = scalar_lea.vmem [#allocation1], 3
      %6598 = vst [vmem:[%s6597] ss:$4 sm:$0xff] %v6466
      %s6599 = scalar_lea.vmem [#allocation1], 32
      %6600 = vst [vmem:[%s6599] ss:$4 sm:$0xff] %v6393
      %s6601 = scalar_lea.vmem [#allocation1], 33
      %6602 = vst [vmem:[%s6601] ss:$4 sm:$0xff] %v6467
      %s6603 = scalar_lea.vmem [#allocation1], 34
      %6604 = vst [vmem:[%s6603] ss:$4 sm:$0xff] %v6468
      %s6605 = scalar_lea.vmem [#allocation1], 35
      %6606 = vst [vmem:[%s6605] ss:$4 sm:$0xff] %v6469
      %v6607 = vld.sshfl [vmem:[#allocation1] sm:$0xff pattern:$0x73625140]
      %v6608 = vld.sshfl [vmem:[#allocation1 + $0x20] sm:$0xff pattern:$0x73625140]
      %6609 = vst [vmem:[#allocation1] ss:$4 sm:$0xff] %v6470
      %6610 = vst [vmem:[%s6593] ss:$4 sm:$0xff] %v6471
      %6611 = vst [vmem:[%s6595] ss:$4 sm:$0xff] %v6472
      %6612 = vst [vmem:[%s6597] ss:$4 sm:$0xff] %v6395
      %6613 = vst [vmem:[%s6599] ss:$4 sm:$0xff] %v6473
      %6614 = vst [vmem:[%s6601] ss:$4 sm:$0xff] %v6474
      %6615 = vst [vmem:[%s6603] ss:$4 sm:$0xff] %v6475
      %6616 = vst [vmem:[%s6605] ss:$4 sm:$0xff] %v6396
      %v6617 = vld.sshfl [vmem:[#allocation1] sm:$0xff pattern:$0x73625140]
      %v6618 = vld.sshfl [vmem:[#allocation1 + $0x20] sm:$0xff pattern:$0x73625140]
      %6619 = vst [vmem:[#allocation1] ss:$4 sm:$0xff] %v6476
      %6620 = vst [vmem:[%s6593] ss:$4 sm:$0xff] %v6477
      %6621 = vst [vmem:[%s6595] ss:$4 sm:$0xff] %v6397
      %6622 = vst [vmem:[%s6597] ss:$4 sm:$0xff] %v6478
      %6623 = vst [vmem:[%s6599] ss:$4 sm:$0xff] %v6479
      %6624 = vst [vmem:[%s6601] ss:$4 sm:$0xff] %v6480
      %6625 = vst [vmem:[%s6603] ss:$4 sm:$0xff] %v6398
      %6626 = vst [vmem:[%s6605] ss:$4 sm:$0xff] %v6481
      %v6627 = vld.sshfl [vmem:[#allocation1] sm:$0xff pattern:$0x73625140]
      %v6628 = vld.sshfl [vmem:[#allocation1 + $0x20] sm:$0xff pattern:$0x73625140]
      %6629 = vst [vmem:[#allocation1] ss:$4 sm:$0xff] %v6482
      %6630 = vst [vmem:[%s6593] ss:$4 sm:$0xff] %v6399
      %6631 = vst [vmem:[%s6595] ss:$4 sm:$0xff] %v6483
      %6632 = vst [vmem:[%s6597] ss:$4 sm:$0xff] %v6484
      %6633 = vst [vmem:[%s6599] ss:$4 sm:$0xff] %v6485
      %6634 = vst [vmem:[%s6601] ss:$4 sm:$0xff] %v6400
      %6635 = vst [vmem:[%s6603] ss:$4 sm:$0xff] %v6486
      %6636 = vst [vmem:[%s6605] ss:$4 sm:$0xff] %v6487
      %v6637 = vld.sshfl [vmem:[#allocation1] sm:$0xff pattern:$0x73625140]
      %v6638 = vld.sshfl [vmem:[#allocation1 + $0x20] sm:$0xff pattern:$0x73625140]
      %6639 = vst [vmem:[#allocation1] ss:$4 sm:$0xff] %v6401
      %6640 = vst [vmem:[%s6593] ss:$4 sm:$0xff] %v6488
      %6641 = vst [vmem:[%s6595] ss:$4 sm:$0xff] %v6489
      %6642 = vst [vmem:[%s6597] ss:$4 sm:$0xff] %v6490
      %6643 = vst [vmem:[%s6599] ss:$4 sm:$0xff] %v6402
      %6644 = vst [vmem:[%s6601] ss:$4 sm:$0xff] %v6491
      %6645 = vst [vmem:[%s6603] ss:$4 sm:$0xff] %v6492
      %6646 = vst [vmem:[%s6605] ss:$4 sm:$0xff] %v6493
      %v6647 = vld.sshfl [vmem:[#allocation1] sm:$0xff pattern:$0x73625140]
      %v6648 = vld.sshfl [vmem:[#allocation1 + $0x20] sm:$0xff pattern:$0x73625140]
      %6649 = vst [vmem:[#allocation1] ss:$4 sm:$0xff] %v6494
      %6650 = vst [vmem:[%s6593] ss:$4 sm:$0xff] %v6495
      %6651 = vst [vmem:[%s6595] ss:$4 sm:$0xff] %v6496
      %6652 = vst [vmem:[%s6597] ss:$4 sm:$0xff] %v6404
      %6653 = vst [vmem:[%s6599] ss:$4 sm:$0xff] %v6497
      %6654 = vst [vmem:[%s6601] ss:$4 sm:$0xff] %v6498
      %6655 = vst [vmem:[%s6603] ss:$4 sm:$0xff] %v6499
      %6656 = vst [vmem:[%s6605] ss:$4 sm:$0xff] %v6405
      %v6657 = vld.sshfl [vmem:[#allocation1] sm:$0xff pattern:$0x73625140]
      %v6658 = vld.sshfl [vmem:[#allocation1 + $0x20] sm:$0xff pattern:$0x73625140]
      %6659 = vst [vmem:[#allocation1] ss:$4 sm:$0xff] %v6500
      %6660 = vst [vmem:[%s6593] ss:$4 sm:$0xff] %v6501
      %6661 = vst [vmem:[%s6595] ss:$4 sm:$0xff] %v6406
      %6662 = vst [vmem:[%s6597] ss:$4 sm:$0xff] %v6502
      %6663 = vst [vmem:[%s6599] ss:$4 sm:$0xff] %v6503
      %6664 = vst [vmem:[%s6601] ss:$4 sm:$0xff] %v6504
      %6665 = vst [vmem:[%s6603] ss:$4 sm:$0xff] %v6407
      %6666 = vst [vmem:[%s6605] ss:$4 sm:$0xff] %v6505
      %v6667 = vld.sshfl [vmem:[#allocation1] sm:$0xff pattern:$0x73625140]
      %v6668 = vld.sshfl [vmem:[#allocation1 + $0x20] sm:$0xff pattern:$0x73625140]
      %6669 = vst [vmem:[#allocation1] ss:$4 sm:$0xff] %v6506
      %6670 = vst [vmem:[%s6593] ss:$4 sm:$0xff] %v6408
      %6671 = vst [vmem:[%s6595] ss:$4 sm:$0xff] %v6507
      %6672 = vst [vmem:[%s6597] ss:$4 sm:$0xff] %v6508
      %6673 = vst [vmem:[%s6599] ss:$4 sm:$0xff] %v6509
      %6674 = vst [vmem:[%s6601] ss:$4 sm:$0xff] %v6409
      %6675 = vst [vmem:[%s6603] ss:$4 sm:$0xff] %v6510
      %6676 = vst [vmem:[%s6605] ss:$4 sm:$0xff] %v6511
      %v6677 = vld.sshfl [vmem:[#allocation1] sm:$0xff pattern:$0x73625140]
      %v6678 = vld.sshfl [vmem:[#allocation1 + $0x20] sm:$0xff pattern:$0x73625140]
      %6679 = vst [vmem:[#allocation1] ss:$4 sm:$0xff] %v6410
      %6680 = vst [vmem:[%s6593] ss:$4 sm:$0xff] %v6512
      %6681 = vst [vmem:[%s6595] ss:$4 sm:$0xff] %v6513
      %6682 = vst [vmem:[%s6597] ss:$4 sm:$0xff] %v6514
      %6683 = vst [vmem:[%s6599] ss:$4 sm:$0xff] %v6411
      %6684 = vst [vmem:[%s6601] ss:$4 sm:$0xff] %v6515
      %6685 = vst [vmem:[%s6603] ss:$4 sm:$0xff] %v6516
      %6686 = vst [vmem:[%s6605] ss:$4 sm:$0xff] %v6517
      %v6687 = vld.sshfl [vmem:[#allocation1] sm:$0xff pattern:$0x73625140]
      %v6688 = vld.sshfl [vmem:[#allocation1 + $0x20] sm:$0xff pattern:$0x73625140]
      %6689 = vst [vmem:[#allocation1] ss:$4 sm:$0xff] %v6518
      %6690 = vst [vmem:[%s6593] ss:$4 sm:$0xff] %v6519
      %6691 = vst [vmem:[%s6595] ss:$4 sm:$0xff] %v6520
      %6692 = vst [vmem:[%s6597] ss:$4 sm:$0xff] %v6413
      %6693 = vst [vmem:[%s6599] ss:$4 sm:$0xff] %v6521
      %6694 = vst [vmem:[%s6601] ss:$4 sm:$0xff] %v6522
      %6695 = vst [vmem:[%s6603] ss:$4 sm:$0xff] %v6523
      %6696 = vst [vmem:[%s6605] ss:$4 sm:$0xff] %v6414
      %v6697 = vld.sshfl [vmem:[#allocation1] sm:$0xff pattern:$0x73625140]
      %v6698 = vld.sshfl [vmem:[#allocation1 + $0x20] sm:$0xff pattern:$0x73625140]
      %6699 = vst [vmem:[#allocation1] ss:$4 sm:$0xff] %v6524
      %6700 = vst [vmem:[%s6593] ss:$4 sm:$0xff] %v6525
      %6701 = vst [vmem:[%s6595] ss:$4 sm:$0xff] %v6415
      %6702 = vst [vmem:[%s6597] ss:$4 sm:$0xff] %v6526
      %6703 = vst [vmem:[%s6599] ss:$4 sm:$0xff] %v6527
      %6704 = vst [vmem:[%s6601] ss:$4 sm:$0xff] %v6528
      %6705 = vst [vmem:[%s6603] ss:$4 sm:$0xff] %v6416
      %6706 = vst [vmem:[%s6605] ss:$4 sm:$0xff] %v6529
      %v6707 = vld.sshfl [vmem:[#allocation1] sm:$0xff pattern:$0x73625140]
      %v6708 = vld.sshfl [vmem:[#allocation1 + $0x20] sm:$0xff pattern:$0x73625140]
      %6709 = vst [vmem:[#allocation1] ss:$4 sm:$0xff] %v6530
      %6710 = vst [vmem:[%s6593] ss:$4 sm:$0xff] %v6417
      %6711 = vst [vmem:[%s6595] ss:$4 sm:$0xff] %v6531
      %6712 = vst [vmem:[%s6597] ss:$4 sm:$0xff] %v6532
      %6713 = vst [vmem:[%s6599] ss:$4 sm:$0xff] %v6533
      %6714 = vst [vmem:[%s6601] ss:$4 sm:$0xff] %v6418
      %6715 = vst [vmem:[%s6603] ss:$4 sm:$0xff] %v6534
      %6716 = vst [vmem:[%s6605] ss:$4 sm:$0xff] %v6535
      %v6717 = vld.sshfl [vmem:[#allocation1] sm:$0xff pattern:$0x73625140]
      %v6718 = vld.sshfl [vmem:[#allocation1 + $0x20] sm:$0xff pattern:$0x73625140]
      %6719 = vst [vmem:[#allocation1] ss:$4 sm:$0xff] %v6419
      %6720 = vst [vmem:[%s6593] ss:$4 sm:$0xff] %v6536
      %6721 = vst [vmem:[%s6595] ss:$4 sm:$0xff] %v6537
      %6722 = vst [vmem:[%s6597] ss:$4 sm:$0xff] %v6538
      %6723 = vst [vmem:[%s6599] ss:$4 sm:$0xff] %v6420
      %6724 = vst [vmem:[%s6601] ss:$4 sm:$0xff] %v6539
      %6725 = vst [vmem:[%s6603] ss:$4 sm:$0xff] %v6540
      %6726 = vst [vmem:[%s6605] ss:$4 sm:$0xff] %v6541
      %v6727 = vld.sshfl [vmem:[#allocation1] sm:$0xff pattern:$0x73625140]
      %v6728 = vld.sshfl [vmem:[#allocation1 + $0x20] sm:$0xff pattern:$0x73625140]
      %6729 = vst [vmem:[#allocation1] ss:$4 sm:$0xff] %v6542
      %6730 = vst [vmem:[%s6593] ss:$4 sm:$0xff] %v6543
      %6731 = vst [vmem:[%s6595] ss:$4 sm:$0xff] %v6544
      %6732 = vst [vmem:[%s6597] ss:$4 sm:$0xff] %v6422
      %6733 = vst [vmem:[%s6599] ss:$4 sm:$0xff] %v6545
      %6734 = vst [vmem:[%s6601] ss:$4 sm:$0xff] %v6546
      %6735 = vst [vmem:[%s6603] ss:$4 sm:$0xff] %v6547
      %6736 = vst [vmem:[%s6605] ss:$4 sm:$0xff] %v6423
      %v6737 = vld.sshfl [vmem:[#allocation1] sm:$0xff pattern:$0x73625140]
      %v6738 = vld.sshfl [vmem:[#allocation1 + $0x20] sm:$0xff pattern:$0x73625140]
      %6739 = vst [vmem:[#allocation1] ss:$4 sm:$0xff] %v6548
      %6740 = vst [vmem:[%s6593] ss:$4 sm:$0xff] %v6549
      %6741 = vst [vmem:[%s6595] ss:$4 sm:$0xff] %v6424
      %6742 = vst [vmem:[%s6597] ss:$4 sm:$0xff] %v6550
      %6743 = vst [vmem:[%s6599] ss:$4 sm:$0xff] %v6551
      %6744 = vst [vmem:[%s6601] ss:$4 sm:$0xff] %v6552
      %6745 = vst [vmem:[%s6603] ss:$4 sm:$0xff] %v6425
      %6746 = vst [vmem:[%s6605] ss:$4 sm:$0xff] %v6553
      %v6747 = vld.sshfl [vmem:[#allocation1] sm:$0xff pattern:$0x73625140]
      %v6748 = vld.sshfl [vmem:[#allocation1 + $0x20] sm:$0xff pattern:$0x73625140]
      %6749 = vst [vmem:[#allocation1] ss:$4 sm:$0xff] %v6554
      %6750 = vst [vmem:[%s6593] ss:$4 sm:$0xff] %v6426
      %6751 = vst [vmem:[%s6595] ss:$4 sm:$0xff] %v6555
      %6752 = vst [vmem:[%s6597] ss:$4 sm:$0xff] %v6556
      %6753 = vst [vmem:[%s6599] ss:$4 sm:$0xff] %v6557
      %6754 = vst [vmem:[%s6601] ss:$4 sm:$0xff] %v6427
      %6755 = vst [vmem:[%s6603] ss:$4 sm:$0xff] %v6558
      %6756 = vst [vmem:[%s6605] ss:$4 sm:$0xff] %v6559
      %v6757 = vld.sshfl [vmem:[#allocation1] sm:$0xff pattern:$0x73625140]
      %v6758 = vld.sshfl [vmem:[#allocation1 + $0x20] sm:$0xff pattern:$0x73625140]
      %v6791 = vadd.f32 %v6560, %v6607
      %v6792 = vadd.f32 %v6561, %v6608
      %v6793 = vadd.f32 %v6562, %v6617
      %v6794 = vadd.f32 %v6563, %v6618
      %v6795 = vadd.f32 %v6564, %v6627
      %v6796 = vadd.f32 %v6565, %v6628
      %v6797 = vadd.f32 %v6566, %v6637
      %v6798 = vadd.f32 %v6567, %v6638
      %v6799 = vadd.f32 %v6568, %v6647
      %v6800 = vadd.f32 %v6569, %v6648
      %v6801 = vadd.f32 %v6570, %v6657
      %v6802 = vadd.f32 %v6571, %v6658
      %v6803 = vadd.f32 %v6572, %v6667
      %v6804 = vadd.f32 %v6573, %v6668
      %v6805 = vadd.f32 %v6574, %v6677
      %v6806 = vadd.f32 %v6575, %v6678
      %v6807 = vadd.f32 %v6576, %v6687
      %v6808 = vadd.f32 %v6577, %v6688
      %v6809 = vadd.f32 %v6578, %v6697
      %v6810 = vadd.f32 %v6579, %v6698
      %v6811 = vadd.f32 %v6580, %v6707
      %v6812 = vadd.f32 %v6581, %v6708
      %v6813 = vadd.f32 %v6582, %v6717
      %v6814 = vadd.f32 %v6583, %v6718
      %v6815 = vadd.f32 %v6584, %v6727
      %v6816 = vadd.f32 %v6585, %v6728
      %v6817 = vadd.f32 %v6586, %v6737
      %v6818 = vadd.f32 %v6587, %v6738
      %v6819 = vadd.f32 %v6588, %v6747
      %v6820 = vadd.f32 %v6589, %v6748
      %v6821 = vadd.f32 %v6590, %v6757
      %v6822 = vadd.f32 %v6591, %v6758
      %6823 = vst.msk [vmem:[%s305] sm:$0xff] %vm306, %v6791
      %6824 = vst.msk [vmem:[%s305 + $0x8] sm:$0xff] %vm306, %v6792
      %6825 = vst.msk [vmem:[%s305 + $0x10] sm:$0xff] %vm306, %v6793
      %6826 = vst.msk [vmem:[%s305 + $0x18] sm:$0xff] %vm306, %v6794
      %6827 = vst.msk [vmem:[%s305 + $0x20] sm:$0xff] %vm306, %v6795
      %6828 = vst.msk [vmem:[%s305 + $0x28] sm:$0xff] %vm306, %v6796
      %6829 = vst.msk [vmem:[%s305 + $0x30] sm:$0xff] %vm306, %v6797
      %6830 = vst.msk [vmem:[%s305 + $0x38] sm:$0xff] %vm306, %v6798
      %6831 = vst.msk [vmem:[%s305 + $0x40] sm:$0xff] %vm306, %v6799
      %6832 = vst.msk [vmem:[%s305 + $0x48] sm:$0xff] %vm306, %v6800
      %6833 = vst.msk [vmem:[%s305 + $0x50] sm:$0xff] %vm306, %v6801
      %6834 = vst.msk [vmem:[%s305 + $0x58] sm:$0xff] %vm306, %v6802
      %6835 = vst.msk [vmem:[%s305 + $0x60] sm:$0xff] %vm306, %v6803
      %6836 = vst.msk [vmem:[%s305 + $0x68] sm:$0xff] %vm306, %v6804
      %6837 = vst.msk [vmem:[%s305 + $0x70] sm:$0xff] %vm306, %v6805
      %6838 = vst.msk [vmem:[%s305 + $0x78] sm:$0xff] %vm306, %v6806
      %6839 = vst.msk [vmem:[%s305 + $0x80] sm:$0xff] %vm306, %v6807
      %6840 = vst.msk [vmem:[%s305 + $0x88] sm:$0xff] %vm306, %v6808
      %6841 = vst.msk [vmem:[%s305 + $0x90] sm:$0xff] %vm306, %v6809
      %6842 = vst.msk [vmem:[%s305 + $0x98] sm:$0xff] %vm306, %v6810
      %6843 = vst.msk [vmem:[%s305 + $0xa0] sm:$0xff] %vm306, %v6811
      %6844 = vst.msk [vmem:[%s305 + $0xa8] sm:$0xff] %vm306, %v6812
      %6845 = vst.msk [vmem:[%s305 + $0xb0] sm:$0xff] %vm306, %v6813
      %6846 = vst.msk [vmem:[%s305 + $0xb8] sm:$0xff] %vm306, %v6814
      %6847 = vst.msk [vmem:[%s305 + $0xc0] sm:$0xff] %vm306, %v6815
      %6848 = vst.msk [vmem:[%s305 + $0xc8] sm:$0xff] %vm306, %v6816
      %6849 = vst.msk [vmem:[%s305 + $0xd0] sm:$0xff] %vm306, %v6817
      %6850 = vst.msk [vmem:[%s305 + $0xd8] sm:$0xff] %vm306, %v6818
      %6851 = vst.msk [vmem:[%s305 + $0xe0] sm:$0xff] %vm306, %v6819
      %6852 = vst.msk [vmem:[%s305 + $0xe8] sm:$0xff] %vm306, %v6820
      %6853 = vst.msk [vmem:[%s305 + $0xf0] sm:$0xff] %vm306, %v6821
      %6854 = vst.msk [vmem:[%s305 + $0xf8] sm:$0xff] %vm306, %v6822
      %p6855 = scmp.lt.s32.totalorder %s19, 1
      %s6856 = scalar_select %p6855, %s19, 1
      %s6857 = smul.addr %s6856, 32
      %s6858 = smul.addr %s6857, 8
      %s6859 = scalar_lea.vmem %s8, %s6858
      // Predicated region
      $region53: #{tpu_custom_call.1} parent=51 // pred_check
        %p6860 = pneg %p210
      $region54: #{tpu_custom_call.1} parent=51 // pred_check_branch
        %6862 = sbr.rel (%p6860) target = $region56
      $region55: #{tpu_custom_call.1} parent=51 // pred_region
        _
      $region56: #{tpu_custom_call.1} parent=51 // pred_fallthru
        _
    $region52: #{tpu_custom_call.1} parent=5 // pred_fallthru
      _
    %p6863 = scmp.le.s32.totalorder 2, %s14
    // Predicated region
    $region57: #{tpu_custom_call.1} parent=5 // pred_check
      %p6864 = pneg %p6863
    $region58: #{tpu_custom_call.1} parent=5 // pred_check_branch
      %6866 = sbr.rel (%p6864) target = $region60
    $region59: #{tpu_custom_call.1} parent=5 // pred_region
      %s6867 = ssub.s32 %s14, 2
      // Predicated region
      $region61: #{tpu_custom_call.1} parent=59 // pred_check
        %p6868 = pneg %p216
      $region62: #{tpu_custom_call.1} parent=59 // pred_check_branch
        %6870 = sbr.rel (%p6868) target = $region64
      $region63: #{tpu_custom_call.1} parent=59 // pred_region
        %p6871 = scmp.lt.s32.totalorder %s20, 1
        %s6872 = scalar_select %p6871, %s20, 1
        %s6873 = smul.addr %s6872, 32
        %s6874 = smul.addr %s6873, 8
        %s6875 = scalar_lea.vmem %s8, %s6874
      $region64: #{tpu_custom_call.1} parent=59 // pred_fallthru
        _
    $region60: #{tpu_custom_call.1} parent=5 // pred_fallthru
      _
  $region6: #{tpu_custom_call.1} parent=0 // loop_footer
    %s18 = sadd.s32 1, %s14
  $region7: #{tpu_custom_call.1} parent=0 // loop_footer_branch
    %13 = sbr.rel target = $region3
  $region8: #{tpu_custom_call.1} parent=0 // loop_exit
    _

</llo_original>
